<compile_context>
chip_gen: v6e
topology: v6e:2x2x1
jax: 0.10.0
libtpu: 0.0.40
codegen_flags: <defaults>
</compile_context>

<pallas_src>
import functools

import jax
import jax.numpy as jnp
from jax.experimental import pallas as pl
from jax.experimental.pallas import tpu as pltpu

IN_FEATURES = 122 * 151          # 18422
HIDDEN = 512
OUT = 1

K_TILE = 4608                    # 18432 = 4 * 4608  ->  4-step K grid
K_PAD = ((IN_FEATURES + K_TILE - 1) // K_TILE) * K_TILE   # 18432
MAX_BATCH_TILE = 128


def _round_up(x, m):
    return (x + m - 1) // m * m


def _mlp_kernel(x_ref, w1_ref, b1_ref, w2_ref, b2_ref, w3_ref, b3_ref,
                o_ref, acc_ref):
    k = pl.program_id(1)

    @pl.when(k == 0)
    def _():
        acc_ref[...] = jnp.zeros_like(acc_ref)

    # Layer-1 partial contraction over this K tile (MXU), f32 accumulation.
    acc_ref[...] += jnp.dot(x_ref[...], w1_ref[...],
                            preferred_element_type=jnp.float32)

    @pl.when(k == pl.num_programs(1) - 1)
    def _():
        h1 = jnp.maximum(acc_ref[...] + b1_ref[...], 0.0)                      # ReLU
        h2 = jnp.maximum(jnp.dot(h1, w2_ref[...],
                                 preferred_element_type=jnp.float32)
                         + b2_ref[...], 0.0)                                   # ReLU
        logits = jnp.dot(h2, w3_ref[...],
                         preferred_element_type=jnp.float32) + b3_ref[...]
        o_ref[...] = jax.nn.sigmoid(logits).astype(o_ref.dtype)                # Sigmoid


@functools.partial(jax.jit, static_argnames=("tb",))
def _forward_impl(x, w1_p, b1, w2, b2, w3, b3, *, tb):
    """x: (B, 18422) f32, w1_p: (K_PAD, 512) f32 (pre-padded). Returns (B, 1) f32."""
    B = x.shape[0]
    B_pad = _round_up(B, tb)
    # Pad the (small) activations only: batch to the batch-tile, features to K_PAD.
    # Zero feature padding contributes 0 to the layer-1 dot.
    x_p = jnp.pad(x, ((0, B_pad - B), (0, K_PAD - IN_FEATURES)))

    grid = (B_pad // tb, K_PAD // K_TILE)

    out = pl.pallas_call(
        _mlp_kernel,
        out_shape=jax.ShapeDtypeStruct((B_pad, OUT), jnp.float32),
        grid_spec=pltpu.PrefetchScalarGridSpec(
            num_scalar_prefetch=0,
            grid=grid,
            in_specs=[
                pl.BlockSpec((tb, K_TILE), lambda b, k: (b, k)),        # x tile
                pl.BlockSpec((K_TILE, HIDDEN), lambda b, k: (k, 0)),    # W1 tile
                pl.BlockSpec((1, HIDDEN), lambda b, k: (0, 0)),         # b1 (resident)
                pl.BlockSpec((HIDDEN, HIDDEN), lambda b, k: (0, 0)),    # W2 (resident)
                pl.BlockSpec((1, HIDDEN), lambda b, k: (0, 0)),         # b2 (resident)
                pl.BlockSpec((HIDDEN, OUT), lambda b, k: (0, 0)),       # W3 (full dims)
                pl.BlockSpec((1, OUT), lambda b, k: (0, 0)),            # b3
            ],
            out_specs=pl.BlockSpec((tb, OUT), lambda b, k: (b, 0)),
            scratch_shapes=[pltpu.VMEM((tb, HIDDEN), jnp.float32)],
        ),
        compiler_params=pltpu.CompilerParams(
            dimension_semantics=("parallel", "arbitrary"),
            vmem_limit_bytes=40 << 20,   # safe on v7x (64 MiB phys), above v5e 16 MiB default
        ),
    )(x_p, w1_p, b1, w2, b2, w3, b3)

    return out[:B]


def neural_network_forward(x, params):
    """params = prepare_params(...) output (W1 pre-padded). x: (B, 18422) -> (B, 1)."""
    B = x.shape[0]
    tb = min(_round_up(B, 8), MAX_BATCH_TILE)     # >= 8 rows/tile (f32 sublane minimum)
    return _forward_impl(x, *params, tb=tb)


def init_params(key):
    """PyTorch nn.Linear default init: U(-1/sqrt(fan_in), +1/sqrt(fan_in))."""
    ks = jax.random.split(key, 6)

    def lin(kw, kb, fan_in, fan_out):
        bound = 1.0 / jnp.sqrt(fan_in)
        w = jax.random.uniform(kw, (fan_in, fan_out), jnp.float32, -bound, bound)
        b = jax.random.uniform(kb, (1, fan_out), jnp.float32, -bound, bound)
        return w, b

    w1, b1 = lin(ks[0], ks[1], IN_FEATURES, HIDDEN)
    w2, b2 = lin(ks[2], ks[3], HIDDEN, HIDDEN)
    w3, b3 = lin(ks[4], ks[5], HIDDEN, OUT)
    return w1, b1, w2, b2, w3, b3


def prepare_params(w1, b1, w2, b2, w3, b3):
    """One-time padding of W1 to (K_PAD, 512) so the per-call path never re-pads ~37.7 MB."""
    w1_p = jnp.pad(w1, ((0, K_PAD - IN_FEATURES), (0, 0)))
    return (jax.block_until_ready(w1_p), b1, w2, b2, w3, b3)


def reference_forward(x, w1, b1, w2, b2, w3, b3):
    h1 = jnp.maximum(x @ w1 + b1, 0.0)
    h2 = jnp.maximum(h1 @ w2 + b2, 0.0)
    return jax.nn.sigmoid(h2 @ w3 + b3)


if __name__ == "__main__":
    key = jax.random.PRNGKey(0)
    k_x, k_p = jax.random.split(key)

    B = 8  # small batch (multiple of 8 sublanes)
    x = jax.random.normal(k_x, (B, IN_FEATURES), jnp.float32)

    raw_params = init_params(k_p)
    params = prepare_params(*raw_params)   # W1 padded once, outside the jitted forward

    out = neural_network_forward(x, params)
    out = jax.block_until_ready(out)

    ref = reference_forward(x, *raw_params)
    assert out.shape == (B, OUT)
    assert jnp.allclose(out, ref, atol=1e-5, rtol=1e-5)

    print("KERNEL_OK")
</pallas_src>

<mosaic_0001>
module attributes {stable_mosaic.version = 11 : i64} {
  func.func @_mlp_kernel(%arg0: i32, %arg1: i32, %arg2: memref<8x4608xf32, #tpu.memory_space<vmem>>, %arg3: memref<4608x512xf32, #tpu.memory_space<vmem>>, %arg4: memref<1x512xf32, #tpu.memory_space<vmem>>, %arg5: memref<512x512xf32, #tpu.memory_space<vmem>>, %arg6: memref<1x512xf32, #tpu.memory_space<vmem>>, %arg7: memref<512x1xf32, #tpu.memory_space<vmem>>, %arg8: memref<1x1xf32, #tpu.memory_space<vmem>>, %arg9: memref<8x1xf32, #tpu.memory_space<vmem>>, %arg10: memref<8x512xf32, #tpu.memory_space<vmem>>) attributes {dimension_semantics = [#tpu.dimension_semantics<parallel>, #tpu.dimension_semantics<arbitrary>], iteration_bounds = array<i64: 1, 4>, scalar_prefetch = 0 : i64, scratch_operands = 1 : i64, tpu.core_type = #tpu.core_type<tc>, window_params = [{transform_indices = @transform_0, window_bounds = array<i64: 8, 4608>}, {transform_indices = @transform_1, window_bounds = array<i64: 4608, 512>}, {pipeline_mode = #tpu.pipeline_mode<synchronous>, transform_indices = @transform_2, window_bounds = array<i64: 1, 512>}, {pipeline_mode = #tpu.pipeline_mode<synchronous>, transform_indices = @transform_3, window_bounds = array<i64: 512, 512>}, {pipeline_mode = #tpu.pipeline_mode<synchronous>, transform_indices = @transform_4, window_bounds = array<i64: 1, 512>}, {pipeline_mode = #tpu.pipeline_mode<synchronous>, transform_indices = @transform_5, window_bounds = array<i64: 512, 1>}, {pipeline_mode = #tpu.pipeline_mode<synchronous>, transform_indices = @transform_6, window_bounds = array<i64: 1, 1>}, {transform_indices = @transform_7, window_bounds = array<i64: 8, 1>}]} {
    %c0_i32 = arith.constant 0 : i32
    %0 = arith.cmpi eq, %arg1, %c0_i32 : i32
    %1 = arith.extui %0 : i1 to i32
    %c0_i32_0 = arith.constant 0 : i32
    %2 = arith.cmpi ne, %1, %c0_i32_0 : i32
    scf.if %2 {
      %cst_9 = arith.constant 0.000000e+00 : f32
      %12 = vector.broadcast %cst_9 : f32 to vector<8x512xf32>
      %c0_10 = arith.constant 0 : index
      %c0_11 = arith.constant 0 : index
      %13 = vector.load %arg10[%c0_10, %c0_11] : memref<8x512xf32, #tpu.memory_space<vmem>>, vector<8x512xf32>
      tpu.vector_store %arg10[%c0_10, %c0_11], %12 {strides = array<i32>} : memref<8x512xf32, #tpu.memory_space<vmem>>, vector<8x512xf32>,
    } else {
    }
    %c0 = arith.constant 0 : index
    %c0_1 = arith.constant 0 : index
    %3 = vector.load %arg10[%c0, %c0_1] : memref<8x512xf32, #tpu.memory_space<vmem>>, vector<8x512xf32>
    %c0_2 = arith.constant 0 : index
    %c0_3 = arith.constant 0 : index
    %4 = vector.load %arg2[%c0_2, %c0_3] : memref<8x4608xf32, #tpu.memory_space<vmem>>, vector<8x4608xf32>
    %c0_4 = arith.constant 0 : index
    %c0_5 = arith.constant 0 : index
    %5 = vector.load %arg3[%c0_4, %c0_5] : memref<4608x512xf32, #tpu.memory_space<vmem>>, vector<4608x512xf32>
    %cst = arith.constant dense<0.000000e+00> : vector<8x512xf32>
    %6 = tpu.matmul %4, %5, %cst {dimension_numbers = #tpu.dot_dimension_numbers<[1], [0], [0], [1], [0, 0, 1, 1], [], []>} : vector<8x4608xf32>, vector<4608x512xf32>, vector<8x512xf32> -> vector<8x512xf32>
    %7 = arith.addf %3, %6 : vector<8x512xf32>
    %c0_6 = arith.constant 0 : index
    %c0_7 = arith.constant 0 : index
    %8 = vector.load %arg10[%c0_6, %c0_7] : memref<8x512xf32, #tpu.memory_space<vmem>>, vector<8x512xf32>
    tpu.vector_store %arg10[%c0_6, %c0_7], %7 {strides = array<i32>} : memref<8x512xf32, #tpu.memory_space<vmem>>, vector<8x512xf32>,
    %c3_i32 = arith.constant 3 : i32
    %9 = arith.cmpi eq, %arg1, %c3_i32 : i32
    %10 = arith.extui %9 : i1 to i32
    %c0_i32_8 = arith.constant 0 : i32
    %11 = arith.cmpi ne, %10, %c0_i32_8 : i32
    scf.if %11 {
      %c0_9 = arith.constant 0 : index
      %c0_10 = arith.constant 0 : index
      %12 = vector.load %arg10[%c0_9, %c0_10] : memref<8x512xf32, #tpu.memory_space<vmem>>, vector<8x512xf32>
      %c0_11 = arith.constant 0 : index
      %c0_12 = arith.constant 0 : index
      %13 = vector.load %arg4[%c0_11, %c0_12] : memref<1x512xf32, #tpu.memory_space<vmem>>, vector<1x512xf32>
      %14 = vector.broadcast %13 : vector<1x512xf32> to vector<8x512xf32>
      %15 = arith.addf %12, %14 : vector<8x512xf32>
      %cst_13 = arith.constant 0.000000e+00 : f32
      %16 = vector.broadcast %cst_13 : f32 to vector<8x512xf32>
      %17 = arith.maximumf %15, %16 : vector<8x512xf32>
      %c0_14 = arith.constant 0 : index
      %c0_15 = arith.constant 0 : index
      %18 = vector.load %arg5[%c0_14, %c0_15] : memref<512x512xf32, #tpu.memory_space<vmem>>, vector<512x512xf32>
      %cst_16 = arith.constant dense<0.000000e+00> : vector<8x512xf32>
      %19 = tpu.matmul %17, %18, %cst_16 {dimension_numbers = #tpu.dot_dimension_numbers<[1], [0], [0], [1], [0, 0, 1, 1], [], []>} : vector<8x512xf32>, vector<512x512xf32>, vector<8x512xf32> -> vector<8x512xf32>
      %c0_17 = arith.constant 0 : index
      %c0_18 = arith.constant 0 : index
      %20 = vector.load %arg6[%c0_17, %c0_18] : memref<1x512xf32, #tpu.memory_space<vmem>>, vector<1x512xf32>
      %21 = vector.broadcast %20 : vector<1x512xf32> to vector<8x512xf32>
      %22 = arith.addf %19, %21 : vector<8x512xf32>
      %cst_19 = arith.constant 0.000000e+00 : f32
      %23 = vector.broadcast %cst_19 : f32 to vector<8x512xf32>
      %24 = arith.maximumf %22, %23 : vector<8x512xf32>
      %c0_20 = arith.constant 0 : index
      %c0_21 = arith.constant 0 : index
      %25 = vector.load %arg7[%c0_20, %c0_21] : memref<512x1xf32, #tpu.memory_space<vmem>>, vector<512x1xf32>
      %cst_22 = arith.constant dense<0.000000e+00> : vector<8x1xf32>
      %26 = tpu.matmul %24, %25, %cst_22 {dimension_numbers = #tpu.dot_dimension_numbers<[1], [0], [0], [1], [0, 0, 1, 1], [], []>} : vector<8x512xf32>, vector<512x1xf32>, vector<8x1xf32> -> vector<8x1xf32>
      %c0_23 = arith.constant 0 : index
      %c0_24 = arith.constant 0 : index
      %27 = vector.load %arg8[%c0_23, %c0_24] : memref<1x1xf32, #tpu.memory_space<vmem>>, vector<1x1xf32>
      %28 = vector.broadcast %27 : vector<1x1xf32> to vector<8x1xf32>
      %29 = arith.addf %26, %28 : vector<8x1xf32>
      %30 = arith.negf %29 : vector<8x1xf32>
      %31 = math.exp %30 : vector<8x1xf32>
      %cst_25 = arith.constant 1.000000e+00 : f32
      %32 = vector.broadcast %cst_25 : f32 to vector<8x1xf32>
      %33 = arith.addf %32, %31 : vector<8x1xf32>
      %34 = arith.divf %32, %33 : vector<8x1xf32>
      %c0_26 = arith.constant 0 : index
      %c0_27 = arith.constant 0 : index
      %35 = vector.load %arg9[%c0_26, %c0_27] : memref<8x1xf32, #tpu.memory_space<vmem>>, vector<8x1xf32>
      tpu.vector_store %arg9[%c0_26, %c0_27], %34 {strides = array<i32>} : memref<8x1xf32, #tpu.memory_space<vmem>>, vector<8x1xf32>,
    } else {
    }
    return
  }
  func.func @transform_0(%arg0: i32, %arg1: i32) -> (i32, i32) {
    %c0_i32 = arith.constant 0 : i32
    return %arg0, %arg1 : i32, i32
  }
  func.func @transform_1(%arg0: i32, %arg1: i32) -> (i32, i32) {
    %c0_i32 = arith.constant 0 : i32
    %c0_i32_0 = arith.constant 0 : i32
    return %arg1, %c0_i32 : i32, i32
  }
  func.func @transform_2(%arg0: i32, %arg1: i32) -> (i32, i32) {
    %c0_i32 = arith.constant 0 : i32
    %c0_i32_0 = arith.constant 0 : i32
    %c0_i32_1 = arith.constant 0 : i32
    return %c0_i32, %c0_i32_0 : i32, i32
  }
  func.func @transform_3(%arg0: i32, %arg1: i32) -> (i32, i32) {
    %c0_i32 = arith.constant 0 : i32
    %c0_i32_0 = arith.constant 0 : i32
    %c0_i32_1 = arith.constant 0 : i32
    return %c0_i32, %c0_i32_0 : i32, i32
  }
  func.func @transform_4(%arg0: i32, %arg1: i32) -> (i32, i32) {
    %c0_i32 = arith.constant 0 : i32
    %c0_i32_0 = arith.constant 0 : i32
    %c0_i32_1 = arith.constant 0 : i32
    return %c0_i32, %c0_i32_0 : i32, i32
  }
  func.func @transform_5(%arg0: i32, %arg1: i32) -> (i32, i32) {
    %c0_i32 = arith.constant 0 : i32
    %c0_i32_0 = arith.constant 0 : i32
    %c0_i32_1 = arith.constant 0 : i32
    return %c0_i32, %c0_i32_0 : i32, i32
  }
  func.func @transform_6(%arg0: i32, %arg1: i32) -> (i32, i32) {
    %c0_i32 = arith.constant 0 : i32
    %c0_i32_0 = arith.constant 0 : i32
    %c0_i32_1 = arith.constant 0 : i32
    return %c0_i32, %c0_i32_0 : i32, i32
  }
  func.func @transform_7(%arg0: i32, %arg1: i32) -> (i32, i32) {
    %c0_i32 = arith.constant 0 : i32
    %c0_i32_0 = arith.constant 0 : i32
    return %arg0, %c0_i32 : i32, i32
  }
}

</mosaic_0001>

<llo_original>
// kernel: _forward_impl.1
$region0: #{_forward_impl.1}
  #allocation0 [shape = 'u32[]', space=smem, size = 0x4, offset = 0x4, fixed_abs, tag = 'smem constant byte address 0x4 - core index']
  #allocation1 [shape = 'u32[144,128]{1,0:T(1,128)}', space=vmem, size = 0x12000, scoped, tag = 'internal scratch']
  #allocation2 [shape = 'f32[8,512]{1,0:T(8,128)}', space=vmem, size = 0x4000, scoped, tag = 'scratch operand']
  #allocation3 [shape = 'f32[1,1]{1,0:T(1,128)S(1)}', space=vmem, size = 0x200, scoped, tag = 'scoped memory for _forward_impl.1']
  %s0 = inlined_call_operand.vmem [shape: f32[8,18432], index: 0, kind: input, shape index: {}]
  %s1 = inlined_call_operand.hbm [shape: f32[18432,512], index: 1, kind: input, shape index: {}]
  %s2 = inlined_call_operand.hbm [shape: f32[1,512], index: 2, kind: input, shape index: {}]
  %s3 = inlined_call_operand.hbm [shape: f32[512,512], index: 3, kind: input, shape index: {}]
  %s4 = inlined_call_operand.hbm [shape: f32[1,512], index: 4, kind: input, shape index: {}]
  %s5 = inlined_call_operand.vmem [shape: f32[512,1], index: 5, kind: input, shape index: {}]
  %s6 = inlined_call_operand.<no memory space> [shape: f32[1,1], index: 6, kind: input, shape index: {}]
  %s7 = inlined_call_operand.vmem [shape: f32[8,1], index: 7, kind: output, shape index: {}]
  %s8 = sld [smem:[#allocation0]]
  $region85: #{_forward_impl.1} parent=0
    _
  %s10 = ssub.s32 1, %s8
  %s11 = scalar_select 0, %s10, %s8
  %v12 = vstv %s6
  %13 = vst [vmem:[#allocation3] sm:$0x1] %v12
  $region1: #{_forward_impl.1} parent=0
    #allocation4 [shape = 'u8[18874368]{0}', space=vmem, size = 0x1200000, scoped, tag = 'input window, operand 1']
    #allocation5 [shape = 's32[2]{0}', space=sflag, size = 0x8, scoped, tag = 'scoped memory for _forward_impl.1']
    #allocation6 [shape = 'u8[2048]{0}', space=vmem, size = 0x800, scoped, tag = 'input window, operand 2, single buffered']
    #allocation7 [shape = 's32[1]{0}', space=sflag, size = 0x4, scoped, tag = 'scoped memory for _forward_impl.1']
    #allocation8 [shape = 'u8[1048576]{0}', space=vmem, size = 0x100000, scoped, tag = 'input window, operand 3, single buffered']
    #allocation9 [shape = 'u8[2048]{0}', space=vmem, size = 0x800, scoped, tag = 'input window, operand 4, single buffered']
    #allocation10 [shape = 's32[1]{0}', space=sflag, size = 0x4, scoped, tag = 'scoped memory for _forward_impl.1']
    %14 = vsyncpa [#allocation5], 0
    %s15 = scalar_lea.sflag [#allocation5], 1
    %16 = vsyncpa %s15, 0
    %17 = vsyncpa [#allocation7], 0
    %18 = vsyncpa [#allocation10], 0
    loop: start=0, step=1, limit=6
    $region2: #{_forward_impl.1} parent=1 // loop_pre_header
      _
    $region3: #{_forward_impl.1} parent=1 // loop_header
      %s20 = sphi 0, %s24
      %p21 = scmp.ge.s32.totalorder %s20, 6
      %s27 = sphi 0, %s39
      %s28 = sphi 0, %s35
      %s29 = sphi 0, %s27
      %s30 = sphi 0, %s28
      %s31 = sphi 0, %s29
      %s32 = sphi 0, %s30
      %s44 = sphi 0, %s46
      %s47 = sphi 0, %s44
      %s48 = sphi 0, %s47
      %s64 = sphi 0, %s48
      %s70 = sphi 0, %s72
      %s73 = sphi 0, %s70
      %s74 = sphi 0, %s73
      %s90 = sphi 0, %s74
      %s94 = sphi 0, %s94
      %s96 = sphi 0, %s94
      %s97 = sphi 0, %s96
      %s111 = sphi 0, %s97
      %s115 = sphi 0, %s115
      %s117 = sphi 0, %s115
      %s118 = sphi 0, %s117
      %s132 = sphi 0, %s118
      %s136 = sphi 0, %s136
      %s138 = sphi 0, %s136
      %s139 = sphi 0, %s138
      %s153 = sphi 0, %s139
      %s157 = sphi 0, %s157
      %s159 = sphi 0, %s157
      %s160 = sphi 0, %s159
      %s174 = sphi 0, %s160
      %s178 = sphi 0, %s178
      %s180 = sphi 0, %s178
      %s181 = sphi 0, %s180
      %s195 = sphi 0, %s181
      %s201 = sphi 0, %s203
      %s204 = sphi 0, %s201
      %s205 = sphi 0, %s204
      %s221 = sphi 0, %s205
    $region4: #{_forward_impl.1} parent=1 // loop_header_branch
      %23 = sbr.rel (%p21) target = $region8
    $region5: #{_forward_impl.1} parent=1 // loop_body
      %s25 = ssub.s32 %s20, 1
      %s26 = ssub.s32 %s20, 2
      %s33 = sadd.s32 1, %s28
      %p34 = scmp.ge.s32.totalorder %s33, 4
      %s35 = scalar_select %p34, 0, %s33
      %s36 = sadd.s32 1, %s27
      %s37 = scalar_select %p34, %s36, %s27
      %p38 = scmp.ge.s32.totalorder %s37, 1
      %s39 = scalar_select %p38, 0, %s37
      %s40 = ssub.s32 %s27, %s39
      %s41 = ssub.s32 %s28, %s35
      %s42 = sor.u32 %s40, %s41
      %p43 = scmp.eq.s32.totalorder %s42, 0
      %s45 = sadd.s32 %s44, 1
      %s46 = scalar_select %p43, %s44, %s45
      %p49 = pneg %p43
      %p50 = scmp.eq.s32.totalorder %s20, 3
      %p51 = por %p49, %p50
      %p52 = scmp.ne.s32.totalorder %s44, %s47
      %p53 = scmp.eq.s32.totalorder %s20, 0
      %p54 = por %p52, %p53
      %p55 = scmp.ne.s32.totalorder %s44, %s47
      %p56 = scmp.eq.s32.totalorder %s25, 3
      %p57 = por %p55, %p56
      %p58 = scmp.ne.s32.totalorder %s47, %s48
      %p59 = scmp.eq.s32.totalorder %s25, 0
      %p60 = por %p58, %p59
      %p61 = scmp.ne.s32.totalorder %s47, %s48
      %p62 = scmp.eq.s32.totalorder %s26, 3
      %p63 = por %p61, %p62
      %p65 = scmp.ne.s32.totalorder %s48, %s64
      %p66 = scmp.eq.s32.totalorder %s26, 0
      %p67 = por %p65, %p66
      %s68 = ssub.s32 %s28, %s35
      %p69 = scmp.eq.s32.totalorder %s68, 0
      %s71 = sadd.s32 %s70, 1
      %s72 = scalar_select %p69, %s70, %s71
      %p75 = pneg %p69
      %p76 = scmp.eq.s32.totalorder %s20, 3
      %p77 = por %p75, %p76
      %p78 = scmp.ne.s32.totalorder %s70, %s73
      %p79 = scmp.eq.s32.totalorder %s20, 0
      %p80 = por %p78, %p79
      %p81 = scmp.ne.s32.totalorder %s70, %s73
      %p82 = scmp.eq.s32.totalorder %s25, 3
      %p83 = por %p81, %p82
      %p84 = scmp.ne.s32.totalorder %s73, %s74
      %p85 = scmp.eq.s32.totalorder %s25, 0
      %p86 = por %p84, %p85
      %p87 = scmp.ne.s32.totalorder %s73, %s74
      %p88 = scmp.eq.s32.totalorder %s26, 3
      %p89 = por %p87, %p88
      %p91 = scmp.ne.s32.totalorder %s74, %s90
      %p92 = scmp.eq.s32.totalorder %s26, 0
      %p93 = por %p91, %p92
      %s95 = sadd.s32 %s94, 1
      %p98 = scmp.eq.s32.totalorder %s20, 3
      %p99 = scmp.ne.s32.totalorder %s94, %s96
      %p100 = scmp.eq.s32.totalorder %s20, 0
      %p101 = por %p99, %p100
      %p102 = scmp.ne.s32.totalorder %s94, %s96
      %p103 = scmp.eq.s32.totalorder %s25, 3
      %p104 = por %p102, %p103
      %p105 = scmp.ne.s32.totalorder %s96, %s97
      %p106 = scmp.eq.s32.totalorder %s25, 0
      %p107 = por %p105, %p106
      %p108 = scmp.ne.s32.totalorder %s96, %s97
      %p109 = scmp.eq.s32.totalorder %s26, 3
      %p110 = por %p108, %p109
      %p112 = scmp.ne.s32.totalorder %s97, %s111
      %p113 = scmp.eq.s32.totalorder %s26, 0
      %p114 = por %p112, %p113
      %s116 = sadd.s32 %s115, 1
      %p119 = scmp.eq.s32.totalorder %s20, 3
      %p120 = scmp.ne.s32.totalorder %s115, %s117
      %p121 = scmp.eq.s32.totalorder %s20, 0
      %p122 = por %p120, %p121
      %p123 = scmp.ne.s32.totalorder %s115, %s117
      %p124 = scmp.eq.s32.totalorder %s25, 3
      %p125 = por %p123, %p124
      %p126 = scmp.ne.s32.totalorder %s117, %s118
      %p127 = scmp.eq.s32.totalorder %s25, 0
      %p128 = por %p126, %p127
      %p129 = scmp.ne.s32.totalorder %s117, %s118
      %p130 = scmp.eq.s32.totalorder %s26, 3
      %p131 = por %p129, %p130
      %p133 = scmp.ne.s32.totalorder %s118, %s132
      %p134 = scmp.eq.s32.totalorder %s26, 0
      %p135 = por %p133, %p134
      %s137 = sadd.s32 %s136, 1
      %p140 = scmp.eq.s32.totalorder %s20, 3
      %p141 = scmp.ne.s32.totalorder %s136, %s138
      %p142 = scmp.eq.s32.totalorder %s20, 0
      %p143 = por %p141, %p142
      %p144 = scmp.ne.s32.totalorder %s136, %s138
      %p145 = scmp.eq.s32.totalorder %s25, 3
      %p146 = por %p144, %p145
      %p147 = scmp.ne.s32.totalorder %s138, %s139
      %p148 = scmp.eq.s32.totalorder %s25, 0
      %p149 = por %p147, %p148
      %p150 = scmp.ne.s32.totalorder %s138, %s139
      %p151 = scmp.eq.s32.totalorder %s26, 3
      %p152 = por %p150, %p151
      %p154 = scmp.ne.s32.totalorder %s139, %s153
      %p155 = scmp.eq.s32.totalorder %s26, 0
      %p156 = por %p154, %p155
      %s158 = sadd.s32 %s157, 1
      %p161 = scmp.eq.s32.totalorder %s20, 3
      %p162 = scmp.ne.s32.totalorder %s157, %s159
      %p163 = scmp.eq.s32.totalorder %s20, 0
      %p164 = por %p162, %p163
      %p165 = scmp.ne.s32.totalorder %s157, %s159
      %p166 = scmp.eq.s32.totalorder %s25, 3
      %p167 = por %p165, %p166
      %p168 = scmp.ne.s32.totalorder %s159, %s160
      %p169 = scmp.eq.s32.totalorder %s25, 0
      %p170 = por %p168, %p169
      %p171 = scmp.ne.s32.totalorder %s159, %s160
      %p172 = scmp.eq.s32.totalorder %s26, 3
      %p173 = por %p171, %p172
      %p175 = scmp.ne.s32.totalorder %s160, %s174
      %p176 = scmp.eq.s32.totalorder %s26, 0
      %p177 = por %p175, %p176
      %s179 = sadd.s32 %s178, 1
      %p182 = scmp.eq.s32.totalorder %s20, 3
      %p183 = scmp.ne.s32.totalorder %s178, %s180
      %p184 = scmp.eq.s32.totalorder %s20, 0
      %p185 = por %p183, %p184
      %p186 = scmp.ne.s32.totalorder %s178, %s180
      %p187 = scmp.eq.s32.totalorder %s25, 3
      %p188 = por %p186, %p187
      %p189 = scmp.ne.s32.totalorder %s180, %s181
      %p190 = scmp.eq.s32.totalorder %s25, 0
      %p191 = por %p189, %p190
      %p192 = scmp.ne.s32.totalorder %s180, %s181
      %p193 = scmp.eq.s32.totalorder %s26, 3
      %p194 = por %p192, %p193
      %p196 = scmp.ne.s32.totalorder %s181, %s195
      %p197 = scmp.eq.s32.totalorder %s26, 0
      %p198 = por %p196, %p197
      %s199 = ssub.s32 %s27, %s39
      %p200 = scmp.eq.s32.totalorder %s199, 0
      %s202 = sadd.s32 %s201, 1
      %s203 = scalar_select %p200, %s201, %s202
      %p206 = pneg %p200
      %p207 = scmp.eq.s32.totalorder %s20, 3
      %p208 = por %p206, %p207
      %p209 = scmp.ne.s32.totalorder %s201, %s204
      %p210 = scmp.eq.s32.totalorder %s20, 0
      %p211 = por %p209, %p210
      %p212 = scmp.ne.s32.totalorder %s201, %s204
      %p213 = scmp.eq.s32.totalorder %s25, 3
      %p214 = por %p212, %p213
      %p215 = scmp.ne.s32.totalorder %s204, %s205
      %p216 = scmp.eq.s32.totalorder %s25, 0
      %p217 = por %p215, %p216
      %p218 = scmp.ne.s32.totalorder %s204, %s205
      %p219 = scmp.eq.s32.totalorder %s26, 3
      %p220 = por %p218, %p219
      %p222 = scmp.ne.s32.totalorder %s205, %s221
      %p223 = scmp.eq.s32.totalorder %s26, 0
      %p224 = por %p222, %p223
      %p225 = scmp.le.s32.totalorder 1, %s20
      %p226 = scmp.lt.s32.totalorder %s20, 5
      %p227 = pnand %p225, %p226
      %p228 = pneg %p227
      // Predicated region
      $region9: #{_forward_impl.1} parent=5 // pred_check
        _
      $region10: #{_forward_impl.1} parent=5 // pred_check_branch
        %230 = sbr.rel (%p227) target = $region12
      $region11: #{_forward_impl.1} parent=5 // pred_region
        %s231 = ssub.s32 %s20, 1
        // Predicated region
        $region13: #{_forward_impl.1} parent=11 // pred_check
          %p232 = pneg %p107
        $region14: #{_forward_impl.1} parent=11 // pred_check_branch
          %234 = sbr.rel (%p232) target = $region16
        $region15: #{_forward_impl.1} parent=11 // pred_region
          %s236 = ssub.s32 64, 64
          %237 = vsyncadd [#allocation7], %s236
          %s239 = sshll.u32 [#allocation6], 4
          %s240 = int_to_ptr.vmem [resolvable:$true] %s239
          %242 = dma.hbm_to_vmem [thread:$0]  %s2, 64, %s240, [#allocation7]
        $region16: #{_forward_impl.1} parent=11 // pred_fallthru
          _
        // Predicated region
        $region17: #{_forward_impl.1} parent=11 // pred_check
          %p243 = pneg %p128
        $region18: #{_forward_impl.1} parent=11 // pred_check_branch
          %245 = sbr.rel (%p243) target = $region20
        $region19: #{_forward_impl.1} parent=11 // pred_region
          %s247 = ssub.s32 32768, 32768
          %248 = vsyncadd [#allocation7], %s247
          %s249 = sshll.u32 [#allocation8], 4
          %s250 = int_to_ptr.vmem [resolvable:$true] %s249
          %255 = dma.hbm_to_vmem [thread:$0]  %s3, 32768, %s250, [#allocation7], 512, 512, 32
        $region20: #{_forward_impl.1} parent=11 // pred_fallthru
          _
        // Predicated region
        $region21: #{_forward_impl.1} parent=11 // pred_check
          %p256 = pneg %p149
        $region22: #{_forward_impl.1} parent=11 // pred_check_branch
          %258 = sbr.rel (%p256) target = $region24
        $region23: #{_forward_impl.1} parent=11 // pred_region
          %s260 = ssub.s32 64, 64
          %261 = vsyncadd [#allocation10], %s260
          %s263 = sshll.u32 [#allocation9], 4
          %s264 = int_to_ptr.vmem [resolvable:$true] %s263
          %266 = dma.hbm_to_vmem [thread:$0]  %s4, 64, %s264, [#allocation10]
        $region24: #{_forward_impl.1} parent=11 // pred_fallthru
          _
        // Predicated region
        $region25: #{_forward_impl.1} parent=11 // pred_check
          %p267 = pneg %p170
        $region26: #{_forward_impl.1} parent=11 // pred_check_branch
          %269 = sbr.rel (%p267) target = $region28
        $region27: #{_forward_impl.1} parent=11 // pred_region
          _
        $region28: #{_forward_impl.1} parent=11 // pred_fallthru
          _
        // Predicated region
        $region29: #{_forward_impl.1} parent=11 // pred_check
          %p270 = pneg %p191
        $region30: #{_forward_impl.1} parent=11 // pred_check_branch
          %272 = sbr.rel (%p270) target = $region32
        $region31: #{_forward_impl.1} parent=11 // pred_region
          _
        $region32: #{_forward_impl.1} parent=11 // pred_fallthru
          _
      $region12: #{_forward_impl.1} parent=5 // pred_fallthru
        _
      %p273 = scmp.lt.s32.totalorder %s20, 4
      // Predicated region
      $region33: #{_forward_impl.1} parent=5 // pred_check
        %p274 = pneg %p273
      $region34: #{_forward_impl.1} parent=5 // pred_check_branch
        %276 = sbr.rel (%p274) target = $region36
      $region35: #{_forward_impl.1} parent=5 // pred_region
        // Predicated region
        $region37: #{_forward_impl.1} parent=35 // pred_check
          %p277 = pneg %p54
        $region38: #{_forward_impl.1} parent=35 // pred_check_branch
          %279 = sbr.rel (%p277) target = $region40
        $region39: #{_forward_impl.1} parent=35 // pred_region
          %s280 = smul.u32 36, %s28
          %p281 = scmp.lt.s32.totalorder %s27, 0
          %s282 = scalar_select %p281, %s27, 0
          %p283 = scmp.lt.s32.totalorder %s280, 143
          %s284 = scalar_select %p283, %s280, 143
          %s285 = smul.addr %s282, 144
          %s286 = sadd.s32 %s284, %s285
          %s287 = smul.addr %s286, 8
          %s288 = scalar_lea.vmem %s0, %s287
          %s289 = smul.u32 36, %s28
        $region40: #{_forward_impl.1} parent=35 // pred_fallthru
          _
        // Predicated region
        $region41: #{_forward_impl.1} parent=35 // pred_check
          %p290 = pneg %p80
        $region42: #{_forward_impl.1} parent=35 // pred_check_branch
          %292 = sbr.rel (%p290) target = $region44
        $region43: #{_forward_impl.1} parent=35 // pred_region
          %s293 = sand.u32 %s70, 1
          %s294 = scalar_lea.sflag [#allocation5], %s293
          %s295 = sand.u32 %s70, 1
          %s296 = smul.addr %s295, 18432
          %s297 = scalar_lea.vmem [#allocation4], %s296
          %s298 = smul.u32 576, %s28
          %s300 = ssub.s32 294912, 294912
          %301 = vsyncadd %s294, %s300
          %s302 = smul.addr %s298, 4
          %s303 = smul.addr %s302, 128
          %s304 = scalar_lea.hbm %s1, %s303
          %s305 = sshll.u32 %s297, 4
          %s306 = int_to_ptr.vmem [resolvable:$true] %s305
          %311 = dma.hbm_to_vmem [thread:$0]  %s304, 294912, %s306, %s294, 512, 512, 32
        $region44: #{_forward_impl.1} parent=35 // pred_fallthru
          _
      $region36: #{_forward_impl.1} parent=5 // pred_fallthru
        _
      %p312 = scmp.le.s32.totalorder 1, %s20
      %p313 = scmp.lt.s32.totalorder %s20, 5
      %p314 = pnand %p312, %p313
      %p315 = pneg %p314
      // Predicated region
      $region45: #{_forward_impl.1} parent=5 // pred_check
        _
      $region46: #{_forward_impl.1} parent=5 // pred_check_branch
        %317 = sbr.rel (%p314) target = $region48
      $region47: #{_forward_impl.1} parent=5 // pred_region
        %s318 = ssub.s32 %s20, 1
        %s319 = sand.u32 %s73, 1
        %s320 = scalar_lea.sflag [#allocation5], %s319
        %s321 = sand.u32 %s73, 1
        %s322 = smul.addr %s321, 18432
        %s323 = scalar_lea.vmem [#allocation4], %s322
        // Predicated region
        $region49: #{_forward_impl.1} parent=47 // pred_check
          %p324 = pneg %p86
        $region50: #{_forward_impl.1} parent=47 // pred_check_branch
          %326 = sbr.rel (%p324) target = $region52
        $region51: #{_forward_impl.1} parent=47 // pred_region
          %327 = dma.done %s320, 294912
        $region52: #{_forward_impl.1} parent=47 // pred_fallthru
          _
        // Predicated region
        $region53: #{_forward_impl.1} parent=47 // pred_check
          %p328 = pneg %p107
        $region54: #{_forward_impl.1} parent=47 // pred_check_branch
          %330 = sbr.rel (%p328) target = $region56
        $region55: #{_forward_impl.1} parent=47 // pred_region
          %331 = dma.done [#allocation7], 64
        $region56: #{_forward_impl.1} parent=47 // pred_fallthru
          _
        // Predicated region
        $region57: #{_forward_impl.1} parent=47 // pred_check
          %p332 = pneg %p128
        $region58: #{_forward_impl.1} parent=47 // pred_check_branch
          %334 = sbr.rel (%p332) target = $region60
        $region59: #{_forward_impl.1} parent=47 // pred_region
          %335 = dma.done [#allocation7], 32768
        $region60: #{_forward_impl.1} parent=47 // pred_fallthru
          _
        // Predicated region
        $region61: #{_forward_impl.1} parent=47 // pred_check
          %p336 = pneg %p149
        $region62: #{_forward_impl.1} parent=47 // pred_check_branch
          %338 = sbr.rel (%p336) target = $region64
        $region63: #{_forward_impl.1} parent=47 // pred_region
          %339 = dma.done [#allocation10], 64
        $region64: #{_forward_impl.1} parent=47 // pred_fallthru
          _
        %s340 = smul.u32 36, %s30
        %p341 = scmp.lt.s32.totalorder %s29, 0
        %s342 = scalar_select %p341, %s29, 0
        %p343 = scmp.lt.s32.totalorder %s340, 143
        %s344 = scalar_select %p343, %s340, 143
        %s345 = smul.addr %s342, 144
        %s346 = sadd.s32 %s344, %s345
        %s347 = smul.addr %s346, 8
        %s348 = scalar_lea.vmem %s0, %s347
        %p349 = pneg %p60
        %p350 = pneg %p57
        %s351 = sand.u32 %s73, 1
        %s352 = scalar_lea.sflag [#allocation5], %s351
        %s353 = sand.u32 %s73, 1
        %s354 = smul.addr %s353, 18432
        %s355 = scalar_lea.vmem [#allocation4], %s354
        %p356 = pneg %p86
        %p357 = pneg %p83
        %p358 = pneg %p107
        %p359 = pneg %p104
        %p360 = pneg %p128
        %p361 = pneg %p125
        %p362 = pneg %p149
        %p363 = pneg %p146
        %p364 = pneg %p170
        %p365 = pneg %p167
        %p366 = pneg %p191
        %p367 = pneg %p188
        %p368 = pneg %p217
        %p369 = pneg %p214
        %p370 = scmp.lt.s32.totalorder %s29, 0
        %s371 = scalar_select %p370, %s29, 0
        %s372 = smul.addr %s371, 8
        %s373 = scalar_lea.vmem %s7, %s372
        %s374 = smul.u32 36, %s30
        %p375 = scmp.lt.s32.totalorder %s29, 0
        %s376 = scalar_select %p375, %s29, 0
        %p377 = scmp.lt.s32.totalorder %s374, 143
        %s378 = scalar_select %p377, %s374, 143
        %s379 = smul.addr %s376, 144
        %s380 = sadd.s32 %s378, %s379
        %s381 = smul.addr %s380, 8
        %s382 = scalar_lea.vmem %s0, %s381
        %s383 = smul.u32 36, %s30
        %s384 = smul.u32 576, %s30
        %p385 = scmp.lt.s32.totalorder %s29, 0
        %s386 = scalar_select %p385, %s29, 0
        %s387 = smul.addr %s386, 8
        %s388 = scalar_lea.vmem %s7, %s387
        %p389 = scmp.eq.s32.totalorder %s30, 0
        // Predicated region
        $region65: #{_forward_impl.1} parent=47 // pred_check
          %p390 = pneg %p389
        $region66: #{_forward_impl.1} parent=47 // pred_check_branch
          %392 = sbr.rel (%p390) target = $region68
        $region67: #{_forward_impl.1} parent=47 // pred_region
          %393 = vst [vmem:[#allocation2] sm:$0xff] 0.0
          %394 = vst [vmem:[#allocation2 + $0x8] sm:$0xff] 0.0
          %395 = vst [vmem:[#allocation2 + $0x10] sm:$0xff] 0.0
          %396 = vst [vmem:[#allocation2 + $0x18] sm:$0xff] 0.0
        $region68: #{_forward_impl.1} parent=47 // pred_fallthru
          _
        %v397 = vld [vmem:[#allocation2] sm:$0xff]
        %v398 = vld [vmem:[#allocation2 + $0x8] sm:$0xff]
        %v399 = vld [vmem:[#allocation2 + $0x10] sm:$0xff]
        %v400 = vld [vmem:[#allocation2 + $0x18] sm:$0xff]
        %v401 = vld [vmem:[%s382] sm:$0xff]
        %v402 = vld [vmem:[%s382 + $0x8] sm:$0xff]
        %v403 = vld [vmem:[%s382 + $0x10] sm:$0xff]
        %v404 = vld [vmem:[%s382 + $0x18] sm:$0xff]
        %v405 = vld [vmem:[%s382 + $0x20] sm:$0xff]
        %v406 = vld [vmem:[%s382 + $0x28] sm:$0xff]
        %v407 = vld [vmem:[%s382 + $0x30] sm:$0xff]
        %v408 = vld [vmem:[%s382 + $0x38] sm:$0xff]
        %v409 = vld [vmem:[%s382 + $0x40] sm:$0xff]
        %v410 = vld [vmem:[%s382 + $0x48] sm:$0xff]
        %v411 = vld [vmem:[%s382 + $0x50] sm:$0xff]
        %v412 = vld [vmem:[%s382 + $0x58] sm:$0xff]
        %v413 = vld [vmem:[%s382 + $0x60] sm:$0xff]
        %v414 = vld [vmem:[%s382 + $0x68] sm:$0xff]
        %v415 = vld [vmem:[%s382 + $0x70] sm:$0xff]
        %v416 = vld [vmem:[%s382 + $0x78] sm:$0xff]
        %v417 = vld [vmem:[%s382 + $0x80] sm:$0xff]
        %v418 = vld [vmem:[%s382 + $0x88] sm:$0xff]
        %v419 = vld [vmem:[%s382 + $0x90] sm:$0xff]
        %v420 = vld [vmem:[%s382 + $0x98] sm:$0xff]
        %v421 = vld [vmem:[%s382 + $0xa0] sm:$0xff]
        %v422 = vld [vmem:[%s382 + $0xa8] sm:$0xff]
        %v423 = vld [vmem:[%s382 + $0xb0] sm:$0xff]
        %v424 = vld [vmem:[%s382 + $0xb8] sm:$0xff]
        %v425 = vld [vmem:[%s382 + $0xc0] sm:$0xff]
        %v426 = vld [vmem:[%s382 + $0xc8] sm:$0xff]
        %v427 = vld [vmem:[%s382 + $0xd0] sm:$0xff]
        %v428 = vld [vmem:[%s382 + $0xd8] sm:$0xff]
        %v429 = vld [vmem:[%s382 + $0xe0] sm:$0xff]
        %v430 = vld [vmem:[%s382 + $0xe8] sm:$0xff]
        %v431 = vld [vmem:[%s382 + $0xf0] sm:$0xff]
        %v432 = vld [vmem:[%s382 + $0xf8] sm:$0xff]
        %v433 = vld [vmem:[%s382 + $0x100] sm:$0xff]
        %v434 = vld [vmem:[%s382 + $0x108] sm:$0xff]
        %v435 = vld [vmem:[%s382 + $0x110] sm:$0xff]
        %v436 = vld [vmem:[%s382 + $0x118] sm:$0xff]
        %v437 = vld [vmem:[%s323] sm:$0xff]
        %v438 = vld [vmem:[%s323 + $0x8] sm:$0xff]
        %v439 = vld [vmem:[%s323 + $0x10] sm:$0xff]
        %v440 = vld [vmem:[%s323 + $0x18] sm:$0xff]
        %v441 = vld [vmem:[%s323 + $0x20] sm:$0xff]
        %v442 = vld [vmem:[%s323 + $0x28] sm:$0xff]
        %v443 = vld [vmem:[%s323 + $0x30] sm:$0xff]
        %v444 = vld [vmem:[%s323 + $0x38] sm:$0xff]
        %v445 = vld [vmem:[%s323 + $0x40] sm:$0xff]
        %v446 = vld [vmem:[%s323 + $0x48] sm:$0xff]
        %v447 = vld [vmem:[%s323 + $0x50] sm:$0xff]
        %v448 = vld [vmem:[%s323 + $0x58] sm:$0xff]
        %v449 = vld [vmem:[%s323 + $0x60] sm:$0xff]
        %v450 = vld [vmem:[%s323 + $0x68] sm:$0xff]
        %v451 = vld [vmem:[%s323 + $0x70] sm:$0xff]
        %v452 = vld [vmem:[%s323 + $0x78] sm:$0xff]
        %v453 = vld [vmem:[%s323 + $0x80] sm:$0xff]
        %v454 = vld [vmem:[%s323 + $0x88] sm:$0xff]
        %v455 = vld [vmem:[%s323 + $0x90] sm:$0xff]
        %v456 = vld [vmem:[%s323 + $0x98] sm:$0xff]
        %v457 = vld [vmem:[%s323 + $0xa0] sm:$0xff]
        %v458 = vld [vmem:[%s323 + $0xa8] sm:$0xff]
        %v459 = vld [vmem:[%s323 + $0xb0] sm:$0xff]
        %v460 = vld [vmem:[%s323 + $0xb8] sm:$0xff]
        %v461 = vld [vmem:[%s323 + $0xc0] sm:$0xff]
        %v462 = vld [vmem:[%s323 + $0xc8] sm:$0xff]
        %v463 = vld [vmem:[%s323 + $0xd0] sm:$0xff]
        %v464 = vld [vmem:[%s323 + $0xd8] sm:$0xff]
        %v465 = vld [vmem:[%s323 + $0xe0] sm:$0xff]
        %v466 = vld [vmem:[%s323 + $0xe8] sm:$0xff]
        %v467 = vld [vmem:[%s323 + $0xf0] sm:$0xff]
        %v468 = vld [vmem:[%s323 + $0xf8] sm:$0xff]
        %v469 = vld [vmem:[%s323 + $0x100] sm:$0xff]
        %v470 = vld [vmem:[%s323 + $0x108] sm:$0xff]
        %v471 = vld [vmem:[%s323 + $0x110] sm:$0xff]
        %v472 = vld [vmem:[%s323 + $0x118] sm:$0xff]
        %v473 = vld [vmem:[%s323 + $0x120] sm:$0xff]
        %v474 = vld [vmem:[%s323 + $0x128] sm:$0xff]
        %v475 = vld [vmem:[%s323 + $0x130] sm:$0xff]
        %v476 = vld [vmem:[%s323 + $0x138] sm:$0xff]
        %v477 = vld [vmem:[%s323 + $0x140] sm:$0xff]
        %v478 = vld [vmem:[%s323 + $0x148] sm:$0xff]
        %v479 = vld [vmem:[%s323 + $0x150] sm:$0xff]
        %v480 = vld [vmem:[%s323 + $0x158] sm:$0xff]
        %v481 = vld [vmem:[%s323 + $0x160] sm:$0xff]
        %v482 = vld [vmem:[%s323 + $0x168] sm:$0xff]
        %v483 = vld [vmem:[%s323 + $0x170] sm:$0xff]
        %v484 = vld [vmem:[%s323 + $0x178] sm:$0xff]
        %v485 = vld [vmem:[%s323 + $0x180] sm:$0xff]
        %v486 = vld [vmem:[%s323 + $0x188] sm:$0xff]
        %v487 = vld [vmem:[%s323 + $0x190] sm:$0xff]
        %v488 = vld [vmem:[%s323 + $0x198] sm:$0xff]
        %v489 = vld [vmem:[%s323 + $0x1a0] sm:$0xff]
        %v490 = vld [vmem:[%s323 + $0x1a8] sm:$0xff]
        %v491 = vld [vmem:[%s323 + $0x1b0] sm:$0xff]
        %v492 = vld [vmem:[%s323 + $0x1b8] sm:$0xff]
        %v493 = vld [vmem:[%s323 + $0x1c0] sm:$0xff]
        %v494 = vld [vmem:[%s323 + $0x1c8] sm:$0xff]
        %v495 = vld [vmem:[%s323 + $0x1d0] sm:$0xff]
        %v496 = vld [vmem:[%s323 + $0x1d8] sm:$0xff]
        %v497 = vld [vmem:[%s323 + $0x1e0] sm:$0xff]
        %v498 = vld [vmem:[%s323 + $0x1e8] sm:$0xff]
        %v499 = vld [vmem:[%s323 + $0x1f0] sm:$0xff]
        %v500 = vld [vmem:[%s323 + $0x1f8] sm:$0xff]
        %v501 = vld [vmem:[%s323 + $0x200] sm:$0xff]
        %v502 = vld [vmem:[%s323 + $0x208] sm:$0xff]
        %v503 = vld [vmem:[%s323 + $0x210] sm:$0xff]
        %v504 = vld [vmem:[%s323 + $0x218] sm:$0xff]
        %v505 = vld [vmem:[%s323 + $0x220] sm:$0xff]
        %v506 = vld [vmem:[%s323 + $0x228] sm:$0xff]
        %v507 = vld [vmem:[%s323 + $0x230] sm:$0xff]
        %v508 = vld [vmem:[%s323 + $0x238] sm:$0xff]
        %v509 = vld [vmem:[%s323 + $0x240] sm:$0xff]
        %v510 = vld [vmem:[%s323 + $0x248] sm:$0xff]
        %v511 = vld [vmem:[%s323 + $0x250] sm:$0xff]
        %v512 = vld [vmem:[%s323 + $0x258] sm:$0xff]
        %v513 = vld [vmem:[%s323 + $0x260] sm:$0xff]
        %v514 = vld [vmem:[%s323 + $0x268] sm:$0xff]
        %v515 = vld [vmem:[%s323 + $0x270] sm:$0xff]
        %v516 = vld [vmem:[%s323 + $0x278] sm:$0xff]
        %v517 = vld [vmem:[%s323 + $0x280] sm:$0xff]
        %v518 = vld [vmem:[%s323 + $0x288] sm:$0xff]
        %v519 = vld [vmem:[%s323 + $0x290] sm:$0xff]
        %v520 = vld [vmem:[%s323 + $0x298] sm:$0xff]
        %v521 = vld [vmem:[%s323 + $0x2a0] sm:$0xff]
        %v522 = vld [vmem:[%s323 + $0x2a8] sm:$0xff]
        %v523 = vld [vmem:[%s323 + $0x2b0] sm:$0xff]
        %v524 = vld [vmem:[%s323 + $0x2b8] sm:$0xff]
        %v525 = vld [vmem:[%s323 + $0x2c0] sm:$0xff]
        %v526 = vld [vmem:[%s323 + $0x2c8] sm:$0xff]
        %v527 = vld [vmem:[%s323 + $0x2d0] sm:$0xff]
        %v528 = vld [vmem:[%s323 + $0x2d8] sm:$0xff]
        %v529 = vld [vmem:[%s323 + $0x2e0] sm:$0xff]
        %v530 = vld [vmem:[%s323 + $0x2e8] sm:$0xff]
        %v531 = vld [vmem:[%s323 + $0x2f0] sm:$0xff]
        %v532 = vld [vmem:[%s323 + $0x2f8] sm:$0xff]
        %v533 = vld [vmem:[%s323 + $0x300] sm:$0xff]
        %v534 = vld [vmem:[%s323 + $0x308] sm:$0xff]
        %v535 = vld [vmem:[%s323 + $0x310] sm:$0xff]
        %v536 = vld [vmem:[%s323 + $0x318] sm:$0xff]
        %v537 = vld [vmem:[%s323 + $0x320] sm:$0xff]
        %v538 = vld [vmem:[%s323 + $0x328] sm:$0xff]
        %v539 = vld [vmem:[%s323 + $0x330] sm:$0xff]
        %v540 = vld [vmem:[%s323 + $0x338] sm:$0xff]
        %v541 = vld [vmem:[%s323 + $0x340] sm:$0xff]
        %v542 = vld [vmem:[%s323 + $0x348] sm:$0xff]
        %v543 = vld [vmem:[%s323 + $0x350] sm:$0xff]
        %v544 = vld [vmem:[%s323 + $0x358] sm:$0xff]
        %v545 = vld [vmem:[%s323 + $0x360] sm:$0xff]
        %v546 = vld [vmem:[%s323 + $0x368] sm:$0xff]
        %v547 = vld [vmem:[%s323 + $0x370] sm:$0xff]
        %v548 = vld [vmem:[%s323 + $0x378] sm:$0xff]
        %v549 = vld [vmem:[%s323 + $0x380] sm:$0xff]
        %v550 = vld [vmem:[%s323 + $0x388] sm:$0xff]
        %v551 = vld [vmem:[%s323 + $0x390] sm:$0xff]
        %v552 = vld [vmem:[%s323 + $0x398] sm:$0xff]
        %v553 = vld [vmem:[%s323 + $0x3a0] sm:$0xff]
        %v554 = vld [vmem:[%s323 + $0x3a8] sm:$0xff]
        %v555 = vld [vmem:[%s323 + $0x3b0] sm:$0xff]
        %v556 = vld [vmem:[%s323 + $0x3b8] sm:$0xff]
        %v557 = vld [vmem:[%s323 + $0x3c0] sm:$0xff]
        %v558 = vld [vmem:[%s323 + $0x3c8] sm:$0xff]
        %v559 = vld [vmem:[%s323 + $0x3d0] sm:$0xff]
        %v560 = vld [vmem:[%s323 + $0x3d8] sm:$0xff]
        %v561 = vld [vmem:[%s323 + $0x3e0] sm:$0xff]
        %v562 = vld [vmem:[%s323 + $0x3e8] sm:$0xff]
        %v563 = vld [vmem:[%s323 + $0x3f0] sm:$0xff]
        %v564 = vld [vmem:[%s323 + $0x3f8] sm:$0xff]
        %v565 = vld [vmem:[%s323 + $0x400] sm:$0xff]
        %v566 = vld [vmem:[%s323 + $0x408] sm:$0xff]
        %v567 = vld [vmem:[%s323 + $0x410] sm:$0xff]
        %v568 = vld [vmem:[%s323 + $0x418] sm:$0xff]
        %v569 = vld [vmem:[%s323 + $0x420] sm:$0xff]
        %v570 = vld [vmem:[%s323 + $0x428] sm:$0xff]
        %v571 = vld [vmem:[%s323 + $0x430] sm:$0xff]
        %v572 = vld [vmem:[%s323 + $0x438] sm:$0xff]
        %v573 = vld [vmem:[%s323 + $0x440] sm:$0xff]
        %v574 = vld [vmem:[%s323 + $0x448] sm:$0xff]
        %v575 = vld [vmem:[%s323 + $0x450] sm:$0xff]
        %v576 = vld [vmem:[%s323 + $0x458] sm:$0xff]
        %v577 = vld [vmem:[%s323 + $0x460] sm:$0xff]
        %v578 = vld [vmem:[%s323 + $0x468] sm:$0xff]
        %v579 = vld [vmem:[%s323 + $0x470] sm:$0xff]
        %v580 = vld [vmem:[%s323 + $0x478] sm:$0xff]
        %v581 = vld [vmem:[%s323 + $0x480] sm:$0xff]
        %v582 = vld [vmem:[%s323 + $0x488] sm:$0xff]
        %v583 = vld [vmem:[%s323 + $0x490] sm:$0xff]
        %v584 = vld [vmem:[%s323 + $0x498] sm:$0xff]
        %v585 = vld [vmem:[%s323 + $0x4a0] sm:$0xff]
        %v586 = vld [vmem:[%s323 + $0x4a8] sm:$0xff]
        %v587 = vld [vmem:[%s323 + $0x4b0] sm:$0xff]
        %v588 = vld [vmem:[%s323 + $0x4b8] sm:$0xff]
        %v589 = vld [vmem:[%s323 + $0x4c0] sm:$0xff]
        %v590 = vld [vmem:[%s323 + $0x4c8] sm:$0xff]
        %v591 = vld [vmem:[%s323 + $0x4d0] sm:$0xff]
        %v592 = vld [vmem:[%s323 + $0x4d8] sm:$0xff]
        %v593 = vld [vmem:[%s323 + $0x4e0] sm:$0xff]
        %v594 = vld [vmem:[%s323 + $0x4e8] sm:$0xff]
        %v595 = vld [vmem:[%s323 + $0x4f0] sm:$0xff]
        %v596 = vld [vmem:[%s323 + $0x4f8] sm:$0xff]
        %v597 = vld [vmem:[%s323 + $0x500] sm:$0xff]
        %v598 = vld [vmem:[%s323 + $0x508] sm:$0xff]
        %v599 = vld [vmem:[%s323 + $0x510] sm:$0xff]
        %v600 = vld [vmem:[%s323 + $0x518] sm:$0xff]
        %v601 = vld [vmem:[%s323 + $0x520] sm:$0xff]
        %v602 = vld [vmem:[%s323 + $0x528] sm:$0xff]
        %v603 = vld [vmem:[%s323 + $0x530] sm:$0xff]
        %v604 = vld [vmem:[%s323 + $0x538] sm:$0xff]
        %v605 = vld [vmem:[%s323 + $0x540] sm:$0xff]
        %v606 = vld [vmem:[%s323 + $0x548] sm:$0xff]
        %v607 = vld [vmem:[%s323 + $0x550] sm:$0xff]
        %v608 = vld [vmem:[%s323 + $0x558] sm:$0xff]
        %v609 = vld [vmem:[%s323 + $0x560] sm:$0xff]
        %v610 = vld [vmem:[%s323 + $0x568] sm:$0xff]
        %v611 = vld [vmem:[%s323 + $0x570] sm:$0xff]
        %v612 = vld [vmem:[%s323 + $0x578] sm:$0xff]
        %v613 = vld [vmem:[%s323 + $0x580] sm:$0xff]
        %v614 = vld [vmem:[%s323 + $0x588] sm:$0xff]
        %v615 = vld [vmem:[%s323 + $0x590] sm:$0xff]
        %v616 = vld [vmem:[%s323 + $0x598] sm:$0xff]
        %v617 = vld [vmem:[%s323 + $0x5a0] sm:$0xff]
        %v618 = vld [vmem:[%s323 + $0x5a8] sm:$0xff]
        %v619 = vld [vmem:[%s323 + $0x5b0] sm:$0xff]
        %v620 = vld [vmem:[%s323 + $0x5b8] sm:$0xff]
        %v621 = vld [vmem:[%s323 + $0x5c0] sm:$0xff]
        %v622 = vld [vmem:[%s323 + $0x5c8] sm:$0xff]
        %v623 = vld [vmem:[%s323 + $0x5d0] sm:$0xff]
        %v624 = vld [vmem:[%s323 + $0x5d8] sm:$0xff]
        %v625 = vld [vmem:[%s323 + $0x5e0] sm:$0xff]
        %v626 = vld [vmem:[%s323 + $0x5e8] sm:$0xff]
        %v627 = vld [vmem:[%s323 + $0x5f0] sm:$0xff]
        %v628 = vld [vmem:[%s323 + $0x5f8] sm:$0xff]
        %v629 = vld [vmem:[%s323 + $0x600] sm:$0xff]
        %v630 = vld [vmem:[%s323 + $0x608] sm:$0xff]
        %v631 = vld [vmem:[%s323 + $0x610] sm:$0xff]
        %v632 = vld [vmem:[%s323 + $0x618] sm:$0xff]
        %v633 = vld [vmem:[%s323 + $0x620] sm:$0xff]
        %v634 = vld [vmem:[%s323 + $0x628] sm:$0xff]
        %v635 = vld [vmem:[%s323 + $0x630] sm:$0xff]
        %v636 = vld [vmem:[%s323 + $0x638] sm:$0xff]
        %v637 = vld [vmem:[%s323 + $0x640] sm:$0xff]
        %v638 = vld [vmem:[%s323 + $0x648] sm:$0xff]
        %v639 = vld [vmem:[%s323 + $0x650] sm:$0xff]
        %v640 = vld [vmem:[%s323 + $0x658] sm:$0xff]
        %v641 = vld [vmem:[%s323 + $0x660] sm:$0xff]
        %v642 = vld [vmem:[%s323 + $0x668] sm:$0xff]
        %v643 = vld [vmem:[%s323 + $0x670] sm:$0xff]
        %v644 = vld [vmem:[%s323 + $0x678] sm:$0xff]
        %v645 = vld [vmem:[%s323 + $0x680] sm:$0xff]
        %v646 = vld [vmem:[%s323 + $0x688] sm:$0xff]
        %v647 = vld [vmem:[%s323 + $0x690] sm:$0xff]
        %v648 = vld [vmem:[%s323 + $0x698] sm:$0xff]
        %v649 = vld [vmem:[%s323 + $0x6a0] sm:$0xff]
        %v650 = vld [vmem:[%s323 + $0x6a8] sm:$0xff]
        %v651 = vld [vmem:[%s323 + $0x6b0] sm:$0xff]
        %v652 = vld [vmem:[%s323 + $0x6b8] sm:$0xff]
        %v653 = vld [vmem:[%s323 + $0x6c0] sm:$0xff]
        %v654 = vld [vmem:[%s323 + $0x6c8] sm:$0xff]
        %v655 = vld [vmem:[%s323 + $0x6d0] sm:$0xff]
        %v656 = vld [vmem:[%s323 + $0x6d8] sm:$0xff]
        %v657 = vld [vmem:[%s323 + $0x6e0] sm:$0xff]
        %v658 = vld [vmem:[%s323 + $0x6e8] sm:$0xff]
        %v659 = vld [vmem:[%s323 + $0x6f0] sm:$0xff]
        %v660 = vld [vmem:[%s323 + $0x6f8] sm:$0xff]
        %v661 = vld [vmem:[%s323 + $0x700] sm:$0xff]
        %v662 = vld [vmem:[%s323 + $0x708] sm:$0xff]
        %v663 = vld [vmem:[%s323 + $0x710] sm:$0xff]
        %v664 = vld [vmem:[%s323 + $0x718] sm:$0xff]
        %v665 = vld [vmem:[%s323 + $0x720] sm:$0xff]
        %v666 = vld [vmem:[%s323 + $0x728] sm:$0xff]
        %v667 = vld [vmem:[%s323 + $0x730] sm:$0xff]
        %v668 = vld [vmem:[%s323 + $0x738] sm:$0xff]
        %v669 = vld [vmem:[%s323 + $0x740] sm:$0xff]
        %v670 = vld [vmem:[%s323 + $0x748] sm:$0xff]
        %v671 = vld [vmem:[%s323 + $0x750] sm:$0xff]
        %v672 = vld [vmem:[%s323 + $0x758] sm:$0xff]
        %v673 = vld [vmem:[%s323 + $0x760] sm:$0xff]
        %v674 = vld [vmem:[%s323 + $0x768] sm:$0xff]
        %v675 = vld [vmem:[%s323 + $0x770] sm:$0xff]
        %v676 = vld [vmem:[%s323 + $0x778] sm:$0xff]
        %v677 = vld [vmem:[%s323 + $0x780] sm:$0xff]
        %v678 = vld [vmem:[%s323 + $0x788] sm:$0xff]
        %v679 = vld [vmem:[%s323 + $0x790] sm:$0xff]
        %v680 = vld [vmem:[%s323 + $0x798] sm:$0xff]
        %v681 = vld [vmem:[%s323 + $0x7a0] sm:$0xff]
        %v682 = vld [vmem:[%s323 + $0x7a8] sm:$0xff]
        %v683 = vld [vmem:[%s323 + $0x7b0] sm:$0xff]
        %v684 = vld [vmem:[%s323 + $0x7b8] sm:$0xff]
        %v685 = vld [vmem:[%s323 + $0x7c0] sm:$0xff]
        %v686 = vld [vmem:[%s323 + $0x7c8] sm:$0xff]
        %v687 = vld [vmem:[%s323 + $0x7d0] sm:$0xff]
        %v688 = vld [vmem:[%s323 + $0x7d8] sm:$0xff]
        %v689 = vld [vmem:[%s323 + $0x7e0] sm:$0xff]
        %v690 = vld [vmem:[%s323 + $0x7e8] sm:$0xff]
        %v691 = vld [vmem:[%s323 + $0x7f0] sm:$0xff]
        %v692 = vld [vmem:[%s323 + $0x7f8] sm:$0xff]
        %v693 = vld [vmem:[%s323 + $0x800] sm:$0xff]
        %v694 = vld [vmem:[%s323 + $0x808] sm:$0xff]
        %v695 = vld [vmem:[%s323 + $0x810] sm:$0xff]
        %v696 = vld [vmem:[%s323 + $0x818] sm:$0xff]
        %v697 = vld [vmem:[%s323 + $0x820] sm:$0xff]
        %v698 = vld [vmem:[%s323 + $0x828] sm:$0xff]
        %v699 = vld [vmem:[%s323 + $0x830] sm:$0xff]
        %v700 = vld [vmem:[%s323 + $0x838] sm:$0xff]
        %v701 = vld [vmem:[%s323 + $0x840] sm:$0xff]
        %v702 = vld [vmem:[%s323 + $0x848] sm:$0xff]
        %v703 = vld [vmem:[%s323 + $0x850] sm:$0xff]
        %v704 = vld [vmem:[%s323 + $0x858] sm:$0xff]
        %v705 = vld [vmem:[%s323 + $0x860] sm:$0xff]
        %v706 = vld [vmem:[%s323 + $0x868] sm:$0xff]
        %v707 = vld [vmem:[%s323 + $0x870] sm:$0xff]
        %v708 = vld [vmem:[%s323 + $0x878] sm:$0xff]
        %v709 = vld [vmem:[%s323 + $0x880] sm:$0xff]
        %v710 = vld [vmem:[%s323 + $0x888] sm:$0xff]
        %v711 = vld [vmem:[%s323 + $0x890] sm:$0xff]
        %v712 = vld [vmem:[%s323 + $0x898] sm:$0xff]
        %v713 = vld [vmem:[%s323 + $0x8a0] sm:$0xff]
        %v714 = vld [vmem:[%s323 + $0x8a8] sm:$0xff]
        %v715 = vld [vmem:[%s323 + $0x8b0] sm:$0xff]
        %v716 = vld [vmem:[%s323 + $0x8b8] sm:$0xff]
        %v717 = vld [vmem:[%s323 + $0x8c0] sm:$0xff]
        %v718 = vld [vmem:[%s323 + $0x8c8] sm:$0xff]
        %v719 = vld [vmem:[%s323 + $0x8d0] sm:$0xff]
        %v720 = vld [vmem:[%s323 + $0x8d8] sm:$0xff]
        %v721 = vld [vmem:[%s323 + $0x8e0] sm:$0xff]
        %v722 = vld [vmem:[%s323 + $0x8e8] sm:$0xff]
        %v723 = vld [vmem:[%s323 + $0x8f0] sm:$0xff]
        %v724 = vld [vmem:[%s323 + $0x8f8] sm:$0xff]
        %v725 = vld [vmem:[%s323 + $0x900] sm:$0xff]
        %v726 = vld [vmem:[%s323 + $0x908] sm:$0xff]
        %v727 = vld [vmem:[%s323 + $0x910] sm:$0xff]
        %v728 = vld [vmem:[%s323 + $0x918] sm:$0xff]
        %v729 = vld [vmem:[%s323 + $0x920] sm:$0xff]
        %v730 = vld [vmem:[%s323 + $0x928] sm:$0xff]
        %v731 = vld [vmem:[%s323 + $0x930] sm:$0xff]
        %v732 = vld [vmem:[%s323 + $0x938] sm:$0xff]
        %v733 = vld [vmem:[%s323 + $0x940] sm:$0xff]
        %v734 = vld [vmem:[%s323 + $0x948] sm:$0xff]
        %v735 = vld [vmem:[%s323 + $0x950] sm:$0xff]
        %v736 = vld [vmem:[%s323 + $0x958] sm:$0xff]
        %v737 = vld [vmem:[%s323 + $0x960] sm:$0xff]
        %v738 = vld [vmem:[%s323 + $0x968] sm:$0xff]
        %v739 = vld [vmem:[%s323 + $0x970] sm:$0xff]
        %v740 = vld [vmem:[%s323 + $0x978] sm:$0xff]
        %v741 = vld [vmem:[%s323 + $0x980] sm:$0xff]
        %v742 = vld [vmem:[%s323 + $0x988] sm:$0xff]
        %v743 = vld [vmem:[%s323 + $0x990] sm:$0xff]
        %v744 = vld [vmem:[%s323 + $0x998] sm:$0xff]
        %v745 = vld [vmem:[%s323 + $0x9a0] sm:$0xff]
        %v746 = vld [vmem:[%s323 + $0x9a8] sm:$0xff]
        %v747 = vld [vmem:[%s323 + $0x9b0] sm:$0xff]
        %v748 = vld [vmem:[%s323 + $0x9b8] sm:$0xff]
        %v749 = vld [vmem:[%s323 + $0x9c0] sm:$0xff]
        %v750 = vld [vmem:[%s323 + $0x9c8] sm:$0xff]
        %v751 = vld [vmem:[%s323 + $0x9d0] sm:$0xff]
        %v752 = vld [vmem:[%s323 + $0x9d8] sm:$0xff]
        %v753 = vld [vmem:[%s323 + $0x9e0] sm:$0xff]
        %v754 = vld [vmem:[%s323 + $0x9e8] sm:$0xff]
        %v755 = vld [vmem:[%s323 + $0x9f0] sm:$0xff]
        %v756 = vld [vmem:[%s323 + $0x9f8] sm:$0xff]
        %v757 = vld [vmem:[%s323 + $0xa00] sm:$0xff]
        %v758 = vld [vmem:[%s323 + $0xa08] sm:$0xff]
        %v759 = vld [vmem:[%s323 + $0xa10] sm:$0xff]
        %v760 = vld [vmem:[%s323 + $0xa18] sm:$0xff]
        %v761 = vld [vmem:[%s323 + $0xa20] sm:$0xff]
        %v762 = vld [vmem:[%s323 + $0xa28] sm:$0xff]
        %v763 = vld [vmem:[%s323 + $0xa30] sm:$0xff]
        %v764 = vld [vmem:[%s323 + $0xa38] sm:$0xff]
        %v765 = vld [vmem:[%s323 + $0xa40] sm:$0xff]
        %v766 = vld [vmem:[%s323 + $0xa48] sm:$0xff]
        %v767 = vld [vmem:[%s323 + $0xa50] sm:$0xff]
        %v768 = vld [vmem:[%s323 + $0xa58] sm:$0xff]
        %v769 = vld [vmem:[%s323 + $0xa60] sm:$0xff]
        %v770 = vld [vmem:[%s323 + $0xa68] sm:$0xff]
        %v771 = vld [vmem:[%s323 + $0xa70] sm:$0xff]
        %v772 = vld [vmem:[%s323 + $0xa78] sm:$0xff]
        %v773 = vld [vmem:[%s323 + $0xa80] sm:$0xff]
        %v774 = vld [vmem:[%s323 + $0xa88] sm:$0xff]
        %v775 = vld [vmem:[%s323 + $0xa90] sm:$0xff]
        %v776 = vld [vmem:[%s323 + $0xa98] sm:$0xff]
        %v777 = vld [vmem:[%s323 + $0xaa0] sm:$0xff]
        %v778 = vld [vmem:[%s323 + $0xaa8] sm:$0xff]
        %v779 = vld [vmem:[%s323 + $0xab0] sm:$0xff]
        %v780 = vld [vmem:[%s323 + $0xab8] sm:$0xff]
        %v781 = vld [vmem:[%s323 + $0xac0] sm:$0xff]
        %v782 = vld [vmem:[%s323 + $0xac8] sm:$0xff]
        %v783 = vld [vmem:[%s323 + $0xad0] sm:$0xff]
        %v784 = vld [vmem:[%s323 + $0xad8] sm:$0xff]
        %v785 = vld [vmem:[%s323 + $0xae0] sm:$0xff]
        %v786 = vld [vmem:[%s323 + $0xae8] sm:$0xff]
        %v787 = vld [vmem:[%s323 + $0xaf0] sm:$0xff]
        %v788 = vld [vmem:[%s323 + $0xaf8] sm:$0xff]
        %v789 = vld [vmem:[%s323 + $0xb00] sm:$0xff]
        %v790 = vld [vmem:[%s323 + $0xb08] sm:$0xff]
        %v791 = vld [vmem:[%s323 + $0xb10] sm:$0xff]
        %v792 = vld [vmem:[%s323 + $0xb18] sm:$0xff]
        %v793 = vld [vmem:[%s323 + $0xb20] sm:$0xff]
        %v794 = vld [vmem:[%s323 + $0xb28] sm:$0xff]
        %v795 = vld [vmem:[%s323 + $0xb30] sm:$0xff]
        %v796 = vld [vmem:[%s323 + $0xb38] sm:$0xff]
        %v797 = vld [vmem:[%s323 + $0xb40] sm:$0xff]
        %v798 = vld [vmem:[%s323 + $0xb48] sm:$0xff]
        %v799 = vld [vmem:[%s323 + $0xb50] sm:$0xff]
        %v800 = vld [vmem:[%s323 + $0xb58] sm:$0xff]
        %v801 = vld [vmem:[%s323 + $0xb60] sm:$0xff]
        %v802 = vld [vmem:[%s323 + $0xb68] sm:$0xff]
        %v803 = vld [vmem:[%s323 + $0xb70] sm:$0xff]
        %v804 = vld [vmem:[%s323 + $0xb78] sm:$0xff]
        %v805 = vld [vmem:[%s323 + $0xb80] sm:$0xff]
        %v806 = vld [vmem:[%s323 + $0xb88] sm:$0xff]
        %v807 = vld [vmem:[%s323 + $0xb90] sm:$0xff]
        %v808 = vld [vmem:[%s323 + $0xb98] sm:$0xff]
        %v809 = vld [vmem:[%s323 + $0xba0] sm:$0xff]
        %v810 = vld [vmem:[%s323 + $0xba8] sm:$0xff]
        %v811 = vld [vmem:[%s323 + $0xbb0] sm:$0xff]
        %v812 = vld [vmem:[%s323 + $0xbb8] sm:$0xff]
        %v813 = vld [vmem:[%s323 + $0xbc0] sm:$0xff]
        %v814 = vld [vmem:[%s323 + $0xbc8] sm:$0xff]
        %v815 = vld [vmem:[%s323 + $0xbd0] sm:$0xff]
        %v816 = vld [vmem:[%s323 + $0xbd8] sm:$0xff]
        %v817 = vld [vmem:[%s323 + $0xbe0] sm:$0xff]
        %v818 = vld [vmem:[%s323 + $0xbe8] sm:$0xff]
        %v819 = vld [vmem:[%s323 + $0xbf0] sm:$0xff]
        %v820 = vld [vmem:[%s323 + $0xbf8] sm:$0xff]
        %v821 = vld [vmem:[%s323 + $0xc00] sm:$0xff]
        %v822 = vld [vmem:[%s323 + $0xc08] sm:$0xff]
        %v823 = vld [vmem:[%s323 + $0xc10] sm:$0xff]
        %v824 = vld [vmem:[%s323 + $0xc18] sm:$0xff]
        %v825 = vld [vmem:[%s323 + $0xc20] sm:$0xff]
        %v826 = vld [vmem:[%s323 + $0xc28] sm:$0xff]
        %v827 = vld [vmem:[%s323 + $0xc30] sm:$0xff]
        %v828 = vld [vmem:[%s323 + $0xc38] sm:$0xff]
        %v829 = vld [vmem:[%s323 + $0xc40] sm:$0xff]
        %v830 = vld [vmem:[%s323 + $0xc48] sm:$0xff]
        %v831 = vld [vmem:[%s323 + $0xc50] sm:$0xff]
        %v832 = vld [vmem:[%s323 + $0xc58] sm:$0xff]
        %v833 = vld [vmem:[%s323 + $0xc60] sm:$0xff]
        %v834 = vld [vmem:[%s323 + $0xc68] sm:$0xff]
        %v835 = vld [vmem:[%s323 + $0xc70] sm:$0xff]
        %v836 = vld [vmem:[%s323 + $0xc78] sm:$0xff]
        %v837 = vld [vmem:[%s323 + $0xc80] sm:$0xff]
        %v838 = vld [vmem:[%s323 + $0xc88] sm:$0xff]
        %v839 = vld [vmem:[%s323 + $0xc90] sm:$0xff]
        %v840 = vld [vmem:[%s323 + $0xc98] sm:$0xff]
        %v841 = vld [vmem:[%s323 + $0xca0] sm:$0xff]
        %v842 = vld [vmem:[%s323 + $0xca8] sm:$0xff]
        %v843 = vld [vmem:[%s323 + $0xcb0] sm:$0xff]
        %v844 = vld [vmem:[%s323 + $0xcb8] sm:$0xff]
        %v845 = vld [vmem:[%s323 + $0xcc0] sm:$0xff]
        %v846 = vld [vmem:[%s323 + $0xcc8] sm:$0xff]
        %v847 = vld [vmem:[%s323 + $0xcd0] sm:$0xff]
        %v848 = vld [vmem:[%s323 + $0xcd8] sm:$0xff]
        %v849 = vld [vmem:[%s323 + $0xce0] sm:$0xff]
        %v850 = vld [vmem:[%s323 + $0xce8] sm:$0xff]
        %v851 = vld [vmem:[%s323 + $0xcf0] sm:$0xff]
        %v852 = vld [vmem:[%s323 + $0xcf8] sm:$0xff]
        %v853 = vld [vmem:[%s323 + $0xd00] sm:$0xff]
        %v854 = vld [vmem:[%s323 + $0xd08] sm:$0xff]
        %v855 = vld [vmem:[%s323 + $0xd10] sm:$0xff]
        %v856 = vld [vmem:[%s323 + $0xd18] sm:$0xff]
        %v857 = vld [vmem:[%s323 + $0xd20] sm:$0xff]
        %v858 = vld [vmem:[%s323 + $0xd28] sm:$0xff]
        %v859 = vld [vmem:[%s323 + $0xd30] sm:$0xff]
        %v860 = vld [vmem:[%s323 + $0xd38] sm:$0xff]
        %v861 = vld [vmem:[%s323 + $0xd40] sm:$0xff]
        %v862 = vld [vmem:[%s323 + $0xd48] sm:$0xff]
        %v863 = vld [vmem:[%s323 + $0xd50] sm:$0xff]
        %v864 = vld [vmem:[%s323 + $0xd58] sm:$0xff]
        %v865 = vld [vmem:[%s323 + $0xd60] sm:$0xff]
        %v866 = vld [vmem:[%s323 + $0xd68] sm:$0xff]
        %v867 = vld [vmem:[%s323 + $0xd70] sm:$0xff]
        %v868 = vld [vmem:[%s323 + $0xd78] sm:$0xff]
        %v869 = vld [vmem:[%s323 + $0xd80] sm:$0xff]
        %v870 = vld [vmem:[%s323 + $0xd88] sm:$0xff]
        %v871 = vld [vmem:[%s323 + $0xd90] sm:$0xff]
        %v872 = vld [vmem:[%s323 + $0xd98] sm:$0xff]
        %v873 = vld [vmem:[%s323 + $0xda0] sm:$0xff]
        %v874 = vld [vmem:[%s323 + $0xda8] sm:$0xff]
        %v875 = vld [vmem:[%s323 + $0xdb0] sm:$0xff]
        %v876 = vld [vmem:[%s323 + $0xdb8] sm:$0xff]
        %v877 = vld [vmem:[%s323 + $0xdc0] sm:$0xff]
        %v878 = vld [vmem:[%s323 + $0xdc8] sm:$0xff]
        %v879 = vld [vmem:[%s323 + $0xdd0] sm:$0xff]
        %v880 = vld [vmem:[%s323 + $0xdd8] sm:$0xff]
        %v881 = vld [vmem:[%s323 + $0xde0] sm:$0xff]
        %v882 = vld [vmem:[%s323 + $0xde8] sm:$0xff]
        %v883 = vld [vmem:[%s323 + $0xdf0] sm:$0xff]
        %v884 = vld [vmem:[%s323 + $0xdf8] sm:$0xff]
        %v885 = vld [vmem:[%s323 + $0xe00] sm:$0xff]
        %v886 = vld [vmem:[%s323 + $0xe08] sm:$0xff]
        %v887 = vld [vmem:[%s323 + $0xe10] sm:$0xff]
        %v888 = vld [vmem:[%s323 + $0xe18] sm:$0xff]
        %v889 = vld [vmem:[%s323 + $0xe20] sm:$0xff]
        %v890 = vld [vmem:[%s323 + $0xe28] sm:$0xff]
        %v891 = vld [vmem:[%s323 + $0xe30] sm:$0xff]
        %v892 = vld [vmem:[%s323 + $0xe38] sm:$0xff]
        %v893 = vld [vmem:[%s323 + $0xe40] sm:$0xff]
        %v894 = vld [vmem:[%s323 + $0xe48] sm:$0xff]
        %v895 = vld [vmem:[%s323 + $0xe50] sm:$0xff]
        %v896 = vld [vmem:[%s323 + $0xe58] sm:$0xff]
        %v897 = vld [vmem:[%s323 + $0xe60] sm:$0xff]
        %v898 = vld [vmem:[%s323 + $0xe68] sm:$0xff]
        %v899 = vld [vmem:[%s323 + $0xe70] sm:$0xff]
        %v900 = vld [vmem:[%s323 + $0xe78] sm:$0xff]
        %v901 = vld [vmem:[%s323 + $0xe80] sm:$0xff]
        %v902 = vld [vmem:[%s323 + $0xe88] sm:$0xff]
        %v903 = vld [vmem:[%s323 + $0xe90] sm:$0xff]
        %v904 = vld [vmem:[%s323 + $0xe98] sm:$0xff]
        %v905 = vld [vmem:[%s323 + $0xea0] sm:$0xff]
        %v906 = vld [vmem:[%s323 + $0xea8] sm:$0xff]
        %v907 = vld [vmem:[%s323 + $0xeb0] sm:$0xff]
        %v908 = vld [vmem:[%s323 + $0xeb8] sm:$0xff]
        %v909 = vld [vmem:[%s323 + $0xec0] sm:$0xff]
        %v910 = vld [vmem:[%s323 + $0xec8] sm:$0xff]
        %v911 = vld [vmem:[%s323 + $0xed0] sm:$0xff]
        %v912 = vld [vmem:[%s323 + $0xed8] sm:$0xff]
        %v913 = vld [vmem:[%s323 + $0xee0] sm:$0xff]
        %v914 = vld [vmem:[%s323 + $0xee8] sm:$0xff]
        %v915 = vld [vmem:[%s323 + $0xef0] sm:$0xff]
        %v916 = vld [vmem:[%s323 + $0xef8] sm:$0xff]
        %v917 = vld [vmem:[%s323 + $0xf00] sm:$0xff]
        %v918 = vld [vmem:[%s323 + $0xf08] sm:$0xff]
        %v919 = vld [vmem:[%s323 + $0xf10] sm:$0xff]
        %v920 = vld [vmem:[%s323 + $0xf18] sm:$0xff]
        %v921 = vld [vmem:[%s323 + $0xf20] sm:$0xff]
        %v922 = vld [vmem:[%s323 + $0xf28] sm:$0xff]
        %v923 = vld [vmem:[%s323 + $0xf30] sm:$0xff]
        %v924 = vld [vmem:[%s323 + $0xf38] sm:$0xff]
        %v925 = vld [vmem:[%s323 + $0xf40] sm:$0xff]
        %v926 = vld [vmem:[%s323 + $0xf48] sm:$0xff]
        %v927 = vld [vmem:[%s323 + $0xf50] sm:$0xff]
        %v928 = vld [vmem:[%s323 + $0xf58] sm:$0xff]
        %v929 = vld [vmem:[%s323 + $0xf60] sm:$0xff]
        %v930 = vld [vmem:[%s323 + $0xf68] sm:$0xff]
        %v931 = vld [vmem:[%s323 + $0xf70] sm:$0xff]
        %v932 = vld [vmem:[%s323 + $0xf78] sm:$0xff]
        %v933 = vld [vmem:[%s323 + $0xf80] sm:$0xff]
        %v934 = vld [vmem:[%s323 + $0xf88] sm:$0xff]
        %v935 = vld [vmem:[%s323 + $0xf90] sm:$0xff]
        %v936 = vld [vmem:[%s323 + $0xf98] sm:$0xff]
        %v937 = vld [vmem:[%s323 + $0xfa0] sm:$0xff]
        %v938 = vld [vmem:[%s323 + $0xfa8] sm:$0xff]
        %v939 = vld [vmem:[%s323 + $0xfb0] sm:$0xff]
        %v940 = vld [vmem:[%s323 + $0xfb8] sm:$0xff]
        %v941 = vld [vmem:[%s323 + $0xfc0] sm:$0xff]
        %v942 = vld [vmem:[%s323 + $0xfc8] sm:$0xff]
        %v943 = vld [vmem:[%s323 + $0xfd0] sm:$0xff]
        %v944 = vld [vmem:[%s323 + $0xfd8] sm:$0xff]
        %v945 = vld [vmem:[%s323 + $0xfe0] sm:$0xff]
        %v946 = vld [vmem:[%s323 + $0xfe8] sm:$0xff]
        %v947 = vld [vmem:[%s323 + $0xff0] sm:$0xff]
        %v948 = vld [vmem:[%s323 + $0xff8] sm:$0xff]
        %v949 = vld [vmem:[%s323 + $0x1000] sm:$0xff]
        %v950 = vld [vmem:[%s323 + $0x1008] sm:$0xff]
        %v951 = vld [vmem:[%s323 + $0x1010] sm:$0xff]
        %v952 = vld [vmem:[%s323 + $0x1018] sm:$0xff]
        %v953 = vld [vmem:[%s323 + $0x1020] sm:$0xff]
        %v954 = vld [vmem:[%s323 + $0x1028] sm:$0xff]
        %v955 = vld [vmem:[%s323 + $0x1030] sm:$0xff]
        %v956 = vld [vmem:[%s323 + $0x1038] sm:$0xff]
        %v957 = vld [vmem:[%s323 + $0x1040] sm:$0xff]
        %v958 = vld [vmem:[%s323 + $0x1048] sm:$0xff]
        %v959 = vld [vmem:[%s323 + $0x1050] sm:$0xff]
        %v960 = vld [vmem:[%s323 + $0x1058] sm:$0xff]
        %v961 = vld [vmem:[%s323 + $0x1060] sm:$0xff]
        %v962 = vld [vmem:[%s323 + $0x1068] sm:$0xff]
        %v963 = vld [vmem:[%s323 + $0x1070] sm:$0xff]
        %v964 = vld [vmem:[%s323 + $0x1078] sm:$0xff]
        %v965 = vld [vmem:[%s323 + $0x1080] sm:$0xff]
        %v966 = vld [vmem:[%s323 + $0x1088] sm:$0xff]
        %v967 = vld [vmem:[%s323 + $0x1090] sm:$0xff]
        %v968 = vld [vmem:[%s323 + $0x1098] sm:$0xff]
        %v969 = vld [vmem:[%s323 + $0x10a0] sm:$0xff]
        %v970 = vld [vmem:[%s323 + $0x10a8] sm:$0xff]
        %v971 = vld [vmem:[%s323 + $0x10b0] sm:$0xff]
        %v972 = vld [vmem:[%s323 + $0x10b8] sm:$0xff]
        %v973 = vld [vmem:[%s323 + $0x10c0] sm:$0xff]
        %v974 = vld [vmem:[%s323 + $0x10c8] sm:$0xff]
        %v975 = vld [vmem:[%s323 + $0x10d0] sm:$0xff]
        %v976 = vld [vmem:[%s323 + $0x10d8] sm:$0xff]
        %v977 = vld [vmem:[%s323 + $0x10e0] sm:$0xff]
        %v978 = vld [vmem:[%s323 + $0x10e8] sm:$0xff]
        %v979 = vld [vmem:[%s323 + $0x10f0] sm:$0xff]
        %v980 = vld [vmem:[%s323 + $0x10f8] sm:$0xff]
        %v981 = vld [vmem:[%s323 + $0x1100] sm:$0xff]
        %v982 = vld [vmem:[%s323 + $0x1108] sm:$0xff]
        %v983 = vld [vmem:[%s323 + $0x1110] sm:$0xff]
        %v984 = vld [vmem:[%s323 + $0x1118] sm:$0xff]
        %v985 = vld [vmem:[%s323 + $0x1120] sm:$0xff]
        %v986 = vld [vmem:[%s323 + $0x1128] sm:$0xff]
        %v987 = vld [vmem:[%s323 + $0x1130] sm:$0xff]
        %v988 = vld [vmem:[%s323 + $0x1138] sm:$0xff]
        %v989 = vld [vmem:[%s323 + $0x1140] sm:$0xff]
        %v990 = vld [vmem:[%s323 + $0x1148] sm:$0xff]
        %v991 = vld [vmem:[%s323 + $0x1150] sm:$0xff]
        %v992 = vld [vmem:[%s323 + $0x1158] sm:$0xff]
        %v993 = vld [vmem:[%s323 + $0x1160] sm:$0xff]
        %v994 = vld [vmem:[%s323 + $0x1168] sm:$0xff]
        %v995 = vld [vmem:[%s323 + $0x1170] sm:$0xff]
        %v996 = vld [vmem:[%s323 + $0x1178] sm:$0xff]
        %v997 = vld [vmem:[%s323 + $0x1180] sm:$0xff]
        %v998 = vld [vmem:[%s323 + $0x1188] sm:$0xff]
        %v999 = vld [vmem:[%s323 + $0x1190] sm:$0xff]
        %v1000 = vld [vmem:[%s323 + $0x1198] sm:$0xff]
        %v1001 = vld [vmem:[%s323 + $0x11a0] sm:$0xff]
        %v1002 = vld [vmem:[%s323 + $0x11a8] sm:$0xff]
        %v1003 = vld [vmem:[%s323 + $0x11b0] sm:$0xff]
        %v1004 = vld [vmem:[%s323 + $0x11b8] sm:$0xff]
        %v1005 = vld [vmem:[%s323 + $0x11c0] sm:$0xff]
        %v1006 = vld [vmem:[%s323 + $0x11c8] sm:$0xff]
        %v1007 = vld [vmem:[%s323 + $0x11d0] sm:$0xff]
        %v1008 = vld [vmem:[%s323 + $0x11d8] sm:$0xff]
        %v1009 = vld [vmem:[%s323 + $0x11e0] sm:$0xff]
        %v1010 = vld [vmem:[%s323 + $0x11e8] sm:$0xff]
        %v1011 = vld [vmem:[%s323 + $0x11f0] sm:$0xff]
        %v1012 = vld [vmem:[%s323 + $0x11f8] sm:$0xff]
        %v1013 = vld [vmem:[%s323 + $0x1200] sm:$0xff]
        %v1014 = vld [vmem:[%s323 + $0x1208] sm:$0xff]
        %v1015 = vld [vmem:[%s323 + $0x1210] sm:$0xff]
        %v1016 = vld [vmem:[%s323 + $0x1218] sm:$0xff]
        %v1017 = vld [vmem:[%s323 + $0x1220] sm:$0xff]
        %v1018 = vld [vmem:[%s323 + $0x1228] sm:$0xff]
        %v1019 = vld [vmem:[%s323 + $0x1230] sm:$0xff]
        %v1020 = vld [vmem:[%s323 + $0x1238] sm:$0xff]
        %v1021 = vld [vmem:[%s323 + $0x1240] sm:$0xff]
        %v1022 = vld [vmem:[%s323 + $0x1248] sm:$0xff]
        %v1023 = vld [vmem:[%s323 + $0x1250] sm:$0xff]
        %v1024 = vld [vmem:[%s323 + $0x1258] sm:$0xff]
        %v1025 = vld [vmem:[%s323 + $0x1260] sm:$0xff]
        %v1026 = vld [vmem:[%s323 + $0x1268] sm:$0xff]
        %v1027 = vld [vmem:[%s323 + $0x1270] sm:$0xff]
        %v1028 = vld [vmem:[%s323 + $0x1278] sm:$0xff]
        %v1029 = vld [vmem:[%s323 + $0x1280] sm:$0xff]
        %v1030 = vld [vmem:[%s323 + $0x1288] sm:$0xff]
        %v1031 = vld [vmem:[%s323 + $0x1290] sm:$0xff]
        %v1032 = vld [vmem:[%s323 + $0x1298] sm:$0xff]
        %v1033 = vld [vmem:[%s323 + $0x12a0] sm:$0xff]
        %v1034 = vld [vmem:[%s323 + $0x12a8] sm:$0xff]
        %v1035 = vld [vmem:[%s323 + $0x12b0] sm:$0xff]
        %v1036 = vld [vmem:[%s323 + $0x12b8] sm:$0xff]
        %v1037 = vld [vmem:[%s323 + $0x12c0] sm:$0xff]
        %v1038 = vld [vmem:[%s323 + $0x12c8] sm:$0xff]
        %v1039 = vld [vmem:[%s323 + $0x12d0] sm:$0xff]
        %v1040 = vld [vmem:[%s323 + $0x12d8] sm:$0xff]
        %v1041 = vld [vmem:[%s323 + $0x12e0] sm:$0xff]
        %v1042 = vld [vmem:[%s323 + $0x12e8] sm:$0xff]
        %v1043 = vld [vmem:[%s323 + $0x12f0] sm:$0xff]
        %v1044 = vld [vmem:[%s323 + $0x12f8] sm:$0xff]
        %v1045 = vld [vmem:[%s323 + $0x1300] sm:$0xff]
        %v1046 = vld [vmem:[%s323 + $0x1308] sm:$0xff]
        %v1047 = vld [vmem:[%s323 + $0x1310] sm:$0xff]
        %v1048 = vld [vmem:[%s323 + $0x1318] sm:$0xff]
        %v1049 = vld [vmem:[%s323 + $0x1320] sm:$0xff]
        %v1050 = vld [vmem:[%s323 + $0x1328] sm:$0xff]
        %v1051 = vld [vmem:[%s323 + $0x1330] sm:$0xff]
        %v1052 = vld [vmem:[%s323 + $0x1338] sm:$0xff]
        %v1053 = vld [vmem:[%s323 + $0x1340] sm:$0xff]
        %v1054 = vld [vmem:[%s323 + $0x1348] sm:$0xff]
        %v1055 = vld [vmem:[%s323 + $0x1350] sm:$0xff]
        %v1056 = vld [vmem:[%s323 + $0x1358] sm:$0xff]
        %v1057 = vld [vmem:[%s323 + $0x1360] sm:$0xff]
        %v1058 = vld [vmem:[%s323 + $0x1368] sm:$0xff]
        %v1059 = vld [vmem:[%s323 + $0x1370] sm:$0xff]
        %v1060 = vld [vmem:[%s323 + $0x1378] sm:$0xff]
        %v1061 = vld [vmem:[%s323 + $0x1380] sm:$0xff]
        %v1062 = vld [vmem:[%s323 + $0x1388] sm:$0xff]
        %v1063 = vld [vmem:[%s323 + $0x1390] sm:$0xff]
        %v1064 = vld [vmem:[%s323 + $0x1398] sm:$0xff]
        %v1065 = vld [vmem:[%s323 + $0x13a0] sm:$0xff]
        %v1066 = vld [vmem:[%s323 + $0x13a8] sm:$0xff]
        %v1067 = vld [vmem:[%s323 + $0x13b0] sm:$0xff]
        %v1068 = vld [vmem:[%s323 + $0x13b8] sm:$0xff]
        %v1069 = vld [vmem:[%s323 + $0x13c0] sm:$0xff]
        %v1070 = vld [vmem:[%s323 + $0x13c8] sm:$0xff]
        %v1071 = vld [vmem:[%s323 + $0x13d0] sm:$0xff]
        %v1072 = vld [vmem:[%s323 + $0x13d8] sm:$0xff]
        %v1073 = vld [vmem:[%s323 + $0x13e0] sm:$0xff]
        %v1074 = vld [vmem:[%s323 + $0x13e8] sm:$0xff]
        %v1075 = vld [vmem:[%s323 + $0x13f0] sm:$0xff]
        %v1076 = vld [vmem:[%s323 + $0x13f8] sm:$0xff]
        %v1077 = vld [vmem:[%s323 + $0x1400] sm:$0xff]
        %v1078 = vld [vmem:[%s323 + $0x1408] sm:$0xff]
        %v1079 = vld [vmem:[%s323 + $0x1410] sm:$0xff]
        %v1080 = vld [vmem:[%s323 + $0x1418] sm:$0xff]
        %v1081 = vld [vmem:[%s323 + $0x1420] sm:$0xff]
        %v1082 = vld [vmem:[%s323 + $0x1428] sm:$0xff]
        %v1083 = vld [vmem:[%s323 + $0x1430] sm:$0xff]
        %v1084 = vld [vmem:[%s323 + $0x1438] sm:$0xff]
        %v1085 = vld [vmem:[%s323 + $0x1440] sm:$0xff]
        %v1086 = vld [vmem:[%s323 + $0x1448] sm:$0xff]
        %v1087 = vld [vmem:[%s323 + $0x1450] sm:$0xff]
        %v1088 = vld [vmem:[%s323 + $0x1458] sm:$0xff]
        %v1089 = vld [vmem:[%s323 + $0x1460] sm:$0xff]
        %v1090 = vld [vmem:[%s323 + $0x1468] sm:$0xff]
        %v1091 = vld [vmem:[%s323 + $0x1470] sm:$0xff]
        %v1092 = vld [vmem:[%s323 + $0x1478] sm:$0xff]
        %v1093 = vld [vmem:[%s323 + $0x1480] sm:$0xff]
        %v1094 = vld [vmem:[%s323 + $0x1488] sm:$0xff]
        %v1095 = vld [vmem:[%s323 + $0x1490] sm:$0xff]
        %v1096 = vld [vmem:[%s323 + $0x1498] sm:$0xff]
        %v1097 = vld [vmem:[%s323 + $0x14a0] sm:$0xff]
        %v1098 = vld [vmem:[%s323 + $0x14a8] sm:$0xff]
        %v1099 = vld [vmem:[%s323 + $0x14b0] sm:$0xff]
        %v1100 = vld [vmem:[%s323 + $0x14b8] sm:$0xff]
        %v1101 = vld [vmem:[%s323 + $0x14c0] sm:$0xff]
        %v1102 = vld [vmem:[%s323 + $0x14c8] sm:$0xff]
        %v1103 = vld [vmem:[%s323 + $0x14d0] sm:$0xff]
        %v1104 = vld [vmem:[%s323 + $0x14d8] sm:$0xff]
        %v1105 = vld [vmem:[%s323 + $0x14e0] sm:$0xff]
        %v1106 = vld [vmem:[%s323 + $0x14e8] sm:$0xff]
        %v1107 = vld [vmem:[%s323 + $0x14f0] sm:$0xff]
        %v1108 = vld [vmem:[%s323 + $0x14f8] sm:$0xff]
        %v1109 = vld [vmem:[%s323 + $0x1500] sm:$0xff]
        %v1110 = vld [vmem:[%s323 + $0x1508] sm:$0xff]
        %v1111 = vld [vmem:[%s323 + $0x1510] sm:$0xff]
        %v1112 = vld [vmem:[%s323 + $0x1518] sm:$0xff]
        %v1113 = vld [vmem:[%s323 + $0x1520] sm:$0xff]
        %v1114 = vld [vmem:[%s323 + $0x1528] sm:$0xff]
        %v1115 = vld [vmem:[%s323 + $0x1530] sm:$0xff]
        %v1116 = vld [vmem:[%s323 + $0x1538] sm:$0xff]
        %v1117 = vld [vmem:[%s323 + $0x1540] sm:$0xff]
        %v1118 = vld [vmem:[%s323 + $0x1548] sm:$0xff]
        %v1119 = vld [vmem:[%s323 + $0x1550] sm:$0xff]
        %v1120 = vld [vmem:[%s323 + $0x1558] sm:$0xff]
        %v1121 = vld [vmem:[%s323 + $0x1560] sm:$0xff]
        %v1122 = vld [vmem:[%s323 + $0x1568] sm:$0xff]
        %v1123 = vld [vmem:[%s323 + $0x1570] sm:$0xff]
        %v1124 = vld [vmem:[%s323 + $0x1578] sm:$0xff]
        %v1125 = vld [vmem:[%s323 + $0x1580] sm:$0xff]
        %v1126 = vld [vmem:[%s323 + $0x1588] sm:$0xff]
        %v1127 = vld [vmem:[%s323 + $0x1590] sm:$0xff]
        %v1128 = vld [vmem:[%s323 + $0x1598] sm:$0xff]
        %v1129 = vld [vmem:[%s323 + $0x15a0] sm:$0xff]
        %v1130 = vld [vmem:[%s323 + $0x15a8] sm:$0xff]
        %v1131 = vld [vmem:[%s323 + $0x15b0] sm:$0xff]
        %v1132 = vld [vmem:[%s323 + $0x15b8] sm:$0xff]
        %v1133 = vld [vmem:[%s323 + $0x15c0] sm:$0xff]
        %v1134 = vld [vmem:[%s323 + $0x15c8] sm:$0xff]
        %v1135 = vld [vmem:[%s323 + $0x15d0] sm:$0xff]
        %v1136 = vld [vmem:[%s323 + $0x15d8] sm:$0xff]
        %v1137 = vld [vmem:[%s323 + $0x15e0] sm:$0xff]
        %v1138 = vld [vmem:[%s323 + $0x15e8] sm:$0xff]
        %v1139 = vld [vmem:[%s323 + $0x15f0] sm:$0xff]
        %v1140 = vld [vmem:[%s323 + $0x15f8] sm:$0xff]
        %v1141 = vld [vmem:[%s323 + $0x1600] sm:$0xff]
        %v1142 = vld [vmem:[%s323 + $0x1608] sm:$0xff]
        %v1143 = vld [vmem:[%s323 + $0x1610] sm:$0xff]
        %v1144 = vld [vmem:[%s323 + $0x1618] sm:$0xff]
        %v1145 = vld [vmem:[%s323 + $0x1620] sm:$0xff]
        %v1146 = vld [vmem:[%s323 + $0x1628] sm:$0xff]
        %v1147 = vld [vmem:[%s323 + $0x1630] sm:$0xff]
        %v1148 = vld [vmem:[%s323 + $0x1638] sm:$0xff]
        %v1149 = vld [vmem:[%s323 + $0x1640] sm:$0xff]
        %v1150 = vld [vmem:[%s323 + $0x1648] sm:$0xff]
        %v1151 = vld [vmem:[%s323 + $0x1650] sm:$0xff]
        %v1152 = vld [vmem:[%s323 + $0x1658] sm:$0xff]
        %v1153 = vld [vmem:[%s323 + $0x1660] sm:$0xff]
        %v1154 = vld [vmem:[%s323 + $0x1668] sm:$0xff]
        %v1155 = vld [vmem:[%s323 + $0x1670] sm:$0xff]
        %v1156 = vld [vmem:[%s323 + $0x1678] sm:$0xff]
        %v1157 = vld [vmem:[%s323 + $0x1680] sm:$0xff]
        %v1158 = vld [vmem:[%s323 + $0x1688] sm:$0xff]
        %v1159 = vld [vmem:[%s323 + $0x1690] sm:$0xff]
        %v1160 = vld [vmem:[%s323 + $0x1698] sm:$0xff]
        %v1161 = vld [vmem:[%s323 + $0x16a0] sm:$0xff]
        %v1162 = vld [vmem:[%s323 + $0x16a8] sm:$0xff]
        %v1163 = vld [vmem:[%s323 + $0x16b0] sm:$0xff]
        %v1164 = vld [vmem:[%s323 + $0x16b8] sm:$0xff]
        %v1165 = vld [vmem:[%s323 + $0x16c0] sm:$0xff]
        %v1166 = vld [vmem:[%s323 + $0x16c8] sm:$0xff]
        %v1167 = vld [vmem:[%s323 + $0x16d0] sm:$0xff]
        %v1168 = vld [vmem:[%s323 + $0x16d8] sm:$0xff]
        %v1169 = vld [vmem:[%s323 + $0x16e0] sm:$0xff]
        %v1170 = vld [vmem:[%s323 + $0x16e8] sm:$0xff]
        %v1171 = vld [vmem:[%s323 + $0x16f0] sm:$0xff]
        %v1172 = vld [vmem:[%s323 + $0x16f8] sm:$0xff]
        %v1173 = vld [vmem:[%s323 + $0x1700] sm:$0xff]
        %v1174 = vld [vmem:[%s323 + $0x1708] sm:$0xff]
        %v1175 = vld [vmem:[%s323 + $0x1710] sm:$0xff]
        %v1176 = vld [vmem:[%s323 + $0x1718] sm:$0xff]
        %v1177 = vld [vmem:[%s323 + $0x1720] sm:$0xff]
        %v1178 = vld [vmem:[%s323 + $0x1728] sm:$0xff]
        %v1179 = vld [vmem:[%s323 + $0x1730] sm:$0xff]
        %v1180 = vld [vmem:[%s323 + $0x1738] sm:$0xff]
        %v1181 = vld [vmem:[%s323 + $0x1740] sm:$0xff]
        %v1182 = vld [vmem:[%s323 + $0x1748] sm:$0xff]
        %v1183 = vld [vmem:[%s323 + $0x1750] sm:$0xff]
        %v1184 = vld [vmem:[%s323 + $0x1758] sm:$0xff]
        %v1185 = vld [vmem:[%s323 + $0x1760] sm:$0xff]
        %v1186 = vld [vmem:[%s323 + $0x1768] sm:$0xff]
        %v1187 = vld [vmem:[%s323 + $0x1770] sm:$0xff]
        %v1188 = vld [vmem:[%s323 + $0x1778] sm:$0xff]
        %v1189 = vld [vmem:[%s323 + $0x1780] sm:$0xff]
        %v1190 = vld [vmem:[%s323 + $0x1788] sm:$0xff]
        %v1191 = vld [vmem:[%s323 + $0x1790] sm:$0xff]
        %v1192 = vld [vmem:[%s323 + $0x1798] sm:$0xff]
        %v1193 = vld [vmem:[%s323 + $0x17a0] sm:$0xff]
        %v1194 = vld [vmem:[%s323 + $0x17a8] sm:$0xff]
        %v1195 = vld [vmem:[%s323 + $0x17b0] sm:$0xff]
        %v1196 = vld [vmem:[%s323 + $0x17b8] sm:$0xff]
        %v1197 = vld [vmem:[%s323 + $0x17c0] sm:$0xff]
        %v1198 = vld [vmem:[%s323 + $0x17c8] sm:$0xff]
        %v1199 = vld [vmem:[%s323 + $0x17d0] sm:$0xff]
        %v1200 = vld [vmem:[%s323 + $0x17d8] sm:$0xff]
        %v1201 = vld [vmem:[%s323 + $0x17e0] sm:$0xff]
        %v1202 = vld [vmem:[%s323 + $0x17e8] sm:$0xff]
        %v1203 = vld [vmem:[%s323 + $0x17f0] sm:$0xff]
        %v1204 = vld [vmem:[%s323 + $0x17f8] sm:$0xff]
        %v1205 = vld [vmem:[%s323 + $0x1800] sm:$0xff]
        %v1206 = vld [vmem:[%s323 + $0x1808] sm:$0xff]
        %v1207 = vld [vmem:[%s323 + $0x1810] sm:$0xff]
        %v1208 = vld [vmem:[%s323 + $0x1818] sm:$0xff]
        %v1209 = vld [vmem:[%s323 + $0x1820] sm:$0xff]
        %v1210 = vld [vmem:[%s323 + $0x1828] sm:$0xff]
        %v1211 = vld [vmem:[%s323 + $0x1830] sm:$0xff]
        %v1212 = vld [vmem:[%s323 + $0x1838] sm:$0xff]
        %v1213 = vld [vmem:[%s323 + $0x1840] sm:$0xff]
        %v1214 = vld [vmem:[%s323 + $0x1848] sm:$0xff]
        %v1215 = vld [vmem:[%s323 + $0x1850] sm:$0xff]
        %v1216 = vld [vmem:[%s323 + $0x1858] sm:$0xff]
        %v1217 = vld [vmem:[%s323 + $0x1860] sm:$0xff]
        %v1218 = vld [vmem:[%s323 + $0x1868] sm:$0xff]
        %v1219 = vld [vmem:[%s323 + $0x1870] sm:$0xff]
        %v1220 = vld [vmem:[%s323 + $0x1878] sm:$0xff]
        %v1221 = vld [vmem:[%s323 + $0x1880] sm:$0xff]
        %v1222 = vld [vmem:[%s323 + $0x1888] sm:$0xff]
        %v1223 = vld [vmem:[%s323 + $0x1890] sm:$0xff]
        %v1224 = vld [vmem:[%s323 + $0x1898] sm:$0xff]
        %v1225 = vld [vmem:[%s323 + $0x18a0] sm:$0xff]
        %v1226 = vld [vmem:[%s323 + $0x18a8] sm:$0xff]
        %v1227 = vld [vmem:[%s323 + $0x18b0] sm:$0xff]
        %v1228 = vld [vmem:[%s323 + $0x18b8] sm:$0xff]
        %v1229 = vld [vmem:[%s323 + $0x18c0] sm:$0xff]
        %v1230 = vld [vmem:[%s323 + $0x18c8] sm:$0xff]
        %v1231 = vld [vmem:[%s323 + $0x18d0] sm:$0xff]
        %v1232 = vld [vmem:[%s323 + $0x18d8] sm:$0xff]
        %v1233 = vld [vmem:[%s323 + $0x18e0] sm:$0xff]
        %v1234 = vld [vmem:[%s323 + $0x18e8] sm:$0xff]
        %v1235 = vld [vmem:[%s323 + $0x18f0] sm:$0xff]
        %v1236 = vld [vmem:[%s323 + $0x18f8] sm:$0xff]
        %v1237 = vld [vmem:[%s323 + $0x1900] sm:$0xff]
        %v1238 = vld [vmem:[%s323 + $0x1908] sm:$0xff]
        %v1239 = vld [vmem:[%s323 + $0x1910] sm:$0xff]
        %v1240 = vld [vmem:[%s323 + $0x1918] sm:$0xff]
        %v1241 = vld [vmem:[%s323 + $0x1920] sm:$0xff]
        %v1242 = vld [vmem:[%s323 + $0x1928] sm:$0xff]
        %v1243 = vld [vmem:[%s323 + $0x1930] sm:$0xff]
        %v1244 = vld [vmem:[%s323 + $0x1938] sm:$0xff]
        %v1245 = vld [vmem:[%s323 + $0x1940] sm:$0xff]
        %v1246 = vld [vmem:[%s323 + $0x1948] sm:$0xff]
        %v1247 = vld [vmem:[%s323 + $0x1950] sm:$0xff]
        %v1248 = vld [vmem:[%s323 + $0x1958] sm:$0xff]
        %v1249 = vld [vmem:[%s323 + $0x1960] sm:$0xff]
        %v1250 = vld [vmem:[%s323 + $0x1968] sm:$0xff]
        %v1251 = vld [vmem:[%s323 + $0x1970] sm:$0xff]
        %v1252 = vld [vmem:[%s323 + $0x1978] sm:$0xff]
        %v1253 = vld [vmem:[%s323 + $0x1980] sm:$0xff]
        %v1254 = vld [vmem:[%s323 + $0x1988] sm:$0xff]
        %v1255 = vld [vmem:[%s323 + $0x1990] sm:$0xff]
        %v1256 = vld [vmem:[%s323 + $0x1998] sm:$0xff]
        %v1257 = vld [vmem:[%s323 + $0x19a0] sm:$0xff]
        %v1258 = vld [vmem:[%s323 + $0x19a8] sm:$0xff]
        %v1259 = vld [vmem:[%s323 + $0x19b0] sm:$0xff]
        %v1260 = vld [vmem:[%s323 + $0x19b8] sm:$0xff]
        %v1261 = vld [vmem:[%s323 + $0x19c0] sm:$0xff]
        %v1262 = vld [vmem:[%s323 + $0x19c8] sm:$0xff]
        %v1263 = vld [vmem:[%s323 + $0x19d0] sm:$0xff]
        %v1264 = vld [vmem:[%s323 + $0x19d8] sm:$0xff]
        %v1265 = vld [vmem:[%s323 + $0x19e0] sm:$0xff]
        %v1266 = vld [vmem:[%s323 + $0x19e8] sm:$0xff]
        %v1267 = vld [vmem:[%s323 + $0x19f0] sm:$0xff]
        %v1268 = vld [vmem:[%s323 + $0x19f8] sm:$0xff]
        %v1269 = vld [vmem:[%s323 + $0x1a00] sm:$0xff]
        %v1270 = vld [vmem:[%s323 + $0x1a08] sm:$0xff]
        %v1271 = vld [vmem:[%s323 + $0x1a10] sm:$0xff]
        %v1272 = vld [vmem:[%s323 + $0x1a18] sm:$0xff]
        %v1273 = vld [vmem:[%s323 + $0x1a20] sm:$0xff]
        %v1274 = vld [vmem:[%s323 + $0x1a28] sm:$0xff]
        %v1275 = vld [vmem:[%s323 + $0x1a30] sm:$0xff]
        %v1276 = vld [vmem:[%s323 + $0x1a38] sm:$0xff]
        %v1277 = vld [vmem:[%s323 + $0x1a40] sm:$0xff]
        %v1278 = vld [vmem:[%s323 + $0x1a48] sm:$0xff]
        %v1279 = vld [vmem:[%s323 + $0x1a50] sm:$0xff]
        %v1280 = vld [vmem:[%s323 + $0x1a58] sm:$0xff]
        %v1281 = vld [vmem:[%s323 + $0x1a60] sm:$0xff]
        %v1282 = vld [vmem:[%s323 + $0x1a68] sm:$0xff]
        %v1283 = vld [vmem:[%s323 + $0x1a70] sm:$0xff]
        %v1284 = vld [vmem:[%s323 + $0x1a78] sm:$0xff]
        %v1285 = vld [vmem:[%s323 + $0x1a80] sm:$0xff]
        %v1286 = vld [vmem:[%s323 + $0x1a88] sm:$0xff]
        %v1287 = vld [vmem:[%s323 + $0x1a90] sm:$0xff]
        %v1288 = vld [vmem:[%s323 + $0x1a98] sm:$0xff]
        %v1289 = vld [vmem:[%s323 + $0x1aa0] sm:$0xff]
        %v1290 = vld [vmem:[%s323 + $0x1aa8] sm:$0xff]
        %v1291 = vld [vmem:[%s323 + $0x1ab0] sm:$0xff]
        %v1292 = vld [vmem:[%s323 + $0x1ab8] sm:$0xff]
        %v1293 = vld [vmem:[%s323 + $0x1ac0] sm:$0xff]
        %v1294 = vld [vmem:[%s323 + $0x1ac8] sm:$0xff]
        %v1295 = vld [vmem:[%s323 + $0x1ad0] sm:$0xff]
        %v1296 = vld [vmem:[%s323 + $0x1ad8] sm:$0xff]
        %v1297 = vld [vmem:[%s323 + $0x1ae0] sm:$0xff]
        %v1298 = vld [vmem:[%s323 + $0x1ae8] sm:$0xff]
        %v1299 = vld [vmem:[%s323 + $0x1af0] sm:$0xff]
        %v1300 = vld [vmem:[%s323 + $0x1af8] sm:$0xff]
        %v1301 = vld [vmem:[%s323 + $0x1b00] sm:$0xff]
        %v1302 = vld [vmem:[%s323 + $0x1b08] sm:$0xff]
        %v1303 = vld [vmem:[%s323 + $0x1b10] sm:$0xff]
        %v1304 = vld [vmem:[%s323 + $0x1b18] sm:$0xff]
        %v1305 = vld [vmem:[%s323 + $0x1b20] sm:$0xff]
        %v1306 = vld [vmem:[%s323 + $0x1b28] sm:$0xff]
        %v1307 = vld [vmem:[%s323 + $0x1b30] sm:$0xff]
        %v1308 = vld [vmem:[%s323 + $0x1b38] sm:$0xff]
        %v1309 = vld [vmem:[%s323 + $0x1b40] sm:$0xff]
        %v1310 = vld [vmem:[%s323 + $0x1b48] sm:$0xff]
        %v1311 = vld [vmem:[%s323 + $0x1b50] sm:$0xff]
        %v1312 = vld [vmem:[%s323 + $0x1b58] sm:$0xff]
        %v1313 = vld [vmem:[%s323 + $0x1b60] sm:$0xff]
        %v1314 = vld [vmem:[%s323 + $0x1b68] sm:$0xff]
        %v1315 = vld [vmem:[%s323 + $0x1b70] sm:$0xff]
        %v1316 = vld [vmem:[%s323 + $0x1b78] sm:$0xff]
        %v1317 = vld [vmem:[%s323 + $0x1b80] sm:$0xff]
        %v1318 = vld [vmem:[%s323 + $0x1b88] sm:$0xff]
        %v1319 = vld [vmem:[%s323 + $0x1b90] sm:$0xff]
        %v1320 = vld [vmem:[%s323 + $0x1b98] sm:$0xff]
        %v1321 = vld [vmem:[%s323 + $0x1ba0] sm:$0xff]
        %v1322 = vld [vmem:[%s323 + $0x1ba8] sm:$0xff]
        %v1323 = vld [vmem:[%s323 + $0x1bb0] sm:$0xff]
        %v1324 = vld [vmem:[%s323 + $0x1bb8] sm:$0xff]
        %v1325 = vld [vmem:[%s323 + $0x1bc0] sm:$0xff]
        %v1326 = vld [vmem:[%s323 + $0x1bc8] sm:$0xff]
        %v1327 = vld [vmem:[%s323 + $0x1bd0] sm:$0xff]
        %v1328 = vld [vmem:[%s323 + $0x1bd8] sm:$0xff]
        %v1329 = vld [vmem:[%s323 + $0x1be0] sm:$0xff]
        %v1330 = vld [vmem:[%s323 + $0x1be8] sm:$0xff]
        %v1331 = vld [vmem:[%s323 + $0x1bf0] sm:$0xff]
        %v1332 = vld [vmem:[%s323 + $0x1bf8] sm:$0xff]
        %v1333 = vld [vmem:[%s323 + $0x1c00] sm:$0xff]
        %v1334 = vld [vmem:[%s323 + $0x1c08] sm:$0xff]
        %v1335 = vld [vmem:[%s323 + $0x1c10] sm:$0xff]
        %v1336 = vld [vmem:[%s323 + $0x1c18] sm:$0xff]
        %v1337 = vld [vmem:[%s323 + $0x1c20] sm:$0xff]
        %v1338 = vld [vmem:[%s323 + $0x1c28] sm:$0xff]
        %v1339 = vld [vmem:[%s323 + $0x1c30] sm:$0xff]
        %v1340 = vld [vmem:[%s323 + $0x1c38] sm:$0xff]
        %v1341 = vld [vmem:[%s323 + $0x1c40] sm:$0xff]
        %v1342 = vld [vmem:[%s323 + $0x1c48] sm:$0xff]
        %v1343 = vld [vmem:[%s323 + $0x1c50] sm:$0xff]
        %v1344 = vld [vmem:[%s323 + $0x1c58] sm:$0xff]
        %v1345 = vld [vmem:[%s323 + $0x1c60] sm:$0xff]
        %v1346 = vld [vmem:[%s323 + $0x1c68] sm:$0xff]
        %v1347 = vld [vmem:[%s323 + $0x1c70] sm:$0xff]
        %v1348 = vld [vmem:[%s323 + $0x1c78] sm:$0xff]
        %v1349 = vld [vmem:[%s323 + $0x1c80] sm:$0xff]
        %v1350 = vld [vmem:[%s323 + $0x1c88] sm:$0xff]
        %v1351 = vld [vmem:[%s323 + $0x1c90] sm:$0xff]
        %v1352 = vld [vmem:[%s323 + $0x1c98] sm:$0xff]
        %v1353 = vld [vmem:[%s323 + $0x1ca0] sm:$0xff]
        %v1354 = vld [vmem:[%s323 + $0x1ca8] sm:$0xff]
        %v1355 = vld [vmem:[%s323 + $0x1cb0] sm:$0xff]
        %v1356 = vld [vmem:[%s323 + $0x1cb8] sm:$0xff]
        %v1357 = vld [vmem:[%s323 + $0x1cc0] sm:$0xff]
        %v1358 = vld [vmem:[%s323 + $0x1cc8] sm:$0xff]
        %v1359 = vld [vmem:[%s323 + $0x1cd0] sm:$0xff]
        %v1360 = vld [vmem:[%s323 + $0x1cd8] sm:$0xff]
        %v1361 = vld [vmem:[%s323 + $0x1ce0] sm:$0xff]
        %v1362 = vld [vmem:[%s323 + $0x1ce8] sm:$0xff]
        %v1363 = vld [vmem:[%s323 + $0x1cf0] sm:$0xff]
        %v1364 = vld [vmem:[%s323 + $0x1cf8] sm:$0xff]
        %v1365 = vld [vmem:[%s323 + $0x1d00] sm:$0xff]
        %v1366 = vld [vmem:[%s323 + $0x1d08] sm:$0xff]
        %v1367 = vld [vmem:[%s323 + $0x1d10] sm:$0xff]
        %v1368 = vld [vmem:[%s323 + $0x1d18] sm:$0xff]
        %v1369 = vld [vmem:[%s323 + $0x1d20] sm:$0xff]
        %v1370 = vld [vmem:[%s323 + $0x1d28] sm:$0xff]
        %v1371 = vld [vmem:[%s323 + $0x1d30] sm:$0xff]
        %v1372 = vld [vmem:[%s323 + $0x1d38] sm:$0xff]
        %v1373 = vld [vmem:[%s323 + $0x1d40] sm:$0xff]
        %v1374 = vld [vmem:[%s323 + $0x1d48] sm:$0xff]
        %v1375 = vld [vmem:[%s323 + $0x1d50] sm:$0xff]
        %v1376 = vld [vmem:[%s323 + $0x1d58] sm:$0xff]
        %v1377 = vld [vmem:[%s323 + $0x1d60] sm:$0xff]
        %v1378 = vld [vmem:[%s323 + $0x1d68] sm:$0xff]
        %v1379 = vld [vmem:[%s323 + $0x1d70] sm:$0xff]
        %v1380 = vld [vmem:[%s323 + $0x1d78] sm:$0xff]
        %v1381 = vld [vmem:[%s323 + $0x1d80] sm:$0xff]
        %v1382 = vld [vmem:[%s323 + $0x1d88] sm:$0xff]
        %v1383 = vld [vmem:[%s323 + $0x1d90] sm:$0xff]
        %v1384 = vld [vmem:[%s323 + $0x1d98] sm:$0xff]
        %v1385 = vld [vmem:[%s323 + $0x1da0] sm:$0xff]
        %v1386 = vld [vmem:[%s323 + $0x1da8] sm:$0xff]
        %v1387 = vld [vmem:[%s323 + $0x1db0] sm:$0xff]
        %v1388 = vld [vmem:[%s323 + $0x1db8] sm:$0xff]
        %v1389 = vld [vmem:[%s323 + $0x1dc0] sm:$0xff]
        %v1390 = vld [vmem:[%s323 + $0x1dc8] sm:$0xff]
        %v1391 = vld [vmem:[%s323 + $0x1dd0] sm:$0xff]
        %v1392 = vld [vmem:[%s323 + $0x1dd8] sm:$0xff]
        %v1393 = vld [vmem:[%s323 + $0x1de0] sm:$0xff]
        %v1394 = vld [vmem:[%s323 + $0x1de8] sm:$0xff]
        %v1395 = vld [vmem:[%s323 + $0x1df0] sm:$0xff]
        %v1396 = vld [vmem:[%s323 + $0x1df8] sm:$0xff]
        %v1397 = vld [vmem:[%s323 + $0x1e00] sm:$0xff]
        %v1398 = vld [vmem:[%s323 + $0x1e08] sm:$0xff]
        %v1399 = vld [vmem:[%s323 + $0x1e10] sm:$0xff]
        %v1400 = vld [vmem:[%s323 + $0x1e18] sm:$0xff]
        %v1401 = vld [vmem:[%s323 + $0x1e20] sm:$0xff]
        %v1402 = vld [vmem:[%s323 + $0x1e28] sm:$0xff]
        %v1403 = vld [vmem:[%s323 + $0x1e30] sm:$0xff]
        %v1404 = vld [vmem:[%s323 + $0x1e38] sm:$0xff]
        %v1405 = vld [vmem:[%s323 + $0x1e40] sm:$0xff]
        %v1406 = vld [vmem:[%s323 + $0x1e48] sm:$0xff]
        %v1407 = vld [vmem:[%s323 + $0x1e50] sm:$0xff]
        %v1408 = vld [vmem:[%s323 + $0x1e58] sm:$0xff]
        %v1409 = vld [vmem:[%s323 + $0x1e60] sm:$0xff]
        %v1410 = vld [vmem:[%s323 + $0x1e68] sm:$0xff]
        %v1411 = vld [vmem:[%s323 + $0x1e70] sm:$0xff]
        %v1412 = vld [vmem:[%s323 + $0x1e78] sm:$0xff]
        %v1413 = vld [vmem:[%s323 + $0x1e80] sm:$0xff]
        %v1414 = vld [vmem:[%s323 + $0x1e88] sm:$0xff]
        %v1415 = vld [vmem:[%s323 + $0x1e90] sm:$0xff]
        %v1416 = vld [vmem:[%s323 + $0x1e98] sm:$0xff]
        %v1417 = vld [vmem:[%s323 + $0x1ea0] sm:$0xff]
        %v1418 = vld [vmem:[%s323 + $0x1ea8] sm:$0xff]
        %v1419 = vld [vmem:[%s323 + $0x1eb0] sm:$0xff]
        %v1420 = vld [vmem:[%s323 + $0x1eb8] sm:$0xff]
        %v1421 = vld [vmem:[%s323 + $0x1ec0] sm:$0xff]
        %v1422 = vld [vmem:[%s323 + $0x1ec8] sm:$0xff]
        %v1423 = vld [vmem:[%s323 + $0x1ed0] sm:$0xff]
        %v1424 = vld [vmem:[%s323 + $0x1ed8] sm:$0xff]
        %v1425 = vld [vmem:[%s323 + $0x1ee0] sm:$0xff]
        %v1426 = vld [vmem:[%s323 + $0x1ee8] sm:$0xff]
        %v1427 = vld [vmem:[%s323 + $0x1ef0] sm:$0xff]
        %v1428 = vld [vmem:[%s323 + $0x1ef8] sm:$0xff]
        %v1429 = vld [vmem:[%s323 + $0x1f00] sm:$0xff]
        %v1430 = vld [vmem:[%s323 + $0x1f08] sm:$0xff]
        %v1431 = vld [vmem:[%s323 + $0x1f10] sm:$0xff]
        %v1432 = vld [vmem:[%s323 + $0x1f18] sm:$0xff]
        %v1433 = vld [vmem:[%s323 + $0x1f20] sm:$0xff]
        %v1434 = vld [vmem:[%s323 + $0x1f28] sm:$0xff]
        %v1435 = vld [vmem:[%s323 + $0x1f30] sm:$0xff]
        %v1436 = vld [vmem:[%s323 + $0x1f38] sm:$0xff]
        %v1437 = vld [vmem:[%s323 + $0x1f40] sm:$0xff]
        %v1438 = vld [vmem:[%s323 + $0x1f48] sm:$0xff]
        %v1439 = vld [vmem:[%s323 + $0x1f50] sm:$0xff]
        %v1440 = vld [vmem:[%s323 + $0x1f58] sm:$0xff]
        %v1441 = vld [vmem:[%s323 + $0x1f60] sm:$0xff]
        %v1442 = vld [vmem:[%s323 + $0x1f68] sm:$0xff]
        %v1443 = vld [vmem:[%s323 + $0x1f70] sm:$0xff]
        %v1444 = vld [vmem:[%s323 + $0x1f78] sm:$0xff]
        %v1445 = vld [vmem:[%s323 + $0x1f80] sm:$0xff]
        %v1446 = vld [vmem:[%s323 + $0x1f88] sm:$0xff]
        %v1447 = vld [vmem:[%s323 + $0x1f90] sm:$0xff]
        %v1448 = vld [vmem:[%s323 + $0x1f98] sm:$0xff]
        %v1449 = vld [vmem:[%s323 + $0x1fa0] sm:$0xff]
        %v1450 = vld [vmem:[%s323 + $0x1fa8] sm:$0xff]
        %v1451 = vld [vmem:[%s323 + $0x1fb0] sm:$0xff]
        %v1452 = vld [vmem:[%s323 + $0x1fb8] sm:$0xff]
        %v1453 = vld [vmem:[%s323 + $0x1fc0] sm:$0xff]
        %v1454 = vld [vmem:[%s323 + $0x1fc8] sm:$0xff]
        %v1455 = vld [vmem:[%s323 + $0x1fd0] sm:$0xff]
        %v1456 = vld [vmem:[%s323 + $0x1fd8] sm:$0xff]
        %v1457 = vld [vmem:[%s323 + $0x1fe0] sm:$0xff]
        %v1458 = vld [vmem:[%s323 + $0x1fe8] sm:$0xff]
        %v1459 = vld [vmem:[%s323 + $0x1ff0] sm:$0xff]
        %v1460 = vld [vmem:[%s323 + $0x1ff8] sm:$0xff]
        %v1461 = vld [vmem:[%s323 + $0x2000] sm:$0xff]
        %v1462 = vld [vmem:[%s323 + $0x2008] sm:$0xff]
        %v1463 = vld [vmem:[%s323 + $0x2010] sm:$0xff]
        %v1464 = vld [vmem:[%s323 + $0x2018] sm:$0xff]
        %v1465 = vld [vmem:[%s323 + $0x2020] sm:$0xff]
        %v1466 = vld [vmem:[%s323 + $0x2028] sm:$0xff]
        %v1467 = vld [vmem:[%s323 + $0x2030] sm:$0xff]
        %v1468 = vld [vmem:[%s323 + $0x2038] sm:$0xff]
        %v1469 = vld [vmem:[%s323 + $0x2040] sm:$0xff]
        %v1470 = vld [vmem:[%s323 + $0x2048] sm:$0xff]
        %v1471 = vld [vmem:[%s323 + $0x2050] sm:$0xff]
        %v1472 = vld [vmem:[%s323 + $0x2058] sm:$0xff]
        %v1473 = vld [vmem:[%s323 + $0x2060] sm:$0xff]
        %v1474 = vld [vmem:[%s323 + $0x2068] sm:$0xff]
        %v1475 = vld [vmem:[%s323 + $0x2070] sm:$0xff]
        %v1476 = vld [vmem:[%s323 + $0x2078] sm:$0xff]
        %v1477 = vld [vmem:[%s323 + $0x2080] sm:$0xff]
        %v1478 = vld [vmem:[%s323 + $0x2088] sm:$0xff]
        %v1479 = vld [vmem:[%s323 + $0x2090] sm:$0xff]
        %v1480 = vld [vmem:[%s323 + $0x2098] sm:$0xff]
        %v1481 = vld [vmem:[%s323 + $0x20a0] sm:$0xff]
        %v1482 = vld [vmem:[%s323 + $0x20a8] sm:$0xff]
        %v1483 = vld [vmem:[%s323 + $0x20b0] sm:$0xff]
        %v1484 = vld [vmem:[%s323 + $0x20b8] sm:$0xff]
        %v1485 = vld [vmem:[%s323 + $0x20c0] sm:$0xff]
        %v1486 = vld [vmem:[%s323 + $0x20c8] sm:$0xff]
        %v1487 = vld [vmem:[%s323 + $0x20d0] sm:$0xff]
        %v1488 = vld [vmem:[%s323 + $0x20d8] sm:$0xff]
        %v1489 = vld [vmem:[%s323 + $0x20e0] sm:$0xff]
        %v1490 = vld [vmem:[%s323 + $0x20e8] sm:$0xff]
        %v1491 = vld [vmem:[%s323 + $0x20f0] sm:$0xff]
        %v1492 = vld [vmem:[%s323 + $0x20f8] sm:$0xff]
        %v1493 = vld [vmem:[%s323 + $0x2100] sm:$0xff]
        %v1494 = vld [vmem:[%s323 + $0x2108] sm:$0xff]
        %v1495 = vld [vmem:[%s323 + $0x2110] sm:$0xff]
        %v1496 = vld [vmem:[%s323 + $0x2118] sm:$0xff]
        %v1497 = vld [vmem:[%s323 + $0x2120] sm:$0xff]
        %v1498 = vld [vmem:[%s323 + $0x2128] sm:$0xff]
        %v1499 = vld [vmem:[%s323 + $0x2130] sm:$0xff]
        %v1500 = vld [vmem:[%s323 + $0x2138] sm:$0xff]
        %v1501 = vld [vmem:[%s323 + $0x2140] sm:$0xff]
        %v1502 = vld [vmem:[%s323 + $0x2148] sm:$0xff]
        %v1503 = vld [vmem:[%s323 + $0x2150] sm:$0xff]
        %v1504 = vld [vmem:[%s323 + $0x2158] sm:$0xff]
        %v1505 = vld [vmem:[%s323 + $0x2160] sm:$0xff]
        %v1506 = vld [vmem:[%s323 + $0x2168] sm:$0xff]
        %v1507 = vld [vmem:[%s323 + $0x2170] sm:$0xff]
        %v1508 = vld [vmem:[%s323 + $0x2178] sm:$0xff]
        %v1509 = vld [vmem:[%s323 + $0x2180] sm:$0xff]
        %v1510 = vld [vmem:[%s323 + $0x2188] sm:$0xff]
        %v1511 = vld [vmem:[%s323 + $0x2190] sm:$0xff]
        %v1512 = vld [vmem:[%s323 + $0x2198] sm:$0xff]
        %v1513 = vld [vmem:[%s323 + $0x21a0] sm:$0xff]
        %v1514 = vld [vmem:[%s323 + $0x21a8] sm:$0xff]
        %v1515 = vld [vmem:[%s323 + $0x21b0] sm:$0xff]
        %v1516 = vld [vmem:[%s323 + $0x21b8] sm:$0xff]
        %v1517 = vld [vmem:[%s323 + $0x21c0] sm:$0xff]
        %v1518 = vld [vmem:[%s323 + $0x21c8] sm:$0xff]
        %v1519 = vld [vmem:[%s323 + $0x21d0] sm:$0xff]
        %v1520 = vld [vmem:[%s323 + $0x21d8] sm:$0xff]
        %v1521 = vld [vmem:[%s323 + $0x21e0] sm:$0xff]
        %v1522 = vld [vmem:[%s323 + $0x21e8] sm:$0xff]
        %v1523 = vld [vmem:[%s323 + $0x21f0] sm:$0xff]
        %v1524 = vld [vmem:[%s323 + $0x21f8] sm:$0xff]
        %v1525 = vld [vmem:[%s323 + $0x2200] sm:$0xff]
        %v1526 = vld [vmem:[%s323 + $0x2208] sm:$0xff]
        %v1527 = vld [vmem:[%s323 + $0x2210] sm:$0xff]
        %v1528 = vld [vmem:[%s323 + $0x2218] sm:$0xff]
        %v1529 = vld [vmem:[%s323 + $0x2220] sm:$0xff]
        %v1530 = vld [vmem:[%s323 + $0x2228] sm:$0xff]
        %v1531 = vld [vmem:[%s323 + $0x2230] sm:$0xff]
        %v1532 = vld [vmem:[%s323 + $0x2238] sm:$0xff]
        %v1533 = vld [vmem:[%s323 + $0x2240] sm:$0xff]
        %v1534 = vld [vmem:[%s323 + $0x2248] sm:$0xff]
        %v1535 = vld [vmem:[%s323 + $0x2250] sm:$0xff]
        %v1536 = vld [vmem:[%s323 + $0x2258] sm:$0xff]
        %v1537 = vld [vmem:[%s323 + $0x2260] sm:$0xff]
        %v1538 = vld [vmem:[%s323 + $0x2268] sm:$0xff]
        %v1539 = vld [vmem:[%s323 + $0x2270] sm:$0xff]
        %v1540 = vld [vmem:[%s323 + $0x2278] sm:$0xff]
        %v1541 = vld [vmem:[%s323 + $0x2280] sm:$0xff]
        %v1542 = vld [vmem:[%s323 + $0x2288] sm:$0xff]
        %v1543 = vld [vmem:[%s323 + $0x2290] sm:$0xff]
        %v1544 = vld [vmem:[%s323 + $0x2298] sm:$0xff]
        %v1545 = vld [vmem:[%s323 + $0x22a0] sm:$0xff]
        %v1546 = vld [vmem:[%s323 + $0x22a8] sm:$0xff]
        %v1547 = vld [vmem:[%s323 + $0x22b0] sm:$0xff]
        %v1548 = vld [vmem:[%s323 + $0x22b8] sm:$0xff]
        %v1549 = vld [vmem:[%s323 + $0x22c0] sm:$0xff]
        %v1550 = vld [vmem:[%s323 + $0x22c8] sm:$0xff]
        %v1551 = vld [vmem:[%s323 + $0x22d0] sm:$0xff]
        %v1552 = vld [vmem:[%s323 + $0x22d8] sm:$0xff]
        %v1553 = vld [vmem:[%s323 + $0x22e0] sm:$0xff]
        %v1554 = vld [vmem:[%s323 + $0x22e8] sm:$0xff]
        %v1555 = vld [vmem:[%s323 + $0x22f0] sm:$0xff]
        %v1556 = vld [vmem:[%s323 + $0x22f8] sm:$0xff]
        %v1557 = vld [vmem:[%s323 + $0x2300] sm:$0xff]
        %v1558 = vld [vmem:[%s323 + $0x2308] sm:$0xff]
        %v1559 = vld [vmem:[%s323 + $0x2310] sm:$0xff]
        %v1560 = vld [vmem:[%s323 + $0x2318] sm:$0xff]
        %v1561 = vld [vmem:[%s323 + $0x2320] sm:$0xff]
        %v1562 = vld [vmem:[%s323 + $0x2328] sm:$0xff]
        %v1563 = vld [vmem:[%s323 + $0x2330] sm:$0xff]
        %v1564 = vld [vmem:[%s323 + $0x2338] sm:$0xff]
        %v1565 = vld [vmem:[%s323 + $0x2340] sm:$0xff]
        %v1566 = vld [vmem:[%s323 + $0x2348] sm:$0xff]
        %v1567 = vld [vmem:[%s323 + $0x2350] sm:$0xff]
        %v1568 = vld [vmem:[%s323 + $0x2358] sm:$0xff]
        %v1569 = vld [vmem:[%s323 + $0x2360] sm:$0xff]
        %v1570 = vld [vmem:[%s323 + $0x2368] sm:$0xff]
        %v1571 = vld [vmem:[%s323 + $0x2370] sm:$0xff]
        %v1572 = vld [vmem:[%s323 + $0x2378] sm:$0xff]
        %v1573 = vld [vmem:[%s323 + $0x2380] sm:$0xff]
        %v1574 = vld [vmem:[%s323 + $0x2388] sm:$0xff]
        %v1575 = vld [vmem:[%s323 + $0x2390] sm:$0xff]
        %v1576 = vld [vmem:[%s323 + $0x2398] sm:$0xff]
        %v1577 = vld [vmem:[%s323 + $0x23a0] sm:$0xff]
        %v1578 = vld [vmem:[%s323 + $0x23a8] sm:$0xff]
        %v1579 = vld [vmem:[%s323 + $0x23b0] sm:$0xff]
        %v1580 = vld [vmem:[%s323 + $0x23b8] sm:$0xff]
        %v1581 = vld [vmem:[%s323 + $0x23c0] sm:$0xff]
        %v1582 = vld [vmem:[%s323 + $0x23c8] sm:$0xff]
        %v1583 = vld [vmem:[%s323 + $0x23d0] sm:$0xff]
        %v1584 = vld [vmem:[%s323 + $0x23d8] sm:$0xff]
        %v1585 = vld [vmem:[%s323 + $0x23e0] sm:$0xff]
        %v1586 = vld [vmem:[%s323 + $0x23e8] sm:$0xff]
        %v1587 = vld [vmem:[%s323 + $0x23f0] sm:$0xff]
        %v1588 = vld [vmem:[%s323 + $0x23f8] sm:$0xff]
        %v1589 = vld [vmem:[%s323 + $0x2400] sm:$0xff]
        %v1590 = vld [vmem:[%s323 + $0x2408] sm:$0xff]
        %v1591 = vld [vmem:[%s323 + $0x2410] sm:$0xff]
        %v1592 = vld [vmem:[%s323 + $0x2418] sm:$0xff]
        %v1593 = vld [vmem:[%s323 + $0x2420] sm:$0xff]
        %v1594 = vld [vmem:[%s323 + $0x2428] sm:$0xff]
        %v1595 = vld [vmem:[%s323 + $0x2430] sm:$0xff]
        %v1596 = vld [vmem:[%s323 + $0x2438] sm:$0xff]
        %v1597 = vld [vmem:[%s323 + $0x2440] sm:$0xff]
        %v1598 = vld [vmem:[%s323 + $0x2448] sm:$0xff]
        %v1599 = vld [vmem:[%s323 + $0x2450] sm:$0xff]
        %v1600 = vld [vmem:[%s323 + $0x2458] sm:$0xff]
        %v1601 = vld [vmem:[%s323 + $0x2460] sm:$0xff]
        %v1602 = vld [vmem:[%s323 + $0x2468] sm:$0xff]
        %v1603 = vld [vmem:[%s323 + $0x2470] sm:$0xff]
        %v1604 = vld [vmem:[%s323 + $0x2478] sm:$0xff]
        %v1605 = vld [vmem:[%s323 + $0x2480] sm:$0xff]
        %v1606 = vld [vmem:[%s323 + $0x2488] sm:$0xff]
        %v1607 = vld [vmem:[%s323 + $0x2490] sm:$0xff]
        %v1608 = vld [vmem:[%s323 + $0x2498] sm:$0xff]
        %v1609 = vld [vmem:[%s323 + $0x24a0] sm:$0xff]
        %v1610 = vld [vmem:[%s323 + $0x24a8] sm:$0xff]
        %v1611 = vld [vmem:[%s323 + $0x24b0] sm:$0xff]
        %v1612 = vld [vmem:[%s323 + $0x24b8] sm:$0xff]
        %v1613 = vld [vmem:[%s323 + $0x24c0] sm:$0xff]
        %v1614 = vld [vmem:[%s323 + $0x24c8] sm:$0xff]
        %v1615 = vld [vmem:[%s323 + $0x24d0] sm:$0xff]
        %v1616 = vld [vmem:[%s323 + $0x24d8] sm:$0xff]
        %v1617 = vld [vmem:[%s323 + $0x24e0] sm:$0xff]
        %v1618 = vld [vmem:[%s323 + $0x24e8] sm:$0xff]
        %v1619 = vld [vmem:[%s323 + $0x24f0] sm:$0xff]
        %v1620 = vld [vmem:[%s323 + $0x24f8] sm:$0xff]
        %v1621 = vld [vmem:[%s323 + $0x2500] sm:$0xff]
        %v1622 = vld [vmem:[%s323 + $0x2508] sm:$0xff]
        %v1623 = vld [vmem:[%s323 + $0x2510] sm:$0xff]
        %v1624 = vld [vmem:[%s323 + $0x2518] sm:$0xff]
        %v1625 = vld [vmem:[%s323 + $0x2520] sm:$0xff]
        %v1626 = vld [vmem:[%s323 + $0x2528] sm:$0xff]
        %v1627 = vld [vmem:[%s323 + $0x2530] sm:$0xff]
        %v1628 = vld [vmem:[%s323 + $0x2538] sm:$0xff]
        %v1629 = vld [vmem:[%s323 + $0x2540] sm:$0xff]
        %v1630 = vld [vmem:[%s323 + $0x2548] sm:$0xff]
        %v1631 = vld [vmem:[%s323 + $0x2550] sm:$0xff]
        %v1632 = vld [vmem:[%s323 + $0x2558] sm:$0xff]
        %v1633 = vld [vmem:[%s323 + $0x2560] sm:$0xff]
        %v1634 = vld [vmem:[%s323 + $0x2568] sm:$0xff]
        %v1635 = vld [vmem:[%s323 + $0x2570] sm:$0xff]
        %v1636 = vld [vmem:[%s323 + $0x2578] sm:$0xff]
        %v1637 = vld [vmem:[%s323 + $0x2580] sm:$0xff]
        %v1638 = vld [vmem:[%s323 + $0x2588] sm:$0xff]
        %v1639 = vld [vmem:[%s323 + $0x2590] sm:$0xff]
        %v1640 = vld [vmem:[%s323 + $0x2598] sm:$0xff]
        %v1641 = vld [vmem:[%s323 + $0x25a0] sm:$0xff]
        %v1642 = vld [vmem:[%s323 + $0x25a8] sm:$0xff]
        %v1643 = vld [vmem:[%s323 + $0x25b0] sm:$0xff]
        %v1644 = vld [vmem:[%s323 + $0x25b8] sm:$0xff]
        %v1645 = vld [vmem:[%s323 + $0x25c0] sm:$0xff]
        %v1646 = vld [vmem:[%s323 + $0x25c8] sm:$0xff]
        %v1647 = vld [vmem:[%s323 + $0x25d0] sm:$0xff]
        %v1648 = vld [vmem:[%s323 + $0x25d8] sm:$0xff]
        %v1649 = vld [vmem:[%s323 + $0x25e0] sm:$0xff]
        %v1650 = vld [vmem:[%s323 + $0x25e8] sm:$0xff]
        %v1651 = vld [vmem:[%s323 + $0x25f0] sm:$0xff]
        %v1652 = vld [vmem:[%s323 + $0x25f8] sm:$0xff]
        %v1653 = vld [vmem:[%s323 + $0x2600] sm:$0xff]
        %v1654 = vld [vmem:[%s323 + $0x2608] sm:$0xff]
        %v1655 = vld [vmem:[%s323 + $0x2610] sm:$0xff]
        %v1656 = vld [vmem:[%s323 + $0x2618] sm:$0xff]
        %v1657 = vld [vmem:[%s323 + $0x2620] sm:$0xff]
        %v1658 = vld [vmem:[%s323 + $0x2628] sm:$0xff]
        %v1659 = vld [vmem:[%s323 + $0x2630] sm:$0xff]
        %v1660 = vld [vmem:[%s323 + $0x2638] sm:$0xff]
        %v1661 = vld [vmem:[%s323 + $0x2640] sm:$0xff]
        %v1662 = vld [vmem:[%s323 + $0x2648] sm:$0xff]
        %v1663 = vld [vmem:[%s323 + $0x2650] sm:$0xff]
        %v1664 = vld [vmem:[%s323 + $0x2658] sm:$0xff]
        %v1665 = vld [vmem:[%s323 + $0x2660] sm:$0xff]
        %v1666 = vld [vmem:[%s323 + $0x2668] sm:$0xff]
        %v1667 = vld [vmem:[%s323 + $0x2670] sm:$0xff]
        %v1668 = vld [vmem:[%s323 + $0x2678] sm:$0xff]
        %v1669 = vld [vmem:[%s323 + $0x2680] sm:$0xff]
        %v1670 = vld [vmem:[%s323 + $0x2688] sm:$0xff]
        %v1671 = vld [vmem:[%s323 + $0x2690] sm:$0xff]
        %v1672 = vld [vmem:[%s323 + $0x2698] sm:$0xff]
        %v1673 = vld [vmem:[%s323 + $0x26a0] sm:$0xff]
        %v1674 = vld [vmem:[%s323 + $0x26a8] sm:$0xff]
        %v1675 = vld [vmem:[%s323 + $0x26b0] sm:$0xff]
        %v1676 = vld [vmem:[%s323 + $0x26b8] sm:$0xff]
        %v1677 = vld [vmem:[%s323 + $0x26c0] sm:$0xff]
        %v1678 = vld [vmem:[%s323 + $0x26c8] sm:$0xff]
        %v1679 = vld [vmem:[%s323 + $0x26d0] sm:$0xff]
        %v1680 = vld [vmem:[%s323 + $0x26d8] sm:$0xff]
        %v1681 = vld [vmem:[%s323 + $0x26e0] sm:$0xff]
        %v1682 = vld [vmem:[%s323 + $0x26e8] sm:$0xff]
        %v1683 = vld [vmem:[%s323 + $0x26f0] sm:$0xff]
        %v1684 = vld [vmem:[%s323 + $0x26f8] sm:$0xff]
        %v1685 = vld [vmem:[%s323 + $0x2700] sm:$0xff]
        %v1686 = vld [vmem:[%s323 + $0x2708] sm:$0xff]
        %v1687 = vld [vmem:[%s323 + $0x2710] sm:$0xff]
        %v1688 = vld [vmem:[%s323 + $0x2718] sm:$0xff]
        %v1689 = vld [vmem:[%s323 + $0x2720] sm:$0xff]
        %v1690 = vld [vmem:[%s323 + $0x2728] sm:$0xff]
        %v1691 = vld [vmem:[%s323 + $0x2730] sm:$0xff]
        %v1692 = vld [vmem:[%s323 + $0x2738] sm:$0xff]
        %v1693 = vld [vmem:[%s323 + $0x2740] sm:$0xff]
        %v1694 = vld [vmem:[%s323 + $0x2748] sm:$0xff]
        %v1695 = vld [vmem:[%s323 + $0x2750] sm:$0xff]
        %v1696 = vld [vmem:[%s323 + $0x2758] sm:$0xff]
        %v1697 = vld [vmem:[%s323 + $0x2760] sm:$0xff]
        %v1698 = vld [vmem:[%s323 + $0x2768] sm:$0xff]
        %v1699 = vld [vmem:[%s323 + $0x2770] sm:$0xff]
        %v1700 = vld [vmem:[%s323 + $0x2778] sm:$0xff]
        %v1701 = vld [vmem:[%s323 + $0x2780] sm:$0xff]
        %v1702 = vld [vmem:[%s323 + $0x2788] sm:$0xff]
        %v1703 = vld [vmem:[%s323 + $0x2790] sm:$0xff]
        %v1704 = vld [vmem:[%s323 + $0x2798] sm:$0xff]
        %v1705 = vld [vmem:[%s323 + $0x27a0] sm:$0xff]
        %v1706 = vld [vmem:[%s323 + $0x27a8] sm:$0xff]
        %v1707 = vld [vmem:[%s323 + $0x27b0] sm:$0xff]
        %v1708 = vld [vmem:[%s323 + $0x27b8] sm:$0xff]
        %v1709 = vld [vmem:[%s323 + $0x27c0] sm:$0xff]
        %v1710 = vld [vmem:[%s323 + $0x27c8] sm:$0xff]
        %v1711 = vld [vmem:[%s323 + $0x27d0] sm:$0xff]
        %v1712 = vld [vmem:[%s323 + $0x27d8] sm:$0xff]
        %v1713 = vld [vmem:[%s323 + $0x27e0] sm:$0xff]
        %v1714 = vld [vmem:[%s323 + $0x27e8] sm:$0xff]
        %v1715 = vld [vmem:[%s323 + $0x27f0] sm:$0xff]
        %v1716 = vld [vmem:[%s323 + $0x27f8] sm:$0xff]
        %v1717 = vld [vmem:[%s323 + $0x2800] sm:$0xff]
        %v1718 = vld [vmem:[%s323 + $0x2808] sm:$0xff]
        %v1719 = vld [vmem:[%s323 + $0x2810] sm:$0xff]
        %v1720 = vld [vmem:[%s323 + $0x2818] sm:$0xff]
        %v1721 = vld [vmem:[%s323 + $0x2820] sm:$0xff]
        %v1722 = vld [vmem:[%s323 + $0x2828] sm:$0xff]
        %v1723 = vld [vmem:[%s323 + $0x2830] sm:$0xff]
        %v1724 = vld [vmem:[%s323 + $0x2838] sm:$0xff]
        %v1725 = vld [vmem:[%s323 + $0x2840] sm:$0xff]
        %v1726 = vld [vmem:[%s323 + $0x2848] sm:$0xff]
        %v1727 = vld [vmem:[%s323 + $0x2850] sm:$0xff]
        %v1728 = vld [vmem:[%s323 + $0x2858] sm:$0xff]
        %v1729 = vld [vmem:[%s323 + $0x2860] sm:$0xff]
        %v1730 = vld [vmem:[%s323 + $0x2868] sm:$0xff]
        %v1731 = vld [vmem:[%s323 + $0x2870] sm:$0xff]
        %v1732 = vld [vmem:[%s323 + $0x2878] sm:$0xff]
        %v1733 = vld [vmem:[%s323 + $0x2880] sm:$0xff]
        %v1734 = vld [vmem:[%s323 + $0x2888] sm:$0xff]
        %v1735 = vld [vmem:[%s323 + $0x2890] sm:$0xff]
        %v1736 = vld [vmem:[%s323 + $0x2898] sm:$0xff]
        %v1737 = vld [vmem:[%s323 + $0x28a0] sm:$0xff]
        %v1738 = vld [vmem:[%s323 + $0x28a8] sm:$0xff]
        %v1739 = vld [vmem:[%s323 + $0x28b0] sm:$0xff]
        %v1740 = vld [vmem:[%s323 + $0x28b8] sm:$0xff]
        %v1741 = vld [vmem:[%s323 + $0x28c0] sm:$0xff]
        %v1742 = vld [vmem:[%s323 + $0x28c8] sm:$0xff]
        %v1743 = vld [vmem:[%s323 + $0x28d0] sm:$0xff]
        %v1744 = vld [vmem:[%s323 + $0x28d8] sm:$0xff]
        %v1745 = vld [vmem:[%s323 + $0x28e0] sm:$0xff]
        %v1746 = vld [vmem:[%s323 + $0x28e8] sm:$0xff]
        %v1747 = vld [vmem:[%s323 + $0x28f0] sm:$0xff]
        %v1748 = vld [vmem:[%s323 + $0x28f8] sm:$0xff]
        %v1749 = vld [vmem:[%s323 + $0x2900] sm:$0xff]
        %v1750 = vld [vmem:[%s323 + $0x2908] sm:$0xff]
        %v1751 = vld [vmem:[%s323 + $0x2910] sm:$0xff]
        %v1752 = vld [vmem:[%s323 + $0x2918] sm:$0xff]
        %v1753 = vld [vmem:[%s323 + $0x2920] sm:$0xff]
        %v1754 = vld [vmem:[%s323 + $0x2928] sm:$0xff]
        %v1755 = vld [vmem:[%s323 + $0x2930] sm:$0xff]
        %v1756 = vld [vmem:[%s323 + $0x2938] sm:$0xff]
        %v1757 = vld [vmem:[%s323 + $0x2940] sm:$0xff]
        %v1758 = vld [vmem:[%s323 + $0x2948] sm:$0xff]
        %v1759 = vld [vmem:[%s323 + $0x2950] sm:$0xff]
        %v1760 = vld [vmem:[%s323 + $0x2958] sm:$0xff]
        %v1761 = vld [vmem:[%s323 + $0x2960] sm:$0xff]
        %v1762 = vld [vmem:[%s323 + $0x2968] sm:$0xff]
        %v1763 = vld [vmem:[%s323 + $0x2970] sm:$0xff]
        %v1764 = vld [vmem:[%s323 + $0x2978] sm:$0xff]
        %v1765 = vld [vmem:[%s323 + $0x2980] sm:$0xff]
        %v1766 = vld [vmem:[%s323 + $0x2988] sm:$0xff]
        %v1767 = vld [vmem:[%s323 + $0x2990] sm:$0xff]
        %v1768 = vld [vmem:[%s323 + $0x2998] sm:$0xff]
        %v1769 = vld [vmem:[%s323 + $0x29a0] sm:$0xff]
        %v1770 = vld [vmem:[%s323 + $0x29a8] sm:$0xff]
        %v1771 = vld [vmem:[%s323 + $0x29b0] sm:$0xff]
        %v1772 = vld [vmem:[%s323 + $0x29b8] sm:$0xff]
        %v1773 = vld [vmem:[%s323 + $0x29c0] sm:$0xff]
        %v1774 = vld [vmem:[%s323 + $0x29c8] sm:$0xff]
        %v1775 = vld [vmem:[%s323 + $0x29d0] sm:$0xff]
        %v1776 = vld [vmem:[%s323 + $0x29d8] sm:$0xff]
        %v1777 = vld [vmem:[%s323 + $0x29e0] sm:$0xff]
        %v1778 = vld [vmem:[%s323 + $0x29e8] sm:$0xff]
        %v1779 = vld [vmem:[%s323 + $0x29f0] sm:$0xff]
        %v1780 = vld [vmem:[%s323 + $0x29f8] sm:$0xff]
        %v1781 = vld [vmem:[%s323 + $0x2a00] sm:$0xff]
        %v1782 = vld [vmem:[%s323 + $0x2a08] sm:$0xff]
        %v1783 = vld [vmem:[%s323 + $0x2a10] sm:$0xff]
        %v1784 = vld [vmem:[%s323 + $0x2a18] sm:$0xff]
        %v1785 = vld [vmem:[%s323 + $0x2a20] sm:$0xff]
        %v1786 = vld [vmem:[%s323 + $0x2a28] sm:$0xff]
        %v1787 = vld [vmem:[%s323 + $0x2a30] sm:$0xff]
        %v1788 = vld [vmem:[%s323 + $0x2a38] sm:$0xff]
        %v1789 = vld [vmem:[%s323 + $0x2a40] sm:$0xff]
        %v1790 = vld [vmem:[%s323 + $0x2a48] sm:$0xff]
        %v1791 = vld [vmem:[%s323 + $0x2a50] sm:$0xff]
        %v1792 = vld [vmem:[%s323 + $0x2a58] sm:$0xff]
        %v1793 = vld [vmem:[%s323 + $0x2a60] sm:$0xff]
        %v1794 = vld [vmem:[%s323 + $0x2a68] sm:$0xff]
        %v1795 = vld [vmem:[%s323 + $0x2a70] sm:$0xff]
        %v1796 = vld [vmem:[%s323 + $0x2a78] sm:$0xff]
        %v1797 = vld [vmem:[%s323 + $0x2a80] sm:$0xff]
        %v1798 = vld [vmem:[%s323 + $0x2a88] sm:$0xff]
        %v1799 = vld [vmem:[%s323 + $0x2a90] sm:$0xff]
        %v1800 = vld [vmem:[%s323 + $0x2a98] sm:$0xff]
        %v1801 = vld [vmem:[%s323 + $0x2aa0] sm:$0xff]
        %v1802 = vld [vmem:[%s323 + $0x2aa8] sm:$0xff]
        %v1803 = vld [vmem:[%s323 + $0x2ab0] sm:$0xff]
        %v1804 = vld [vmem:[%s323 + $0x2ab8] sm:$0xff]
        %v1805 = vld [vmem:[%s323 + $0x2ac0] sm:$0xff]
        %v1806 = vld [vmem:[%s323 + $0x2ac8] sm:$0xff]
        %v1807 = vld [vmem:[%s323 + $0x2ad0] sm:$0xff]
        %v1808 = vld [vmem:[%s323 + $0x2ad8] sm:$0xff]
        %v1809 = vld [vmem:[%s323 + $0x2ae0] sm:$0xff]
        %v1810 = vld [vmem:[%s323 + $0x2ae8] sm:$0xff]
        %v1811 = vld [vmem:[%s323 + $0x2af0] sm:$0xff]
        %v1812 = vld [vmem:[%s323 + $0x2af8] sm:$0xff]
        %v1813 = vld [vmem:[%s323 + $0x2b00] sm:$0xff]
        %v1814 = vld [vmem:[%s323 + $0x2b08] sm:$0xff]
        %v1815 = vld [vmem:[%s323 + $0x2b10] sm:$0xff]
        %v1816 = vld [vmem:[%s323 + $0x2b18] sm:$0xff]
        %v1817 = vld [vmem:[%s323 + $0x2b20] sm:$0xff]
        %v1818 = vld [vmem:[%s323 + $0x2b28] sm:$0xff]
        %v1819 = vld [vmem:[%s323 + $0x2b30] sm:$0xff]
        %v1820 = vld [vmem:[%s323 + $0x2b38] sm:$0xff]
        %v1821 = vld [vmem:[%s323 + $0x2b40] sm:$0xff]
        %v1822 = vld [vmem:[%s323 + $0x2b48] sm:$0xff]
        %v1823 = vld [vmem:[%s323 + $0x2b50] sm:$0xff]
        %v1824 = vld [vmem:[%s323 + $0x2b58] sm:$0xff]
        %v1825 = vld [vmem:[%s323 + $0x2b60] sm:$0xff]
        %v1826 = vld [vmem:[%s323 + $0x2b68] sm:$0xff]
        %v1827 = vld [vmem:[%s323 + $0x2b70] sm:$0xff]
        %v1828 = vld [vmem:[%s323 + $0x2b78] sm:$0xff]
        %v1829 = vld [vmem:[%s323 + $0x2b80] sm:$0xff]
        %v1830 = vld [vmem:[%s323 + $0x2b88] sm:$0xff]
        %v1831 = vld [vmem:[%s323 + $0x2b90] sm:$0xff]
        %v1832 = vld [vmem:[%s323 + $0x2b98] sm:$0xff]
        %v1833 = vld [vmem:[%s323 + $0x2ba0] sm:$0xff]
        %v1834 = vld [vmem:[%s323 + $0x2ba8] sm:$0xff]
        %v1835 = vld [vmem:[%s323 + $0x2bb0] sm:$0xff]
        %v1836 = vld [vmem:[%s323 + $0x2bb8] sm:$0xff]
        %v1837 = vld [vmem:[%s323 + $0x2bc0] sm:$0xff]
        %v1838 = vld [vmem:[%s323 + $0x2bc8] sm:$0xff]
        %v1839 = vld [vmem:[%s323 + $0x2bd0] sm:$0xff]
        %v1840 = vld [vmem:[%s323 + $0x2bd8] sm:$0xff]
        %v1841 = vld [vmem:[%s323 + $0x2be0] sm:$0xff]
        %v1842 = vld [vmem:[%s323 + $0x2be8] sm:$0xff]
        %v1843 = vld [vmem:[%s323 + $0x2bf0] sm:$0xff]
        %v1844 = vld [vmem:[%s323 + $0x2bf8] sm:$0xff]
        %v1845 = vld [vmem:[%s323 + $0x2c00] sm:$0xff]
        %v1846 = vld [vmem:[%s323 + $0x2c08] sm:$0xff]
        %v1847 = vld [vmem:[%s323 + $0x2c10] sm:$0xff]
        %v1848 = vld [vmem:[%s323 + $0x2c18] sm:$0xff]
        %v1849 = vld [vmem:[%s323 + $0x2c20] sm:$0xff]
        %v1850 = vld [vmem:[%s323 + $0x2c28] sm:$0xff]
        %v1851 = vld [vmem:[%s323 + $0x2c30] sm:$0xff]
        %v1852 = vld [vmem:[%s323 + $0x2c38] sm:$0xff]
        %v1853 = vld [vmem:[%s323 + $0x2c40] sm:$0xff]
        %v1854 = vld [vmem:[%s323 + $0x2c48] sm:$0xff]
        %v1855 = vld [vmem:[%s323 + $0x2c50] sm:$0xff]
        %v1856 = vld [vmem:[%s323 + $0x2c58] sm:$0xff]
        %v1857 = vld [vmem:[%s323 + $0x2c60] sm:$0xff]
        %v1858 = vld [vmem:[%s323 + $0x2c68] sm:$0xff]
        %v1859 = vld [vmem:[%s323 + $0x2c70] sm:$0xff]
        %v1860 = vld [vmem:[%s323 + $0x2c78] sm:$0xff]
        %v1861 = vld [vmem:[%s323 + $0x2c80] sm:$0xff]
        %v1862 = vld [vmem:[%s323 + $0x2c88] sm:$0xff]
        %v1863 = vld [vmem:[%s323 + $0x2c90] sm:$0xff]
        %v1864 = vld [vmem:[%s323 + $0x2c98] sm:$0xff]
        %v1865 = vld [vmem:[%s323 + $0x2ca0] sm:$0xff]
        %v1866 = vld [vmem:[%s323 + $0x2ca8] sm:$0xff]
        %v1867 = vld [vmem:[%s323 + $0x2cb0] sm:$0xff]
        %v1868 = vld [vmem:[%s323 + $0x2cb8] sm:$0xff]
        %v1869 = vld [vmem:[%s323 + $0x2cc0] sm:$0xff]
        %v1870 = vld [vmem:[%s323 + $0x2cc8] sm:$0xff]
        %v1871 = vld [vmem:[%s323 + $0x2cd0] sm:$0xff]
        %v1872 = vld [vmem:[%s323 + $0x2cd8] sm:$0xff]
        %v1873 = vld [vmem:[%s323 + $0x2ce0] sm:$0xff]
        %v1874 = vld [vmem:[%s323 + $0x2ce8] sm:$0xff]
        %v1875 = vld [vmem:[%s323 + $0x2cf0] sm:$0xff]
        %v1876 = vld [vmem:[%s323 + $0x2cf8] sm:$0xff]
        %v1877 = vld [vmem:[%s323 + $0x2d00] sm:$0xff]
        %v1878 = vld [vmem:[%s323 + $0x2d08] sm:$0xff]
        %v1879 = vld [vmem:[%s323 + $0x2d10] sm:$0xff]
        %v1880 = vld [vmem:[%s323 + $0x2d18] sm:$0xff]
        %v1881 = vld [vmem:[%s323 + $0x2d20] sm:$0xff]
        %v1882 = vld [vmem:[%s323 + $0x2d28] sm:$0xff]
        %v1883 = vld [vmem:[%s323 + $0x2d30] sm:$0xff]
        %v1884 = vld [vmem:[%s323 + $0x2d38] sm:$0xff]
        %v1885 = vld [vmem:[%s323 + $0x2d40] sm:$0xff]
        %v1886 = vld [vmem:[%s323 + $0x2d48] sm:$0xff]
        %v1887 = vld [vmem:[%s323 + $0x2d50] sm:$0xff]
        %v1888 = vld [vmem:[%s323 + $0x2d58] sm:$0xff]
        %v1889 = vld [vmem:[%s323 + $0x2d60] sm:$0xff]
        %v1890 = vld [vmem:[%s323 + $0x2d68] sm:$0xff]
        %v1891 = vld [vmem:[%s323 + $0x2d70] sm:$0xff]
        %v1892 = vld [vmem:[%s323 + $0x2d78] sm:$0xff]
        %v1893 = vld [vmem:[%s323 + $0x2d80] sm:$0xff]
        %v1894 = vld [vmem:[%s323 + $0x2d88] sm:$0xff]
        %v1895 = vld [vmem:[%s323 + $0x2d90] sm:$0xff]
        %v1896 = vld [vmem:[%s323 + $0x2d98] sm:$0xff]
        %v1897 = vld [vmem:[%s323 + $0x2da0] sm:$0xff]
        %v1898 = vld [vmem:[%s323 + $0x2da8] sm:$0xff]
        %v1899 = vld [vmem:[%s323 + $0x2db0] sm:$0xff]
        %v1900 = vld [vmem:[%s323 + $0x2db8] sm:$0xff]
        %v1901 = vld [vmem:[%s323 + $0x2dc0] sm:$0xff]
        %v1902 = vld [vmem:[%s323 + $0x2dc8] sm:$0xff]
        %v1903 = vld [vmem:[%s323 + $0x2dd0] sm:$0xff]
        %v1904 = vld [vmem:[%s323 + $0x2dd8] sm:$0xff]
        %v1905 = vld [vmem:[%s323 + $0x2de0] sm:$0xff]
        %v1906 = vld [vmem:[%s323 + $0x2de8] sm:$0xff]
        %v1907 = vld [vmem:[%s323 + $0x2df0] sm:$0xff]
        %v1908 = vld [vmem:[%s323 + $0x2df8] sm:$0xff]
        %v1909 = vld [vmem:[%s323 + $0x2e00] sm:$0xff]
        %v1910 = vld [vmem:[%s323 + $0x2e08] sm:$0xff]
        %v1911 = vld [vmem:[%s323 + $0x2e10] sm:$0xff]
        %v1912 = vld [vmem:[%s323 + $0x2e18] sm:$0xff]
        %v1913 = vld [vmem:[%s323 + $0x2e20] sm:$0xff]
        %v1914 = vld [vmem:[%s323 + $0x2e28] sm:$0xff]
        %v1915 = vld [vmem:[%s323 + $0x2e30] sm:$0xff]
        %v1916 = vld [vmem:[%s323 + $0x2e38] sm:$0xff]
        %v1917 = vld [vmem:[%s323 + $0x2e40] sm:$0xff]
        %v1918 = vld [vmem:[%s323 + $0x2e48] sm:$0xff]
        %v1919 = vld [vmem:[%s323 + $0x2e50] sm:$0xff]
        %v1920 = vld [vmem:[%s323 + $0x2e58] sm:$0xff]
        %v1921 = vld [vmem:[%s323 + $0x2e60] sm:$0xff]
        %v1922 = vld [vmem:[%s323 + $0x2e68] sm:$0xff]
        %v1923 = vld [vmem:[%s323 + $0x2e70] sm:$0xff]
        %v1924 = vld [vmem:[%s323 + $0x2e78] sm:$0xff]
        %v1925 = vld [vmem:[%s323 + $0x2e80] sm:$0xff]
        %v1926 = vld [vmem:[%s323 + $0x2e88] sm:$0xff]
        %v1927 = vld [vmem:[%s323 + $0x2e90] sm:$0xff]
        %v1928 = vld [vmem:[%s323 + $0x2e98] sm:$0xff]
        %v1929 = vld [vmem:[%s323 + $0x2ea0] sm:$0xff]
        %v1930 = vld [vmem:[%s323 + $0x2ea8] sm:$0xff]
        %v1931 = vld [vmem:[%s323 + $0x2eb0] sm:$0xff]
        %v1932 = vld [vmem:[%s323 + $0x2eb8] sm:$0xff]
        %v1933 = vld [vmem:[%s323 + $0x2ec0] sm:$0xff]
        %v1934 = vld [vmem:[%s323 + $0x2ec8] sm:$0xff]
        %v1935 = vld [vmem:[%s323 + $0x2ed0] sm:$0xff]
        %v1936 = vld [vmem:[%s323 + $0x2ed8] sm:$0xff]
        %v1937 = vld [vmem:[%s323 + $0x2ee0] sm:$0xff]
        %v1938 = vld [vmem:[%s323 + $0x2ee8] sm:$0xff]
        %v1939 = vld [vmem:[%s323 + $0x2ef0] sm:$0xff]
        %v1940 = vld [vmem:[%s323 + $0x2ef8] sm:$0xff]
        %v1941 = vld [vmem:[%s323 + $0x2f00] sm:$0xff]
        %v1942 = vld [vmem:[%s323 + $0x2f08] sm:$0xff]
        %v1943 = vld [vmem:[%s323 + $0x2f10] sm:$0xff]
        %v1944 = vld [vmem:[%s323 + $0x2f18] sm:$0xff]
        %v1945 = vld [vmem:[%s323 + $0x2f20] sm:$0xff]
        %v1946 = vld [vmem:[%s323 + $0x2f28] sm:$0xff]
        %v1947 = vld [vmem:[%s323 + $0x2f30] sm:$0xff]
        %v1948 = vld [vmem:[%s323 + $0x2f38] sm:$0xff]
        %v1949 = vld [vmem:[%s323 + $0x2f40] sm:$0xff]
        %v1950 = vld [vmem:[%s323 + $0x2f48] sm:$0xff]
        %v1951 = vld [vmem:[%s323 + $0x2f50] sm:$0xff]
        %v1952 = vld [vmem:[%s323 + $0x2f58] sm:$0xff]
        %v1953 = vld [vmem:[%s323 + $0x2f60] sm:$0xff]
        %v1954 = vld [vmem:[%s323 + $0x2f68] sm:$0xff]
        %v1955 = vld [vmem:[%s323 + $0x2f70] sm:$0xff]
        %v1956 = vld [vmem:[%s323 + $0x2f78] sm:$0xff]
        %v1957 = vld [vmem:[%s323 + $0x2f80] sm:$0xff]
        %v1958 = vld [vmem:[%s323 + $0x2f88] sm:$0xff]
        %v1959 = vld [vmem:[%s323 + $0x2f90] sm:$0xff]
        %v1960 = vld [vmem:[%s323 + $0x2f98] sm:$0xff]
        %v1961 = vld [vmem:[%s323 + $0x2fa0] sm:$0xff]
        %v1962 = vld [vmem:[%s323 + $0x2fa8] sm:$0xff]
        %v1963 = vld [vmem:[%s323 + $0x2fb0] sm:$0xff]
        %v1964 = vld [vmem:[%s323 + $0x2fb8] sm:$0xff]
        %v1965 = vld [vmem:[%s323 + $0x2fc0] sm:$0xff]
        %v1966 = vld [vmem:[%s323 + $0x2fc8] sm:$0xff]
        %v1967 = vld [vmem:[%s323 + $0x2fd0] sm:$0xff]
        %v1968 = vld [vmem:[%s323 + $0x2fd8] sm:$0xff]
        %v1969 = vld [vmem:[%s323 + $0x2fe0] sm:$0xff]
        %v1970 = vld [vmem:[%s323 + $0x2fe8] sm:$0xff]
        %v1971 = vld [vmem:[%s323 + $0x2ff0] sm:$0xff]
        %v1972 = vld [vmem:[%s323 + $0x2ff8] sm:$0xff]
        %v1973 = vld [vmem:[%s323 + $0x3000] sm:$0xff]
        %v1974 = vld [vmem:[%s323 + $0x3008] sm:$0xff]
        %v1975 = vld [vmem:[%s323 + $0x3010] sm:$0xff]
        %v1976 = vld [vmem:[%s323 + $0x3018] sm:$0xff]
        %v1977 = vld [vmem:[%s323 + $0x3020] sm:$0xff]
        %v1978 = vld [vmem:[%s323 + $0x3028] sm:$0xff]
        %v1979 = vld [vmem:[%s323 + $0x3030] sm:$0xff]
        %v1980 = vld [vmem:[%s323 + $0x3038] sm:$0xff]
        %v1981 = vld [vmem:[%s323 + $0x3040] sm:$0xff]
        %v1982 = vld [vmem:[%s323 + $0x3048] sm:$0xff]
        %v1983 = vld [vmem:[%s323 + $0x3050] sm:$0xff]
        %v1984 = vld [vmem:[%s323 + $0x3058] sm:$0xff]
        %v1985 = vld [vmem:[%s323 + $0x3060] sm:$0xff]
        %v1986 = vld [vmem:[%s323 + $0x3068] sm:$0xff]
        %v1987 = vld [vmem:[%s323 + $0x3070] sm:$0xff]
        %v1988 = vld [vmem:[%s323 + $0x3078] sm:$0xff]
        %v1989 = vld [vmem:[%s323 + $0x3080] sm:$0xff]
        %v1990 = vld [vmem:[%s323 + $0x3088] sm:$0xff]
        %v1991 = vld [vmem:[%s323 + $0x3090] sm:$0xff]
        %v1992 = vld [vmem:[%s323 + $0x3098] sm:$0xff]
        %v1993 = vld [vmem:[%s323 + $0x30a0] sm:$0xff]
        %v1994 = vld [vmem:[%s323 + $0x30a8] sm:$0xff]
        %v1995 = vld [vmem:[%s323 + $0x30b0] sm:$0xff]
        %v1996 = vld [vmem:[%s323 + $0x30b8] sm:$0xff]
        %v1997 = vld [vmem:[%s323 + $0x30c0] sm:$0xff]
        %v1998 = vld [vmem:[%s323 + $0x30c8] sm:$0xff]
        %v1999 = vld [vmem:[%s323 + $0x30d0] sm:$0xff]
        %v2000 = vld [vmem:[%s323 + $0x30d8] sm:$0xff]
        %v2001 = vld [vmem:[%s323 + $0x30e0] sm:$0xff]
        %v2002 = vld [vmem:[%s323 + $0x30e8] sm:$0xff]
        %v2003 = vld [vmem:[%s323 + $0x30f0] sm:$0xff]
        %v2004 = vld [vmem:[%s323 + $0x30f8] sm:$0xff]
        %v2005 = vld [vmem:[%s323 + $0x3100] sm:$0xff]
        %v2006 = vld [vmem:[%s323 + $0x3108] sm:$0xff]
        %v2007 = vld [vmem:[%s323 + $0x3110] sm:$0xff]
        %v2008 = vld [vmem:[%s323 + $0x3118] sm:$0xff]
        %v2009 = vld [vmem:[%s323 + $0x3120] sm:$0xff]
        %v2010 = vld [vmem:[%s323 + $0x3128] sm:$0xff]
        %v2011 = vld [vmem:[%s323 + $0x3130] sm:$0xff]
        %v2012 = vld [vmem:[%s323 + $0x3138] sm:$0xff]
        %v2013 = vld [vmem:[%s323 + $0x3140] sm:$0xff]
        %v2014 = vld [vmem:[%s323 + $0x3148] sm:$0xff]
        %v2015 = vld [vmem:[%s323 + $0x3150] sm:$0xff]
        %v2016 = vld [vmem:[%s323 + $0x3158] sm:$0xff]
        %v2017 = vld [vmem:[%s323 + $0x3160] sm:$0xff]
        %v2018 = vld [vmem:[%s323 + $0x3168] sm:$0xff]
        %v2019 = vld [vmem:[%s323 + $0x3170] sm:$0xff]
        %v2020 = vld [vmem:[%s323 + $0x3178] sm:$0xff]
        %v2021 = vld [vmem:[%s323 + $0x3180] sm:$0xff]
        %v2022 = vld [vmem:[%s323 + $0x3188] sm:$0xff]
        %v2023 = vld [vmem:[%s323 + $0x3190] sm:$0xff]
        %v2024 = vld [vmem:[%s323 + $0x3198] sm:$0xff]
        %v2025 = vld [vmem:[%s323 + $0x31a0] sm:$0xff]
        %v2026 = vld [vmem:[%s323 + $0x31a8] sm:$0xff]
        %v2027 = vld [vmem:[%s323 + $0x31b0] sm:$0xff]
        %v2028 = vld [vmem:[%s323 + $0x31b8] sm:$0xff]
        %v2029 = vld [vmem:[%s323 + $0x31c0] sm:$0xff]
        %v2030 = vld [vmem:[%s323 + $0x31c8] sm:$0xff]
        %v2031 = vld [vmem:[%s323 + $0x31d0] sm:$0xff]
        %v2032 = vld [vmem:[%s323 + $0x31d8] sm:$0xff]
        %v2033 = vld [vmem:[%s323 + $0x31e0] sm:$0xff]
        %v2034 = vld [vmem:[%s323 + $0x31e8] sm:$0xff]
        %v2035 = vld [vmem:[%s323 + $0x31f0] sm:$0xff]
        %v2036 = vld [vmem:[%s323 + $0x31f8] sm:$0xff]
        %v2037 = vld [vmem:[%s323 + $0x3200] sm:$0xff]
        %v2038 = vld [vmem:[%s323 + $0x3208] sm:$0xff]
        %v2039 = vld [vmem:[%s323 + $0x3210] sm:$0xff]
        %v2040 = vld [vmem:[%s323 + $0x3218] sm:$0xff]
        %v2041 = vld [vmem:[%s323 + $0x3220] sm:$0xff]
        %v2042 = vld [vmem:[%s323 + $0x3228] sm:$0xff]
        %v2043 = vld [vmem:[%s323 + $0x3230] sm:$0xff]
        %v2044 = vld [vmem:[%s323 + $0x3238] sm:$0xff]
        %v2045 = vld [vmem:[%s323 + $0x3240] sm:$0xff]
        %v2046 = vld [vmem:[%s323 + $0x3248] sm:$0xff]
        %v2047 = vld [vmem:[%s323 + $0x3250] sm:$0xff]
        %v2048 = vld [vmem:[%s323 + $0x3258] sm:$0xff]
        %v2049 = vld [vmem:[%s323 + $0x3260] sm:$0xff]
        %v2050 = vld [vmem:[%s323 + $0x3268] sm:$0xff]
        %v2051 = vld [vmem:[%s323 + $0x3270] sm:$0xff]
        %v2052 = vld [vmem:[%s323 + $0x3278] sm:$0xff]
        %v2053 = vld [vmem:[%s323 + $0x3280] sm:$0xff]
        %v2054 = vld [vmem:[%s323 + $0x3288] sm:$0xff]
        %v2055 = vld [vmem:[%s323 + $0x3290] sm:$0xff]
        %v2056 = vld [vmem:[%s323 + $0x3298] sm:$0xff]
        %v2057 = vld [vmem:[%s323 + $0x32a0] sm:$0xff]
        %v2058 = vld [vmem:[%s323 + $0x32a8] sm:$0xff]
        %v2059 = vld [vmem:[%s323 + $0x32b0] sm:$0xff]
        %v2060 = vld [vmem:[%s323 + $0x32b8] sm:$0xff]
        %v2061 = vld [vmem:[%s323 + $0x32c0] sm:$0xff]
        %v2062 = vld [vmem:[%s323 + $0x32c8] sm:$0xff]
        %v2063 = vld [vmem:[%s323 + $0x32d0] sm:$0xff]
        %v2064 = vld [vmem:[%s323 + $0x32d8] sm:$0xff]
        %v2065 = vld [vmem:[%s323 + $0x32e0] sm:$0xff]
        %v2066 = vld [vmem:[%s323 + $0x32e8] sm:$0xff]
        %v2067 = vld [vmem:[%s323 + $0x32f0] sm:$0xff]
        %v2068 = vld [vmem:[%s323 + $0x32f8] sm:$0xff]
        %v2069 = vld [vmem:[%s323 + $0x3300] sm:$0xff]
        %v2070 = vld [vmem:[%s323 + $0x3308] sm:$0xff]
        %v2071 = vld [vmem:[%s323 + $0x3310] sm:$0xff]
        %v2072 = vld [vmem:[%s323 + $0x3318] sm:$0xff]
        %v2073 = vld [vmem:[%s323 + $0x3320] sm:$0xff]
        %v2074 = vld [vmem:[%s323 + $0x3328] sm:$0xff]
        %v2075 = vld [vmem:[%s323 + $0x3330] sm:$0xff]
        %v2076 = vld [vmem:[%s323 + $0x3338] sm:$0xff]
        %v2077 = vld [vmem:[%s323 + $0x3340] sm:$0xff]
        %v2078 = vld [vmem:[%s323 + $0x3348] sm:$0xff]
        %v2079 = vld [vmem:[%s323 + $0x3350] sm:$0xff]
        %v2080 = vld [vmem:[%s323 + $0x3358] sm:$0xff]
        %v2081 = vld [vmem:[%s323 + $0x3360] sm:$0xff]
        %v2082 = vld [vmem:[%s323 + $0x3368] sm:$0xff]
        %v2083 = vld [vmem:[%s323 + $0x3370] sm:$0xff]
        %v2084 = vld [vmem:[%s323 + $0x3378] sm:$0xff]
        %v2085 = vld [vmem:[%s323 + $0x3380] sm:$0xff]
        %v2086 = vld [vmem:[%s323 + $0x3388] sm:$0xff]
        %v2087 = vld [vmem:[%s323 + $0x3390] sm:$0xff]
        %v2088 = vld [vmem:[%s323 + $0x3398] sm:$0xff]
        %v2089 = vld [vmem:[%s323 + $0x33a0] sm:$0xff]
        %v2090 = vld [vmem:[%s323 + $0x33a8] sm:$0xff]
        %v2091 = vld [vmem:[%s323 + $0x33b0] sm:$0xff]
        %v2092 = vld [vmem:[%s323 + $0x33b8] sm:$0xff]
        %v2093 = vld [vmem:[%s323 + $0x33c0] sm:$0xff]
        %v2094 = vld [vmem:[%s323 + $0x33c8] sm:$0xff]
        %v2095 = vld [vmem:[%s323 + $0x33d0] sm:$0xff]
        %v2096 = vld [vmem:[%s323 + $0x33d8] sm:$0xff]
        %v2097 = vld [vmem:[%s323 + $0x33e0] sm:$0xff]
        %v2098 = vld [vmem:[%s323 + $0x33e8] sm:$0xff]
        %v2099 = vld [vmem:[%s323 + $0x33f0] sm:$0xff]
        %v2100 = vld [vmem:[%s323 + $0x33f8] sm:$0xff]
        %v2101 = vld [vmem:[%s323 + $0x3400] sm:$0xff]
        %v2102 = vld [vmem:[%s323 + $0x3408] sm:$0xff]
        %v2103 = vld [vmem:[%s323 + $0x3410] sm:$0xff]
        %v2104 = vld [vmem:[%s323 + $0x3418] sm:$0xff]
        %v2105 = vld [vmem:[%s323 + $0x3420] sm:$0xff]
        %v2106 = vld [vmem:[%s323 + $0x3428] sm:$0xff]
        %v2107 = vld [vmem:[%s323 + $0x3430] sm:$0xff]
        %v2108 = vld [vmem:[%s323 + $0x3438] sm:$0xff]
        %v2109 = vld [vmem:[%s323 + $0x3440] sm:$0xff]
        %v2110 = vld [vmem:[%s323 + $0x3448] sm:$0xff]
        %v2111 = vld [vmem:[%s323 + $0x3450] sm:$0xff]
        %v2112 = vld [vmem:[%s323 + $0x3458] sm:$0xff]
        %v2113 = vld [vmem:[%s323 + $0x3460] sm:$0xff]
        %v2114 = vld [vmem:[%s323 + $0x3468] sm:$0xff]
        %v2115 = vld [vmem:[%s323 + $0x3470] sm:$0xff]
        %v2116 = vld [vmem:[%s323 + $0x3478] sm:$0xff]
        %v2117 = vld [vmem:[%s323 + $0x3480] sm:$0xff]
        %v2118 = vld [vmem:[%s323 + $0x3488] sm:$0xff]
        %v2119 = vld [vmem:[%s323 + $0x3490] sm:$0xff]
        %v2120 = vld [vmem:[%s323 + $0x3498] sm:$0xff]
        %v2121 = vld [vmem:[%s323 + $0x34a0] sm:$0xff]
        %v2122 = vld [vmem:[%s323 + $0x34a8] sm:$0xff]
        %v2123 = vld [vmem:[%s323 + $0x34b0] sm:$0xff]
        %v2124 = vld [vmem:[%s323 + $0x34b8] sm:$0xff]
        %v2125 = vld [vmem:[%s323 + $0x34c0] sm:$0xff]
        %v2126 = vld [vmem:[%s323 + $0x34c8] sm:$0xff]
        %v2127 = vld [vmem:[%s323 + $0x34d0] sm:$0xff]
        %v2128 = vld [vmem:[%s323 + $0x34d8] sm:$0xff]
        %v2129 = vld [vmem:[%s323 + $0x34e0] sm:$0xff]
        %v2130 = vld [vmem:[%s323 + $0x34e8] sm:$0xff]
        %v2131 = vld [vmem:[%s323 + $0x34f0] sm:$0xff]
        %v2132 = vld [vmem:[%s323 + $0x34f8] sm:$0xff]
        %v2133 = vld [vmem:[%s323 + $0x3500] sm:$0xff]
        %v2134 = vld [vmem:[%s323 + $0x3508] sm:$0xff]
        %v2135 = vld [vmem:[%s323 + $0x3510] sm:$0xff]
        %v2136 = vld [vmem:[%s323 + $0x3518] sm:$0xff]
        %v2137 = vld [vmem:[%s323 + $0x3520] sm:$0xff]
        %v2138 = vld [vmem:[%s323 + $0x3528] sm:$0xff]
        %v2139 = vld [vmem:[%s323 + $0x3530] sm:$0xff]
        %v2140 = vld [vmem:[%s323 + $0x3538] sm:$0xff]
        %v2141 = vld [vmem:[%s323 + $0x3540] sm:$0xff]
        %v2142 = vld [vmem:[%s323 + $0x3548] sm:$0xff]
        %v2143 = vld [vmem:[%s323 + $0x3550] sm:$0xff]
        %v2144 = vld [vmem:[%s323 + $0x3558] sm:$0xff]
        %v2145 = vld [vmem:[%s323 + $0x3560] sm:$0xff]
        %v2146 = vld [vmem:[%s323 + $0x3568] sm:$0xff]
        %v2147 = vld [vmem:[%s323 + $0x3570] sm:$0xff]
        %v2148 = vld [vmem:[%s323 + $0x3578] sm:$0xff]
        %v2149 = vld [vmem:[%s323 + $0x3580] sm:$0xff]
        %v2150 = vld [vmem:[%s323 + $0x3588] sm:$0xff]
        %v2151 = vld [vmem:[%s323 + $0x3590] sm:$0xff]
        %v2152 = vld [vmem:[%s323 + $0x3598] sm:$0xff]
        %v2153 = vld [vmem:[%s323 + $0x35a0] sm:$0xff]
        %v2154 = vld [vmem:[%s323 + $0x35a8] sm:$0xff]
        %v2155 = vld [vmem:[%s323 + $0x35b0] sm:$0xff]
        %v2156 = vld [vmem:[%s323 + $0x35b8] sm:$0xff]
        %v2157 = vld [vmem:[%s323 + $0x35c0] sm:$0xff]
        %v2158 = vld [vmem:[%s323 + $0x35c8] sm:$0xff]
        %v2159 = vld [vmem:[%s323 + $0x35d0] sm:$0xff]
        %v2160 = vld [vmem:[%s323 + $0x35d8] sm:$0xff]
        %v2161 = vld [vmem:[%s323 + $0x35e0] sm:$0xff]
        %v2162 = vld [vmem:[%s323 + $0x35e8] sm:$0xff]
        %v2163 = vld [vmem:[%s323 + $0x35f0] sm:$0xff]
        %v2164 = vld [vmem:[%s323 + $0x35f8] sm:$0xff]
        %v2165 = vld [vmem:[%s323 + $0x3600] sm:$0xff]
        %v2166 = vld [vmem:[%s323 + $0x3608] sm:$0xff]
        %v2167 = vld [vmem:[%s323 + $0x3610] sm:$0xff]
        %v2168 = vld [vmem:[%s323 + $0x3618] sm:$0xff]
        %v2169 = vld [vmem:[%s323 + $0x3620] sm:$0xff]
        %v2170 = vld [vmem:[%s323 + $0x3628] sm:$0xff]
        %v2171 = vld [vmem:[%s323 + $0x3630] sm:$0xff]
        %v2172 = vld [vmem:[%s323 + $0x3638] sm:$0xff]
        %v2173 = vld [vmem:[%s323 + $0x3640] sm:$0xff]
        %v2174 = vld [vmem:[%s323 + $0x3648] sm:$0xff]
        %v2175 = vld [vmem:[%s323 + $0x3650] sm:$0xff]
        %v2176 = vld [vmem:[%s323 + $0x3658] sm:$0xff]
        %v2177 = vld [vmem:[%s323 + $0x3660] sm:$0xff]
        %v2178 = vld [vmem:[%s323 + $0x3668] sm:$0xff]
        %v2179 = vld [vmem:[%s323 + $0x3670] sm:$0xff]
        %v2180 = vld [vmem:[%s323 + $0x3678] sm:$0xff]
        %v2181 = vld [vmem:[%s323 + $0x3680] sm:$0xff]
        %v2182 = vld [vmem:[%s323 + $0x3688] sm:$0xff]
        %v2183 = vld [vmem:[%s323 + $0x3690] sm:$0xff]
        %v2184 = vld [vmem:[%s323 + $0x3698] sm:$0xff]
        %v2185 = vld [vmem:[%s323 + $0x36a0] sm:$0xff]
        %v2186 = vld [vmem:[%s323 + $0x36a8] sm:$0xff]
        %v2187 = vld [vmem:[%s323 + $0x36b0] sm:$0xff]
        %v2188 = vld [vmem:[%s323 + $0x36b8] sm:$0xff]
        %v2189 = vld [vmem:[%s323 + $0x36c0] sm:$0xff]
        %v2190 = vld [vmem:[%s323 + $0x36c8] sm:$0xff]
        %v2191 = vld [vmem:[%s323 + $0x36d0] sm:$0xff]
        %v2192 = vld [vmem:[%s323 + $0x36d8] sm:$0xff]
        %v2193 = vld [vmem:[%s323 + $0x36e0] sm:$0xff]
        %v2194 = vld [vmem:[%s323 + $0x36e8] sm:$0xff]
        %v2195 = vld [vmem:[%s323 + $0x36f0] sm:$0xff]
        %v2196 = vld [vmem:[%s323 + $0x36f8] sm:$0xff]
        %v2197 = vld [vmem:[%s323 + $0x3700] sm:$0xff]
        %v2198 = vld [vmem:[%s323 + $0x3708] sm:$0xff]
        %v2199 = vld [vmem:[%s323 + $0x3710] sm:$0xff]
        %v2200 = vld [vmem:[%s323 + $0x3718] sm:$0xff]
        %v2201 = vld [vmem:[%s323 + $0x3720] sm:$0xff]
        %v2202 = vld [vmem:[%s323 + $0x3728] sm:$0xff]
        %v2203 = vld [vmem:[%s323 + $0x3730] sm:$0xff]
        %v2204 = vld [vmem:[%s323 + $0x3738] sm:$0xff]
        %v2205 = vld [vmem:[%s323 + $0x3740] sm:$0xff]
        %v2206 = vld [vmem:[%s323 + $0x3748] sm:$0xff]
        %v2207 = vld [vmem:[%s323 + $0x3750] sm:$0xff]
        %v2208 = vld [vmem:[%s323 + $0x3758] sm:$0xff]
        %v2209 = vld [vmem:[%s323 + $0x3760] sm:$0xff]
        %v2210 = vld [vmem:[%s323 + $0x3768] sm:$0xff]
        %v2211 = vld [vmem:[%s323 + $0x3770] sm:$0xff]
        %v2212 = vld [vmem:[%s323 + $0x3778] sm:$0xff]
        %v2213 = vld [vmem:[%s323 + $0x3780] sm:$0xff]
        %v2214 = vld [vmem:[%s323 + $0x3788] sm:$0xff]
        %v2215 = vld [vmem:[%s323 + $0x3790] sm:$0xff]
        %v2216 = vld [vmem:[%s323 + $0x3798] sm:$0xff]
        %v2217 = vld [vmem:[%s323 + $0x37a0] sm:$0xff]
        %v2218 = vld [vmem:[%s323 + $0x37a8] sm:$0xff]
        %v2219 = vld [vmem:[%s323 + $0x37b0] sm:$0xff]
        %v2220 = vld [vmem:[%s323 + $0x37b8] sm:$0xff]
        %v2221 = vld [vmem:[%s323 + $0x37c0] sm:$0xff]
        %v2222 = vld [vmem:[%s323 + $0x37c8] sm:$0xff]
        %v2223 = vld [vmem:[%s323 + $0x37d0] sm:$0xff]
        %v2224 = vld [vmem:[%s323 + $0x37d8] sm:$0xff]
        %v2225 = vld [vmem:[%s323 + $0x37e0] sm:$0xff]
        %v2226 = vld [vmem:[%s323 + $0x37e8] sm:$0xff]
        %v2227 = vld [vmem:[%s323 + $0x37f0] sm:$0xff]
        %v2228 = vld [vmem:[%s323 + $0x37f8] sm:$0xff]
        %v2229 = vld [vmem:[%s323 + $0x3800] sm:$0xff]
        %v2230 = vld [vmem:[%s323 + $0x3808] sm:$0xff]
        %v2231 = vld [vmem:[%s323 + $0x3810] sm:$0xff]
        %v2232 = vld [vmem:[%s323 + $0x3818] sm:$0xff]
        %v2233 = vld [vmem:[%s323 + $0x3820] sm:$0xff]
        %v2234 = vld [vmem:[%s323 + $0x3828] sm:$0xff]
        %v2235 = vld [vmem:[%s323 + $0x3830] sm:$0xff]
        %v2236 = vld [vmem:[%s323 + $0x3838] sm:$0xff]
        %v2237 = vld [vmem:[%s323 + $0x3840] sm:$0xff]
        %v2238 = vld [vmem:[%s323 + $0x3848] sm:$0xff]
        %v2239 = vld [vmem:[%s323 + $0x3850] sm:$0xff]
        %v2240 = vld [vmem:[%s323 + $0x3858] sm:$0xff]
        %v2241 = vld [vmem:[%s323 + $0x3860] sm:$0xff]
        %v2242 = vld [vmem:[%s323 + $0x3868] sm:$0xff]
        %v2243 = vld [vmem:[%s323 + $0x3870] sm:$0xff]
        %v2244 = vld [vmem:[%s323 + $0x3878] sm:$0xff]
        %v2245 = vld [vmem:[%s323 + $0x3880] sm:$0xff]
        %v2246 = vld [vmem:[%s323 + $0x3888] sm:$0xff]
        %v2247 = vld [vmem:[%s323 + $0x3890] sm:$0xff]
        %v2248 = vld [vmem:[%s323 + $0x3898] sm:$0xff]
        %v2249 = vld [vmem:[%s323 + $0x38a0] sm:$0xff]
        %v2250 = vld [vmem:[%s323 + $0x38a8] sm:$0xff]
        %v2251 = vld [vmem:[%s323 + $0x38b0] sm:$0xff]
        %v2252 = vld [vmem:[%s323 + $0x38b8] sm:$0xff]
        %v2253 = vld [vmem:[%s323 + $0x38c0] sm:$0xff]
        %v2254 = vld [vmem:[%s323 + $0x38c8] sm:$0xff]
        %v2255 = vld [vmem:[%s323 + $0x38d0] sm:$0xff]
        %v2256 = vld [vmem:[%s323 + $0x38d8] sm:$0xff]
        %v2257 = vld [vmem:[%s323 + $0x38e0] sm:$0xff]
        %v2258 = vld [vmem:[%s323 + $0x38e8] sm:$0xff]
        %v2259 = vld [vmem:[%s323 + $0x38f0] sm:$0xff]
        %v2260 = vld [vmem:[%s323 + $0x38f8] sm:$0xff]
        %v2261 = vld [vmem:[%s323 + $0x3900] sm:$0xff]
        %v2262 = vld [vmem:[%s323 + $0x3908] sm:$0xff]
        %v2263 = vld [vmem:[%s323 + $0x3910] sm:$0xff]
        %v2264 = vld [vmem:[%s323 + $0x3918] sm:$0xff]
        %v2265 = vld [vmem:[%s323 + $0x3920] sm:$0xff]
        %v2266 = vld [vmem:[%s323 + $0x3928] sm:$0xff]
        %v2267 = vld [vmem:[%s323 + $0x3930] sm:$0xff]
        %v2268 = vld [vmem:[%s323 + $0x3938] sm:$0xff]
        %v2269 = vld [vmem:[%s323 + $0x3940] sm:$0xff]
        %v2270 = vld [vmem:[%s323 + $0x3948] sm:$0xff]
        %v2271 = vld [vmem:[%s323 + $0x3950] sm:$0xff]
        %v2272 = vld [vmem:[%s323 + $0x3958] sm:$0xff]
        %v2273 = vld [vmem:[%s323 + $0x3960] sm:$0xff]
        %v2274 = vld [vmem:[%s323 + $0x3968] sm:$0xff]
        %v2275 = vld [vmem:[%s323 + $0x3970] sm:$0xff]
        %v2276 = vld [vmem:[%s323 + $0x3978] sm:$0xff]
        %v2277 = vld [vmem:[%s323 + $0x3980] sm:$0xff]
        %v2278 = vld [vmem:[%s323 + $0x3988] sm:$0xff]
        %v2279 = vld [vmem:[%s323 + $0x3990] sm:$0xff]
        %v2280 = vld [vmem:[%s323 + $0x3998] sm:$0xff]
        %v2281 = vld [vmem:[%s323 + $0x39a0] sm:$0xff]
        %v2282 = vld [vmem:[%s323 + $0x39a8] sm:$0xff]
        %v2283 = vld [vmem:[%s323 + $0x39b0] sm:$0xff]
        %v2284 = vld [vmem:[%s323 + $0x39b8] sm:$0xff]
        %v2285 = vld [vmem:[%s323 + $0x39c0] sm:$0xff]
        %v2286 = vld [vmem:[%s323 + $0x39c8] sm:$0xff]
        %v2287 = vld [vmem:[%s323 + $0x39d0] sm:$0xff]
        %v2288 = vld [vmem:[%s323 + $0x39d8] sm:$0xff]
        %v2289 = vld [vmem:[%s323 + $0x39e0] sm:$0xff]
        %v2290 = vld [vmem:[%s323 + $0x39e8] sm:$0xff]
        %v2291 = vld [vmem:[%s323 + $0x39f0] sm:$0xff]
        %v2292 = vld [vmem:[%s323 + $0x39f8] sm:$0xff]
        %v2293 = vld [vmem:[%s323 + $0x3a00] sm:$0xff]
        %v2294 = vld [vmem:[%s323 + $0x3a08] sm:$0xff]
        %v2295 = vld [vmem:[%s323 + $0x3a10] sm:$0xff]
        %v2296 = vld [vmem:[%s323 + $0x3a18] sm:$0xff]
        %v2297 = vld [vmem:[%s323 + $0x3a20] sm:$0xff]
        %v2298 = vld [vmem:[%s323 + $0x3a28] sm:$0xff]
        %v2299 = vld [vmem:[%s323 + $0x3a30] sm:$0xff]
        %v2300 = vld [vmem:[%s323 + $0x3a38] sm:$0xff]
        %v2301 = vld [vmem:[%s323 + $0x3a40] sm:$0xff]
        %v2302 = vld [vmem:[%s323 + $0x3a48] sm:$0xff]
        %v2303 = vld [vmem:[%s323 + $0x3a50] sm:$0xff]
        %v2304 = vld [vmem:[%s323 + $0x3a58] sm:$0xff]
        %v2305 = vld [vmem:[%s323 + $0x3a60] sm:$0xff]
        %v2306 = vld [vmem:[%s323 + $0x3a68] sm:$0xff]
        %v2307 = vld [vmem:[%s323 + $0x3a70] sm:$0xff]
        %v2308 = vld [vmem:[%s323 + $0x3a78] sm:$0xff]
        %v2309 = vld [vmem:[%s323 + $0x3a80] sm:$0xff]
        %v2310 = vld [vmem:[%s323 + $0x3a88] sm:$0xff]
        %v2311 = vld [vmem:[%s323 + $0x3a90] sm:$0xff]
        %v2312 = vld [vmem:[%s323 + $0x3a98] sm:$0xff]
        %v2313 = vld [vmem:[%s323 + $0x3aa0] sm:$0xff]
        %v2314 = vld [vmem:[%s323 + $0x3aa8] sm:$0xff]
        %v2315 = vld [vmem:[%s323 + $0x3ab0] sm:$0xff]
        %v2316 = vld [vmem:[%s323 + $0x3ab8] sm:$0xff]
        %v2317 = vld [vmem:[%s323 + $0x3ac0] sm:$0xff]
        %v2318 = vld [vmem:[%s323 + $0x3ac8] sm:$0xff]
        %v2319 = vld [vmem:[%s323 + $0x3ad0] sm:$0xff]
        %v2320 = vld [vmem:[%s323 + $0x3ad8] sm:$0xff]
        %v2321 = vld [vmem:[%s323 + $0x3ae0] sm:$0xff]
        %v2322 = vld [vmem:[%s323 + $0x3ae8] sm:$0xff]
        %v2323 = vld [vmem:[%s323 + $0x3af0] sm:$0xff]
        %v2324 = vld [vmem:[%s323 + $0x3af8] sm:$0xff]
        %v2325 = vld [vmem:[%s323 + $0x3b00] sm:$0xff]
        %v2326 = vld [vmem:[%s323 + $0x3b08] sm:$0xff]
        %v2327 = vld [vmem:[%s323 + $0x3b10] sm:$0xff]
        %v2328 = vld [vmem:[%s323 + $0x3b18] sm:$0xff]
        %v2329 = vld [vmem:[%s323 + $0x3b20] sm:$0xff]
        %v2330 = vld [vmem:[%s323 + $0x3b28] sm:$0xff]
        %v2331 = vld [vmem:[%s323 + $0x3b30] sm:$0xff]
        %v2332 = vld [vmem:[%s323 + $0x3b38] sm:$0xff]
        %v2333 = vld [vmem:[%s323 + $0x3b40] sm:$0xff]
        %v2334 = vld [vmem:[%s323 + $0x3b48] sm:$0xff]
        %v2335 = vld [vmem:[%s323 + $0x3b50] sm:$0xff]
        %v2336 = vld [vmem:[%s323 + $0x3b58] sm:$0xff]
        %v2337 = vld [vmem:[%s323 + $0x3b60] sm:$0xff]
        %v2338 = vld [vmem:[%s323 + $0x3b68] sm:$0xff]
        %v2339 = vld [vmem:[%s323 + $0x3b70] sm:$0xff]
        %v2340 = vld [vmem:[%s323 + $0x3b78] sm:$0xff]
        %v2341 = vld [vmem:[%s323 + $0x3b80] sm:$0xff]
        %v2342 = vld [vmem:[%s323 + $0x3b88] sm:$0xff]
        %v2343 = vld [vmem:[%s323 + $0x3b90] sm:$0xff]
        %v2344 = vld [vmem:[%s323 + $0x3b98] sm:$0xff]
        %v2345 = vld [vmem:[%s323 + $0x3ba0] sm:$0xff]
        %v2346 = vld [vmem:[%s323 + $0x3ba8] sm:$0xff]
        %v2347 = vld [vmem:[%s323 + $0x3bb0] sm:$0xff]
        %v2348 = vld [vmem:[%s323 + $0x3bb8] sm:$0xff]
        %v2349 = vld [vmem:[%s323 + $0x3bc0] sm:$0xff]
        %v2350 = vld [vmem:[%s323 + $0x3bc8] sm:$0xff]
        %v2351 = vld [vmem:[%s323 + $0x3bd0] sm:$0xff]
        %v2352 = vld [vmem:[%s323 + $0x3bd8] sm:$0xff]
        %v2353 = vld [vmem:[%s323 + $0x3be0] sm:$0xff]
        %v2354 = vld [vmem:[%s323 + $0x3be8] sm:$0xff]
        %v2355 = vld [vmem:[%s323 + $0x3bf0] sm:$0xff]
        %v2356 = vld [vmem:[%s323 + $0x3bf8] sm:$0xff]
        %v2357 = vld [vmem:[%s323 + $0x3c00] sm:$0xff]
        %v2358 = vld [vmem:[%s323 + $0x3c08] sm:$0xff]
        %v2359 = vld [vmem:[%s323 + $0x3c10] sm:$0xff]
        %v2360 = vld [vmem:[%s323 + $0x3c18] sm:$0xff]
        %v2361 = vld [vmem:[%s323 + $0x3c20] sm:$0xff]
        %v2362 = vld [vmem:[%s323 + $0x3c28] sm:$0xff]
        %v2363 = vld [vmem:[%s323 + $0x3c30] sm:$0xff]
        %v2364 = vld [vmem:[%s323 + $0x3c38] sm:$0xff]
        %v2365 = vld [vmem:[%s323 + $0x3c40] sm:$0xff]
        %v2366 = vld [vmem:[%s323 + $0x3c48] sm:$0xff]
        %v2367 = vld [vmem:[%s323 + $0x3c50] sm:$0xff]
        %v2368 = vld [vmem:[%s323 + $0x3c58] sm:$0xff]
        %v2369 = vld [vmem:[%s323 + $0x3c60] sm:$0xff]
        %v2370 = vld [vmem:[%s323 + $0x3c68] sm:$0xff]
        %v2371 = vld [vmem:[%s323 + $0x3c70] sm:$0xff]
        %v2372 = vld [vmem:[%s323 + $0x3c78] sm:$0xff]
        %v2373 = vld [vmem:[%s323 + $0x3c80] sm:$0xff]
        %v2374 = vld [vmem:[%s323 + $0x3c88] sm:$0xff]
        %v2375 = vld [vmem:[%s323 + $0x3c90] sm:$0xff]
        %v2376 = vld [vmem:[%s323 + $0x3c98] sm:$0xff]
        %v2377 = vld [vmem:[%s323 + $0x3ca0] sm:$0xff]
        %v2378 = vld [vmem:[%s323 + $0x3ca8] sm:$0xff]
        %v2379 = vld [vmem:[%s323 + $0x3cb0] sm:$0xff]
        %v2380 = vld [vmem:[%s323 + $0x3cb8] sm:$0xff]
        %v2381 = vld [vmem:[%s323 + $0x3cc0] sm:$0xff]
        %v2382 = vld [vmem:[%s323 + $0x3cc8] sm:$0xff]
        %v2383 = vld [vmem:[%s323 + $0x3cd0] sm:$0xff]
        %v2384 = vld [vmem:[%s323 + $0x3cd8] sm:$0xff]
        %v2385 = vld [vmem:[%s323 + $0x3ce0] sm:$0xff]
        %v2386 = vld [vmem:[%s323 + $0x3ce8] sm:$0xff]
        %v2387 = vld [vmem:[%s323 + $0x3cf0] sm:$0xff]
        %v2388 = vld [vmem:[%s323 + $0x3cf8] sm:$0xff]
        %v2389 = vld [vmem:[%s323 + $0x3d00] sm:$0xff]
        %v2390 = vld [vmem:[%s323 + $0x3d08] sm:$0xff]
        %v2391 = vld [vmem:[%s323 + $0x3d10] sm:$0xff]
        %v2392 = vld [vmem:[%s323 + $0x3d18] sm:$0xff]
        %v2393 = vld [vmem:[%s323 + $0x3d20] sm:$0xff]
        %v2394 = vld [vmem:[%s323 + $0x3d28] sm:$0xff]
        %v2395 = vld [vmem:[%s323 + $0x3d30] sm:$0xff]
        %v2396 = vld [vmem:[%s323 + $0x3d38] sm:$0xff]
        %v2397 = vld [vmem:[%s323 + $0x3d40] sm:$0xff]
        %v2398 = vld [vmem:[%s323 + $0x3d48] sm:$0xff]
        %v2399 = vld [vmem:[%s323 + $0x3d50] sm:$0xff]
        %v2400 = vld [vmem:[%s323 + $0x3d58] sm:$0xff]
        %v2401 = vld [vmem:[%s323 + $0x3d60] sm:$0xff]
        %v2402 = vld [vmem:[%s323 + $0x3d68] sm:$0xff]
        %v2403 = vld [vmem:[%s323 + $0x3d70] sm:$0xff]
        %v2404 = vld [vmem:[%s323 + $0x3d78] sm:$0xff]
        %v2405 = vld [vmem:[%s323 + $0x3d80] sm:$0xff]
        %v2406 = vld [vmem:[%s323 + $0x3d88] sm:$0xff]
        %v2407 = vld [vmem:[%s323 + $0x3d90] sm:$0xff]
        %v2408 = vld [vmem:[%s323 + $0x3d98] sm:$0xff]
        %v2409 = vld [vmem:[%s323 + $0x3da0] sm:$0xff]
        %v2410 = vld [vmem:[%s323 + $0x3da8] sm:$0xff]
        %v2411 = vld [vmem:[%s323 + $0x3db0] sm:$0xff]
        %v2412 = vld [vmem:[%s323 + $0x3db8] sm:$0xff]
        %v2413 = vld [vmem:[%s323 + $0x3dc0] sm:$0xff]
        %v2414 = vld [vmem:[%s323 + $0x3dc8] sm:$0xff]
        %v2415 = vld [vmem:[%s323 + $0x3dd0] sm:$0xff]
        %v2416 = vld [vmem:[%s323 + $0x3dd8] sm:$0xff]
        %v2417 = vld [vmem:[%s323 + $0x3de0] sm:$0xff]
        %v2418 = vld [vmem:[%s323 + $0x3de8] sm:$0xff]
        %v2419 = vld [vmem:[%s323 + $0x3df0] sm:$0xff]
        %v2420 = vld [vmem:[%s323 + $0x3df8] sm:$0xff]
        %v2421 = vld [vmem:[%s323 + $0x3e00] sm:$0xff]
        %v2422 = vld [vmem:[%s323 + $0x3e08] sm:$0xff]
        %v2423 = vld [vmem:[%s323 + $0x3e10] sm:$0xff]
        %v2424 = vld [vmem:[%s323 + $0x3e18] sm:$0xff]
        %v2425 = vld [vmem:[%s323 + $0x3e20] sm:$0xff]
        %v2426 = vld [vmem:[%s323 + $0x3e28] sm:$0xff]
        %v2427 = vld [vmem:[%s323 + $0x3e30] sm:$0xff]
        %v2428 = vld [vmem:[%s323 + $0x3e38] sm:$0xff]
        %v2429 = vld [vmem:[%s323 + $0x3e40] sm:$0xff]
        %v2430 = vld [vmem:[%s323 + $0x3e48] sm:$0xff]
        %v2431 = vld [vmem:[%s323 + $0x3e50] sm:$0xff]
        %v2432 = vld [vmem:[%s323 + $0x3e58] sm:$0xff]
        %v2433 = vld [vmem:[%s323 + $0x3e60] sm:$0xff]
        %v2434 = vld [vmem:[%s323 + $0x3e68] sm:$0xff]
        %v2435 = vld [vmem:[%s323 + $0x3e70] sm:$0xff]
        %v2436 = vld [vmem:[%s323 + $0x3e78] sm:$0xff]
        %v2437 = vld [vmem:[%s323 + $0x3e80] sm:$0xff]
        %v2438 = vld [vmem:[%s323 + $0x3e88] sm:$0xff]
        %v2439 = vld [vmem:[%s323 + $0x3e90] sm:$0xff]
        %v2440 = vld [vmem:[%s323 + $0x3e98] sm:$0xff]
        %v2441 = vld [vmem:[%s323 + $0x3ea0] sm:$0xff]
        %v2442 = vld [vmem:[%s323 + $0x3ea8] sm:$0xff]
        %v2443 = vld [vmem:[%s323 + $0x3eb0] sm:$0xff]
        %v2444 = vld [vmem:[%s323 + $0x3eb8] sm:$0xff]
        %v2445 = vld [vmem:[%s323 + $0x3ec0] sm:$0xff]
        %v2446 = vld [vmem:[%s323 + $0x3ec8] sm:$0xff]
        %v2447 = vld [vmem:[%s323 + $0x3ed0] sm:$0xff]
        %v2448 = vld [vmem:[%s323 + $0x3ed8] sm:$0xff]
        %v2449 = vld [vmem:[%s323 + $0x3ee0] sm:$0xff]
        %v2450 = vld [vmem:[%s323 + $0x3ee8] sm:$0xff]
        %v2451 = vld [vmem:[%s323 + $0x3ef0] sm:$0xff]
        %v2452 = vld [vmem:[%s323 + $0x3ef8] sm:$0xff]
        %v2453 = vld [vmem:[%s323 + $0x3f00] sm:$0xff]
        %v2454 = vld [vmem:[%s323 + $0x3f08] sm:$0xff]
        %v2455 = vld [vmem:[%s323 + $0x3f10] sm:$0xff]
        %v2456 = vld [vmem:[%s323 + $0x3f18] sm:$0xff]
        %v2457 = vld [vmem:[%s323 + $0x3f20] sm:$0xff]
        %v2458 = vld [vmem:[%s323 + $0x3f28] sm:$0xff]
        %v2459 = vld [vmem:[%s323 + $0x3f30] sm:$0xff]
        %v2460 = vld [vmem:[%s323 + $0x3f38] sm:$0xff]
        %v2461 = vld [vmem:[%s323 + $0x3f40] sm:$0xff]
        %v2462 = vld [vmem:[%s323 + $0x3f48] sm:$0xff]
        %v2463 = vld [vmem:[%s323 + $0x3f50] sm:$0xff]
        %v2464 = vld [vmem:[%s323 + $0x3f58] sm:$0xff]
        %v2465 = vld [vmem:[%s323 + $0x3f60] sm:$0xff]
        %v2466 = vld [vmem:[%s323 + $0x3f68] sm:$0xff]
        %v2467 = vld [vmem:[%s323 + $0x3f70] sm:$0xff]
        %v2468 = vld [vmem:[%s323 + $0x3f78] sm:$0xff]
        %v2469 = vld [vmem:[%s323 + $0x3f80] sm:$0xff]
        %v2470 = vld [vmem:[%s323 + $0x3f88] sm:$0xff]
        %v2471 = vld [vmem:[%s323 + $0x3f90] sm:$0xff]
        %v2472 = vld [vmem:[%s323 + $0x3f98] sm:$0xff]
        %v2473 = vld [vmem:[%s323 + $0x3fa0] sm:$0xff]
        %v2474 = vld [vmem:[%s323 + $0x3fa8] sm:$0xff]
        %v2475 = vld [vmem:[%s323 + $0x3fb0] sm:$0xff]
        %v2476 = vld [vmem:[%s323 + $0x3fb8] sm:$0xff]
        %v2477 = vld [vmem:[%s323 + $0x3fc0] sm:$0xff]
        %v2478 = vld [vmem:[%s323 + $0x3fc8] sm:$0xff]
        %v2479 = vld [vmem:[%s323 + $0x3fd0] sm:$0xff]
        %v2480 = vld [vmem:[%s323 + $0x3fd8] sm:$0xff]
        %v2481 = vld [vmem:[%s323 + $0x3fe0] sm:$0xff]
        %v2482 = vld [vmem:[%s323 + $0x3fe8] sm:$0xff]
        %v2483 = vld [vmem:[%s323 + $0x3ff0] sm:$0xff]
        %v2484 = vld [vmem:[%s323 + $0x3ff8] sm:$0xff]
        %v2485 = vld [vmem:[%s323 + $0x4000] sm:$0xff]
        %v2486 = vld [vmem:[%s323 + $0x4008] sm:$0xff]
        %v2487 = vld [vmem:[%s323 + $0x4010] sm:$0xff]
        %v2488 = vld [vmem:[%s323 + $0x4018] sm:$0xff]
        %v2489 = vld [vmem:[%s323 + $0x4020] sm:$0xff]
        %v2490 = vld [vmem:[%s323 + $0x4028] sm:$0xff]
        %v2491 = vld [vmem:[%s323 + $0x4030] sm:$0xff]
        %v2492 = vld [vmem:[%s323 + $0x4038] sm:$0xff]
        %v2493 = vld [vmem:[%s323 + $0x4040] sm:$0xff]
        %v2494 = vld [vmem:[%s323 + $0x4048] sm:$0xff]
        %v2495 = vld [vmem:[%s323 + $0x4050] sm:$0xff]
        %v2496 = vld [vmem:[%s323 + $0x4058] sm:$0xff]
        %v2497 = vld [vmem:[%s323 + $0x4060] sm:$0xff]
        %v2498 = vld [vmem:[%s323 + $0x4068] sm:$0xff]
        %v2499 = vld [vmem:[%s323 + $0x4070] sm:$0xff]
        %v2500 = vld [vmem:[%s323 + $0x4078] sm:$0xff]
        %v2501 = vld [vmem:[%s323 + $0x4080] sm:$0xff]
        %v2502 = vld [vmem:[%s323 + $0x4088] sm:$0xff]
        %v2503 = vld [vmem:[%s323 + $0x4090] sm:$0xff]
        %v2504 = vld [vmem:[%s323 + $0x4098] sm:$0xff]
        %v2505 = vld [vmem:[%s323 + $0x40a0] sm:$0xff]
        %v2506 = vld [vmem:[%s323 + $0x40a8] sm:$0xff]
        %v2507 = vld [vmem:[%s323 + $0x40b0] sm:$0xff]
        %v2508 = vld [vmem:[%s323 + $0x40b8] sm:$0xff]
        %v2509 = vld [vmem:[%s323 + $0x40c0] sm:$0xff]
        %v2510 = vld [vmem:[%s323 + $0x40c8] sm:$0xff]
        %v2511 = vld [vmem:[%s323 + $0x40d0] sm:$0xff]
        %v2512 = vld [vmem:[%s323 + $0x40d8] sm:$0xff]
        %v2513 = vld [vmem:[%s323 + $0x40e0] sm:$0xff]
        %v2514 = vld [vmem:[%s323 + $0x40e8] sm:$0xff]
        %v2515 = vld [vmem:[%s323 + $0x40f0] sm:$0xff]
        %v2516 = vld [vmem:[%s323 + $0x40f8] sm:$0xff]
        %v2517 = vld [vmem:[%s323 + $0x4100] sm:$0xff]
        %v2518 = vld [vmem:[%s323 + $0x4108] sm:$0xff]
        %v2519 = vld [vmem:[%s323 + $0x4110] sm:$0xff]
        %v2520 = vld [vmem:[%s323 + $0x4118] sm:$0xff]
        %v2521 = vld [vmem:[%s323 + $0x4120] sm:$0xff]
        %v2522 = vld [vmem:[%s323 + $0x4128] sm:$0xff]
        %v2523 = vld [vmem:[%s323 + $0x4130] sm:$0xff]
        %v2524 = vld [vmem:[%s323 + $0x4138] sm:$0xff]
        %v2525 = vld [vmem:[%s323 + $0x4140] sm:$0xff]
        %v2526 = vld [vmem:[%s323 + $0x4148] sm:$0xff]
        %v2527 = vld [vmem:[%s323 + $0x4150] sm:$0xff]
        %v2528 = vld [vmem:[%s323 + $0x4158] sm:$0xff]
        %v2529 = vld [vmem:[%s323 + $0x4160] sm:$0xff]
        %v2530 = vld [vmem:[%s323 + $0x4168] sm:$0xff]
        %v2531 = vld [vmem:[%s323 + $0x4170] sm:$0xff]
        %v2532 = vld [vmem:[%s323 + $0x4178] sm:$0xff]
        %v2533 = vld [vmem:[%s323 + $0x4180] sm:$0xff]
        %v2534 = vld [vmem:[%s323 + $0x4188] sm:$0xff]
        %v2535 = vld [vmem:[%s323 + $0x4190] sm:$0xff]
        %v2536 = vld [vmem:[%s323 + $0x4198] sm:$0xff]
        %v2537 = vld [vmem:[%s323 + $0x41a0] sm:$0xff]
        %v2538 = vld [vmem:[%s323 + $0x41a8] sm:$0xff]
        %v2539 = vld [vmem:[%s323 + $0x41b0] sm:$0xff]
        %v2540 = vld [vmem:[%s323 + $0x41b8] sm:$0xff]
        %v2541 = vld [vmem:[%s323 + $0x41c0] sm:$0xff]
        %v2542 = vld [vmem:[%s323 + $0x41c8] sm:$0xff]
        %v2543 = vld [vmem:[%s323 + $0x41d0] sm:$0xff]
        %v2544 = vld [vmem:[%s323 + $0x41d8] sm:$0xff]
        %v2545 = vld [vmem:[%s323 + $0x41e0] sm:$0xff]
        %v2546 = vld [vmem:[%s323 + $0x41e8] sm:$0xff]
        %v2547 = vld [vmem:[%s323 + $0x41f0] sm:$0xff]
        %v2548 = vld [vmem:[%s323 + $0x41f8] sm:$0xff]
        %v2549 = vld [vmem:[%s323 + $0x4200] sm:$0xff]
        %v2550 = vld [vmem:[%s323 + $0x4208] sm:$0xff]
        %v2551 = vld [vmem:[%s323 + $0x4210] sm:$0xff]
        %v2552 = vld [vmem:[%s323 + $0x4218] sm:$0xff]
        %v2553 = vld [vmem:[%s323 + $0x4220] sm:$0xff]
        %v2554 = vld [vmem:[%s323 + $0x4228] sm:$0xff]
        %v2555 = vld [vmem:[%s323 + $0x4230] sm:$0xff]
        %v2556 = vld [vmem:[%s323 + $0x4238] sm:$0xff]
        %v2557 = vld [vmem:[%s323 + $0x4240] sm:$0xff]
        %v2558 = vld [vmem:[%s323 + $0x4248] sm:$0xff]
        %v2559 = vld [vmem:[%s323 + $0x4250] sm:$0xff]
        %v2560 = vld [vmem:[%s323 + $0x4258] sm:$0xff]
        %v2561 = vld [vmem:[%s323 + $0x4260] sm:$0xff]
        %v2562 = vld [vmem:[%s323 + $0x4268] sm:$0xff]
        %v2563 = vld [vmem:[%s323 + $0x4270] sm:$0xff]
        %v2564 = vld [vmem:[%s323 + $0x4278] sm:$0xff]
        %v2565 = vld [vmem:[%s323 + $0x4280] sm:$0xff]
        %v2566 = vld [vmem:[%s323 + $0x4288] sm:$0xff]
        %v2567 = vld [vmem:[%s323 + $0x4290] sm:$0xff]
        %v2568 = vld [vmem:[%s323 + $0x4298] sm:$0xff]
        %v2569 = vld [vmem:[%s323 + $0x42a0] sm:$0xff]
        %v2570 = vld [vmem:[%s323 + $0x42a8] sm:$0xff]
        %v2571 = vld [vmem:[%s323 + $0x42b0] sm:$0xff]
        %v2572 = vld [vmem:[%s323 + $0x42b8] sm:$0xff]
        %v2573 = vld [vmem:[%s323 + $0x42c0] sm:$0xff]
        %v2574 = vld [vmem:[%s323 + $0x42c8] sm:$0xff]
        %v2575 = vld [vmem:[%s323 + $0x42d0] sm:$0xff]
        %v2576 = vld [vmem:[%s323 + $0x42d8] sm:$0xff]
        %v2577 = vld [vmem:[%s323 + $0x42e0] sm:$0xff]
        %v2578 = vld [vmem:[%s323 + $0x42e8] sm:$0xff]
        %v2579 = vld [vmem:[%s323 + $0x42f0] sm:$0xff]
        %v2580 = vld [vmem:[%s323 + $0x42f8] sm:$0xff]
        %v2581 = vld [vmem:[%s323 + $0x4300] sm:$0xff]
        %v2582 = vld [vmem:[%s323 + $0x4308] sm:$0xff]
        %v2583 = vld [vmem:[%s323 + $0x4310] sm:$0xff]
        %v2584 = vld [vmem:[%s323 + $0x4318] sm:$0xff]
        %v2585 = vld [vmem:[%s323 + $0x4320] sm:$0xff]
        %v2586 = vld [vmem:[%s323 + $0x4328] sm:$0xff]
        %v2587 = vld [vmem:[%s323 + $0x4330] sm:$0xff]
        %v2588 = vld [vmem:[%s323 + $0x4338] sm:$0xff]
        %v2589 = vld [vmem:[%s323 + $0x4340] sm:$0xff]
        %v2590 = vld [vmem:[%s323 + $0x4348] sm:$0xff]
        %v2591 = vld [vmem:[%s323 + $0x4350] sm:$0xff]
        %v2592 = vld [vmem:[%s323 + $0x4358] sm:$0xff]
        %v2593 = vld [vmem:[%s323 + $0x4360] sm:$0xff]
        %v2594 = vld [vmem:[%s323 + $0x4368] sm:$0xff]
        %v2595 = vld [vmem:[%s323 + $0x4370] sm:$0xff]
        %v2596 = vld [vmem:[%s323 + $0x4378] sm:$0xff]
        %v2597 = vld [vmem:[%s323 + $0x4380] sm:$0xff]
        %v2598 = vld [vmem:[%s323 + $0x4388] sm:$0xff]
        %v2599 = vld [vmem:[%s323 + $0x4390] sm:$0xff]
        %v2600 = vld [vmem:[%s323 + $0x4398] sm:$0xff]
        %v2601 = vld [vmem:[%s323 + $0x43a0] sm:$0xff]
        %v2602 = vld [vmem:[%s323 + $0x43a8] sm:$0xff]
        %v2603 = vld [vmem:[%s323 + $0x43b0] sm:$0xff]
        %v2604 = vld [vmem:[%s323 + $0x43b8] sm:$0xff]
        %v2605 = vld [vmem:[%s323 + $0x43c0] sm:$0xff]
        %v2606 = vld [vmem:[%s323 + $0x43c8] sm:$0xff]
        %v2607 = vld [vmem:[%s323 + $0x43d0] sm:$0xff]
        %v2608 = vld [vmem:[%s323 + $0x43d8] sm:$0xff]
        %v2609 = vld [vmem:[%s323 + $0x43e0] sm:$0xff]
        %v2610 = vld [vmem:[%s323 + $0x43e8] sm:$0xff]
        %v2611 = vld [vmem:[%s323 + $0x43f0] sm:$0xff]
        %v2612 = vld [vmem:[%s323 + $0x43f8] sm:$0xff]
        %v2613 = vld [vmem:[%s323 + $0x4400] sm:$0xff]
        %v2614 = vld [vmem:[%s323 + $0x4408] sm:$0xff]
        %v2615 = vld [vmem:[%s323 + $0x4410] sm:$0xff]
        %v2616 = vld [vmem:[%s323 + $0x4418] sm:$0xff]
        %v2617 = vld [vmem:[%s323 + $0x4420] sm:$0xff]
        %v2618 = vld [vmem:[%s323 + $0x4428] sm:$0xff]
        %v2619 = vld [vmem:[%s323 + $0x4430] sm:$0xff]
        %v2620 = vld [vmem:[%s323 + $0x4438] sm:$0xff]
        %v2621 = vld [vmem:[%s323 + $0x4440] sm:$0xff]
        %v2622 = vld [vmem:[%s323 + $0x4448] sm:$0xff]
        %v2623 = vld [vmem:[%s323 + $0x4450] sm:$0xff]
        %v2624 = vld [vmem:[%s323 + $0x4458] sm:$0xff]
        %v2625 = vld [vmem:[%s323 + $0x4460] sm:$0xff]
        %v2626 = vld [vmem:[%s323 + $0x4468] sm:$0xff]
        %v2627 = vld [vmem:[%s323 + $0x4470] sm:$0xff]
        %v2628 = vld [vmem:[%s323 + $0x4478] sm:$0xff]
        %v2629 = vld [vmem:[%s323 + $0x4480] sm:$0xff]
        %v2630 = vld [vmem:[%s323 + $0x4488] sm:$0xff]
        %v2631 = vld [vmem:[%s323 + $0x4490] sm:$0xff]
        %v2632 = vld [vmem:[%s323 + $0x4498] sm:$0xff]
        %v2633 = vld [vmem:[%s323 + $0x44a0] sm:$0xff]
        %v2634 = vld [vmem:[%s323 + $0x44a8] sm:$0xff]
        %v2635 = vld [vmem:[%s323 + $0x44b0] sm:$0xff]
        %v2636 = vld [vmem:[%s323 + $0x44b8] sm:$0xff]
        %v2637 = vld [vmem:[%s323 + $0x44c0] sm:$0xff]
        %v2638 = vld [vmem:[%s323 + $0x44c8] sm:$0xff]
        %v2639 = vld [vmem:[%s323 + $0x44d0] sm:$0xff]
        %v2640 = vld [vmem:[%s323 + $0x44d8] sm:$0xff]
        %v2641 = vld [vmem:[%s323 + $0x44e0] sm:$0xff]
        %v2642 = vld [vmem:[%s323 + $0x44e8] sm:$0xff]
        %v2643 = vld [vmem:[%s323 + $0x44f0] sm:$0xff]
        %v2644 = vld [vmem:[%s323 + $0x44f8] sm:$0xff]
        %v2645 = vld [vmem:[%s323 + $0x4500] sm:$0xff]
        %v2646 = vld [vmem:[%s323 + $0x4508] sm:$0xff]
        %v2647 = vld [vmem:[%s323 + $0x4510] sm:$0xff]
        %v2648 = vld [vmem:[%s323 + $0x4518] sm:$0xff]
        %v2649 = vld [vmem:[%s323 + $0x4520] sm:$0xff]
        %v2650 = vld [vmem:[%s323 + $0x4528] sm:$0xff]
        %v2651 = vld [vmem:[%s323 + $0x4530] sm:$0xff]
        %v2652 = vld [vmem:[%s323 + $0x4538] sm:$0xff]
        %v2653 = vld [vmem:[%s323 + $0x4540] sm:$0xff]
        %v2654 = vld [vmem:[%s323 + $0x4548] sm:$0xff]
        %v2655 = vld [vmem:[%s323 + $0x4550] sm:$0xff]
        %v2656 = vld [vmem:[%s323 + $0x4558] sm:$0xff]
        %v2657 = vld [vmem:[%s323 + $0x4560] sm:$0xff]
        %v2658 = vld [vmem:[%s323 + $0x4568] sm:$0xff]
        %v2659 = vld [vmem:[%s323 + $0x4570] sm:$0xff]
        %v2660 = vld [vmem:[%s323 + $0x4578] sm:$0xff]
        %v2661 = vld [vmem:[%s323 + $0x4580] sm:$0xff]
        %v2662 = vld [vmem:[%s323 + $0x4588] sm:$0xff]
        %v2663 = vld [vmem:[%s323 + $0x4590] sm:$0xff]
        %v2664 = vld [vmem:[%s323 + $0x4598] sm:$0xff]
        %v2665 = vld [vmem:[%s323 + $0x45a0] sm:$0xff]
        %v2666 = vld [vmem:[%s323 + $0x45a8] sm:$0xff]
        %v2667 = vld [vmem:[%s323 + $0x45b0] sm:$0xff]
        %v2668 = vld [vmem:[%s323 + $0x45b8] sm:$0xff]
        %v2669 = vld [vmem:[%s323 + $0x45c0] sm:$0xff]
        %v2670 = vld [vmem:[%s323 + $0x45c8] sm:$0xff]
        %v2671 = vld [vmem:[%s323 + $0x45d0] sm:$0xff]
        %v2672 = vld [vmem:[%s323 + $0x45d8] sm:$0xff]
        %v2673 = vld [vmem:[%s323 + $0x45e0] sm:$0xff]
        %v2674 = vld [vmem:[%s323 + $0x45e8] sm:$0xff]
        %v2675 = vld [vmem:[%s323 + $0x45f0] sm:$0xff]
        %v2676 = vld [vmem:[%s323 + $0x45f8] sm:$0xff]
        %v2677 = vld [vmem:[%s323 + $0x4600] sm:$0xff]
        %v2678 = vld [vmem:[%s323 + $0x4608] sm:$0xff]
        %v2679 = vld [vmem:[%s323 + $0x4610] sm:$0xff]
        %v2680 = vld [vmem:[%s323 + $0x4618] sm:$0xff]
        %v2681 = vld [vmem:[%s323 + $0x4620] sm:$0xff]
        %v2682 = vld [vmem:[%s323 + $0x4628] sm:$0xff]
        %v2683 = vld [vmem:[%s323 + $0x4630] sm:$0xff]
        %v2684 = vld [vmem:[%s323 + $0x4638] sm:$0xff]
        %v2685 = vld [vmem:[%s323 + $0x4640] sm:$0xff]
        %v2686 = vld [vmem:[%s323 + $0x4648] sm:$0xff]
        %v2687 = vld [vmem:[%s323 + $0x4650] sm:$0xff]
        %v2688 = vld [vmem:[%s323 + $0x4658] sm:$0xff]
        %v2689 = vld [vmem:[%s323 + $0x4660] sm:$0xff]
        %v2690 = vld [vmem:[%s323 + $0x4668] sm:$0xff]
        %v2691 = vld [vmem:[%s323 + $0x4670] sm:$0xff]
        %v2692 = vld [vmem:[%s323 + $0x4678] sm:$0xff]
        %v2693 = vld [vmem:[%s323 + $0x4680] sm:$0xff]
        %v2694 = vld [vmem:[%s323 + $0x4688] sm:$0xff]
        %v2695 = vld [vmem:[%s323 + $0x4690] sm:$0xff]
        %v2696 = vld [vmem:[%s323 + $0x4698] sm:$0xff]
        %v2697 = vld [vmem:[%s323 + $0x46a0] sm:$0xff]
        %v2698 = vld [vmem:[%s323 + $0x46a8] sm:$0xff]
        %v2699 = vld [vmem:[%s323 + $0x46b0] sm:$0xff]
        %v2700 = vld [vmem:[%s323 + $0x46b8] sm:$0xff]
        %v2701 = vld [vmem:[%s323 + $0x46c0] sm:$0xff]
        %v2702 = vld [vmem:[%s323 + $0x46c8] sm:$0xff]
        %v2703 = vld [vmem:[%s323 + $0x46d0] sm:$0xff]
        %v2704 = vld [vmem:[%s323 + $0x46d8] sm:$0xff]
        %v2705 = vld [vmem:[%s323 + $0x46e0] sm:$0xff]
        %v2706 = vld [vmem:[%s323 + $0x46e8] sm:$0xff]
        %v2707 = vld [vmem:[%s323 + $0x46f0] sm:$0xff]
        %v2708 = vld [vmem:[%s323 + $0x46f8] sm:$0xff]
        %v2709 = vld [vmem:[%s323 + $0x4700] sm:$0xff]
        %v2710 = vld [vmem:[%s323 + $0x4708] sm:$0xff]
        %v2711 = vld [vmem:[%s323 + $0x4710] sm:$0xff]
        %v2712 = vld [vmem:[%s323 + $0x4718] sm:$0xff]
        %v2713 = vld [vmem:[%s323 + $0x4720] sm:$0xff]
        %v2714 = vld [vmem:[%s323 + $0x4728] sm:$0xff]
        %v2715 = vld [vmem:[%s323 + $0x4730] sm:$0xff]
        %v2716 = vld [vmem:[%s323 + $0x4738] sm:$0xff]
        %v2717 = vld [vmem:[%s323 + $0x4740] sm:$0xff]
        %v2718 = vld [vmem:[%s323 + $0x4748] sm:$0xff]
        %v2719 = vld [vmem:[%s323 + $0x4750] sm:$0xff]
        %v2720 = vld [vmem:[%s323 + $0x4758] sm:$0xff]
        %v2721 = vld [vmem:[%s323 + $0x4760] sm:$0xff]
        %v2722 = vld [vmem:[%s323 + $0x4768] sm:$0xff]
        %v2723 = vld [vmem:[%s323 + $0x4770] sm:$0xff]
        %v2724 = vld [vmem:[%s323 + $0x4778] sm:$0xff]
        %v2725 = vld [vmem:[%s323 + $0x4780] sm:$0xff]
        %v2726 = vld [vmem:[%s323 + $0x4788] sm:$0xff]
        %v2727 = vld [vmem:[%s323 + $0x4790] sm:$0xff]
        %v2728 = vld [vmem:[%s323 + $0x4798] sm:$0xff]
        %v2729 = vld [vmem:[%s323 + $0x47a0] sm:$0xff]
        %v2730 = vld [vmem:[%s323 + $0x47a8] sm:$0xff]
        %v2731 = vld [vmem:[%s323 + $0x47b0] sm:$0xff]
        %v2732 = vld [vmem:[%s323 + $0x47b8] sm:$0xff]
        %v2733 = vld [vmem:[%s323 + $0x47c0] sm:$0xff]
        %v2734 = vld [vmem:[%s323 + $0x47c8] sm:$0xff]
        %v2735 = vld [vmem:[%s323 + $0x47d0] sm:$0xff]
        %v2736 = vld [vmem:[%s323 + $0x47d8] sm:$0xff]
        %v2737 = vld [vmem:[%s323 + $0x47e0] sm:$0xff]
        %v2738 = vld [vmem:[%s323 + $0x47e8] sm:$0xff]
        %v2739 = vld [vmem:[%s323 + $0x47f0] sm:$0xff]
        %v2740 = vld [vmem:[%s323 + $0x47f8] sm:$0xff]
        %2741 = vmatprep.subr.mxu0 %v498
        %2742 = vmatpush1.msra.mxu0 %v497
        %2743 = vmatprep.subr.mxu0 %v494
        %2744 = vmatpush1.msra.mxu0 %v493
        %2745 = vmatprep.subr.mxu0 %v490
        %2746 = vmatpush1.msra.mxu0 %v489
        %2747 = vmatprep.subr.mxu0 %v486
        %2748 = vmatpush1.msra.mxu0 %v485
        %2749 = vmatprep.subr.mxu0 %v482
        %2750 = vmatpush1.msra.mxu0 %v481
        %2751 = vmatprep.subr.mxu0 %v478
        %2752 = vmatpush1.msra.mxu0 %v477
        %2753 = vmatprep.subr.mxu0 %v474
        %2754 = vmatpush1.msra.mxu0 %v473
        %2755 = vmatprep.subr.mxu0 %v470
        %2756 = vmatpush1.msra.mxu0 %v469
        %2757 = vmatprep.subr.mxu0 %v466
        %2758 = vmatpush1.msra.mxu0 %v465
        %2759 = vmatprep.subr.mxu0 %v462
        %2760 = vmatpush1.msra.mxu0 %v461
        %2761 = vmatprep.subr.mxu0 %v458
        %2762 = vmatpush1.msra.mxu0 %v457
        %2763 = vmatprep.subr.mxu0 %v454
        %2764 = vmatpush1.msra.mxu0 %v453
        %2765 = vmatprep.subr.mxu0 %v450
        %2766 = vmatpush1.msra.mxu0 %v449
        %2767 = vmatprep.subr.mxu0 %v446
        %2768 = vmatpush1.msra.mxu0 %v445
        %2769 = vmatprep.subr.mxu0 %v442
        %2770 = vmatpush1.msra.mxu0 %v441
        %2771 = vmatprep.subr.mxu0 %v438
        %2772 = vmatpush1.msra.mxu0 %v437
        %2773 = vmatprep.subr.mxu0 %v562
        %2774 = vmatpush2.msra.mxu0 %v561
        %2775 = vmatprep.subr.mxu0 %v558
        %2776 = vmatpush2.msra.mxu0 %v557
        %2777 = vmatprep.subr.mxu0 %v554
        %2778 = vmatpush2.msra.mxu0 %v553
        %2779 = vmatprep.subr.mxu0 %v550
        %2780 = vmatpush2.msra.mxu0 %v549
        %2781 = vmatprep.subr.mxu0 %v546
        %2782 = vmatpush2.msra.mxu0 %v545
        %2783 = vmatprep.subr.mxu0 %v542
        %2784 = vmatpush2.msra.mxu0 %v541
        %2785 = vmatprep.subr.mxu0 %v538
        %2786 = vmatpush2.msra.mxu0 %v537
        %2787 = vmatprep.subr.mxu0 %v534
        %2788 = vmatpush2.msra.mxu0 %v533
        %2789 = vmatprep.subr.mxu0 %v530
        %2790 = vmatpush2.msra.mxu0 %v529
        %2791 = vmatprep.subr.mxu0 %v526
        %2792 = vmatpush2.msra.mxu0 %v525
        %2793 = vmatprep.subr.mxu0 %v522
        %2794 = vmatpush2.msra.mxu0 %v521
        %2795 = vmatprep.subr.mxu0 %v518
        %2796 = vmatpush2.msra.mxu0 %v517
        %2797 = vmatprep.subr.mxu0 %v514
        %2798 = vmatpush2.msra.mxu0 %v513
        %2799 = vmatprep.subr.mxu0 %v510
        %2800 = vmatpush2.msra.mxu0 %v509
        %2801 = vmatprep.subr.mxu0 %v506
        %2802 = vmatpush2.msra.mxu0 %v505
        %2803 = vmatprep.subr.mxu0 %v502
        %2804 = vmatpush2.msra.mxu0 %v501
        %2805 = vmatprep.mubr.f32.mxu0 %v402
        %2806 = vmatmul.mubr.f32.gmra.mxu0 %v401
        %v2807 = vpop.f32.mrf.mxu0
        %v2808 = vadd.f32 0.0, %v2807
        %v2809 = vpop.f32.mrf.mxu0
        %v2810 = vadd.f32 0.0, %v2809
        %2811 = vdwg.mxu0
        %2812 = vmatprep.subr.mxu0 %v626
        %2813 = vmatpush1.msra.mxu0 %v625
        %2814 = vmatprep.subr.mxu0 %v622
        %2815 = vmatpush1.msra.mxu0 %v621
        %2816 = vmatprep.subr.mxu0 %v618
        %2817 = vmatpush1.msra.mxu0 %v617
        %2818 = vmatprep.subr.mxu0 %v614
        %2819 = vmatpush1.msra.mxu0 %v613
        %2820 = vmatprep.subr.mxu0 %v610
        %2821 = vmatpush1.msra.mxu0 %v609
        %2822 = vmatprep.subr.mxu0 %v606
        %2823 = vmatpush1.msra.mxu0 %v605
        %2824 = vmatprep.subr.mxu0 %v602
        %2825 = vmatpush1.msra.mxu0 %v601
        %2826 = vmatprep.subr.mxu0 %v598
        %2827 = vmatpush1.msra.mxu0 %v597
        %2828 = vmatprep.subr.mxu0 %v594
        %2829 = vmatpush1.msra.mxu0 %v593
        %2830 = vmatprep.subr.mxu0 %v590
        %2831 = vmatpush1.msra.mxu0 %v589
        %2832 = vmatprep.subr.mxu0 %v586
        %2833 = vmatpush1.msra.mxu0 %v585
        %2834 = vmatprep.subr.mxu0 %v582
        %2835 = vmatpush1.msra.mxu0 %v581
        %2836 = vmatprep.subr.mxu0 %v578
        %2837 = vmatpush1.msra.mxu0 %v577
        %2838 = vmatprep.subr.mxu0 %v574
        %2839 = vmatpush1.msra.mxu0 %v573
        %2840 = vmatprep.subr.mxu0 %v570
        %2841 = vmatpush1.msra.mxu0 %v569
        %2842 = vmatprep.subr.mxu0 %v566
        %2843 = vmatpush1.msra.mxu0 %v565
        %2844 = vmatprep.subr.mxu0 %v690
        %2845 = vmatpush2.msra.mxu0 %v689
        %2846 = vmatprep.subr.mxu0 %v686
        %2847 = vmatpush2.msra.mxu0 %v685
        %2848 = vmatprep.subr.mxu0 %v682
        %2849 = vmatpush2.msra.mxu0 %v681
        %2850 = vmatprep.subr.mxu0 %v678
        %2851 = vmatpush2.msra.mxu0 %v677
        %2852 = vmatprep.subr.mxu0 %v674
        %2853 = vmatpush2.msra.mxu0 %v673
        %2854 = vmatprep.subr.mxu0 %v670
        %2855 = vmatpush2.msra.mxu0 %v669
        %2856 = vmatprep.subr.mxu0 %v666
        %2857 = vmatpush2.msra.mxu0 %v665
        %2858 = vmatprep.subr.mxu0 %v662
        %2859 = vmatpush2.msra.mxu0 %v661
        %2860 = vmatprep.subr.mxu0 %v658
        %2861 = vmatpush2.msra.mxu0 %v657
        %2862 = vmatprep.subr.mxu0 %v654
        %2863 = vmatpush2.msra.mxu0 %v653
        %2864 = vmatprep.subr.mxu0 %v650
        %2865 = vmatpush2.msra.mxu0 %v649
        %2866 = vmatprep.subr.mxu0 %v646
        %2867 = vmatpush2.msra.mxu0 %v645
        %2868 = vmatprep.subr.mxu0 %v642
        %2869 = vmatpush2.msra.mxu0 %v641
        %2870 = vmatprep.subr.mxu0 %v638
        %2871 = vmatpush2.msra.mxu0 %v637
        %2872 = vmatprep.subr.mxu0 %v634
        %2873 = vmatpush2.msra.mxu0 %v633
        %2874 = vmatprep.subr.mxu0 %v630
        %2875 = vmatpush2.msra.mxu0 %v629
        %2876 = vmatprep.mubr.f32.mxu0 %v404
        %2877 = vmatmul.mubr.f32.gmra.mxu0 %v403
        %v2878 = vpop.f32.mrf.mxu0
        %v2879 = vadd.f32 %v2808, %v2878
        %v2880 = vpop.f32.mrf.mxu0
        %v2881 = vadd.f32 %v2810, %v2880
        %2882 = vdwg.mxu0
        %2883 = vmatprep.subr.mxu0 %v754
        %2884 = vmatpush1.msra.mxu0 %v753
        %2885 = vmatprep.subr.mxu0 %v750
        %2886 = vmatpush1.msra.mxu0 %v749
        %2887 = vmatprep.subr.mxu0 %v746
        %2888 = vmatpush1.msra.mxu0 %v745
        %2889 = vmatprep.subr.mxu0 %v742
        %2890 = vmatpush1.msra.mxu0 %v741
        %2891 = vmatprep.subr.mxu0 %v738
        %2892 = vmatpush1.msra.mxu0 %v737
        %2893 = vmatprep.subr.mxu0 %v734
        %2894 = vmatpush1.msra.mxu0 %v733
        %2895 = vmatprep.subr.mxu0 %v730
        %2896 = vmatpush1.msra.mxu0 %v729
        %2897 = vmatprep.subr.mxu0 %v726
        %2898 = vmatpush1.msra.mxu0 %v725
        %2899 = vmatprep.subr.mxu0 %v722
        %2900 = vmatpush1.msra.mxu0 %v721
        %2901 = vmatprep.subr.mxu0 %v718
        %2902 = vmatpush1.msra.mxu0 %v717
        %2903 = vmatprep.subr.mxu0 %v714
        %2904 = vmatpush1.msra.mxu0 %v713
        %2905 = vmatprep.subr.mxu0 %v710
        %2906 = vmatpush1.msra.mxu0 %v709
        %2907 = vmatprep.subr.mxu0 %v706
        %2908 = vmatpush1.msra.mxu0 %v705
        %2909 = vmatprep.subr.mxu0 %v702
        %2910 = vmatpush1.msra.mxu0 %v701
        %2911 = vmatprep.subr.mxu0 %v698
        %2912 = vmatpush1.msra.mxu0 %v697
        %2913 = vmatprep.subr.mxu0 %v694
        %2914 = vmatpush1.msra.mxu0 %v693
        %2915 = vmatprep.subr.mxu0 %v818
        %2916 = vmatpush2.msra.mxu0 %v817
        %2917 = vmatprep.subr.mxu0 %v814
        %2918 = vmatpush2.msra.mxu0 %v813
        %2919 = vmatprep.subr.mxu0 %v810
        %2920 = vmatpush2.msra.mxu0 %v809
        %2921 = vmatprep.subr.mxu0 %v806
        %2922 = vmatpush2.msra.mxu0 %v805
        %2923 = vmatprep.subr.mxu0 %v802
        %2924 = vmatpush2.msra.mxu0 %v801
        %2925 = vmatprep.subr.mxu0 %v798
        %2926 = vmatpush2.msra.mxu0 %v797
        %2927 = vmatprep.subr.mxu0 %v794
        %2928 = vmatpush2.msra.mxu0 %v793
        %2929 = vmatprep.subr.mxu0 %v790
        %2930 = vmatpush2.msra.mxu0 %v789
        %2931 = vmatprep.subr.mxu0 %v786
        %2932 = vmatpush2.msra.mxu0 %v785
        %2933 = vmatprep.subr.mxu0 %v782
        %2934 = vmatpush2.msra.mxu0 %v781
        %2935 = vmatprep.subr.mxu0 %v778
        %2936 = vmatpush2.msra.mxu0 %v777
        %2937 = vmatprep.subr.mxu0 %v774
        %2938 = vmatpush2.msra.mxu0 %v773
        %2939 = vmatprep.subr.mxu0 %v770
        %2940 = vmatpush2.msra.mxu0 %v769
        %2941 = vmatprep.subr.mxu0 %v766
        %2942 = vmatpush2.msra.mxu0 %v765
        %2943 = vmatprep.subr.mxu0 %v762
        %2944 = vmatpush2.msra.mxu0 %v761
        %2945 = vmatprep.subr.mxu0 %v758
        %2946 = vmatpush2.msra.mxu0 %v757
        %2947 = vmatprep.mubr.f32.mxu0 %v406
        %2948 = vmatmul.mubr.f32.gmra.mxu0 %v405
        %v2949 = vpop.f32.mrf.mxu0
        %v2950 = vadd.f32 %v2879, %v2949
        %v2951 = vpop.f32.mrf.mxu0
        %v2952 = vadd.f32 %v2881, %v2951
        %2953 = vdwg.mxu0
        %2954 = vmatprep.subr.mxu0 %v882
        %2955 = vmatpush1.msra.mxu0 %v881
        %2956 = vmatprep.subr.mxu0 %v878
        %2957 = vmatpush1.msra.mxu0 %v877
        %2958 = vmatprep.subr.mxu0 %v874
        %2959 = vmatpush1.msra.mxu0 %v873
        %2960 = vmatprep.subr.mxu0 %v870
        %2961 = vmatpush1.msra.mxu0 %v869
        %2962 = vmatprep.subr.mxu0 %v866
        %2963 = vmatpush1.msra.mxu0 %v865
        %2964 = vmatprep.subr.mxu0 %v862
        %2965 = vmatpush1.msra.mxu0 %v861
        %2966 = vmatprep.subr.mxu0 %v858
        %2967 = vmatpush1.msra.mxu0 %v857
        %2968 = vmatprep.subr.mxu0 %v854
        %2969 = vmatpush1.msra.mxu0 %v853
        %2970 = vmatprep.subr.mxu0 %v850
        %2971 = vmatpush1.msra.mxu0 %v849
        %2972 = vmatprep.subr.mxu0 %v846
        %2973 = vmatpush1.msra.mxu0 %v845
        %2974 = vmatprep.subr.mxu0 %v842
        %2975 = vmatpush1.msra.mxu0 %v841
        %2976 = vmatprep.subr.mxu0 %v838
        %2977 = vmatpush1.msra.mxu0 %v837
        %2978 = vmatprep.subr.mxu0 %v834
        %2979 = vmatpush1.msra.mxu0 %v833
        %2980 = vmatprep.subr.mxu0 %v830
        %2981 = vmatpush1.msra.mxu0 %v829
        %2982 = vmatprep.subr.mxu0 %v826
        %2983 = vmatpush1.msra.mxu0 %v825
        %2984 = vmatprep.subr.mxu0 %v822
        %2985 = vmatpush1.msra.mxu0 %v821
        %2986 = vmatprep.subr.mxu0 %v946
        %2987 = vmatpush2.msra.mxu0 %v945
        %2988 = vmatprep.subr.mxu0 %v942
        %2989 = vmatpush2.msra.mxu0 %v941
        %2990 = vmatprep.subr.mxu0 %v938
        %2991 = vmatpush2.msra.mxu0 %v937
        %2992 = vmatprep.subr.mxu0 %v934
        %2993 = vmatpush2.msra.mxu0 %v933
        %2994 = vmatprep.subr.mxu0 %v930
        %2995 = vmatpush2.msra.mxu0 %v929
        %2996 = vmatprep.subr.mxu0 %v926
        %2997 = vmatpush2.msra.mxu0 %v925
        %2998 = vmatprep.subr.mxu0 %v922
        %2999 = vmatpush2.msra.mxu0 %v921
        %3000 = vmatprep.subr.mxu0 %v918
        %3001 = vmatpush2.msra.mxu0 %v917
        %3002 = vmatprep.subr.mxu0 %v914
        %3003 = vmatpush2.msra.mxu0 %v913
        %3004 = vmatprep.subr.mxu0 %v910
        %3005 = vmatpush2.msra.mxu0 %v909
        %3006 = vmatprep.subr.mxu0 %v906
        %3007 = vmatpush2.msra.mxu0 %v905
        %3008 = vmatprep.subr.mxu0 %v902
        %3009 = vmatpush2.msra.mxu0 %v901
        %3010 = vmatprep.subr.mxu0 %v898
        %3011 = vmatpush2.msra.mxu0 %v897
        %3012 = vmatprep.subr.mxu0 %v894
        %3013 = vmatpush2.msra.mxu0 %v893
        %3014 = vmatprep.subr.mxu0 %v890
        %3015 = vmatpush2.msra.mxu0 %v889
        %3016 = vmatprep.subr.mxu0 %v886
        %3017 = vmatpush2.msra.mxu0 %v885
        %3018 = vmatprep.mubr.f32.mxu0 %v408
        %3019 = vmatmul.mubr.f32.gmra.mxu0 %v407
        %v3020 = vpop.f32.mrf.mxu0
        %v3021 = vadd.f32 %v2950, %v3020
        %v3022 = vpop.f32.mrf.mxu0
        %v3023 = vadd.f32 %v2952, %v3022
        %3024 = vdwg.mxu0
        %3025 = vmatprep.subr.mxu0 %v1010
        %3026 = vmatpush1.msra.mxu0 %v1009
        %3027 = vmatprep.subr.mxu0 %v1006
        %3028 = vmatpush1.msra.mxu0 %v1005
        %3029 = vmatprep.subr.mxu0 %v1002
        %3030 = vmatpush1.msra.mxu0 %v1001
        %3031 = vmatprep.subr.mxu0 %v998
        %3032 = vmatpush1.msra.mxu0 %v997
        %3033 = vmatprep.subr.mxu0 %v994
        %3034 = vmatpush1.msra.mxu0 %v993
        %3035 = vmatprep.subr.mxu0 %v990
        %3036 = vmatpush1.msra.mxu0 %v989
        %3037 = vmatprep.subr.mxu0 %v986
        %3038 = vmatpush1.msra.mxu0 %v985
        %3039 = vmatprep.subr.mxu0 %v982
        %3040 = vmatpush1.msra.mxu0 %v981
        %3041 = vmatprep.subr.mxu0 %v978
        %3042 = vmatpush1.msra.mxu0 %v977
        %3043 = vmatprep.subr.mxu0 %v974
        %3044 = vmatpush1.msra.mxu0 %v973
        %3045 = vmatprep.subr.mxu0 %v970
        %3046 = vmatpush1.msra.mxu0 %v969
        %3047 = vmatprep.subr.mxu0 %v966
        %3048 = vmatpush1.msra.mxu0 %v965
        %3049 = vmatprep.subr.mxu0 %v962
        %3050 = vmatpush1.msra.mxu0 %v961
        %3051 = vmatprep.subr.mxu0 %v958
        %3052 = vmatpush1.msra.mxu0 %v957
        %3053 = vmatprep.subr.mxu0 %v954
        %3054 = vmatpush1.msra.mxu0 %v953
        %3055 = vmatprep.subr.mxu0 %v950
        %3056 = vmatpush1.msra.mxu0 %v949
        %3057 = vmatprep.subr.mxu0 %v1074
        %3058 = vmatpush2.msra.mxu0 %v1073
        %3059 = vmatprep.subr.mxu0 %v1070
        %3060 = vmatpush2.msra.mxu0 %v1069
        %3061 = vmatprep.subr.mxu0 %v1066
        %3062 = vmatpush2.msra.mxu0 %v1065
        %3063 = vmatprep.subr.mxu0 %v1062
        %3064 = vmatpush2.msra.mxu0 %v1061
        %3065 = vmatprep.subr.mxu0 %v1058
        %3066 = vmatpush2.msra.mxu0 %v1057
        %3067 = vmatprep.subr.mxu0 %v1054
        %3068 = vmatpush2.msra.mxu0 %v1053
        %3069 = vmatprep.subr.mxu0 %v1050
        %3070 = vmatpush2.msra.mxu0 %v1049
        %3071 = vmatprep.subr.mxu0 %v1046
        %3072 = vmatpush2.msra.mxu0 %v1045
        %3073 = vmatprep.subr.mxu0 %v1042
        %3074 = vmatpush2.msra.mxu0 %v1041
        %3075 = vmatprep.subr.mxu0 %v1038
        %3076 = vmatpush2.msra.mxu0 %v1037
        %3077 = vmatprep.subr.mxu0 %v1034
        %3078 = vmatpush2.msra.mxu0 %v1033
        %3079 = vmatprep.subr.mxu0 %v1030
        %3080 = vmatpush2.msra.mxu0 %v1029
        %3081 = vmatprep.subr.mxu0 %v1026
        %3082 = vmatpush2.msra.mxu0 %v1025
        %3083 = vmatprep.subr.mxu0 %v1022
        %3084 = vmatpush2.msra.mxu0 %v1021
        %3085 = vmatprep.subr.mxu0 %v1018
        %3086 = vmatpush2.msra.mxu0 %v1017
        %3087 = vmatprep.subr.mxu0 %v1014
        %3088 = vmatpush2.msra.mxu0 %v1013
        %3089 = vmatprep.mubr.f32.mxu0 %v410
        %3090 = vmatmul.mubr.f32.gmra.mxu0 %v409
        %v3091 = vpop.f32.mrf.mxu0
        %v3092 = vadd.f32 %v3021, %v3091
        %v3093 = vpop.f32.mrf.mxu0
        %v3094 = vadd.f32 %v3023, %v3093
        %3095 = vdwg.mxu0
        %3096 = vmatprep.subr.mxu0 %v1138
        %3097 = vmatpush1.msra.mxu0 %v1137
        %3098 = vmatprep.subr.mxu0 %v1134
        %3099 = vmatpush1.msra.mxu0 %v1133
        %3100 = vmatprep.subr.mxu0 %v1130
        %3101 = vmatpush1.msra.mxu0 %v1129
        %3102 = vmatprep.subr.mxu0 %v1126
        %3103 = vmatpush1.msra.mxu0 %v1125
        %3104 = vmatprep.subr.mxu0 %v1122
        %3105 = vmatpush1.msra.mxu0 %v1121
        %3106 = vmatprep.subr.mxu0 %v1118
        %3107 = vmatpush1.msra.mxu0 %v1117
        %3108 = vmatprep.subr.mxu0 %v1114
        %3109 = vmatpush1.msra.mxu0 %v1113
        %3110 = vmatprep.subr.mxu0 %v1110
        %3111 = vmatpush1.msra.mxu0 %v1109
        %3112 = vmatprep.subr.mxu0 %v1106
        %3113 = vmatpush1.msra.mxu0 %v1105
        %3114 = vmatprep.subr.mxu0 %v1102
        %3115 = vmatpush1.msra.mxu0 %v1101
        %3116 = vmatprep.subr.mxu0 %v1098
        %3117 = vmatpush1.msra.mxu0 %v1097
        %3118 = vmatprep.subr.mxu0 %v1094
        %3119 = vmatpush1.msra.mxu0 %v1093
        %3120 = vmatprep.subr.mxu0 %v1090
        %3121 = vmatpush1.msra.mxu0 %v1089
        %3122 = vmatprep.subr.mxu0 %v1086
        %3123 = vmatpush1.msra.mxu0 %v1085
        %3124 = vmatprep.subr.mxu0 %v1082
        %3125 = vmatpush1.msra.mxu0 %v1081
        %3126 = vmatprep.subr.mxu0 %v1078
        %3127 = vmatpush1.msra.mxu0 %v1077
        %3128 = vmatprep.subr.mxu0 %v1202
        %3129 = vmatpush2.msra.mxu0 %v1201
        %3130 = vmatprep.subr.mxu0 %v1198
        %3131 = vmatpush2.msra.mxu0 %v1197
        %3132 = vmatprep.subr.mxu0 %v1194
        %3133 = vmatpush2.msra.mxu0 %v1193
        %3134 = vmatprep.subr.mxu0 %v1190
        %3135 = vmatpush2.msra.mxu0 %v1189
        %3136 = vmatprep.subr.mxu0 %v1186
        %3137 = vmatpush2.msra.mxu0 %v1185
        %3138 = vmatprep.subr.mxu0 %v1182
        %3139 = vmatpush2.msra.mxu0 %v1181
        %3140 = vmatprep.subr.mxu0 %v1178
        %3141 = vmatpush2.msra.mxu0 %v1177
        %3142 = vmatprep.subr.mxu0 %v1174
        %3143 = vmatpush2.msra.mxu0 %v1173
        %3144 = vmatprep.subr.mxu0 %v1170
        %3145 = vmatpush2.msra.mxu0 %v1169
        %3146 = vmatprep.subr.mxu0 %v1166
        %3147 = vmatpush2.msra.mxu0 %v1165
        %3148 = vmatprep.subr.mxu0 %v1162
        %3149 = vmatpush2.msra.mxu0 %v1161
        %3150 = vmatprep.subr.mxu0 %v1158
        %3151 = vmatpush2.msra.mxu0 %v1157
        %3152 = vmatprep.subr.mxu0 %v1154
        %3153 = vmatpush2.msra.mxu0 %v1153
        %3154 = vmatprep.subr.mxu0 %v1150
        %3155 = vmatpush2.msra.mxu0 %v1149
        %3156 = vmatprep.subr.mxu0 %v1146
        %3157 = vmatpush2.msra.mxu0 %v1145
        %3158 = vmatprep.subr.mxu0 %v1142
        %3159 = vmatpush2.msra.mxu0 %v1141
        %3160 = vmatprep.mubr.f32.mxu0 %v412
        %3161 = vmatmul.mubr.f32.gmra.mxu0 %v411
        %v3162 = vpop.f32.mrf.mxu0
        %v3163 = vadd.f32 %v3092, %v3162
        %v3164 = vpop.f32.mrf.mxu0
        %v3165 = vadd.f32 %v3094, %v3164
        %3166 = vdwg.mxu0
        %3167 = vmatprep.subr.mxu0 %v1266
        %3168 = vmatpush1.msra.mxu0 %v1265
        %3169 = vmatprep.subr.mxu0 %v1262
        %3170 = vmatpush1.msra.mxu0 %v1261
        %3171 = vmatprep.subr.mxu0 %v1258
        %3172 = vmatpush1.msra.mxu0 %v1257
        %3173 = vmatprep.subr.mxu0 %v1254
        %3174 = vmatpush1.msra.mxu0 %v1253
        %3175 = vmatprep.subr.mxu0 %v1250
        %3176 = vmatpush1.msra.mxu0 %v1249
        %3177 = vmatprep.subr.mxu0 %v1246
        %3178 = vmatpush1.msra.mxu0 %v1245
        %3179 = vmatprep.subr.mxu0 %v1242
        %3180 = vmatpush1.msra.mxu0 %v1241
        %3181 = vmatprep.subr.mxu0 %v1238
        %3182 = vmatpush1.msra.mxu0 %v1237
        %3183 = vmatprep.subr.mxu0 %v1234
        %3184 = vmatpush1.msra.mxu0 %v1233
        %3185 = vmatprep.subr.mxu0 %v1230
        %3186 = vmatpush1.msra.mxu0 %v1229
        %3187 = vmatprep.subr.mxu0 %v1226
        %3188 = vmatpush1.msra.mxu0 %v1225
        %3189 = vmatprep.subr.mxu0 %v1222
        %3190 = vmatpush1.msra.mxu0 %v1221
        %3191 = vmatprep.subr.mxu0 %v1218
        %3192 = vmatpush1.msra.mxu0 %v1217
        %3193 = vmatprep.subr.mxu0 %v1214
        %3194 = vmatpush1.msra.mxu0 %v1213
        %3195 = vmatprep.subr.mxu0 %v1210
        %3196 = vmatpush1.msra.mxu0 %v1209
        %3197 = vmatprep.subr.mxu0 %v1206
        %3198 = vmatpush1.msra.mxu0 %v1205
        %3199 = vmatprep.subr.mxu0 %v1330
        %3200 = vmatpush2.msra.mxu0 %v1329
        %3201 = vmatprep.subr.mxu0 %v1326
        %3202 = vmatpush2.msra.mxu0 %v1325
        %3203 = vmatprep.subr.mxu0 %v1322
        %3204 = vmatpush2.msra.mxu0 %v1321
        %3205 = vmatprep.subr.mxu0 %v1318
        %3206 = vmatpush2.msra.mxu0 %v1317
        %3207 = vmatprep.subr.mxu0 %v1314
        %3208 = vmatpush2.msra.mxu0 %v1313
        %3209 = vmatprep.subr.mxu0 %v1310
        %3210 = vmatpush2.msra.mxu0 %v1309
        %3211 = vmatprep.subr.mxu0 %v1306
        %3212 = vmatpush2.msra.mxu0 %v1305
        %3213 = vmatprep.subr.mxu0 %v1302
        %3214 = vmatpush2.msra.mxu0 %v1301
        %3215 = vmatprep.subr.mxu0 %v1298
        %3216 = vmatpush2.msra.mxu0 %v1297
        %3217 = vmatprep.subr.mxu0 %v1294
        %3218 = vmatpush2.msra.mxu0 %v1293
        %3219 = vmatprep.subr.mxu0 %v1290
        %3220 = vmatpush2.msra.mxu0 %v1289
        %3221 = vmatprep.subr.mxu0 %v1286
        %3222 = vmatpush2.msra.mxu0 %v1285
        %3223 = vmatprep.subr.mxu0 %v1282
        %3224 = vmatpush2.msra.mxu0 %v1281
        %3225 = vmatprep.subr.mxu0 %v1278
        %3226 = vmatpush2.msra.mxu0 %v1277
        %3227 = vmatprep.subr.mxu0 %v1274
        %3228 = vmatpush2.msra.mxu0 %v1273
        %3229 = vmatprep.subr.mxu0 %v1270
        %3230 = vmatpush2.msra.mxu0 %v1269
        %3231 = vmatprep.mubr.f32.mxu0 %v414
        %3232 = vmatmul.mubr.f32.gmra.mxu0 %v413
        %v3233 = vpop.f32.mrf.mxu0
        %v3234 = vadd.f32 %v3163, %v3233
        %v3235 = vpop.f32.mrf.mxu0
        %v3236 = vadd.f32 %v3165, %v3235
        %3237 = vdwg.mxu0
        %3238 = vmatprep.subr.mxu0 %v1394
        %3239 = vmatpush1.msra.mxu0 %v1393
        %3240 = vmatprep.subr.mxu0 %v1390
        %3241 = vmatpush1.msra.mxu0 %v1389
        %3242 = vmatprep.subr.mxu0 %v1386
        %3243 = vmatpush1.msra.mxu0 %v1385
        %3244 = vmatprep.subr.mxu0 %v1382
        %3245 = vmatpush1.msra.mxu0 %v1381
        %3246 = vmatprep.subr.mxu0 %v1378
        %3247 = vmatpush1.msra.mxu0 %v1377
        %3248 = vmatprep.subr.mxu0 %v1374
        %3249 = vmatpush1.msra.mxu0 %v1373
        %3250 = vmatprep.subr.mxu0 %v1370
        %3251 = vmatpush1.msra.mxu0 %v1369
        %3252 = vmatprep.subr.mxu0 %v1366
        %3253 = vmatpush1.msra.mxu0 %v1365
        %3254 = vmatprep.subr.mxu0 %v1362
        %3255 = vmatpush1.msra.mxu0 %v1361
        %3256 = vmatprep.subr.mxu0 %v1358
        %3257 = vmatpush1.msra.mxu0 %v1357
        %3258 = vmatprep.subr.mxu0 %v1354
        %3259 = vmatpush1.msra.mxu0 %v1353
        %3260 = vmatprep.subr.mxu0 %v1350
        %3261 = vmatpush1.msra.mxu0 %v1349
        %3262 = vmatprep.subr.mxu0 %v1346
        %3263 = vmatpush1.msra.mxu0 %v1345
        %3264 = vmatprep.subr.mxu0 %v1342
        %3265 = vmatpush1.msra.mxu0 %v1341
        %3266 = vmatprep.subr.mxu0 %v1338
        %3267 = vmatpush1.msra.mxu0 %v1337
        %3268 = vmatprep.subr.mxu0 %v1334
        %3269 = vmatpush1.msra.mxu0 %v1333
        %3270 = vmatprep.subr.mxu0 %v1458
        %3271 = vmatpush2.msra.mxu0 %v1457
        %3272 = vmatprep.subr.mxu0 %v1454
        %3273 = vmatpush2.msra.mxu0 %v1453
        %3274 = vmatprep.subr.mxu0 %v1450
        %3275 = vmatpush2.msra.mxu0 %v1449
        %3276 = vmatprep.subr.mxu0 %v1446
        %3277 = vmatpush2.msra.mxu0 %v1445
        %3278 = vmatprep.subr.mxu0 %v1442
        %3279 = vmatpush2.msra.mxu0 %v1441
        %3280 = vmatprep.subr.mxu0 %v1438
        %3281 = vmatpush2.msra.mxu0 %v1437
        %3282 = vmatprep.subr.mxu0 %v1434
        %3283 = vmatpush2.msra.mxu0 %v1433
        %3284 = vmatprep.subr.mxu0 %v1430
        %3285 = vmatpush2.msra.mxu0 %v1429
        %3286 = vmatprep.subr.mxu0 %v1426
        %3287 = vmatpush2.msra.mxu0 %v1425
        %3288 = vmatprep.subr.mxu0 %v1422
        %3289 = vmatpush2.msra.mxu0 %v1421
        %3290 = vmatprep.subr.mxu0 %v1418
        %3291 = vmatpush2.msra.mxu0 %v1417
        %3292 = vmatprep.subr.mxu0 %v1414
        %3293 = vmatpush2.msra.mxu0 %v1413
        %3294 = vmatprep.subr.mxu0 %v1410
        %3295 = vmatpush2.msra.mxu0 %v1409
        %3296 = vmatprep.subr.mxu0 %v1406
        %3297 = vmatpush2.msra.mxu0 %v1405
        %3298 = vmatprep.subr.mxu0 %v1402
        %3299 = vmatpush2.msra.mxu0 %v1401
        %3300 = vmatprep.subr.mxu0 %v1398
        %3301 = vmatpush2.msra.mxu0 %v1397
        %3302 = vmatprep.mubr.f32.mxu0 %v416
        %3303 = vmatmul.mubr.f32.gmra.mxu0 %v415
        %v3304 = vpop.f32.mrf.mxu0
        %v3305 = vadd.f32 %v3234, %v3304
        %v3306 = vpop.f32.mrf.mxu0
        %v3307 = vadd.f32 %v3236, %v3306
        %3308 = vdwg.mxu0
        %3309 = vmatprep.subr.mxu0 %v1522
        %3310 = vmatpush1.msra.mxu0 %v1521
        %3311 = vmatprep.subr.mxu0 %v1518
        %3312 = vmatpush1.msra.mxu0 %v1517
        %3313 = vmatprep.subr.mxu0 %v1514
        %3314 = vmatpush1.msra.mxu0 %v1513
        %3315 = vmatprep.subr.mxu0 %v1510
        %3316 = vmatpush1.msra.mxu0 %v1509
        %3317 = vmatprep.subr.mxu0 %v1506
        %3318 = vmatpush1.msra.mxu0 %v1505
        %3319 = vmatprep.subr.mxu0 %v1502
        %3320 = vmatpush1.msra.mxu0 %v1501
        %3321 = vmatprep.subr.mxu0 %v1498
        %3322 = vmatpush1.msra.mxu0 %v1497
        %3323 = vmatprep.subr.mxu0 %v1494
        %3324 = vmatpush1.msra.mxu0 %v1493
        %3325 = vmatprep.subr.mxu0 %v1490
        %3326 = vmatpush1.msra.mxu0 %v1489
        %3327 = vmatprep.subr.mxu0 %v1486
        %3328 = vmatpush1.msra.mxu0 %v1485
        %3329 = vmatprep.subr.mxu0 %v1482
        %3330 = vmatpush1.msra.mxu0 %v1481
        %3331 = vmatprep.subr.mxu0 %v1478
        %3332 = vmatpush1.msra.mxu0 %v1477
        %3333 = vmatprep.subr.mxu0 %v1474
        %3334 = vmatpush1.msra.mxu0 %v1473
        %3335 = vmatprep.subr.mxu0 %v1470
        %3336 = vmatpush1.msra.mxu0 %v1469
        %3337 = vmatprep.subr.mxu0 %v1466
        %3338 = vmatpush1.msra.mxu0 %v1465
        %3339 = vmatprep.subr.mxu0 %v1462
        %3340 = vmatpush1.msra.mxu0 %v1461
        %3341 = vmatprep.subr.mxu0 %v1586
        %3342 = vmatpush2.msra.mxu0 %v1585
        %3343 = vmatprep.subr.mxu0 %v1582
        %3344 = vmatpush2.msra.mxu0 %v1581
        %3345 = vmatprep.subr.mxu0 %v1578
        %3346 = vmatpush2.msra.mxu0 %v1577
        %3347 = vmatprep.subr.mxu0 %v1574
        %3348 = vmatpush2.msra.mxu0 %v1573
        %3349 = vmatprep.subr.mxu0 %v1570
        %3350 = vmatpush2.msra.mxu0 %v1569
        %3351 = vmatprep.subr.mxu0 %v1566
        %3352 = vmatpush2.msra.mxu0 %v1565
        %3353 = vmatprep.subr.mxu0 %v1562
        %3354 = vmatpush2.msra.mxu0 %v1561
        %3355 = vmatprep.subr.mxu0 %v1558
        %3356 = vmatpush2.msra.mxu0 %v1557
        %3357 = vmatprep.subr.mxu0 %v1554
        %3358 = vmatpush2.msra.mxu0 %v1553
        %3359 = vmatprep.subr.mxu0 %v1550
        %3360 = vmatpush2.msra.mxu0 %v1549
        %3361 = vmatprep.subr.mxu0 %v1546
        %3362 = vmatpush2.msra.mxu0 %v1545
        %3363 = vmatprep.subr.mxu0 %v1542
        %3364 = vmatpush2.msra.mxu0 %v1541
        %3365 = vmatprep.subr.mxu0 %v1538
        %3366 = vmatpush2.msra.mxu0 %v1537
        %3367 = vmatprep.subr.mxu0 %v1534
        %3368 = vmatpush2.msra.mxu0 %v1533
        %3369 = vmatprep.subr.mxu0 %v1530
        %3370 = vmatpush2.msra.mxu0 %v1529
        %3371 = vmatprep.subr.mxu0 %v1526
        %3372 = vmatpush2.msra.mxu0 %v1525
        %3373 = vmatprep.mubr.f32.mxu0 %v418
        %3374 = vmatmul.mubr.f32.gmra.mxu0 %v417
        %v3375 = vpop.f32.mrf.mxu0
        %v3376 = vadd.f32 %v3305, %v3375
        %v3377 = vpop.f32.mrf.mxu0
        %v3378 = vadd.f32 %v3307, %v3377
        %3379 = vdwg.mxu0
        %3380 = vmatprep.subr.mxu0 %v1650
        %3381 = vmatpush1.msra.mxu0 %v1649
        %3382 = vmatprep.subr.mxu0 %v1646
        %3383 = vmatpush1.msra.mxu0 %v1645
        %3384 = vmatprep.subr.mxu0 %v1642
        %3385 = vmatpush1.msra.mxu0 %v1641
        %3386 = vmatprep.subr.mxu0 %v1638
        %3387 = vmatpush1.msra.mxu0 %v1637
        %3388 = vmatprep.subr.mxu0 %v1634
        %3389 = vmatpush1.msra.mxu0 %v1633
        %3390 = vmatprep.subr.mxu0 %v1630
        %3391 = vmatpush1.msra.mxu0 %v1629
        %3392 = vmatprep.subr.mxu0 %v1626
        %3393 = vmatpush1.msra.mxu0 %v1625
        %3394 = vmatprep.subr.mxu0 %v1622
        %3395 = vmatpush1.msra.mxu0 %v1621
        %3396 = vmatprep.subr.mxu0 %v1618
        %3397 = vmatpush1.msra.mxu0 %v1617
        %3398 = vmatprep.subr.mxu0 %v1614
        %3399 = vmatpush1.msra.mxu0 %v1613
        %3400 = vmatprep.subr.mxu0 %v1610
        %3401 = vmatpush1.msra.mxu0 %v1609
        %3402 = vmatprep.subr.mxu0 %v1606
        %3403 = vmatpush1.msra.mxu0 %v1605
        %3404 = vmatprep.subr.mxu0 %v1602
        %3405 = vmatpush1.msra.mxu0 %v1601
        %3406 = vmatprep.subr.mxu0 %v1598
        %3407 = vmatpush1.msra.mxu0 %v1597
        %3408 = vmatprep.subr.mxu0 %v1594
        %3409 = vmatpush1.msra.mxu0 %v1593
        %3410 = vmatprep.subr.mxu0 %v1590
        %3411 = vmatpush1.msra.mxu0 %v1589
        %3412 = vmatprep.subr.mxu0 %v1714
        %3413 = vmatpush2.msra.mxu0 %v1713
        %3414 = vmatprep.subr.mxu0 %v1710
        %3415 = vmatpush2.msra.mxu0 %v1709
        %3416 = vmatprep.subr.mxu0 %v1706
        %3417 = vmatpush2.msra.mxu0 %v1705
        %3418 = vmatprep.subr.mxu0 %v1702
        %3419 = vmatpush2.msra.mxu0 %v1701
        %3420 = vmatprep.subr.mxu0 %v1698
        %3421 = vmatpush2.msra.mxu0 %v1697
        %3422 = vmatprep.subr.mxu0 %v1694
        %3423 = vmatpush2.msra.mxu0 %v1693
        %3424 = vmatprep.subr.mxu0 %v1690
        %3425 = vmatpush2.msra.mxu0 %v1689
        %3426 = vmatprep.subr.mxu0 %v1686
        %3427 = vmatpush2.msra.mxu0 %v1685
        %3428 = vmatprep.subr.mxu0 %v1682
        %3429 = vmatpush2.msra.mxu0 %v1681
        %3430 = vmatprep.subr.mxu0 %v1678
        %3431 = vmatpush2.msra.mxu0 %v1677
        %3432 = vmatprep.subr.mxu0 %v1674
        %3433 = vmatpush2.msra.mxu0 %v1673
        %3434 = vmatprep.subr.mxu0 %v1670
        %3435 = vmatpush2.msra.mxu0 %v1669
        %3436 = vmatprep.subr.mxu0 %v1666
        %3437 = vmatpush2.msra.mxu0 %v1665
        %3438 = vmatprep.subr.mxu0 %v1662
        %3439 = vmatpush2.msra.mxu0 %v1661
        %3440 = vmatprep.subr.mxu0 %v1658
        %3441 = vmatpush2.msra.mxu0 %v1657
        %3442 = vmatprep.subr.mxu0 %v1654
        %3443 = vmatpush2.msra.mxu0 %v1653
        %3444 = vmatprep.mubr.f32.mxu0 %v420
        %3445 = vmatmul.mubr.f32.gmra.mxu0 %v419
        %v3446 = vpop.f32.mrf.mxu0
        %v3447 = vadd.f32 %v3376, %v3446
        %v3448 = vpop.f32.mrf.mxu0
        %v3449 = vadd.f32 %v3378, %v3448
        %3450 = vdwg.mxu0
        %3451 = vmatprep.subr.mxu0 %v1778
        %3452 = vmatpush1.msra.mxu0 %v1777
        %3453 = vmatprep.subr.mxu0 %v1774
        %3454 = vmatpush1.msra.mxu0 %v1773
        %3455 = vmatprep.subr.mxu0 %v1770
        %3456 = vmatpush1.msra.mxu0 %v1769
        %3457 = vmatprep.subr.mxu0 %v1766
        %3458 = vmatpush1.msra.mxu0 %v1765
        %3459 = vmatprep.subr.mxu0 %v1762
        %3460 = vmatpush1.msra.mxu0 %v1761
        %3461 = vmatprep.subr.mxu0 %v1758
        %3462 = vmatpush1.msra.mxu0 %v1757
        %3463 = vmatprep.subr.mxu0 %v1754
        %3464 = vmatpush1.msra.mxu0 %v1753
        %3465 = vmatprep.subr.mxu0 %v1750
        %3466 = vmatpush1.msra.mxu0 %v1749
        %3467 = vmatprep.subr.mxu0 %v1746
        %3468 = vmatpush1.msra.mxu0 %v1745
        %3469 = vmatprep.subr.mxu0 %v1742
        %3470 = vmatpush1.msra.mxu0 %v1741
        %3471 = vmatprep.subr.mxu0 %v1738
        %3472 = vmatpush1.msra.mxu0 %v1737
        %3473 = vmatprep.subr.mxu0 %v1734
        %3474 = vmatpush1.msra.mxu0 %v1733
        %3475 = vmatprep.subr.mxu0 %v1730
        %3476 = vmatpush1.msra.mxu0 %v1729
        %3477 = vmatprep.subr.mxu0 %v1726
        %3478 = vmatpush1.msra.mxu0 %v1725
        %3479 = vmatprep.subr.mxu0 %v1722
        %3480 = vmatpush1.msra.mxu0 %v1721
        %3481 = vmatprep.subr.mxu0 %v1718
        %3482 = vmatpush1.msra.mxu0 %v1717
        %3483 = vmatprep.subr.mxu0 %v1842
        %3484 = vmatpush2.msra.mxu0 %v1841
        %3485 = vmatprep.subr.mxu0 %v1838
        %3486 = vmatpush2.msra.mxu0 %v1837
        %3487 = vmatprep.subr.mxu0 %v1834
        %3488 = vmatpush2.msra.mxu0 %v1833
        %3489 = vmatprep.subr.mxu0 %v1830
        %3490 = vmatpush2.msra.mxu0 %v1829
        %3491 = vmatprep.subr.mxu0 %v1826
        %3492 = vmatpush2.msra.mxu0 %v1825
        %3493 = vmatprep.subr.mxu0 %v1822
        %3494 = vmatpush2.msra.mxu0 %v1821
        %3495 = vmatprep.subr.mxu0 %v1818
        %3496 = vmatpush2.msra.mxu0 %v1817
        %3497 = vmatprep.subr.mxu0 %v1814
        %3498 = vmatpush2.msra.mxu0 %v1813
        %3499 = vmatprep.subr.mxu0 %v1810
        %3500 = vmatpush2.msra.mxu0 %v1809
        %3501 = vmatprep.subr.mxu0 %v1806
        %3502 = vmatpush2.msra.mxu0 %v1805
        %3503 = vmatprep.subr.mxu0 %v1802
        %3504 = vmatpush2.msra.mxu0 %v1801
        %3505 = vmatprep.subr.mxu0 %v1798
        %3506 = vmatpush2.msra.mxu0 %v1797
        %3507 = vmatprep.subr.mxu0 %v1794
        %3508 = vmatpush2.msra.mxu0 %v1793
        %3509 = vmatprep.subr.mxu0 %v1790
        %3510 = vmatpush2.msra.mxu0 %v1789
        %3511 = vmatprep.subr.mxu0 %v1786
        %3512 = vmatpush2.msra.mxu0 %v1785
        %3513 = vmatprep.subr.mxu0 %v1782
        %3514 = vmatpush2.msra.mxu0 %v1781
        %3515 = vmatprep.mubr.f32.mxu0 %v422
        %3516 = vmatmul.mubr.f32.gmra.mxu0 %v421
        %v3517 = vpop.f32.mrf.mxu0
        %v3518 = vadd.f32 %v3447, %v3517
        %v3519 = vpop.f32.mrf.mxu0
        %v3520 = vadd.f32 %v3449, %v3519
        %3521 = vdwg.mxu0
        %3522 = vmatprep.subr.mxu0 %v1906
        %3523 = vmatpush1.msra.mxu0 %v1905
        %3524 = vmatprep.subr.mxu0 %v1902
        %3525 = vmatpush1.msra.mxu0 %v1901
        %3526 = vmatprep.subr.mxu0 %v1898
        %3527 = vmatpush1.msra.mxu0 %v1897
        %3528 = vmatprep.subr.mxu0 %v1894
        %3529 = vmatpush1.msra.mxu0 %v1893
        %3530 = vmatprep.subr.mxu0 %v1890
        %3531 = vmatpush1.msra.mxu0 %v1889
        %3532 = vmatprep.subr.mxu0 %v1886
        %3533 = vmatpush1.msra.mxu0 %v1885
        %3534 = vmatprep.subr.mxu0 %v1882
        %3535 = vmatpush1.msra.mxu0 %v1881
        %3536 = vmatprep.subr.mxu0 %v1878
        %3537 = vmatpush1.msra.mxu0 %v1877
        %3538 = vmatprep.subr.mxu0 %v1874
        %3539 = vmatpush1.msra.mxu0 %v1873
        %3540 = vmatprep.subr.mxu0 %v1870
        %3541 = vmatpush1.msra.mxu0 %v1869
        %3542 = vmatprep.subr.mxu0 %v1866
        %3543 = vmatpush1.msra.mxu0 %v1865
        %3544 = vmatprep.subr.mxu0 %v1862
        %3545 = vmatpush1.msra.mxu0 %v1861
        %3546 = vmatprep.subr.mxu0 %v1858
        %3547 = vmatpush1.msra.mxu0 %v1857
        %3548 = vmatprep.subr.mxu0 %v1854
        %3549 = vmatpush1.msra.mxu0 %v1853
        %3550 = vmatprep.subr.mxu0 %v1850
        %3551 = vmatpush1.msra.mxu0 %v1849
        %3552 = vmatprep.subr.mxu0 %v1846
        %3553 = vmatpush1.msra.mxu0 %v1845
        %3554 = vmatprep.subr.mxu0 %v1970
        %3555 = vmatpush2.msra.mxu0 %v1969
        %3556 = vmatprep.subr.mxu0 %v1966
        %3557 = vmatpush2.msra.mxu0 %v1965
        %3558 = vmatprep.subr.mxu0 %v1962
        %3559 = vmatpush2.msra.mxu0 %v1961
        %3560 = vmatprep.subr.mxu0 %v1958
        %3561 = vmatpush2.msra.mxu0 %v1957
        %3562 = vmatprep.subr.mxu0 %v1954
        %3563 = vmatpush2.msra.mxu0 %v1953
        %3564 = vmatprep.subr.mxu0 %v1950
        %3565 = vmatpush2.msra.mxu0 %v1949
        %3566 = vmatprep.subr.mxu0 %v1946
        %3567 = vmatpush2.msra.mxu0 %v1945
        %3568 = vmatprep.subr.mxu0 %v1942
        %3569 = vmatpush2.msra.mxu0 %v1941
        %3570 = vmatprep.subr.mxu0 %v1938
        %3571 = vmatpush2.msra.mxu0 %v1937
        %3572 = vmatprep.subr.mxu0 %v1934
        %3573 = vmatpush2.msra.mxu0 %v1933
        %3574 = vmatprep.subr.mxu0 %v1930
        %3575 = vmatpush2.msra.mxu0 %v1929
        %3576 = vmatprep.subr.mxu0 %v1926
        %3577 = vmatpush2.msra.mxu0 %v1925
        %3578 = vmatprep.subr.mxu0 %v1922
        %3579 = vmatpush2.msra.mxu0 %v1921
        %3580 = vmatprep.subr.mxu0 %v1918
        %3581 = vmatpush2.msra.mxu0 %v1917
        %3582 = vmatprep.subr.mxu0 %v1914
        %3583 = vmatpush2.msra.mxu0 %v1913
        %3584 = vmatprep.subr.mxu0 %v1910
        %3585 = vmatpush2.msra.mxu0 %v1909
        %3586 = vmatprep.mubr.f32.mxu0 %v424
        %3587 = vmatmul.mubr.f32.gmra.mxu0 %v423
        %v3588 = vpop.f32.mrf.mxu0
        %v3589 = vadd.f32 %v3518, %v3588
        %v3590 = vpop.f32.mrf.mxu0
        %v3591 = vadd.f32 %v3520, %v3590
        %3592 = vdwg.mxu0
        %3593 = vmatprep.subr.mxu0 %v2034
        %3594 = vmatpush1.msra.mxu0 %v2033
        %3595 = vmatprep.subr.mxu0 %v2030
        %3596 = vmatpush1.msra.mxu0 %v2029
        %3597 = vmatprep.subr.mxu0 %v2026
        %3598 = vmatpush1.msra.mxu0 %v2025
        %3599 = vmatprep.subr.mxu0 %v2022
        %3600 = vmatpush1.msra.mxu0 %v2021
        %3601 = vmatprep.subr.mxu0 %v2018
        %3602 = vmatpush1.msra.mxu0 %v2017
        %3603 = vmatprep.subr.mxu0 %v2014
        %3604 = vmatpush1.msra.mxu0 %v2013
        %3605 = vmatprep.subr.mxu0 %v2010
        %3606 = vmatpush1.msra.mxu0 %v2009
        %3607 = vmatprep.subr.mxu0 %v2006
        %3608 = vmatpush1.msra.mxu0 %v2005
        %3609 = vmatprep.subr.mxu0 %v2002
        %3610 = vmatpush1.msra.mxu0 %v2001
        %3611 = vmatprep.subr.mxu0 %v1998
        %3612 = vmatpush1.msra.mxu0 %v1997
        %3613 = vmatprep.subr.mxu0 %v1994
        %3614 = vmatpush1.msra.mxu0 %v1993
        %3615 = vmatprep.subr.mxu0 %v1990
        %3616 = vmatpush1.msra.mxu0 %v1989
        %3617 = vmatprep.subr.mxu0 %v1986
        %3618 = vmatpush1.msra.mxu0 %v1985
        %3619 = vmatprep.subr.mxu0 %v1982
        %3620 = vmatpush1.msra.mxu0 %v1981
        %3621 = vmatprep.subr.mxu0 %v1978
        %3622 = vmatpush1.msra.mxu0 %v1977
        %3623 = vmatprep.subr.mxu0 %v1974
        %3624 = vmatpush1.msra.mxu0 %v1973
        %3625 = vmatprep.subr.mxu0 %v2098
        %3626 = vmatpush2.msra.mxu0 %v2097
        %3627 = vmatprep.subr.mxu0 %v2094
        %3628 = vmatpush2.msra.mxu0 %v2093
        %3629 = vmatprep.subr.mxu0 %v2090
        %3630 = vmatpush2.msra.mxu0 %v2089
        %3631 = vmatprep.subr.mxu0 %v2086
        %3632 = vmatpush2.msra.mxu0 %v2085
        %3633 = vmatprep.subr.mxu0 %v2082
        %3634 = vmatpush2.msra.mxu0 %v2081
        %3635 = vmatprep.subr.mxu0 %v2078
        %3636 = vmatpush2.msra.mxu0 %v2077
        %3637 = vmatprep.subr.mxu0 %v2074
        %3638 = vmatpush2.msra.mxu0 %v2073
        %3639 = vmatprep.subr.mxu0 %v2070
        %3640 = vmatpush2.msra.mxu0 %v2069
        %3641 = vmatprep.subr.mxu0 %v2066
        %3642 = vmatpush2.msra.mxu0 %v2065
        %3643 = vmatprep.subr.mxu0 %v2062
        %3644 = vmatpush2.msra.mxu0 %v2061
        %3645 = vmatprep.subr.mxu0 %v2058
        %3646 = vmatpush2.msra.mxu0 %v2057
        %3647 = vmatprep.subr.mxu0 %v2054
        %3648 = vmatpush2.msra.mxu0 %v2053
        %3649 = vmatprep.subr.mxu0 %v2050
        %3650 = vmatpush2.msra.mxu0 %v2049
        %3651 = vmatprep.subr.mxu0 %v2046
        %3652 = vmatpush2.msra.mxu0 %v2045
        %3653 = vmatprep.subr.mxu0 %v2042
        %3654 = vmatpush2.msra.mxu0 %v2041
        %3655 = vmatprep.subr.mxu0 %v2038
        %3656 = vmatpush2.msra.mxu0 %v2037
        %3657 = vmatprep.mubr.f32.mxu0 %v426
        %3658 = vmatmul.mubr.f32.gmra.mxu0 %v425
        %v3659 = vpop.f32.mrf.mxu0
        %v3660 = vadd.f32 %v3589, %v3659
        %v3661 = vpop.f32.mrf.mxu0
        %v3662 = vadd.f32 %v3591, %v3661
        %3663 = vdwg.mxu0
        %3664 = vmatprep.subr.mxu0 %v2162
        %3665 = vmatpush1.msra.mxu0 %v2161
        %3666 = vmatprep.subr.mxu0 %v2158
        %3667 = vmatpush1.msra.mxu0 %v2157
        %3668 = vmatprep.subr.mxu0 %v2154
        %3669 = vmatpush1.msra.mxu0 %v2153
        %3670 = vmatprep.subr.mxu0 %v2150
        %3671 = vmatpush1.msra.mxu0 %v2149
        %3672 = vmatprep.subr.mxu0 %v2146
        %3673 = vmatpush1.msra.mxu0 %v2145
        %3674 = vmatprep.subr.mxu0 %v2142
        %3675 = vmatpush1.msra.mxu0 %v2141
        %3676 = vmatprep.subr.mxu0 %v2138
        %3677 = vmatpush1.msra.mxu0 %v2137
        %3678 = vmatprep.subr.mxu0 %v2134
        %3679 = vmatpush1.msra.mxu0 %v2133
        %3680 = vmatprep.subr.mxu0 %v2130
        %3681 = vmatpush1.msra.mxu0 %v2129
        %3682 = vmatprep.subr.mxu0 %v2126
        %3683 = vmatpush1.msra.mxu0 %v2125
        %3684 = vmatprep.subr.mxu0 %v2122
        %3685 = vmatpush1.msra.mxu0 %v2121
        %3686 = vmatprep.subr.mxu0 %v2118
        %3687 = vmatpush1.msra.mxu0 %v2117
        %3688 = vmatprep.subr.mxu0 %v2114
        %3689 = vmatpush1.msra.mxu0 %v2113
        %3690 = vmatprep.subr.mxu0 %v2110
        %3691 = vmatpush1.msra.mxu0 %v2109
        %3692 = vmatprep.subr.mxu0 %v2106
        %3693 = vmatpush1.msra.mxu0 %v2105
        %3694 = vmatprep.subr.mxu0 %v2102
        %3695 = vmatpush1.msra.mxu0 %v2101
        %3696 = vmatprep.subr.mxu0 %v2226
        %3697 = vmatpush2.msra.mxu0 %v2225
        %3698 = vmatprep.subr.mxu0 %v2222
        %3699 = vmatpush2.msra.mxu0 %v2221
        %3700 = vmatprep.subr.mxu0 %v2218
        %3701 = vmatpush2.msra.mxu0 %v2217
        %3702 = vmatprep.subr.mxu0 %v2214
        %3703 = vmatpush2.msra.mxu0 %v2213
        %3704 = vmatprep.subr.mxu0 %v2210
        %3705 = vmatpush2.msra.mxu0 %v2209
        %3706 = vmatprep.subr.mxu0 %v2206
        %3707 = vmatpush2.msra.mxu0 %v2205
        %3708 = vmatprep.subr.mxu0 %v2202
        %3709 = vmatpush2.msra.mxu0 %v2201
        %3710 = vmatprep.subr.mxu0 %v2198
        %3711 = vmatpush2.msra.mxu0 %v2197
        %3712 = vmatprep.subr.mxu0 %v2194
        %3713 = vmatpush2.msra.mxu0 %v2193
        %3714 = vmatprep.subr.mxu0 %v2190
        %3715 = vmatpush2.msra.mxu0 %v2189
        %3716 = vmatprep.subr.mxu0 %v2186
        %3717 = vmatpush2.msra.mxu0 %v2185
        %3718 = vmatprep.subr.mxu0 %v2182
        %3719 = vmatpush2.msra.mxu0 %v2181
        %3720 = vmatprep.subr.mxu0 %v2178
        %3721 = vmatpush2.msra.mxu0 %v2177
        %3722 = vmatprep.subr.mxu0 %v2174
        %3723 = vmatpush2.msra.mxu0 %v2173
        %3724 = vmatprep.subr.mxu0 %v2170
        %3725 = vmatpush2.msra.mxu0 %v2169
        %3726 = vmatprep.subr.mxu0 %v2166
        %3727 = vmatpush2.msra.mxu0 %v2165
        %3728 = vmatprep.mubr.f32.mxu0 %v428
        %3729 = vmatmul.mubr.f32.gmra.mxu0 %v427
        %v3730 = vpop.f32.mrf.mxu0
        %v3731 = vadd.f32 %v3660, %v3730
        %v3732 = vpop.f32.mrf.mxu0
        %v3733 = vadd.f32 %v3662, %v3732
        %3734 = vdwg.mxu0
        %3735 = vmatprep.subr.mxu0 %v2290
        %3736 = vmatpush1.msra.mxu0 %v2289
        %3737 = vmatprep.subr.mxu0 %v2286
        %3738 = vmatpush1.msra.mxu0 %v2285
        %3739 = vmatprep.subr.mxu0 %v2282
        %3740 = vmatpush1.msra.mxu0 %v2281
        %3741 = vmatprep.subr.mxu0 %v2278
        %3742 = vmatpush1.msra.mxu0 %v2277
        %3743 = vmatprep.subr.mxu0 %v2274
        %3744 = vmatpush1.msra.mxu0 %v2273
        %3745 = vmatprep.subr.mxu0 %v2270
        %3746 = vmatpush1.msra.mxu0 %v2269
        %3747 = vmatprep.subr.mxu0 %v2266
        %3748 = vmatpush1.msra.mxu0 %v2265
        %3749 = vmatprep.subr.mxu0 %v2262
        %3750 = vmatpush1.msra.mxu0 %v2261
        %3751 = vmatprep.subr.mxu0 %v2258
        %3752 = vmatpush1.msra.mxu0 %v2257
        %3753 = vmatprep.subr.mxu0 %v2254
        %3754 = vmatpush1.msra.mxu0 %v2253
        %3755 = vmatprep.subr.mxu0 %v2250
        %3756 = vmatpush1.msra.mxu0 %v2249
        %3757 = vmatprep.subr.mxu0 %v2246
        %3758 = vmatpush1.msra.mxu0 %v2245
        %3759 = vmatprep.subr.mxu0 %v2242
        %3760 = vmatpush1.msra.mxu0 %v2241
        %3761 = vmatprep.subr.mxu0 %v2238
        %3762 = vmatpush1.msra.mxu0 %v2237
        %3763 = vmatprep.subr.mxu0 %v2234
        %3764 = vmatpush1.msra.mxu0 %v2233
        %3765 = vmatprep.subr.mxu0 %v2230
        %3766 = vmatpush1.msra.mxu0 %v2229
        %3767 = vmatprep.subr.mxu0 %v2354
        %3768 = vmatpush2.msra.mxu0 %v2353
        %3769 = vmatprep.subr.mxu0 %v2350
        %3770 = vmatpush2.msra.mxu0 %v2349
        %3771 = vmatprep.subr.mxu0 %v2346
        %3772 = vmatpush2.msra.mxu0 %v2345
        %3773 = vmatprep.subr.mxu0 %v2342
        %3774 = vmatpush2.msra.mxu0 %v2341
        %3775 = vmatprep.subr.mxu0 %v2338
        %3776 = vmatpush2.msra.mxu0 %v2337
        %3777 = vmatprep.subr.mxu0 %v2334
        %3778 = vmatpush2.msra.mxu0 %v2333
        %3779 = vmatprep.subr.mxu0 %v2330
        %3780 = vmatpush2.msra.mxu0 %v2329
        %3781 = vmatprep.subr.mxu0 %v2326
        %3782 = vmatpush2.msra.mxu0 %v2325
        %3783 = vmatprep.subr.mxu0 %v2322
        %3784 = vmatpush2.msra.mxu0 %v2321
        %3785 = vmatprep.subr.mxu0 %v2318
        %3786 = vmatpush2.msra.mxu0 %v2317
        %3787 = vmatprep.subr.mxu0 %v2314
        %3788 = vmatpush2.msra.mxu0 %v2313
        %3789 = vmatprep.subr.mxu0 %v2310
        %3790 = vmatpush2.msra.mxu0 %v2309
        %3791 = vmatprep.subr.mxu0 %v2306
        %3792 = vmatpush2.msra.mxu0 %v2305
        %3793 = vmatprep.subr.mxu0 %v2302
        %3794 = vmatpush2.msra.mxu0 %v2301
        %3795 = vmatprep.subr.mxu0 %v2298
        %3796 = vmatpush2.msra.mxu0 %v2297
        %3797 = vmatprep.subr.mxu0 %v2294
        %3798 = vmatpush2.msra.mxu0 %v2293
        %3799 = vmatprep.mubr.f32.mxu0 %v430
        %3800 = vmatmul.mubr.f32.gmra.mxu0 %v429
        %v3801 = vpop.f32.mrf.mxu0
        %v3802 = vadd.f32 %v3731, %v3801
        %v3803 = vpop.f32.mrf.mxu0
        %v3804 = vadd.f32 %v3733, %v3803
        %3805 = vdwg.mxu0
        %3806 = vmatprep.subr.mxu0 %v2418
        %3807 = vmatpush1.msra.mxu0 %v2417
        %3808 = vmatprep.subr.mxu0 %v2414
        %3809 = vmatpush1.msra.mxu0 %v2413
        %3810 = vmatprep.subr.mxu0 %v2410
        %3811 = vmatpush1.msra.mxu0 %v2409
        %3812 = vmatprep.subr.mxu0 %v2406
        %3813 = vmatpush1.msra.mxu0 %v2405
        %3814 = vmatprep.subr.mxu0 %v2402
        %3815 = vmatpush1.msra.mxu0 %v2401
        %3816 = vmatprep.subr.mxu0 %v2398
        %3817 = vmatpush1.msra.mxu0 %v2397
        %3818 = vmatprep.subr.mxu0 %v2394
        %3819 = vmatpush1.msra.mxu0 %v2393
        %3820 = vmatprep.subr.mxu0 %v2390
        %3821 = vmatpush1.msra.mxu0 %v2389
        %3822 = vmatprep.subr.mxu0 %v2386
        %3823 = vmatpush1.msra.mxu0 %v2385
        %3824 = vmatprep.subr.mxu0 %v2382
        %3825 = vmatpush1.msra.mxu0 %v2381
        %3826 = vmatprep.subr.mxu0 %v2378
        %3827 = vmatpush1.msra.mxu0 %v2377
        %3828 = vmatprep.subr.mxu0 %v2374
        %3829 = vmatpush1.msra.mxu0 %v2373
        %3830 = vmatprep.subr.mxu0 %v2370
        %3831 = vmatpush1.msra.mxu0 %v2369
        %3832 = vmatprep.subr.mxu0 %v2366
        %3833 = vmatpush1.msra.mxu0 %v2365
        %3834 = vmatprep.subr.mxu0 %v2362
        %3835 = vmatpush1.msra.mxu0 %v2361
        %3836 = vmatprep.subr.mxu0 %v2358
        %3837 = vmatpush1.msra.mxu0 %v2357
        %3838 = vmatprep.subr.mxu0 %v2482
        %3839 = vmatpush2.msra.mxu0 %v2481
        %3840 = vmatprep.subr.mxu0 %v2478
        %3841 = vmatpush2.msra.mxu0 %v2477
        %3842 = vmatprep.subr.mxu0 %v2474
        %3843 = vmatpush2.msra.mxu0 %v2473
        %3844 = vmatprep.subr.mxu0 %v2470
        %3845 = vmatpush2.msra.mxu0 %v2469
        %3846 = vmatprep.subr.mxu0 %v2466
        %3847 = vmatpush2.msra.mxu0 %v2465
        %3848 = vmatprep.subr.mxu0 %v2462
        %3849 = vmatpush2.msra.mxu0 %v2461
        %3850 = vmatprep.subr.mxu0 %v2458
        %3851 = vmatpush2.msra.mxu0 %v2457
        %3852 = vmatprep.subr.mxu0 %v2454
        %3853 = vmatpush2.msra.mxu0 %v2453
        %3854 = vmatprep.subr.mxu0 %v2450
        %3855 = vmatpush2.msra.mxu0 %v2449
        %3856 = vmatprep.subr.mxu0 %v2446
        %3857 = vmatpush2.msra.mxu0 %v2445
        %3858 = vmatprep.subr.mxu0 %v2442
        %3859 = vmatpush2.msra.mxu0 %v2441
        %3860 = vmatprep.subr.mxu0 %v2438
        %3861 = vmatpush2.msra.mxu0 %v2437
        %3862 = vmatprep.subr.mxu0 %v2434
        %3863 = vmatpush2.msra.mxu0 %v2433
        %3864 = vmatprep.subr.mxu0 %v2430
        %3865 = vmatpush2.msra.mxu0 %v2429
        %3866 = vmatprep.subr.mxu0 %v2426
        %3867 = vmatpush2.msra.mxu0 %v2425
        %3868 = vmatprep.subr.mxu0 %v2422
        %3869 = vmatpush2.msra.mxu0 %v2421
        %3870 = vmatprep.mubr.f32.mxu0 %v432
        %3871 = vmatmul.mubr.f32.gmra.mxu0 %v431
        %v3872 = vpop.f32.mrf.mxu0
        %v3873 = vadd.f32 %v3802, %v3872
        %v3874 = vpop.f32.mrf.mxu0
        %v3875 = vadd.f32 %v3804, %v3874
        %3876 = vdwg.mxu0
        %3877 = vmatprep.subr.mxu0 %v2546
        %3878 = vmatpush1.msra.mxu0 %v2545
        %3879 = vmatprep.subr.mxu0 %v2542
        %3880 = vmatpush1.msra.mxu0 %v2541
        %3881 = vmatprep.subr.mxu0 %v2538
        %3882 = vmatpush1.msra.mxu0 %v2537
        %3883 = vmatprep.subr.mxu0 %v2534
        %3884 = vmatpush1.msra.mxu0 %v2533
        %3885 = vmatprep.subr.mxu0 %v2530
        %3886 = vmatpush1.msra.mxu0 %v2529
        %3887 = vmatprep.subr.mxu0 %v2526
        %3888 = vmatpush1.msra.mxu0 %v2525
        %3889 = vmatprep.subr.mxu0 %v2522
        %3890 = vmatpush1.msra.mxu0 %v2521
        %3891 = vmatprep.subr.mxu0 %v2518
        %3892 = vmatpush1.msra.mxu0 %v2517
        %3893 = vmatprep.subr.mxu0 %v2514
        %3894 = vmatpush1.msra.mxu0 %v2513
        %3895 = vmatprep.subr.mxu0 %v2510
        %3896 = vmatpush1.msra.mxu0 %v2509
        %3897 = vmatprep.subr.mxu0 %v2506
        %3898 = vmatpush1.msra.mxu0 %v2505
        %3899 = vmatprep.subr.mxu0 %v2502
        %3900 = vmatpush1.msra.mxu0 %v2501
        %3901 = vmatprep.subr.mxu0 %v2498
        %3902 = vmatpush1.msra.mxu0 %v2497
        %3903 = vmatprep.subr.mxu0 %v2494
        %3904 = vmatpush1.msra.mxu0 %v2493
        %3905 = vmatprep.subr.mxu0 %v2490
        %3906 = vmatpush1.msra.mxu0 %v2489
        %3907 = vmatprep.subr.mxu0 %v2486
        %3908 = vmatpush1.msra.mxu0 %v2485
        %3909 = vmatprep.subr.mxu0 %v2610
        %3910 = vmatpush2.msra.mxu0 %v2609
        %3911 = vmatprep.subr.mxu0 %v2606
        %3912 = vmatpush2.msra.mxu0 %v2605
        %3913 = vmatprep.subr.mxu0 %v2602
        %3914 = vmatpush2.msra.mxu0 %v2601
        %3915 = vmatprep.subr.mxu0 %v2598
        %3916 = vmatpush2.msra.mxu0 %v2597
        %3917 = vmatprep.subr.mxu0 %v2594
        %3918 = vmatpush2.msra.mxu0 %v2593
        %3919 = vmatprep.subr.mxu0 %v2590
        %3920 = vmatpush2.msra.mxu0 %v2589
        %3921 = vmatprep.subr.mxu0 %v2586
        %3922 = vmatpush2.msra.mxu0 %v2585
        %3923 = vmatprep.subr.mxu0 %v2582
        %3924 = vmatpush2.msra.mxu0 %v2581
        %3925 = vmatprep.subr.mxu0 %v2578
        %3926 = vmatpush2.msra.mxu0 %v2577
        %3927 = vmatprep.subr.mxu0 %v2574
        %3928 = vmatpush2.msra.mxu0 %v2573
        %3929 = vmatprep.subr.mxu0 %v2570
        %3930 = vmatpush2.msra.mxu0 %v2569
        %3931 = vmatprep.subr.mxu0 %v2566
        %3932 = vmatpush2.msra.mxu0 %v2565
        %3933 = vmatprep.subr.mxu0 %v2562
        %3934 = vmatpush2.msra.mxu0 %v2561
        %3935 = vmatprep.subr.mxu0 %v2558
        %3936 = vmatpush2.msra.mxu0 %v2557
        %3937 = vmatprep.subr.mxu0 %v2554
        %3938 = vmatpush2.msra.mxu0 %v2553
        %3939 = vmatprep.subr.mxu0 %v2550
        %3940 = vmatpush2.msra.mxu0 %v2549
        %3941 = vmatprep.mubr.f32.mxu0 %v434
        %3942 = vmatmul.mubr.f32.gmra.mxu0 %v433
        %v3943 = vpop.f32.mrf.mxu0
        %v3944 = vadd.f32 %v3873, %v3943
        %v3945 = vpop.f32.mrf.mxu0
        %v3946 = vadd.f32 %v3875, %v3945
        %3947 = vdwg.mxu0
        %3948 = vmatprep.subr.mxu0 %v2674
        %3949 = vmatpush1.msra.mxu0 %v2673
        %3950 = vmatprep.subr.mxu0 %v2670
        %3951 = vmatpush1.msra.mxu0 %v2669
        %3952 = vmatprep.subr.mxu0 %v2666
        %3953 = vmatpush1.msra.mxu0 %v2665
        %3954 = vmatprep.subr.mxu0 %v2662
        %3955 = vmatpush1.msra.mxu0 %v2661
        %3956 = vmatprep.subr.mxu0 %v2658
        %3957 = vmatpush1.msra.mxu0 %v2657
        %3958 = vmatprep.subr.mxu0 %v2654
        %3959 = vmatpush1.msra.mxu0 %v2653
        %3960 = vmatprep.subr.mxu0 %v2650
        %3961 = vmatpush1.msra.mxu0 %v2649
        %3962 = vmatprep.subr.mxu0 %v2646
        %3963 = vmatpush1.msra.mxu0 %v2645
        %3964 = vmatprep.subr.mxu0 %v2642
        %3965 = vmatpush1.msra.mxu0 %v2641
        %3966 = vmatprep.subr.mxu0 %v2638
        %3967 = vmatpush1.msra.mxu0 %v2637
        %3968 = vmatprep.subr.mxu0 %v2634
        %3969 = vmatpush1.msra.mxu0 %v2633
        %3970 = vmatprep.subr.mxu0 %v2630
        %3971 = vmatpush1.msra.mxu0 %v2629
        %3972 = vmatprep.subr.mxu0 %v2626
        %3973 = vmatpush1.msra.mxu0 %v2625
        %3974 = vmatprep.subr.mxu0 %v2622
        %3975 = vmatpush1.msra.mxu0 %v2621
        %3976 = vmatprep.subr.mxu0 %v2618
        %3977 = vmatpush1.msra.mxu0 %v2617
        %3978 = vmatprep.subr.mxu0 %v2614
        %3979 = vmatpush1.msra.mxu0 %v2613
        %3980 = vmatprep.subr.mxu0 %v2738
        %3981 = vmatpush2.msra.mxu0 %v2737
        %3982 = vmatprep.subr.mxu0 %v2734
        %3983 = vmatpush2.msra.mxu0 %v2733
        %3984 = vmatprep.subr.mxu0 %v2730
        %3985 = vmatpush2.msra.mxu0 %v2729
        %3986 = vmatprep.subr.mxu0 %v2726
        %3987 = vmatpush2.msra.mxu0 %v2725
        %3988 = vmatprep.subr.mxu0 %v2722
        %3989 = vmatpush2.msra.mxu0 %v2721
        %3990 = vmatprep.subr.mxu0 %v2718
        %3991 = vmatpush2.msra.mxu0 %v2717
        %3992 = vmatprep.subr.mxu0 %v2714
        %3993 = vmatpush2.msra.mxu0 %v2713
        %3994 = vmatprep.subr.mxu0 %v2710
        %3995 = vmatpush2.msra.mxu0 %v2709
        %3996 = vmatprep.subr.mxu0 %v2706
        %3997 = vmatpush2.msra.mxu0 %v2705
        %3998 = vmatprep.subr.mxu0 %v2702
        %3999 = vmatpush2.msra.mxu0 %v2701
        %4000 = vmatprep.subr.mxu0 %v2698
        %4001 = vmatpush2.msra.mxu0 %v2697
        %4002 = vmatprep.subr.mxu0 %v2694
        %4003 = vmatpush2.msra.mxu0 %v2693
        %4004 = vmatprep.subr.mxu0 %v2690
        %4005 = vmatpush2.msra.mxu0 %v2689
        %4006 = vmatprep.subr.mxu0 %v2686
        %4007 = vmatpush2.msra.mxu0 %v2685
        %4008 = vmatprep.subr.mxu0 %v2682
        %4009 = vmatpush2.msra.mxu0 %v2681
        %4010 = vmatprep.subr.mxu0 %v2678
        %4011 = vmatpush2.msra.mxu0 %v2677
        %4012 = vmatprep.mubr.f32.mxu0 %v436
        %4013 = vmatmul.mubr.f32.gmra.mxu0 %v435
        %v4014 = vpop.f32.mrf.mxu0
        %v4015 = vadd.f32 %v3944, %v4014
        %v4016 = vpop.f32.mrf.mxu0
        %v4017 = vadd.f32 %v3946, %v4016
        %4018 = vdwg.mxu0
        %4019 = vmatprep.subr.mxu0 %v500
        %4020 = vmatpush1.msra.mxu0 %v499
        %4021 = vmatprep.subr.mxu0 %v496
        %4022 = vmatpush1.msra.mxu0 %v495
        %4023 = vmatprep.subr.mxu0 %v492
        %4024 = vmatpush1.msra.mxu0 %v491
        %4025 = vmatprep.subr.mxu0 %v488
        %4026 = vmatpush1.msra.mxu0 %v487
        %4027 = vmatprep.subr.mxu0 %v484
        %4028 = vmatpush1.msra.mxu0 %v483
        %4029 = vmatprep.subr.mxu0 %v480
        %4030 = vmatpush1.msra.mxu0 %v479
        %4031 = vmatprep.subr.mxu0 %v476
        %4032 = vmatpush1.msra.mxu0 %v475
        %4033 = vmatprep.subr.mxu0 %v472
        %4034 = vmatpush1.msra.mxu0 %v471
        %4035 = vmatprep.subr.mxu0 %v468
        %4036 = vmatpush1.msra.mxu0 %v467
        %4037 = vmatprep.subr.mxu0 %v464
        %4038 = vmatpush1.msra.mxu0 %v463
        %4039 = vmatprep.subr.mxu0 %v460
        %4040 = vmatpush1.msra.mxu0 %v459
        %4041 = vmatprep.subr.mxu0 %v456
        %4042 = vmatpush1.msra.mxu0 %v455
        %4043 = vmatprep.subr.mxu0 %v452
        %4044 = vmatpush1.msra.mxu0 %v451
        %4045 = vmatprep.subr.mxu0 %v448
        %4046 = vmatpush1.msra.mxu0 %v447
        %4047 = vmatprep.subr.mxu0 %v444
        %4048 = vmatpush1.msra.mxu0 %v443
        %4049 = vmatprep.subr.mxu0 %v440
        %4050 = vmatpush1.msra.mxu0 %v439
        %4051 = vmatprep.subr.mxu0 %v564
        %4052 = vmatpush2.msra.mxu0 %v563
        %4053 = vmatprep.subr.mxu0 %v560
        %4054 = vmatpush2.msra.mxu0 %v559
        %4055 = vmatprep.subr.mxu0 %v556
        %4056 = vmatpush2.msra.mxu0 %v555
        %4057 = vmatprep.subr.mxu0 %v552
        %4058 = vmatpush2.msra.mxu0 %v551
        %4059 = vmatprep.subr.mxu0 %v548
        %4060 = vmatpush2.msra.mxu0 %v547
        %4061 = vmatprep.subr.mxu0 %v544
        %4062 = vmatpush2.msra.mxu0 %v543
        %4063 = vmatprep.subr.mxu0 %v540
        %4064 = vmatpush2.msra.mxu0 %v539
        %4065 = vmatprep.subr.mxu0 %v536
        %4066 = vmatpush2.msra.mxu0 %v535
        %4067 = vmatprep.subr.mxu0 %v532
        %4068 = vmatpush2.msra.mxu0 %v531
        %4069 = vmatprep.subr.mxu0 %v528
        %4070 = vmatpush2.msra.mxu0 %v527
        %4071 = vmatprep.subr.mxu0 %v524
        %4072 = vmatpush2.msra.mxu0 %v523
        %4073 = vmatprep.subr.mxu0 %v520
        %4074 = vmatpush2.msra.mxu0 %v519
        %4075 = vmatprep.subr.mxu0 %v516
        %4076 = vmatpush2.msra.mxu0 %v515
        %4077 = vmatprep.subr.mxu0 %v512
        %4078 = vmatpush2.msra.mxu0 %v511
        %4079 = vmatprep.subr.mxu0 %v508
        %4080 = vmatpush2.msra.mxu0 %v507
        %4081 = vmatprep.subr.mxu0 %v504
        %4082 = vmatpush2.msra.mxu0 %v503
        %4083 = vmatprep.mubr.f32.mxu0 %v402
        %4084 = vmatmul.mubr.f32.gmra.mxu0 %v401
        %v4085 = vpop.f32.mrf.mxu0
        %v4086 = vadd.f32 0.0, %v4085
        %v4087 = vpop.f32.mrf.mxu0
        %v4088 = vadd.f32 0.0, %v4087
        %4089 = vdwg.mxu0
        %4090 = vmatprep.subr.mxu0 %v628
        %4091 = vmatpush1.msra.mxu0 %v627
        %4092 = vmatprep.subr.mxu0 %v624
        %4093 = vmatpush1.msra.mxu0 %v623
        %4094 = vmatprep.subr.mxu0 %v620
        %4095 = vmatpush1.msra.mxu0 %v619
        %4096 = vmatprep.subr.mxu0 %v616
        %4097 = vmatpush1.msra.mxu0 %v615
        %4098 = vmatprep.subr.mxu0 %v612
        %4099 = vmatpush1.msra.mxu0 %v611
        %4100 = vmatprep.subr.mxu0 %v608
        %4101 = vmatpush1.msra.mxu0 %v607
        %4102 = vmatprep.subr.mxu0 %v604
        %4103 = vmatpush1.msra.mxu0 %v603
        %4104 = vmatprep.subr.mxu0 %v600
        %4105 = vmatpush1.msra.mxu0 %v599
        %4106 = vmatprep.subr.mxu0 %v596
        %4107 = vmatpush1.msra.mxu0 %v595
        %4108 = vmatprep.subr.mxu0 %v592
        %4109 = vmatpush1.msra.mxu0 %v591
        %4110 = vmatprep.subr.mxu0 %v588
        %4111 = vmatpush1.msra.mxu0 %v587
        %4112 = vmatprep.subr.mxu0 %v584
        %4113 = vmatpush1.msra.mxu0 %v583
        %4114 = vmatprep.subr.mxu0 %v580
        %4115 = vmatpush1.msra.mxu0 %v579
        %4116 = vmatprep.subr.mxu0 %v576
        %4117 = vmatpush1.msra.mxu0 %v575
        %4118 = vmatprep.subr.mxu0 %v572
        %4119 = vmatpush1.msra.mxu0 %v571
        %4120 = vmatprep.subr.mxu0 %v568
        %4121 = vmatpush1.msra.mxu0 %v567
        %4122 = vmatprep.subr.mxu0 %v692
        %4123 = vmatpush2.msra.mxu0 %v691
        %4124 = vmatprep.subr.mxu0 %v688
        %4125 = vmatpush2.msra.mxu0 %v687
        %4126 = vmatprep.subr.mxu0 %v684
        %4127 = vmatpush2.msra.mxu0 %v683
        %4128 = vmatprep.subr.mxu0 %v680
        %4129 = vmatpush2.msra.mxu0 %v679
        %4130 = vmatprep.subr.mxu0 %v676
        %4131 = vmatpush2.msra.mxu0 %v675
        %4132 = vmatprep.subr.mxu0 %v672
        %4133 = vmatpush2.msra.mxu0 %v671
        %4134 = vmatprep.subr.mxu0 %v668
        %4135 = vmatpush2.msra.mxu0 %v667
        %4136 = vmatprep.subr.mxu0 %v664
        %4137 = vmatpush2.msra.mxu0 %v663
        %4138 = vmatprep.subr.mxu0 %v660
        %4139 = vmatpush2.msra.mxu0 %v659
        %4140 = vmatprep.subr.mxu0 %v656
        %4141 = vmatpush2.msra.mxu0 %v655
        %4142 = vmatprep.subr.mxu0 %v652
        %4143 = vmatpush2.msra.mxu0 %v651
        %4144 = vmatprep.subr.mxu0 %v648
        %4145 = vmatpush2.msra.mxu0 %v647
        %4146 = vmatprep.subr.mxu0 %v644
        %4147 = vmatpush2.msra.mxu0 %v643
        %4148 = vmatprep.subr.mxu0 %v640
        %4149 = vmatpush2.msra.mxu0 %v639
        %4150 = vmatprep.subr.mxu0 %v636
        %4151 = vmatpush2.msra.mxu0 %v635
        %4152 = vmatprep.subr.mxu0 %v632
        %4153 = vmatpush2.msra.mxu0 %v631
        %4154 = vmatprep.mubr.f32.mxu0 %v404
        %4155 = vmatmul.mubr.f32.gmra.mxu0 %v403
        %v4156 = vpop.f32.mrf.mxu0
        %v4157 = vadd.f32 %v4086, %v4156
        %v4158 = vpop.f32.mrf.mxu0
        %v4159 = vadd.f32 %v4088, %v4158
        %4160 = vdwg.mxu0
        %4161 = vmatprep.subr.mxu0 %v756
        %4162 = vmatpush1.msra.mxu0 %v755
        %4163 = vmatprep.subr.mxu0 %v752
        %4164 = vmatpush1.msra.mxu0 %v751
        %4165 = vmatprep.subr.mxu0 %v748
        %4166 = vmatpush1.msra.mxu0 %v747
        %4167 = vmatprep.subr.mxu0 %v744
        %4168 = vmatpush1.msra.mxu0 %v743
        %4169 = vmatprep.subr.mxu0 %v740
        %4170 = vmatpush1.msra.mxu0 %v739
        %4171 = vmatprep.subr.mxu0 %v736
        %4172 = vmatpush1.msra.mxu0 %v735
        %4173 = vmatprep.subr.mxu0 %v732
        %4174 = vmatpush1.msra.mxu0 %v731
        %4175 = vmatprep.subr.mxu0 %v728
        %4176 = vmatpush1.msra.mxu0 %v727
        %4177 = vmatprep.subr.mxu0 %v724
        %4178 = vmatpush1.msra.mxu0 %v723
        %4179 = vmatprep.subr.mxu0 %v720
        %4180 = vmatpush1.msra.mxu0 %v719
        %4181 = vmatprep.subr.mxu0 %v716
        %4182 = vmatpush1.msra.mxu0 %v715
        %4183 = vmatprep.subr.mxu0 %v712
        %4184 = vmatpush1.msra.mxu0 %v711
        %4185 = vmatprep.subr.mxu0 %v708
        %4186 = vmatpush1.msra.mxu0 %v707
        %4187 = vmatprep.subr.mxu0 %v704
        %4188 = vmatpush1.msra.mxu0 %v703
        %4189 = vmatprep.subr.mxu0 %v700
        %4190 = vmatpush1.msra.mxu0 %v699
        %4191 = vmatprep.subr.mxu0 %v696
        %4192 = vmatpush1.msra.mxu0 %v695
        %4193 = vmatprep.subr.mxu0 %v820
        %4194 = vmatpush2.msra.mxu0 %v819
        %4195 = vmatprep.subr.mxu0 %v816
        %4196 = vmatpush2.msra.mxu0 %v815
        %4197 = vmatprep.subr.mxu0 %v812
        %4198 = vmatpush2.msra.mxu0 %v811
        %4199 = vmatprep.subr.mxu0 %v808
        %4200 = vmatpush2.msra.mxu0 %v807
        %4201 = vmatprep.subr.mxu0 %v804
        %4202 = vmatpush2.msra.mxu0 %v803
        %4203 = vmatprep.subr.mxu0 %v800
        %4204 = vmatpush2.msra.mxu0 %v799
        %4205 = vmatprep.subr.mxu0 %v796
        %4206 = vmatpush2.msra.mxu0 %v795
        %4207 = vmatprep.subr.mxu0 %v792
        %4208 = vmatpush2.msra.mxu0 %v791
        %4209 = vmatprep.subr.mxu0 %v788
        %4210 = vmatpush2.msra.mxu0 %v787
        %4211 = vmatprep.subr.mxu0 %v784
        %4212 = vmatpush2.msra.mxu0 %v783
        %4213 = vmatprep.subr.mxu0 %v780
        %4214 = vmatpush2.msra.mxu0 %v779
        %4215 = vmatprep.subr.mxu0 %v776
        %4216 = vmatpush2.msra.mxu0 %v775
        %4217 = vmatprep.subr.mxu0 %v772
        %4218 = vmatpush2.msra.mxu0 %v771
        %4219 = vmatprep.subr.mxu0 %v768
        %4220 = vmatpush2.msra.mxu0 %v767
        %4221 = vmatprep.subr.mxu0 %v764
        %4222 = vmatpush2.msra.mxu0 %v763
        %4223 = vmatprep.subr.mxu0 %v760
        %4224 = vmatpush2.msra.mxu0 %v759
        %4225 = vmatprep.mubr.f32.mxu0 %v406
        %4226 = vmatmul.mubr.f32.gmra.mxu0 %v405
        %v4227 = vpop.f32.mrf.mxu0
        %v4228 = vadd.f32 %v4157, %v4227
        %v4229 = vpop.f32.mrf.mxu0
        %v4230 = vadd.f32 %v4159, %v4229
        %4231 = vdwg.mxu0
        %4232 = vmatprep.subr.mxu0 %v884
        %4233 = vmatpush1.msra.mxu0 %v883
        %4234 = vmatprep.subr.mxu0 %v880
        %4235 = vmatpush1.msra.mxu0 %v879
        %4236 = vmatprep.subr.mxu0 %v876
        %4237 = vmatpush1.msra.mxu0 %v875
        %4238 = vmatprep.subr.mxu0 %v872
        %4239 = vmatpush1.msra.mxu0 %v871
        %4240 = vmatprep.subr.mxu0 %v868
        %4241 = vmatpush1.msra.mxu0 %v867
        %4242 = vmatprep.subr.mxu0 %v864
        %4243 = vmatpush1.msra.mxu0 %v863
        %4244 = vmatprep.subr.mxu0 %v860
        %4245 = vmatpush1.msra.mxu0 %v859
        %4246 = vmatprep.subr.mxu0 %v856
        %4247 = vmatpush1.msra.mxu0 %v855
        %4248 = vmatprep.subr.mxu0 %v852
        %4249 = vmatpush1.msra.mxu0 %v851
        %4250 = vmatprep.subr.mxu0 %v848
        %4251 = vmatpush1.msra.mxu0 %v847
        %4252 = vmatprep.subr.mxu0 %v844
        %4253 = vmatpush1.msra.mxu0 %v843
        %4254 = vmatprep.subr.mxu0 %v840
        %4255 = vmatpush1.msra.mxu0 %v839
        %4256 = vmatprep.subr.mxu0 %v836
        %4257 = vmatpush1.msra.mxu0 %v835
        %4258 = vmatprep.subr.mxu0 %v832
        %4259 = vmatpush1.msra.mxu0 %v831
        %4260 = vmatprep.subr.mxu0 %v828
        %4261 = vmatpush1.msra.mxu0 %v827
        %4262 = vmatprep.subr.mxu0 %v824
        %4263 = vmatpush1.msra.mxu0 %v823
        %4264 = vmatprep.subr.mxu0 %v948
        %4265 = vmatpush2.msra.mxu0 %v947
        %4266 = vmatprep.subr.mxu0 %v944
        %4267 = vmatpush2.msra.mxu0 %v943
        %4268 = vmatprep.subr.mxu0 %v940
        %4269 = vmatpush2.msra.mxu0 %v939
        %4270 = vmatprep.subr.mxu0 %v936
        %4271 = vmatpush2.msra.mxu0 %v935
        %4272 = vmatprep.subr.mxu0 %v932
        %4273 = vmatpush2.msra.mxu0 %v931
        %4274 = vmatprep.subr.mxu0 %v928
        %4275 = vmatpush2.msra.mxu0 %v927
        %4276 = vmatprep.subr.mxu0 %v924
        %4277 = vmatpush2.msra.mxu0 %v923
        %4278 = vmatprep.subr.mxu0 %v920
        %4279 = vmatpush2.msra.mxu0 %v919
        %4280 = vmatprep.subr.mxu0 %v916
        %4281 = vmatpush2.msra.mxu0 %v915
        %4282 = vmatprep.subr.mxu0 %v912
        %4283 = vmatpush2.msra.mxu0 %v911
        %4284 = vmatprep.subr.mxu0 %v908
        %4285 = vmatpush2.msra.mxu0 %v907
        %4286 = vmatprep.subr.mxu0 %v904
        %4287 = vmatpush2.msra.mxu0 %v903
        %4288 = vmatprep.subr.mxu0 %v900
        %4289 = vmatpush2.msra.mxu0 %v899
        %4290 = vmatprep.subr.mxu0 %v896
        %4291 = vmatpush2.msra.mxu0 %v895
        %4292 = vmatprep.subr.mxu0 %v892
        %4293 = vmatpush2.msra.mxu0 %v891
        %4294 = vmatprep.subr.mxu0 %v888
        %4295 = vmatpush2.msra.mxu0 %v887
        %4296 = vmatprep.mubr.f32.mxu0 %v408
        %4297 = vmatmul.mubr.f32.gmra.mxu0 %v407
        %v4298 = vpop.f32.mrf.mxu0
        %v4299 = vadd.f32 %v4228, %v4298
        %v4300 = vpop.f32.mrf.mxu0
        %v4301 = vadd.f32 %v4230, %v4300
        %4302 = vdwg.mxu0
        %4303 = vmatprep.subr.mxu0 %v1012
        %4304 = vmatpush1.msra.mxu0 %v1011
        %4305 = vmatprep.subr.mxu0 %v1008
        %4306 = vmatpush1.msra.mxu0 %v1007
        %4307 = vmatprep.subr.mxu0 %v1004
        %4308 = vmatpush1.msra.mxu0 %v1003
        %4309 = vmatprep.subr.mxu0 %v1000
        %4310 = vmatpush1.msra.mxu0 %v999
        %4311 = vmatprep.subr.mxu0 %v996
        %4312 = vmatpush1.msra.mxu0 %v995
        %4313 = vmatprep.subr.mxu0 %v992
        %4314 = vmatpush1.msra.mxu0 %v991
        %4315 = vmatprep.subr.mxu0 %v988
        %4316 = vmatpush1.msra.mxu0 %v987
        %4317 = vmatprep.subr.mxu0 %v984
        %4318 = vmatpush1.msra.mxu0 %v983
        %4319 = vmatprep.subr.mxu0 %v980
        %4320 = vmatpush1.msra.mxu0 %v979
        %4321 = vmatprep.subr.mxu0 %v976
        %4322 = vmatpush1.msra.mxu0 %v975
        %4323 = vmatprep.subr.mxu0 %v972
        %4324 = vmatpush1.msra.mxu0 %v971
        %4325 = vmatprep.subr.mxu0 %v968
        %4326 = vmatpush1.msra.mxu0 %v967
        %4327 = vmatprep.subr.mxu0 %v964
        %4328 = vmatpush1.msra.mxu0 %v963
        %4329 = vmatprep.subr.mxu0 %v960
        %4330 = vmatpush1.msra.mxu0 %v959
        %4331 = vmatprep.subr.mxu0 %v956
        %4332 = vmatpush1.msra.mxu0 %v955
        %4333 = vmatprep.subr.mxu0 %v952
        %4334 = vmatpush1.msra.mxu0 %v951
        %4335 = vmatprep.subr.mxu0 %v1076
        %4336 = vmatpush2.msra.mxu0 %v1075
        %4337 = vmatprep.subr.mxu0 %v1072
        %4338 = vmatpush2.msra.mxu0 %v1071
        %4339 = vmatprep.subr.mxu0 %v1068
        %4340 = vmatpush2.msra.mxu0 %v1067
        %4341 = vmatprep.subr.mxu0 %v1064
        %4342 = vmatpush2.msra.mxu0 %v1063
        %4343 = vmatprep.subr.mxu0 %v1060
        %4344 = vmatpush2.msra.mxu0 %v1059
        %4345 = vmatprep.subr.mxu0 %v1056
        %4346 = vmatpush2.msra.mxu0 %v1055
        %4347 = vmatprep.subr.mxu0 %v1052
        %4348 = vmatpush2.msra.mxu0 %v1051
        %4349 = vmatprep.subr.mxu0 %v1048
        %4350 = vmatpush2.msra.mxu0 %v1047
        %4351 = vmatprep.subr.mxu0 %v1044
        %4352 = vmatpush2.msra.mxu0 %v1043
        %4353 = vmatprep.subr.mxu0 %v1040
        %4354 = vmatpush2.msra.mxu0 %v1039
        %4355 = vmatprep.subr.mxu0 %v1036
        %4356 = vmatpush2.msra.mxu0 %v1035
        %4357 = vmatprep.subr.mxu0 %v1032
        %4358 = vmatpush2.msra.mxu0 %v1031
        %4359 = vmatprep.subr.mxu0 %v1028
        %4360 = vmatpush2.msra.mxu0 %v1027
        %4361 = vmatprep.subr.mxu0 %v1024
        %4362 = vmatpush2.msra.mxu0 %v1023
        %4363 = vmatprep.subr.mxu0 %v1020
        %4364 = vmatpush2.msra.mxu0 %v1019
        %4365 = vmatprep.subr.mxu0 %v1016
        %4366 = vmatpush2.msra.mxu0 %v1015
        %4367 = vmatprep.mubr.f32.mxu0 %v410
        %4368 = vmatmul.mubr.f32.gmra.mxu0 %v409
        %v4369 = vpop.f32.mrf.mxu0
        %v4370 = vadd.f32 %v4299, %v4369
        %v4371 = vpop.f32.mrf.mxu0
        %v4372 = vadd.f32 %v4301, %v4371
        %4373 = vdwg.mxu0
        %4374 = vmatprep.subr.mxu0 %v1140
        %4375 = vmatpush1.msra.mxu0 %v1139
        %4376 = vmatprep.subr.mxu0 %v1136
        %4377 = vmatpush1.msra.mxu0 %v1135
        %4378 = vmatprep.subr.mxu0 %v1132
        %4379 = vmatpush1.msra.mxu0 %v1131
        %4380 = vmatprep.subr.mxu0 %v1128
        %4381 = vmatpush1.msra.mxu0 %v1127
        %4382 = vmatprep.subr.mxu0 %v1124
        %4383 = vmatpush1.msra.mxu0 %v1123
        %4384 = vmatprep.subr.mxu0 %v1120
        %4385 = vmatpush1.msra.mxu0 %v1119
        %4386 = vmatprep.subr.mxu0 %v1116
        %4387 = vmatpush1.msra.mxu0 %v1115
        %4388 = vmatprep.subr.mxu0 %v1112
        %4389 = vmatpush1.msra.mxu0 %v1111
        %4390 = vmatprep.subr.mxu0 %v1108
        %4391 = vmatpush1.msra.mxu0 %v1107
        %4392 = vmatprep.subr.mxu0 %v1104
        %4393 = vmatpush1.msra.mxu0 %v1103
        %4394 = vmatprep.subr.mxu0 %v1100
        %4395 = vmatpush1.msra.mxu0 %v1099
        %4396 = vmatprep.subr.mxu0 %v1096
        %4397 = vmatpush1.msra.mxu0 %v1095
        %4398 = vmatprep.subr.mxu0 %v1092
        %4399 = vmatpush1.msra.mxu0 %v1091
        %4400 = vmatprep.subr.mxu0 %v1088
        %4401 = vmatpush1.msra.mxu0 %v1087
        %4402 = vmatprep.subr.mxu0 %v1084
        %4403 = vmatpush1.msra.mxu0 %v1083
        %4404 = vmatprep.subr.mxu0 %v1080
        %4405 = vmatpush1.msra.mxu0 %v1079
        %4406 = vmatprep.subr.mxu0 %v1204
        %4407 = vmatpush2.msra.mxu0 %v1203
        %4408 = vmatprep.subr.mxu0 %v1200
        %4409 = vmatpush2.msra.mxu0 %v1199
        %4410 = vmatprep.subr.mxu0 %v1196
        %4411 = vmatpush2.msra.mxu0 %v1195
        %4412 = vmatprep.subr.mxu0 %v1192
        %4413 = vmatpush2.msra.mxu0 %v1191
        %4414 = vmatprep.subr.mxu0 %v1188
        %4415 = vmatpush2.msra.mxu0 %v1187
        %4416 = vmatprep.subr.mxu0 %v1184
        %4417 = vmatpush2.msra.mxu0 %v1183
        %4418 = vmatprep.subr.mxu0 %v1180
        %4419 = vmatpush2.msra.mxu0 %v1179
        %4420 = vmatprep.subr.mxu0 %v1176
        %4421 = vmatpush2.msra.mxu0 %v1175
        %4422 = vmatprep.subr.mxu0 %v1172
        %4423 = vmatpush2.msra.mxu0 %v1171
        %4424 = vmatprep.subr.mxu0 %v1168
        %4425 = vmatpush2.msra.mxu0 %v1167
        %4426 = vmatprep.subr.mxu0 %v1164
        %4427 = vmatpush2.msra.mxu0 %v1163
        %4428 = vmatprep.subr.mxu0 %v1160
        %4429 = vmatpush2.msra.mxu0 %v1159
        %4430 = vmatprep.subr.mxu0 %v1156
        %4431 = vmatpush2.msra.mxu0 %v1155
        %4432 = vmatprep.subr.mxu0 %v1152
        %4433 = vmatpush2.msra.mxu0 %v1151
        %4434 = vmatprep.subr.mxu0 %v1148
        %4435 = vmatpush2.msra.mxu0 %v1147
        %4436 = vmatprep.subr.mxu0 %v1144
        %4437 = vmatpush2.msra.mxu0 %v1143
        %4438 = vmatprep.mubr.f32.mxu0 %v412
        %4439 = vmatmul.mubr.f32.gmra.mxu0 %v411
        %v4440 = vpop.f32.mrf.mxu0
        %v4441 = vadd.f32 %v4370, %v4440
        %v4442 = vpop.f32.mrf.mxu0
        %v4443 = vadd.f32 %v4372, %v4442
        %4444 = vdwg.mxu0
        %4445 = vmatprep.subr.mxu0 %v1268
        %4446 = vmatpush1.msra.mxu0 %v1267
        %4447 = vmatprep.subr.mxu0 %v1264
        %4448 = vmatpush1.msra.mxu0 %v1263
        %4449 = vmatprep.subr.mxu0 %v1260
        %4450 = vmatpush1.msra.mxu0 %v1259
        %4451 = vmatprep.subr.mxu0 %v1256
        %4452 = vmatpush1.msra.mxu0 %v1255
        %4453 = vmatprep.subr.mxu0 %v1252
        %4454 = vmatpush1.msra.mxu0 %v1251
        %4455 = vmatprep.subr.mxu0 %v1248
        %4456 = vmatpush1.msra.mxu0 %v1247
        %4457 = vmatprep.subr.mxu0 %v1244
        %4458 = vmatpush1.msra.mxu0 %v1243
        %4459 = vmatprep.subr.mxu0 %v1240
        %4460 = vmatpush1.msra.mxu0 %v1239
        %4461 = vmatprep.subr.mxu0 %v1236
        %4462 = vmatpush1.msra.mxu0 %v1235
        %4463 = vmatprep.subr.mxu0 %v1232
        %4464 = vmatpush1.msra.mxu0 %v1231
        %4465 = vmatprep.subr.mxu0 %v1228
        %4466 = vmatpush1.msra.mxu0 %v1227
        %4467 = vmatprep.subr.mxu0 %v1224
        %4468 = vmatpush1.msra.mxu0 %v1223
        %4469 = vmatprep.subr.mxu0 %v1220
        %4470 = vmatpush1.msra.mxu0 %v1219
        %4471 = vmatprep.subr.mxu0 %v1216
        %4472 = vmatpush1.msra.mxu0 %v1215
        %4473 = vmatprep.subr.mxu0 %v1212
        %4474 = vmatpush1.msra.mxu0 %v1211
        %4475 = vmatprep.subr.mxu0 %v1208
        %4476 = vmatpush1.msra.mxu0 %v1207
        %4477 = vmatprep.subr.mxu0 %v1332
        %4478 = vmatpush2.msra.mxu0 %v1331
        %4479 = vmatprep.subr.mxu0 %v1328
        %4480 = vmatpush2.msra.mxu0 %v1327
        %4481 = vmatprep.subr.mxu0 %v1324
        %4482 = vmatpush2.msra.mxu0 %v1323
        %4483 = vmatprep.subr.mxu0 %v1320
        %4484 = vmatpush2.msra.mxu0 %v1319
        %4485 = vmatprep.subr.mxu0 %v1316
        %4486 = vmatpush2.msra.mxu0 %v1315
        %4487 = vmatprep.subr.mxu0 %v1312
        %4488 = vmatpush2.msra.mxu0 %v1311
        %4489 = vmatprep.subr.mxu0 %v1308
        %4490 = vmatpush2.msra.mxu0 %v1307
        %4491 = vmatprep.subr.mxu0 %v1304
        %4492 = vmatpush2.msra.mxu0 %v1303
        %4493 = vmatprep.subr.mxu0 %v1300
        %4494 = vmatpush2.msra.mxu0 %v1299
        %4495 = vmatprep.subr.mxu0 %v1296
        %4496 = vmatpush2.msra.mxu0 %v1295
        %4497 = vmatprep.subr.mxu0 %v1292
        %4498 = vmatpush2.msra.mxu0 %v1291
        %4499 = vmatprep.subr.mxu0 %v1288
        %4500 = vmatpush2.msra.mxu0 %v1287
        %4501 = vmatprep.subr.mxu0 %v1284
        %4502 = vmatpush2.msra.mxu0 %v1283
        %4503 = vmatprep.subr.mxu0 %v1280
        %4504 = vmatpush2.msra.mxu0 %v1279
        %4505 = vmatprep.subr.mxu0 %v1276
        %4506 = vmatpush2.msra.mxu0 %v1275
        %4507 = vmatprep.subr.mxu0 %v1272
        %4508 = vmatpush2.msra.mxu0 %v1271
        %4509 = vmatprep.mubr.f32.mxu0 %v414
        %4510 = vmatmul.mubr.f32.gmra.mxu0 %v413
        %v4511 = vpop.f32.mrf.mxu0
        %v4512 = vadd.f32 %v4441, %v4511
        %v4513 = vpop.f32.mrf.mxu0
        %v4514 = vadd.f32 %v4443, %v4513
        %4515 = vdwg.mxu0
        %4516 = vmatprep.subr.mxu0 %v1396
        %4517 = vmatpush1.msra.mxu0 %v1395
        %4518 = vmatprep.subr.mxu0 %v1392
        %4519 = vmatpush1.msra.mxu0 %v1391
        %4520 = vmatprep.subr.mxu0 %v1388
        %4521 = vmatpush1.msra.mxu0 %v1387
        %4522 = vmatprep.subr.mxu0 %v1384
        %4523 = vmatpush1.msra.mxu0 %v1383
        %4524 = vmatprep.subr.mxu0 %v1380
        %4525 = vmatpush1.msra.mxu0 %v1379
        %4526 = vmatprep.subr.mxu0 %v1376
        %4527 = vmatpush1.msra.mxu0 %v1375
        %4528 = vmatprep.subr.mxu0 %v1372
        %4529 = vmatpush1.msra.mxu0 %v1371
        %4530 = vmatprep.subr.mxu0 %v1368
        %4531 = vmatpush1.msra.mxu0 %v1367
        %4532 = vmatprep.subr.mxu0 %v1364
        %4533 = vmatpush1.msra.mxu0 %v1363
        %4534 = vmatprep.subr.mxu0 %v1360
        %4535 = vmatpush1.msra.mxu0 %v1359
        %4536 = vmatprep.subr.mxu0 %v1356
        %4537 = vmatpush1.msra.mxu0 %v1355
        %4538 = vmatprep.subr.mxu0 %v1352
        %4539 = vmatpush1.msra.mxu0 %v1351
        %4540 = vmatprep.subr.mxu0 %v1348
        %4541 = vmatpush1.msra.mxu0 %v1347
        %4542 = vmatprep.subr.mxu0 %v1344
        %4543 = vmatpush1.msra.mxu0 %v1343
        %4544 = vmatprep.subr.mxu0 %v1340
        %4545 = vmatpush1.msra.mxu0 %v1339
        %4546 = vmatprep.subr.mxu0 %v1336
        %4547 = vmatpush1.msra.mxu0 %v1335
        %4548 = vmatprep.subr.mxu0 %v1460
        %4549 = vmatpush2.msra.mxu0 %v1459
        %4550 = vmatprep.subr.mxu0 %v1456
        %4551 = vmatpush2.msra.mxu0 %v1455
        %4552 = vmatprep.subr.mxu0 %v1452
        %4553 = vmatpush2.msra.mxu0 %v1451
        %4554 = vmatprep.subr.mxu0 %v1448
        %4555 = vmatpush2.msra.mxu0 %v1447
        %4556 = vmatprep.subr.mxu0 %v1444
        %4557 = vmatpush2.msra.mxu0 %v1443
        %4558 = vmatprep.subr.mxu0 %v1440
        %4559 = vmatpush2.msra.mxu0 %v1439
        %4560 = vmatprep.subr.mxu0 %v1436
        %4561 = vmatpush2.msra.mxu0 %v1435
        %4562 = vmatprep.subr.mxu0 %v1432
        %4563 = vmatpush2.msra.mxu0 %v1431
        %4564 = vmatprep.subr.mxu0 %v1428
        %4565 = vmatpush2.msra.mxu0 %v1427
        %4566 = vmatprep.subr.mxu0 %v1424
        %4567 = vmatpush2.msra.mxu0 %v1423
        %4568 = vmatprep.subr.mxu0 %v1420
        %4569 = vmatpush2.msra.mxu0 %v1419
        %4570 = vmatprep.subr.mxu0 %v1416
        %4571 = vmatpush2.msra.mxu0 %v1415
        %4572 = vmatprep.subr.mxu0 %v1412
        %4573 = vmatpush2.msra.mxu0 %v1411
        %4574 = vmatprep.subr.mxu0 %v1408
        %4575 = vmatpush2.msra.mxu0 %v1407
        %4576 = vmatprep.subr.mxu0 %v1404
        %4577 = vmatpush2.msra.mxu0 %v1403
        %4578 = vmatprep.subr.mxu0 %v1400
        %4579 = vmatpush2.msra.mxu0 %v1399
        %4580 = vmatprep.mubr.f32.mxu0 %v416
        %4581 = vmatmul.mubr.f32.gmra.mxu0 %v415
        %v4582 = vpop.f32.mrf.mxu0
        %v4583 = vadd.f32 %v4512, %v4582
        %v4584 = vpop.f32.mrf.mxu0
        %v4585 = vadd.f32 %v4514, %v4584
        %4586 = vdwg.mxu0
        %4587 = vmatprep.subr.mxu0 %v1524
        %4588 = vmatpush1.msra.mxu0 %v1523
        %4589 = vmatprep.subr.mxu0 %v1520
        %4590 = vmatpush1.msra.mxu0 %v1519
        %4591 = vmatprep.subr.mxu0 %v1516
        %4592 = vmatpush1.msra.mxu0 %v1515
        %4593 = vmatprep.subr.mxu0 %v1512
        %4594 = vmatpush1.msra.mxu0 %v1511
        %4595 = vmatprep.subr.mxu0 %v1508
        %4596 = vmatpush1.msra.mxu0 %v1507
        %4597 = vmatprep.subr.mxu0 %v1504
        %4598 = vmatpush1.msra.mxu0 %v1503
        %4599 = vmatprep.subr.mxu0 %v1500
        %4600 = vmatpush1.msra.mxu0 %v1499
        %4601 = vmatprep.subr.mxu0 %v1496
        %4602 = vmatpush1.msra.mxu0 %v1495
        %4603 = vmatprep.subr.mxu0 %v1492
        %4604 = vmatpush1.msra.mxu0 %v1491
        %4605 = vmatprep.subr.mxu0 %v1488
        %4606 = vmatpush1.msra.mxu0 %v1487
        %4607 = vmatprep.subr.mxu0 %v1484
        %4608 = vmatpush1.msra.mxu0 %v1483
        %4609 = vmatprep.subr.mxu0 %v1480
        %4610 = vmatpush1.msra.mxu0 %v1479
        %4611 = vmatprep.subr.mxu0 %v1476
        %4612 = vmatpush1.msra.mxu0 %v1475
        %4613 = vmatprep.subr.mxu0 %v1472
        %4614 = vmatpush1.msra.mxu0 %v1471
        %4615 = vmatprep.subr.mxu0 %v1468
        %4616 = vmatpush1.msra.mxu0 %v1467
        %4617 = vmatprep.subr.mxu0 %v1464
        %4618 = vmatpush1.msra.mxu0 %v1463
        %4619 = vmatprep.subr.mxu0 %v1588
        %4620 = vmatpush2.msra.mxu0 %v1587
        %4621 = vmatprep.subr.mxu0 %v1584
        %4622 = vmatpush2.msra.mxu0 %v1583
        %4623 = vmatprep.subr.mxu0 %v1580
        %4624 = vmatpush2.msra.mxu0 %v1579
        %4625 = vmatprep.subr.mxu0 %v1576
        %4626 = vmatpush2.msra.mxu0 %v1575
        %4627 = vmatprep.subr.mxu0 %v1572
        %4628 = vmatpush2.msra.mxu0 %v1571
        %4629 = vmatprep.subr.mxu0 %v1568
        %4630 = vmatpush2.msra.mxu0 %v1567
        %4631 = vmatprep.subr.mxu0 %v1564
        %4632 = vmatpush2.msra.mxu0 %v1563
        %4633 = vmatprep.subr.mxu0 %v1560
        %4634 = vmatpush2.msra.mxu0 %v1559
        %4635 = vmatprep.subr.mxu0 %v1556
        %4636 = vmatpush2.msra.mxu0 %v1555
        %4637 = vmatprep.subr.mxu0 %v1552
        %4638 = vmatpush2.msra.mxu0 %v1551
        %4639 = vmatprep.subr.mxu0 %v1548
        %4640 = vmatpush2.msra.mxu0 %v1547
        %4641 = vmatprep.subr.mxu0 %v1544
        %4642 = vmatpush2.msra.mxu0 %v1543
        %4643 = vmatprep.subr.mxu0 %v1540
        %4644 = vmatpush2.msra.mxu0 %v1539
        %4645 = vmatprep.subr.mxu0 %v1536
        %4646 = vmatpush2.msra.mxu0 %v1535
        %4647 = vmatprep.subr.mxu0 %v1532
        %4648 = vmatpush2.msra.mxu0 %v1531
        %4649 = vmatprep.subr.mxu0 %v1528
        %4650 = vmatpush2.msra.mxu0 %v1527
        %4651 = vmatprep.mubr.f32.mxu0 %v418
        %4652 = vmatmul.mubr.f32.gmra.mxu0 %v417
        %v4653 = vpop.f32.mrf.mxu0
        %v4654 = vadd.f32 %v4583, %v4653
        %v4655 = vpop.f32.mrf.mxu0
        %v4656 = vadd.f32 %v4585, %v4655
        %4657 = vdwg.mxu0
        %4658 = vmatprep.subr.mxu0 %v1652
        %4659 = vmatpush1.msra.mxu0 %v1651
        %4660 = vmatprep.subr.mxu0 %v1648
        %4661 = vmatpush1.msra.mxu0 %v1647
        %4662 = vmatprep.subr.mxu0 %v1644
        %4663 = vmatpush1.msra.mxu0 %v1643
        %4664 = vmatprep.subr.mxu0 %v1640
        %4665 = vmatpush1.msra.mxu0 %v1639
        %4666 = vmatprep.subr.mxu0 %v1636
        %4667 = vmatpush1.msra.mxu0 %v1635
        %4668 = vmatprep.subr.mxu0 %v1632
        %4669 = vmatpush1.msra.mxu0 %v1631
        %4670 = vmatprep.subr.mxu0 %v1628
        %4671 = vmatpush1.msra.mxu0 %v1627
        %4672 = vmatprep.subr.mxu0 %v1624
        %4673 = vmatpush1.msra.mxu0 %v1623
        %4674 = vmatprep.subr.mxu0 %v1620
        %4675 = vmatpush1.msra.mxu0 %v1619
        %4676 = vmatprep.subr.mxu0 %v1616
        %4677 = vmatpush1.msra.mxu0 %v1615
        %4678 = vmatprep.subr.mxu0 %v1612
        %4679 = vmatpush1.msra.mxu0 %v1611
        %4680 = vmatprep.subr.mxu0 %v1608
        %4681 = vmatpush1.msra.mxu0 %v1607
        %4682 = vmatprep.subr.mxu0 %v1604
        %4683 = vmatpush1.msra.mxu0 %v1603
        %4684 = vmatprep.subr.mxu0 %v1600
        %4685 = vmatpush1.msra.mxu0 %v1599
        %4686 = vmatprep.subr.mxu0 %v1596
        %4687 = vmatpush1.msra.mxu0 %v1595
        %4688 = vmatprep.subr.mxu0 %v1592
        %4689 = vmatpush1.msra.mxu0 %v1591
        %4690 = vmatprep.subr.mxu0 %v1716
        %4691 = vmatpush2.msra.mxu0 %v1715
        %4692 = vmatprep.subr.mxu0 %v1712
        %4693 = vmatpush2.msra.mxu0 %v1711
        %4694 = vmatprep.subr.mxu0 %v1708
        %4695 = vmatpush2.msra.mxu0 %v1707
        %4696 = vmatprep.subr.mxu0 %v1704
        %4697 = vmatpush2.msra.mxu0 %v1703
        %4698 = vmatprep.subr.mxu0 %v1700
        %4699 = vmatpush2.msra.mxu0 %v1699
        %4700 = vmatprep.subr.mxu0 %v1696
        %4701 = vmatpush2.msra.mxu0 %v1695
        %4702 = vmatprep.subr.mxu0 %v1692
        %4703 = vmatpush2.msra.mxu0 %v1691
        %4704 = vmatprep.subr.mxu0 %v1688
        %4705 = vmatpush2.msra.mxu0 %v1687
        %4706 = vmatprep.subr.mxu0 %v1684
        %4707 = vmatpush2.msra.mxu0 %v1683
        %4708 = vmatprep.subr.mxu0 %v1680
        %4709 = vmatpush2.msra.mxu0 %v1679
        %4710 = vmatprep.subr.mxu0 %v1676
        %4711 = vmatpush2.msra.mxu0 %v1675
        %4712 = vmatprep.subr.mxu0 %v1672
        %4713 = vmatpush2.msra.mxu0 %v1671
        %4714 = vmatprep.subr.mxu0 %v1668
        %4715 = vmatpush2.msra.mxu0 %v1667
        %4716 = vmatprep.subr.mxu0 %v1664
        %4717 = vmatpush2.msra.mxu0 %v1663
        %4718 = vmatprep.subr.mxu0 %v1660
        %4719 = vmatpush2.msra.mxu0 %v1659
        %4720 = vmatprep.subr.mxu0 %v1656
        %4721 = vmatpush2.msra.mxu0 %v1655
        %4722 = vmatprep.mubr.f32.mxu0 %v420
        %4723 = vmatmul.mubr.f32.gmra.mxu0 %v419
        %v4724 = vpop.f32.mrf.mxu0
        %v4725 = vadd.f32 %v4654, %v4724
        %v4726 = vpop.f32.mrf.mxu0
        %v4727 = vadd.f32 %v4656, %v4726
        %4728 = vdwg.mxu0
        %4729 = vmatprep.subr.mxu0 %v1780
        %4730 = vmatpush1.msra.mxu0 %v1779
        %4731 = vmatprep.subr.mxu0 %v1776
        %4732 = vmatpush1.msra.mxu0 %v1775
        %4733 = vmatprep.subr.mxu0 %v1772
        %4734 = vmatpush1.msra.mxu0 %v1771
        %4735 = vmatprep.subr.mxu0 %v1768
        %4736 = vmatpush1.msra.mxu0 %v1767
        %4737 = vmatprep.subr.mxu0 %v1764
        %4738 = vmatpush1.msra.mxu0 %v1763
        %4739 = vmatprep.subr.mxu0 %v1760
        %4740 = vmatpush1.msra.mxu0 %v1759
        %4741 = vmatprep.subr.mxu0 %v1756
        %4742 = vmatpush1.msra.mxu0 %v1755
        %4743 = vmatprep.subr.mxu0 %v1752
        %4744 = vmatpush1.msra.mxu0 %v1751
        %4745 = vmatprep.subr.mxu0 %v1748
        %4746 = vmatpush1.msra.mxu0 %v1747
        %4747 = vmatprep.subr.mxu0 %v1744
        %4748 = vmatpush1.msra.mxu0 %v1743
        %4749 = vmatprep.subr.mxu0 %v1740
        %4750 = vmatpush1.msra.mxu0 %v1739
        %4751 = vmatprep.subr.mxu0 %v1736
        %4752 = vmatpush1.msra.mxu0 %v1735
        %4753 = vmatprep.subr.mxu0 %v1732
        %4754 = vmatpush1.msra.mxu0 %v1731
        %4755 = vmatprep.subr.mxu0 %v1728
        %4756 = vmatpush1.msra.mxu0 %v1727
        %4757 = vmatprep.subr.mxu0 %v1724
        %4758 = vmatpush1.msra.mxu0 %v1723
        %4759 = vmatprep.subr.mxu0 %v1720
        %4760 = vmatpush1.msra.mxu0 %v1719
        %4761 = vmatprep.subr.mxu0 %v1844
        %4762 = vmatpush2.msra.mxu0 %v1843
        %4763 = vmatprep.subr.mxu0 %v1840
        %4764 = vmatpush2.msra.mxu0 %v1839
        %4765 = vmatprep.subr.mxu0 %v1836
        %4766 = vmatpush2.msra.mxu0 %v1835
        %4767 = vmatprep.subr.mxu0 %v1832
        %4768 = vmatpush2.msra.mxu0 %v1831
        %4769 = vmatprep.subr.mxu0 %v1828
        %4770 = vmatpush2.msra.mxu0 %v1827
        %4771 = vmatprep.subr.mxu0 %v1824
        %4772 = vmatpush2.msra.mxu0 %v1823
        %4773 = vmatprep.subr.mxu0 %v1820
        %4774 = vmatpush2.msra.mxu0 %v1819
        %4775 = vmatprep.subr.mxu0 %v1816
        %4776 = vmatpush2.msra.mxu0 %v1815
        %4777 = vmatprep.subr.mxu0 %v1812
        %4778 = vmatpush2.msra.mxu0 %v1811
        %4779 = vmatprep.subr.mxu0 %v1808
        %4780 = vmatpush2.msra.mxu0 %v1807
        %4781 = vmatprep.subr.mxu0 %v1804
        %4782 = vmatpush2.msra.mxu0 %v1803
        %4783 = vmatprep.subr.mxu0 %v1800
        %4784 = vmatpush2.msra.mxu0 %v1799
        %4785 = vmatprep.subr.mxu0 %v1796
        %4786 = vmatpush2.msra.mxu0 %v1795
        %4787 = vmatprep.subr.mxu0 %v1792
        %4788 = vmatpush2.msra.mxu0 %v1791
        %4789 = vmatprep.subr.mxu0 %v1788
        %4790 = vmatpush2.msra.mxu0 %v1787
        %4791 = vmatprep.subr.mxu0 %v1784
        %4792 = vmatpush2.msra.mxu0 %v1783
        %4793 = vmatprep.mubr.f32.mxu0 %v422
        %4794 = vmatmul.mubr.f32.gmra.mxu0 %v421
        %v4795 = vpop.f32.mrf.mxu0
        %v4796 = vadd.f32 %v4725, %v4795
        %v4797 = vpop.f32.mrf.mxu0
        %v4798 = vadd.f32 %v4727, %v4797
        %4799 = vdwg.mxu0
        %4800 = vmatprep.subr.mxu0 %v1908
        %4801 = vmatpush1.msra.mxu0 %v1907
        %4802 = vmatprep.subr.mxu0 %v1904
        %4803 = vmatpush1.msra.mxu0 %v1903
        %4804 = vmatprep.subr.mxu0 %v1900
        %4805 = vmatpush1.msra.mxu0 %v1899
        %4806 = vmatprep.subr.mxu0 %v1896
        %4807 = vmatpush1.msra.mxu0 %v1895
        %4808 = vmatprep.subr.mxu0 %v1892
        %4809 = vmatpush1.msra.mxu0 %v1891
        %4810 = vmatprep.subr.mxu0 %v1888
        %4811 = vmatpush1.msra.mxu0 %v1887
        %4812 = vmatprep.subr.mxu0 %v1884
        %4813 = vmatpush1.msra.mxu0 %v1883
        %4814 = vmatprep.subr.mxu0 %v1880
        %4815 = vmatpush1.msra.mxu0 %v1879
        %4816 = vmatprep.subr.mxu0 %v1876
        %4817 = vmatpush1.msra.mxu0 %v1875
        %4818 = vmatprep.subr.mxu0 %v1872
        %4819 = vmatpush1.msra.mxu0 %v1871
        %4820 = vmatprep.subr.mxu0 %v1868
        %4821 = vmatpush1.msra.mxu0 %v1867
        %4822 = vmatprep.subr.mxu0 %v1864
        %4823 = vmatpush1.msra.mxu0 %v1863
        %4824 = vmatprep.subr.mxu0 %v1860
        %4825 = vmatpush1.msra.mxu0 %v1859
        %4826 = vmatprep.subr.mxu0 %v1856
        %4827 = vmatpush1.msra.mxu0 %v1855
        %4828 = vmatprep.subr.mxu0 %v1852
        %4829 = vmatpush1.msra.mxu0 %v1851
        %4830 = vmatprep.subr.mxu0 %v1848
        %4831 = vmatpush1.msra.mxu0 %v1847
        %4832 = vmatprep.subr.mxu0 %v1972
        %4833 = vmatpush2.msra.mxu0 %v1971
        %4834 = vmatprep.subr.mxu0 %v1968
        %4835 = vmatpush2.msra.mxu0 %v1967
        %4836 = vmatprep.subr.mxu0 %v1964
        %4837 = vmatpush2.msra.mxu0 %v1963
        %4838 = vmatprep.subr.mxu0 %v1960
        %4839 = vmatpush2.msra.mxu0 %v1959
        %4840 = vmatprep.subr.mxu0 %v1956
        %4841 = vmatpush2.msra.mxu0 %v1955
        %4842 = vmatprep.subr.mxu0 %v1952
        %4843 = vmatpush2.msra.mxu0 %v1951
        %4844 = vmatprep.subr.mxu0 %v1948
        %4845 = vmatpush2.msra.mxu0 %v1947
        %4846 = vmatprep.subr.mxu0 %v1944
        %4847 = vmatpush2.msra.mxu0 %v1943
        %4848 = vmatprep.subr.mxu0 %v1940
        %4849 = vmatpush2.msra.mxu0 %v1939
        %4850 = vmatprep.subr.mxu0 %v1936
        %4851 = vmatpush2.msra.mxu0 %v1935
        %4852 = vmatprep.subr.mxu0 %v1932
        %4853 = vmatpush2.msra.mxu0 %v1931
        %4854 = vmatprep.subr.mxu0 %v1928
        %4855 = vmatpush2.msra.mxu0 %v1927
        %4856 = vmatprep.subr.mxu0 %v1924
        %4857 = vmatpush2.msra.mxu0 %v1923
        %4858 = vmatprep.subr.mxu0 %v1920
        %4859 = vmatpush2.msra.mxu0 %v1919
        %4860 = vmatprep.subr.mxu0 %v1916
        %4861 = vmatpush2.msra.mxu0 %v1915
        %4862 = vmatprep.subr.mxu0 %v1912
        %4863 = vmatpush2.msra.mxu0 %v1911
        %4864 = vmatprep.mubr.f32.mxu0 %v424
        %4865 = vmatmul.mubr.f32.gmra.mxu0 %v423
        %v4866 = vpop.f32.mrf.mxu0
        %v4867 = vadd.f32 %v4796, %v4866
        %v4868 = vpop.f32.mrf.mxu0
        %v4869 = vadd.f32 %v4798, %v4868
        %4870 = vdwg.mxu0
        %4871 = vmatprep.subr.mxu0 %v2036
        %4872 = vmatpush1.msra.mxu0 %v2035
        %4873 = vmatprep.subr.mxu0 %v2032
        %4874 = vmatpush1.msra.mxu0 %v2031
        %4875 = vmatprep.subr.mxu0 %v2028
        %4876 = vmatpush1.msra.mxu0 %v2027
        %4877 = vmatprep.subr.mxu0 %v2024
        %4878 = vmatpush1.msra.mxu0 %v2023
        %4879 = vmatprep.subr.mxu0 %v2020
        %4880 = vmatpush1.msra.mxu0 %v2019
        %4881 = vmatprep.subr.mxu0 %v2016
        %4882 = vmatpush1.msra.mxu0 %v2015
        %4883 = vmatprep.subr.mxu0 %v2012
        %4884 = vmatpush1.msra.mxu0 %v2011
        %4885 = vmatprep.subr.mxu0 %v2008
        %4886 = vmatpush1.msra.mxu0 %v2007
        %4887 = vmatprep.subr.mxu0 %v2004
        %4888 = vmatpush1.msra.mxu0 %v2003
        %4889 = vmatprep.subr.mxu0 %v2000
        %4890 = vmatpush1.msra.mxu0 %v1999
        %4891 = vmatprep.subr.mxu0 %v1996
        %4892 = vmatpush1.msra.mxu0 %v1995
        %4893 = vmatprep.subr.mxu0 %v1992
        %4894 = vmatpush1.msra.mxu0 %v1991
        %4895 = vmatprep.subr.mxu0 %v1988
        %4896 = vmatpush1.msra.mxu0 %v1987
        %4897 = vmatprep.subr.mxu0 %v1984
        %4898 = vmatpush1.msra.mxu0 %v1983
        %4899 = vmatprep.subr.mxu0 %v1980
        %4900 = vmatpush1.msra.mxu0 %v1979
        %4901 = vmatprep.subr.mxu0 %v1976
        %4902 = vmatpush1.msra.mxu0 %v1975
        %4903 = vmatprep.subr.mxu0 %v2100
        %4904 = vmatpush2.msra.mxu0 %v2099
        %4905 = vmatprep.subr.mxu0 %v2096
        %4906 = vmatpush2.msra.mxu0 %v2095
        %4907 = vmatprep.subr.mxu0 %v2092
        %4908 = vmatpush2.msra.mxu0 %v2091
        %4909 = vmatprep.subr.mxu0 %v2088
        %4910 = vmatpush2.msra.mxu0 %v2087
        %4911 = vmatprep.subr.mxu0 %v2084
        %4912 = vmatpush2.msra.mxu0 %v2083
        %4913 = vmatprep.subr.mxu0 %v2080
        %4914 = vmatpush2.msra.mxu0 %v2079
        %4915 = vmatprep.subr.mxu0 %v2076
        %4916 = vmatpush2.msra.mxu0 %v2075
        %4917 = vmatprep.subr.mxu0 %v2072
        %4918 = vmatpush2.msra.mxu0 %v2071
        %4919 = vmatprep.subr.mxu0 %v2068
        %4920 = vmatpush2.msra.mxu0 %v2067
        %4921 = vmatprep.subr.mxu0 %v2064
        %4922 = vmatpush2.msra.mxu0 %v2063
        %4923 = vmatprep.subr.mxu0 %v2060
        %4924 = vmatpush2.msra.mxu0 %v2059
        %4925 = vmatprep.subr.mxu0 %v2056
        %4926 = vmatpush2.msra.mxu0 %v2055
        %4927 = vmatprep.subr.mxu0 %v2052
        %4928 = vmatpush2.msra.mxu0 %v2051
        %4929 = vmatprep.subr.mxu0 %v2048
        %4930 = vmatpush2.msra.mxu0 %v2047
        %4931 = vmatprep.subr.mxu0 %v2044
        %4932 = vmatpush2.msra.mxu0 %v2043
        %4933 = vmatprep.subr.mxu0 %v2040
        %4934 = vmatpush2.msra.mxu0 %v2039
        %4935 = vmatprep.mubr.f32.mxu0 %v426
        %4936 = vmatmul.mubr.f32.gmra.mxu0 %v425
        %v4937 = vpop.f32.mrf.mxu0
        %v4938 = vadd.f32 %v4867, %v4937
        %v4939 = vpop.f32.mrf.mxu0
        %v4940 = vadd.f32 %v4869, %v4939
        %4941 = vdwg.mxu0
        %4942 = vmatprep.subr.mxu0 %v2164
        %4943 = vmatpush1.msra.mxu0 %v2163
        %4944 = vmatprep.subr.mxu0 %v2160
        %4945 = vmatpush1.msra.mxu0 %v2159
        %4946 = vmatprep.subr.mxu0 %v2156
        %4947 = vmatpush1.msra.mxu0 %v2155
        %4948 = vmatprep.subr.mxu0 %v2152
        %4949 = vmatpush1.msra.mxu0 %v2151
        %4950 = vmatprep.subr.mxu0 %v2148
        %4951 = vmatpush1.msra.mxu0 %v2147
        %4952 = vmatprep.subr.mxu0 %v2144
        %4953 = vmatpush1.msra.mxu0 %v2143
        %4954 = vmatprep.subr.mxu0 %v2140
        %4955 = vmatpush1.msra.mxu0 %v2139
        %4956 = vmatprep.subr.mxu0 %v2136
        %4957 = vmatpush1.msra.mxu0 %v2135
        %4958 = vmatprep.subr.mxu0 %v2132
        %4959 = vmatpush1.msra.mxu0 %v2131
        %4960 = vmatprep.subr.mxu0 %v2128
        %4961 = vmatpush1.msra.mxu0 %v2127
        %4962 = vmatprep.subr.mxu0 %v2124
        %4963 = vmatpush1.msra.mxu0 %v2123
        %4964 = vmatprep.subr.mxu0 %v2120
        %4965 = vmatpush1.msra.mxu0 %v2119
        %4966 = vmatprep.subr.mxu0 %v2116
        %4967 = vmatpush1.msra.mxu0 %v2115
        %4968 = vmatprep.subr.mxu0 %v2112
        %4969 = vmatpush1.msra.mxu0 %v2111
        %4970 = vmatprep.subr.mxu0 %v2108
        %4971 = vmatpush1.msra.mxu0 %v2107
        %4972 = vmatprep.subr.mxu0 %v2104
        %4973 = vmatpush1.msra.mxu0 %v2103
        %4974 = vmatprep.subr.mxu0 %v2228
        %4975 = vmatpush2.msra.mxu0 %v2227
        %4976 = vmatprep.subr.mxu0 %v2224
        %4977 = vmatpush2.msra.mxu0 %v2223
        %4978 = vmatprep.subr.mxu0 %v2220
        %4979 = vmatpush2.msra.mxu0 %v2219
        %4980 = vmatprep.subr.mxu0 %v2216
        %4981 = vmatpush2.msra.mxu0 %v2215
        %4982 = vmatprep.subr.mxu0 %v2212
        %4983 = vmatpush2.msra.mxu0 %v2211
        %4984 = vmatprep.subr.mxu0 %v2208
        %4985 = vmatpush2.msra.mxu0 %v2207
        %4986 = vmatprep.subr.mxu0 %v2204
        %4987 = vmatpush2.msra.mxu0 %v2203
        %4988 = vmatprep.subr.mxu0 %v2200
        %4989 = vmatpush2.msra.mxu0 %v2199
        %4990 = vmatprep.subr.mxu0 %v2196
        %4991 = vmatpush2.msra.mxu0 %v2195
        %4992 = vmatprep.subr.mxu0 %v2192
        %4993 = vmatpush2.msra.mxu0 %v2191
        %4994 = vmatprep.subr.mxu0 %v2188
        %4995 = vmatpush2.msra.mxu0 %v2187
        %4996 = vmatprep.subr.mxu0 %v2184
        %4997 = vmatpush2.msra.mxu0 %v2183
        %4998 = vmatprep.subr.mxu0 %v2180
        %4999 = vmatpush2.msra.mxu0 %v2179
        %5000 = vmatprep.subr.mxu0 %v2176
        %5001 = vmatpush2.msra.mxu0 %v2175
        %5002 = vmatprep.subr.mxu0 %v2172
        %5003 = vmatpush2.msra.mxu0 %v2171
        %5004 = vmatprep.subr.mxu0 %v2168
        %5005 = vmatpush2.msra.mxu0 %v2167
        %5006 = vmatprep.mubr.f32.mxu0 %v428
        %5007 = vmatmul.mubr.f32.gmra.mxu0 %v427
        %v5008 = vpop.f32.mrf.mxu0
        %v5009 = vadd.f32 %v4938, %v5008
        %v5010 = vpop.f32.mrf.mxu0
        %v5011 = vadd.f32 %v4940, %v5010
        %5012 = vdwg.mxu0
        %5013 = vmatprep.subr.mxu0 %v2292
        %5014 = vmatpush1.msra.mxu0 %v2291
        %5015 = vmatprep.subr.mxu0 %v2288
        %5016 = vmatpush1.msra.mxu0 %v2287
        %5017 = vmatprep.subr.mxu0 %v2284
        %5018 = vmatpush1.msra.mxu0 %v2283
        %5019 = vmatprep.subr.mxu0 %v2280
        %5020 = vmatpush1.msra.mxu0 %v2279
        %5021 = vmatprep.subr.mxu0 %v2276
        %5022 = vmatpush1.msra.mxu0 %v2275
        %5023 = vmatprep.subr.mxu0 %v2272
        %5024 = vmatpush1.msra.mxu0 %v2271
        %5025 = vmatprep.subr.mxu0 %v2268
        %5026 = vmatpush1.msra.mxu0 %v2267
        %5027 = vmatprep.subr.mxu0 %v2264
        %5028 = vmatpush1.msra.mxu0 %v2263
        %5029 = vmatprep.subr.mxu0 %v2260
        %5030 = vmatpush1.msra.mxu0 %v2259
        %5031 = vmatprep.subr.mxu0 %v2256
        %5032 = vmatpush1.msra.mxu0 %v2255
        %5033 = vmatprep.subr.mxu0 %v2252
        %5034 = vmatpush1.msra.mxu0 %v2251
        %5035 = vmatprep.subr.mxu0 %v2248
        %5036 = vmatpush1.msra.mxu0 %v2247
        %5037 = vmatprep.subr.mxu0 %v2244
        %5038 = vmatpush1.msra.mxu0 %v2243
        %5039 = vmatprep.subr.mxu0 %v2240
        %5040 = vmatpush1.msra.mxu0 %v2239
        %5041 = vmatprep.subr.mxu0 %v2236
        %5042 = vmatpush1.msra.mxu0 %v2235
        %5043 = vmatprep.subr.mxu0 %v2232
        %5044 = vmatpush1.msra.mxu0 %v2231
        %5045 = vmatprep.subr.mxu0 %v2356
        %5046 = vmatpush2.msra.mxu0 %v2355
        %5047 = vmatprep.subr.mxu0 %v2352
        %5048 = vmatpush2.msra.mxu0 %v2351
        %5049 = vmatprep.subr.mxu0 %v2348
        %5050 = vmatpush2.msra.mxu0 %v2347
        %5051 = vmatprep.subr.mxu0 %v2344
        %5052 = vmatpush2.msra.mxu0 %v2343
        %5053 = vmatprep.subr.mxu0 %v2340
        %5054 = vmatpush2.msra.mxu0 %v2339
        %5055 = vmatprep.subr.mxu0 %v2336
        %5056 = vmatpush2.msra.mxu0 %v2335
        %5057 = vmatprep.subr.mxu0 %v2332
        %5058 = vmatpush2.msra.mxu0 %v2331
        %5059 = vmatprep.subr.mxu0 %v2328
        %5060 = vmatpush2.msra.mxu0 %v2327
        %5061 = vmatprep.subr.mxu0 %v2324
        %5062 = vmatpush2.msra.mxu0 %v2323
        %5063 = vmatprep.subr.mxu0 %v2320
        %5064 = vmatpush2.msra.mxu0 %v2319
        %5065 = vmatprep.subr.mxu0 %v2316
        %5066 = vmatpush2.msra.mxu0 %v2315
        %5067 = vmatprep.subr.mxu0 %v2312
        %5068 = vmatpush2.msra.mxu0 %v2311
        %5069 = vmatprep.subr.mxu0 %v2308
        %5070 = vmatpush2.msra.mxu0 %v2307
        %5071 = vmatprep.subr.mxu0 %v2304
        %5072 = vmatpush2.msra.mxu0 %v2303
        %5073 = vmatprep.subr.mxu0 %v2300
        %5074 = vmatpush2.msra.mxu0 %v2299
        %5075 = vmatprep.subr.mxu0 %v2296
        %5076 = vmatpush2.msra.mxu0 %v2295
        %5077 = vmatprep.mubr.f32.mxu0 %v430
        %5078 = vmatmul.mubr.f32.gmra.mxu0 %v429
        %v5079 = vpop.f32.mrf.mxu0
        %v5080 = vadd.f32 %v5009, %v5079
        %v5081 = vpop.f32.mrf.mxu0
        %v5082 = vadd.f32 %v5011, %v5081
        %5083 = vdwg.mxu0
        %5084 = vmatprep.subr.mxu0 %v2420
        %5085 = vmatpush1.msra.mxu0 %v2419
        %5086 = vmatprep.subr.mxu0 %v2416
        %5087 = vmatpush1.msra.mxu0 %v2415
        %5088 = vmatprep.subr.mxu0 %v2412
        %5089 = vmatpush1.msra.mxu0 %v2411
        %5090 = vmatprep.subr.mxu0 %v2408
        %5091 = vmatpush1.msra.mxu0 %v2407
        %5092 = vmatprep.subr.mxu0 %v2404
        %5093 = vmatpush1.msra.mxu0 %v2403
        %5094 = vmatprep.subr.mxu0 %v2400
        %5095 = vmatpush1.msra.mxu0 %v2399
        %5096 = vmatprep.subr.mxu0 %v2396
        %5097 = vmatpush1.msra.mxu0 %v2395
        %5098 = vmatprep.subr.mxu0 %v2392
        %5099 = vmatpush1.msra.mxu0 %v2391
        %5100 = vmatprep.subr.mxu0 %v2388
        %5101 = vmatpush1.msra.mxu0 %v2387
        %5102 = vmatprep.subr.mxu0 %v2384
        %5103 = vmatpush1.msra.mxu0 %v2383
        %5104 = vmatprep.subr.mxu0 %v2380
        %5105 = vmatpush1.msra.mxu0 %v2379
        %5106 = vmatprep.subr.mxu0 %v2376
        %5107 = vmatpush1.msra.mxu0 %v2375
        %5108 = vmatprep.subr.mxu0 %v2372
        %5109 = vmatpush1.msra.mxu0 %v2371
        %5110 = vmatprep.subr.mxu0 %v2368
        %5111 = vmatpush1.msra.mxu0 %v2367
        %5112 = vmatprep.subr.mxu0 %v2364
        %5113 = vmatpush1.msra.mxu0 %v2363
        %5114 = vmatprep.subr.mxu0 %v2360
        %5115 = vmatpush1.msra.mxu0 %v2359
        %5116 = vmatprep.subr.mxu0 %v2484
        %5117 = vmatpush2.msra.mxu0 %v2483
        %5118 = vmatprep.subr.mxu0 %v2480
        %5119 = vmatpush2.msra.mxu0 %v2479
        %5120 = vmatprep.subr.mxu0 %v2476
        %5121 = vmatpush2.msra.mxu0 %v2475
        %5122 = vmatprep.subr.mxu0 %v2472
        %5123 = vmatpush2.msra.mxu0 %v2471
        %5124 = vmatprep.subr.mxu0 %v2468
        %5125 = vmatpush2.msra.mxu0 %v2467
        %5126 = vmatprep.subr.mxu0 %v2464
        %5127 = vmatpush2.msra.mxu0 %v2463
        %5128 = vmatprep.subr.mxu0 %v2460
        %5129 = vmatpush2.msra.mxu0 %v2459
        %5130 = vmatprep.subr.mxu0 %v2456
        %5131 = vmatpush2.msra.mxu0 %v2455
        %5132 = vmatprep.subr.mxu0 %v2452
        %5133 = vmatpush2.msra.mxu0 %v2451
        %5134 = vmatprep.subr.mxu0 %v2448
        %5135 = vmatpush2.msra.mxu0 %v2447
        %5136 = vmatprep.subr.mxu0 %v2444
        %5137 = vmatpush2.msra.mxu0 %v2443
        %5138 = vmatprep.subr.mxu0 %v2440
        %5139 = vmatpush2.msra.mxu0 %v2439
        %5140 = vmatprep.subr.mxu0 %v2436
        %5141 = vmatpush2.msra.mxu0 %v2435
        %5142 = vmatprep.subr.mxu0 %v2432
        %5143 = vmatpush2.msra.mxu0 %v2431
        %5144 = vmatprep.subr.mxu0 %v2428
        %5145 = vmatpush2.msra.mxu0 %v2427
        %5146 = vmatprep.subr.mxu0 %v2424
        %5147 = vmatpush2.msra.mxu0 %v2423
        %5148 = vmatprep.mubr.f32.mxu0 %v432
        %5149 = vmatmul.mubr.f32.gmra.mxu0 %v431
        %v5150 = vpop.f32.mrf.mxu0
        %v5151 = vadd.f32 %v5080, %v5150
        %v5152 = vpop.f32.mrf.mxu0
        %v5153 = vadd.f32 %v5082, %v5152
        %5154 = vdwg.mxu0
        %5155 = vmatprep.subr.mxu0 %v2548
        %5156 = vmatpush1.msra.mxu0 %v2547
        %5157 = vmatprep.subr.mxu0 %v2544
        %5158 = vmatpush1.msra.mxu0 %v2543
        %5159 = vmatprep.subr.mxu0 %v2540
        %5160 = vmatpush1.msra.mxu0 %v2539
        %5161 = vmatprep.subr.mxu0 %v2536
        %5162 = vmatpush1.msra.mxu0 %v2535
        %5163 = vmatprep.subr.mxu0 %v2532
        %5164 = vmatpush1.msra.mxu0 %v2531
        %5165 = vmatprep.subr.mxu0 %v2528
        %5166 = vmatpush1.msra.mxu0 %v2527
        %5167 = vmatprep.subr.mxu0 %v2524
        %5168 = vmatpush1.msra.mxu0 %v2523
        %5169 = vmatprep.subr.mxu0 %v2520
        %5170 = vmatpush1.msra.mxu0 %v2519
        %5171 = vmatprep.subr.mxu0 %v2516
        %5172 = vmatpush1.msra.mxu0 %v2515
        %5173 = vmatprep.subr.mxu0 %v2512
        %5174 = vmatpush1.msra.mxu0 %v2511
        %5175 = vmatprep.subr.mxu0 %v2508
        %5176 = vmatpush1.msra.mxu0 %v2507
        %5177 = vmatprep.subr.mxu0 %v2504
        %5178 = vmatpush1.msra.mxu0 %v2503
        %5179 = vmatprep.subr.mxu0 %v2500
        %5180 = vmatpush1.msra.mxu0 %v2499
        %5181 = vmatprep.subr.mxu0 %v2496
        %5182 = vmatpush1.msra.mxu0 %v2495
        %5183 = vmatprep.subr.mxu0 %v2492
        %5184 = vmatpush1.msra.mxu0 %v2491
        %5185 = vmatprep.subr.mxu0 %v2488
        %5186 = vmatpush1.msra.mxu0 %v2487
        %5187 = vmatprep.subr.mxu0 %v2612
        %5188 = vmatpush2.msra.mxu0 %v2611
        %5189 = vmatprep.subr.mxu0 %v2608
        %5190 = vmatpush2.msra.mxu0 %v2607
        %5191 = vmatprep.subr.mxu0 %v2604
        %5192 = vmatpush2.msra.mxu0 %v2603
        %5193 = vmatprep.subr.mxu0 %v2600
        %5194 = vmatpush2.msra.mxu0 %v2599
        %5195 = vmatprep.subr.mxu0 %v2596
        %5196 = vmatpush2.msra.mxu0 %v2595
        %5197 = vmatprep.subr.mxu0 %v2592
        %5198 = vmatpush2.msra.mxu0 %v2591
        %5199 = vmatprep.subr.mxu0 %v2588
        %5200 = vmatpush2.msra.mxu0 %v2587
        %5201 = vmatprep.subr.mxu0 %v2584
        %5202 = vmatpush2.msra.mxu0 %v2583
        %5203 = vmatprep.subr.mxu0 %v2580
        %5204 = vmatpush2.msra.mxu0 %v2579
        %5205 = vmatprep.subr.mxu0 %v2576
        %5206 = vmatpush2.msra.mxu0 %v2575
        %5207 = vmatprep.subr.mxu0 %v2572
        %5208 = vmatpush2.msra.mxu0 %v2571
        %5209 = vmatprep.subr.mxu0 %v2568
        %5210 = vmatpush2.msra.mxu0 %v2567
        %5211 = vmatprep.subr.mxu0 %v2564
        %5212 = vmatpush2.msra.mxu0 %v2563
        %5213 = vmatprep.subr.mxu0 %v2560
        %5214 = vmatpush2.msra.mxu0 %v2559
        %5215 = vmatprep.subr.mxu0 %v2556
        %5216 = vmatpush2.msra.mxu0 %v2555
        %5217 = vmatprep.subr.mxu0 %v2552
        %5218 = vmatpush2.msra.mxu0 %v2551
        %5219 = vmatprep.mubr.f32.mxu0 %v434
        %5220 = vmatmul.mubr.f32.gmra.mxu0 %v433
        %v5221 = vpop.f32.mrf.mxu0
        %v5222 = vadd.f32 %v5151, %v5221
        %v5223 = vpop.f32.mrf.mxu0
        %v5224 = vadd.f32 %v5153, %v5223
        %5225 = vdwg.mxu0
        %5226 = vmatprep.subr.mxu0 %v2676
        %5227 = vmatpush1.msra.mxu0 %v2675
        %5228 = vmatprep.subr.mxu0 %v2672
        %5229 = vmatpush1.msra.mxu0 %v2671
        %5230 = vmatprep.subr.mxu0 %v2668
        %5231 = vmatpush1.msra.mxu0 %v2667
        %5232 = vmatprep.subr.mxu0 %v2664
        %5233 = vmatpush1.msra.mxu0 %v2663
        %5234 = vmatprep.subr.mxu0 %v2660
        %5235 = vmatpush1.msra.mxu0 %v2659
        %5236 = vmatprep.subr.mxu0 %v2656
        %5237 = vmatpush1.msra.mxu0 %v2655
        %5238 = vmatprep.subr.mxu0 %v2652
        %5239 = vmatpush1.msra.mxu0 %v2651
        %5240 = vmatprep.subr.mxu0 %v2648
        %5241 = vmatpush1.msra.mxu0 %v2647
        %5242 = vmatprep.subr.mxu0 %v2644
        %5243 = vmatpush1.msra.mxu0 %v2643
        %5244 = vmatprep.subr.mxu0 %v2640
        %5245 = vmatpush1.msra.mxu0 %v2639
        %5246 = vmatprep.subr.mxu0 %v2636
        %5247 = vmatpush1.msra.mxu0 %v2635
        %5248 = vmatprep.subr.mxu0 %v2632
        %5249 = vmatpush1.msra.mxu0 %v2631
        %5250 = vmatprep.subr.mxu0 %v2628
        %5251 = vmatpush1.msra.mxu0 %v2627
        %5252 = vmatprep.subr.mxu0 %v2624
        %5253 = vmatpush1.msra.mxu0 %v2623
        %5254 = vmatprep.subr.mxu0 %v2620
        %5255 = vmatpush1.msra.mxu0 %v2619
        %5256 = vmatprep.subr.mxu0 %v2616
        %5257 = vmatpush1.msra.mxu0 %v2615
        %5258 = vmatprep.subr.mxu0 %v2740
        %5259 = vmatpush2.msra.mxu0 %v2739
        %5260 = vmatprep.subr.mxu0 %v2736
        %5261 = vmatpush2.msra.mxu0 %v2735
        %5262 = vmatprep.subr.mxu0 %v2732
        %5263 = vmatpush2.msra.mxu0 %v2731
        %5264 = vmatprep.subr.mxu0 %v2728
        %5265 = vmatpush2.msra.mxu0 %v2727
        %5266 = vmatprep.subr.mxu0 %v2724
        %5267 = vmatpush2.msra.mxu0 %v2723
        %5268 = vmatprep.subr.mxu0 %v2720
        %5269 = vmatpush2.msra.mxu0 %v2719
        %5270 = vmatprep.subr.mxu0 %v2716
        %5271 = vmatpush2.msra.mxu0 %v2715
        %5272 = vmatprep.subr.mxu0 %v2712
        %5273 = vmatpush2.msra.mxu0 %v2711
        %5274 = vmatprep.subr.mxu0 %v2708
        %5275 = vmatpush2.msra.mxu0 %v2707
        %5276 = vmatprep.subr.mxu0 %v2704
        %5277 = vmatpush2.msra.mxu0 %v2703
        %5278 = vmatprep.subr.mxu0 %v2700
        %5279 = vmatpush2.msra.mxu0 %v2699
        %5280 = vmatprep.subr.mxu0 %v2696
        %5281 = vmatpush2.msra.mxu0 %v2695
        %5282 = vmatprep.subr.mxu0 %v2692
        %5283 = vmatpush2.msra.mxu0 %v2691
        %5284 = vmatprep.subr.mxu0 %v2688
        %5285 = vmatpush2.msra.mxu0 %v2687
        %5286 = vmatprep.subr.mxu0 %v2684
        %5287 = vmatpush2.msra.mxu0 %v2683
        %5288 = vmatprep.subr.mxu0 %v2680
        %5289 = vmatpush2.msra.mxu0 %v2679
        %5290 = vmatprep.mubr.f32.mxu0 %v436
        %5291 = vmatmul.mubr.f32.gmra.mxu0 %v435
        %v5292 = vpop.f32.mrf.mxu0
        %v5293 = vadd.f32 %v5222, %v5292
        %v5294 = vpop.f32.mrf.mxu0
        %v5295 = vadd.f32 %v5224, %v5294
        %5296 = vdwg.mxu0
        %v5297 = vadd.f32 %v397, %v4015
        %v5298 = vadd.f32 %v398, %v4017
        %v5299 = vadd.f32 %v399, %v5293
        %v5300 = vadd.f32 %v400, %v5295
        %5301 = vst [vmem:[#allocation2] sm:$0xff] %v5297
        %5302 = vst [vmem:[#allocation2 + $0x8] sm:$0xff] %v5298
        %5303 = vst [vmem:[#allocation2 + $0x10] sm:$0xff] %v5299
        %5304 = vst [vmem:[#allocation2 + $0x18] sm:$0xff] %v5300
        %p5305 = scmp.eq.s32.totalorder %s30, 3
        // Predicated region
        $region69: #{_forward_impl.1} parent=47 // pred_check
          %p5306 = pneg %p5305
        $region70: #{_forward_impl.1} parent=47 // pred_check_branch
          %5308 = sbr.rel (%p5306) target = $region72
        $region71: #{_forward_impl.1} parent=47 // pred_region
          %v5309 = vld [vmem:[#allocation2] sm:$0xff]
          %v5310 = vld [vmem:[#allocation2 + $0x8] sm:$0xff]
          %v5311 = vld [vmem:[#allocation2 + $0x10] sm:$0xff]
          %v5312 = vld [vmem:[#allocation2 + $0x18] sm:$0xff]
          %v5313 = vld [vmem:[#allocation6] sm:$0xf]
          %v5315 = vlaneseq
          %v5316 = vshrl.u32 %v5315, 7
          %v5317 = vsub.s32 0, %v5316
          %v5318 = vrot.slane %v5313, %v5317
          %v5319 = vlaneseq
          %v5320 = vshrl.u32 %v5319, 7
          %v5321 = vsub.s32 1, %v5320
          %v5322 = vrot.slane %v5313, %v5321
          %v5323 = vlaneseq
          %v5324 = vshrl.u32 %v5323, 7
          %v5325 = vsub.s32 2, %v5324
          %v5326 = vrot.slane %v5313, %v5325
          %v5327 = vlaneseq
          %v5328 = vshrl.u32 %v5327, 7
          %v5329 = vsub.s32 3, %v5328
          %v5330 = vrot.slane %v5313, %v5329
          %v5335 = vadd.f32 %v5309, %v5318
          %v5336 = vadd.f32 %v5310, %v5322
          %v5337 = vadd.f32 %v5311, %v5326
          %v5338 = vadd.f32 %v5312, %v5330
          %v5339 = vmax.f32 %v5335, 0.0
          %v5340 = vmax.f32 %v5336, 0.0
          %v5341 = vmax.f32 %v5337, 0.0
          %v5342 = vmax.f32 %v5338, 0.0
          %v5343 = vld [vmem:[#allocation8] sm:$0xff]
          %v5344 = vld [vmem:[#allocation8 + $0x8] sm:$0xff]
          %v5345 = vld [vmem:[#allocation8 + $0x10] sm:$0xff]
          %v5346 = vld [vmem:[#allocation8 + $0x18] sm:$0xff]
          %v5347 = vld [vmem:[#allocation8 + $0x20] sm:$0xff]
          %v5348 = vld [vmem:[#allocation8 + $0x28] sm:$0xff]
          %v5349 = vld [vmem:[#allocation8 + $0x30] sm:$0xff]
          %v5350 = vld [vmem:[#allocation8 + $0x38] sm:$0xff]
          %v5351 = vld [vmem:[#allocation8 + $0x40] sm:$0xff]
          %v5352 = vld [vmem:[#allocation8 + $0x48] sm:$0xff]
          %v5353 = vld [vmem:[#allocation8 + $0x50] sm:$0xff]
          %v5354 = vld [vmem:[#allocation8 + $0x58] sm:$0xff]
          %v5355 = vld [vmem:[#allocation8 + $0x60] sm:$0xff]
          %v5356 = vld [vmem:[#allocation8 + $0x68] sm:$0xff]
          %v5357 = vld [vmem:[#allocation8 + $0x70] sm:$0xff]
          %v5358 = vld [vmem:[#allocation8 + $0x78] sm:$0xff]
          %v5359 = vld [vmem:[#allocation8 + $0x80] sm:$0xff]
          %v5360 = vld [vmem:[#allocation8 + $0x88] sm:$0xff]
          %v5361 = vld [vmem:[#allocation8 + $0x90] sm:$0xff]
          %v5362 = vld [vmem:[#allocation8 + $0x98] sm:$0xff]
          %v5363 = vld [vmem:[#allocation8 + $0xa0] sm:$0xff]
          %v5364 = vld [vmem:[#allocation8 + $0xa8] sm:$0xff]
          %v5365 = vld [vmem:[#allocation8 + $0xb0] sm:$0xff]
          %v5366 = vld [vmem:[#allocation8 + $0xb8] sm:$0xff]
          %v5367 = vld [vmem:[#allocation8 + $0xc0] sm:$0xff]
          %v5368 = vld [vmem:[#allocation8 + $0xc8] sm:$0xff]
          %v5369 = vld [vmem:[#allocation8 + $0xd0] sm:$0xff]
          %v5370 = vld [vmem:[#allocation8 + $0xd8] sm:$0xff]
          %v5371 = vld [vmem:[#allocation8 + $0xe0] sm:$0xff]
          %v5372 = vld [vmem:[#allocation8 + $0xe8] sm:$0xff]
          %v5373 = vld [vmem:[#allocation8 + $0xf0] sm:$0xff]
          %v5374 = vld [vmem:[#allocation8 + $0xf8] sm:$0xff]
          %v5375 = vld [vmem:[#allocation8 + $0x100] sm:$0xff]
          %v5376 = vld [vmem:[#allocation8 + $0x108] sm:$0xff]
          %v5377 = vld [vmem:[#allocation8 + $0x110] sm:$0xff]
          %v5378 = vld [vmem:[#allocation8 + $0x118] sm:$0xff]
          %v5379 = vld [vmem:[#allocation8 + $0x120] sm:$0xff]
          %v5380 = vld [vmem:[#allocation8 + $0x128] sm:$0xff]
          %v5381 = vld [vmem:[#allocation8 + $0x130] sm:$0xff]
          %v5382 = vld [vmem:[#allocation8 + $0x138] sm:$0xff]
          %v5383 = vld [vmem:[#allocation8 + $0x140] sm:$0xff]
          %v5384 = vld [vmem:[#allocation8 + $0x148] sm:$0xff]
          %v5385 = vld [vmem:[#allocation8 + $0x150] sm:$0xff]
          %v5386 = vld [vmem:[#allocation8 + $0x158] sm:$0xff]
          %v5387 = vld [vmem:[#allocation8 + $0x160] sm:$0xff]
          %v5388 = vld [vmem:[#allocation8 + $0x168] sm:$0xff]
          %v5389 = vld [vmem:[#allocation8 + $0x170] sm:$0xff]
          %v5390 = vld [vmem:[#allocation8 + $0x178] sm:$0xff]
          %v5391 = vld [vmem:[#allocation8 + $0x180] sm:$0xff]
          %v5392 = vld [vmem:[#allocation8 + $0x188] sm:$0xff]
          %v5393 = vld [vmem:[#allocation8 + $0x190] sm:$0xff]
          %v5394 = vld [vmem:[#allocation8 + $0x198] sm:$0xff]
          %v5395 = vld [vmem:[#allocation8 + $0x1a0] sm:$0xff]
          %v5396 = vld [vmem:[#allocation8 + $0x1a8] sm:$0xff]
          %v5397 = vld [vmem:[#allocation8 + $0x1b0] sm:$0xff]
          %v5398 = vld [vmem:[#allocation8 + $0x1b8] sm:$0xff]
          %v5399 = vld [vmem:[#allocation8 + $0x1c0] sm:$0xff]
          %v5400 = vld [vmem:[#allocation8 + $0x1c8] sm:$0xff]
          %v5401 = vld [vmem:[#allocation8 + $0x1d0] sm:$0xff]
          %v5402 = vld [vmem:[#allocation8 + $0x1d8] sm:$0xff]
          %v5403 = vld [vmem:[#allocation8 + $0x1e0] sm:$0xff]
          %v5404 = vld [vmem:[#allocation8 + $0x1e8] sm:$0xff]
          %v5405 = vld [vmem:[#allocation8 + $0x1f0] sm:$0xff]
          %v5406 = vld [vmem:[#allocation8 + $0x1f8] sm:$0xff]
          %v5407 = vld [vmem:[#allocation8 + $0x200] sm:$0xff]
          %v5408 = vld [vmem:[#allocation8 + $0x208] sm:$0xff]
          %v5409 = vld [vmem:[#allocation8 + $0x210] sm:$0xff]
          %v5410 = vld [vmem:[#allocation8 + $0x218] sm:$0xff]
          %v5411 = vld [vmem:[#allocation8 + $0x220] sm:$0xff]
          %v5412 = vld [vmem:[#allocation8 + $0x228] sm:$0xff]
          %v5413 = vld [vmem:[#allocation8 + $0x230] sm:$0xff]
          %v5414 = vld [vmem:[#allocation8 + $0x238] sm:$0xff]
          %v5415 = vld [vmem:[#allocation8 + $0x240] sm:$0xff]
          %v5416 = vld [vmem:[#allocation8 + $0x248] sm:$0xff]
          %v5417 = vld [vmem:[#allocation8 + $0x250] sm:$0xff]
          %v5418 = vld [vmem:[#allocation8 + $0x258] sm:$0xff]
          %v5419 = vld [vmem:[#allocation8 + $0x260] sm:$0xff]
          %v5420 = vld [vmem:[#allocation8 + $0x268] sm:$0xff]
          %v5421 = vld [vmem:[#allocation8 + $0x270] sm:$0xff]
          %v5422 = vld [vmem:[#allocation8 + $0x278] sm:$0xff]
          %v5423 = vld [vmem:[#allocation8 + $0x280] sm:$0xff]
          %v5424 = vld [vmem:[#allocation8 + $0x288] sm:$0xff]
          %v5425 = vld [vmem:[#allocation8 + $0x290] sm:$0xff]
          %v5426 = vld [vmem:[#allocation8 + $0x298] sm:$0xff]
          %v5427 = vld [vmem:[#allocation8 + $0x2a0] sm:$0xff]
          %v5428 = vld [vmem:[#allocation8 + $0x2a8] sm:$0xff]
          %v5429 = vld [vmem:[#allocation8 + $0x2b0] sm:$0xff]
          %v5430 = vld [vmem:[#allocation8 + $0x2b8] sm:$0xff]
          %v5431 = vld [vmem:[#allocation8 + $0x2c0] sm:$0xff]
          %v5432 = vld [vmem:[#allocation8 + $0x2c8] sm:$0xff]
          %v5433 = vld [vmem:[#allocation8 + $0x2d0] sm:$0xff]
          %v5434 = vld [vmem:[#allocation8 + $0x2d8] sm:$0xff]
          %v5435 = vld [vmem:[#allocation8 + $0x2e0] sm:$0xff]
          %v5436 = vld [vmem:[#allocation8 + $0x2e8] sm:$0xff]
          %v5437 = vld [vmem:[#allocation8 + $0x2f0] sm:$0xff]
          %v5438 = vld [vmem:[#allocation8 + $0x2f8] sm:$0xff]
          %v5439 = vld [vmem:[#allocation8 + $0x300] sm:$0xff]
          %v5440 = vld [vmem:[#allocation8 + $0x308] sm:$0xff]
          %v5441 = vld [vmem:[#allocation8 + $0x310] sm:$0xff]
          %v5442 = vld [vmem:[#allocation8 + $0x318] sm:$0xff]
          %v5443 = vld [vmem:[#allocation8 + $0x320] sm:$0xff]
          %v5444 = vld [vmem:[#allocation8 + $0x328] sm:$0xff]
          %v5445 = vld [vmem:[#allocation8 + $0x330] sm:$0xff]
          %v5446 = vld [vmem:[#allocation8 + $0x338] sm:$0xff]
          %v5447 = vld [vmem:[#allocation8 + $0x340] sm:$0xff]
          %v5448 = vld [vmem:[#allocation8 + $0x348] sm:$0xff]
          %v5449 = vld [vmem:[#allocation8 + $0x350] sm:$0xff]
          %v5450 = vld [vmem:[#allocation8 + $0x358] sm:$0xff]
          %v5451 = vld [vmem:[#allocation8 + $0x360] sm:$0xff]
          %v5452 = vld [vmem:[#allocation8 + $0x368] sm:$0xff]
          %v5453 = vld [vmem:[#allocation8 + $0x370] sm:$0xff]
          %v5454 = vld [vmem:[#allocation8 + $0x378] sm:$0xff]
          %v5455 = vld [vmem:[#allocation8 + $0x380] sm:$0xff]
          %v5456 = vld [vmem:[#allocation8 + $0x388] sm:$0xff]
          %v5457 = vld [vmem:[#allocation8 + $0x390] sm:$0xff]
          %v5458 = vld [vmem:[#allocation8 + $0x398] sm:$0xff]
          %v5459 = vld [vmem:[#allocation8 + $0x3a0] sm:$0xff]
          %v5460 = vld [vmem:[#allocation8 + $0x3a8] sm:$0xff]
          %v5461 = vld [vmem:[#allocation8 + $0x3b0] sm:$0xff]
          %v5462 = vld [vmem:[#allocation8 + $0x3b8] sm:$0xff]
          %v5463 = vld [vmem:[#allocation8 + $0x3c0] sm:$0xff]
          %v5464 = vld [vmem:[#allocation8 + $0x3c8] sm:$0xff]
          %v5465 = vld [vmem:[#allocation8 + $0x3d0] sm:$0xff]
          %v5466 = vld [vmem:[#allocation8 + $0x3d8] sm:$0xff]
          %v5467 = vld [vmem:[#allocation8 + $0x3e0] sm:$0xff]
          %v5468 = vld [vmem:[#allocation8 + $0x3e8] sm:$0xff]
          %v5469 = vld [vmem:[#allocation8 + $0x3f0] sm:$0xff]
          %v5470 = vld [vmem:[#allocation8 + $0x3f8] sm:$0xff]
          %v5471 = vld [vmem:[#allocation8 + $0x400] sm:$0xff]
          %v5472 = vld [vmem:[#allocation8 + $0x408] sm:$0xff]
          %v5473 = vld [vmem:[#allocation8 + $0x410] sm:$0xff]
          %v5474 = vld [vmem:[#allocation8 + $0x418] sm:$0xff]
          %v5475 = vld [vmem:[#allocation8 + $0x420] sm:$0xff]
          %v5476 = vld [vmem:[#allocation8 + $0x428] sm:$0xff]
          %v5477 = vld [vmem:[#allocation8 + $0x430] sm:$0xff]
          %v5478 = vld [vmem:[#allocation8 + $0x438] sm:$0xff]
          %v5479 = vld [vmem:[#allocation8 + $0x440] sm:$0xff]
          %v5480 = vld [vmem:[#allocation8 + $0x448] sm:$0xff]
          %v5481 = vld [vmem:[#allocation8 + $0x450] sm:$0xff]
          %v5482 = vld [vmem:[#allocation8 + $0x458] sm:$0xff]
          %v5483 = vld [vmem:[#allocation8 + $0x460] sm:$0xff]
          %v5484 = vld [vmem:[#allocation8 + $0x468] sm:$0xff]
          %v5485 = vld [vmem:[#allocation8 + $0x470] sm:$0xff]
          %v5486 = vld [vmem:[#allocation8 + $0x478] sm:$0xff]
          %v5487 = vld [vmem:[#allocation8 + $0x480] sm:$0xff]
          %v5488 = vld [vmem:[#allocation8 + $0x488] sm:$0xff]
          %v5489 = vld [vmem:[#allocation8 + $0x490] sm:$0xff]
          %v5490 = vld [vmem:[#allocation8 + $0x498] sm:$0xff]
          %v5491 = vld [vmem:[#allocation8 + $0x4a0] sm:$0xff]
          %v5492 = vld [vmem:[#allocation8 + $0x4a8] sm:$0xff]
          %v5493 = vld [vmem:[#allocation8 + $0x4b0] sm:$0xff]
          %v5494 = vld [vmem:[#allocation8 + $0x4b8] sm:$0xff]
          %v5495 = vld [vmem:[#allocation8 + $0x4c0] sm:$0xff]
          %v5496 = vld [vmem:[#allocation8 + $0x4c8] sm:$0xff]
          %v5497 = vld [vmem:[#allocation8 + $0x4d0] sm:$0xff]
          %v5498 = vld [vmem:[#allocation8 + $0x4d8] sm:$0xff]
          %v5499 = vld [vmem:[#allocation8 + $0x4e0] sm:$0xff]
          %v5500 = vld [vmem:[#allocation8 + $0x4e8] sm:$0xff]
          %v5501 = vld [vmem:[#allocation8 + $0x4f0] sm:$0xff]
          %v5502 = vld [vmem:[#allocation8 + $0x4f8] sm:$0xff]
          %v5503 = vld [vmem:[#allocation8 + $0x500] sm:$0xff]
          %v5504 = vld [vmem:[#allocation8 + $0x508] sm:$0xff]
          %v5505 = vld [vmem:[#allocation8 + $0x510] sm:$0xff]
          %v5506 = vld [vmem:[#allocation8 + $0x518] sm:$0xff]
          %v5507 = vld [vmem:[#allocation8 + $0x520] sm:$0xff]
          %v5508 = vld [vmem:[#allocation8 + $0x528] sm:$0xff]
          %v5509 = vld [vmem:[#allocation8 + $0x530] sm:$0xff]
          %v5510 = vld [vmem:[#allocation8 + $0x538] sm:$0xff]
          %v5511 = vld [vmem:[#allocation8 + $0x540] sm:$0xff]
          %v5512 = vld [vmem:[#allocation8 + $0x548] sm:$0xff]
          %v5513 = vld [vmem:[#allocation8 + $0x550] sm:$0xff]
          %v5514 = vld [vmem:[#allocation8 + $0x558] sm:$0xff]
          %v5515 = vld [vmem:[#allocation8 + $0x560] sm:$0xff]
          %v5516 = vld [vmem:[#allocation8 + $0x568] sm:$0xff]
          %v5517 = vld [vmem:[#allocation8 + $0x570] sm:$0xff]
          %v5518 = vld [vmem:[#allocation8 + $0x578] sm:$0xff]
          %v5519 = vld [vmem:[#allocation8 + $0x580] sm:$0xff]
          %v5520 = vld [vmem:[#allocation8 + $0x588] sm:$0xff]
          %v5521 = vld [vmem:[#allocation8 + $0x590] sm:$0xff]
          %v5522 = vld [vmem:[#allocation8 + $0x598] sm:$0xff]
          %v5523 = vld [vmem:[#allocation8 + $0x5a0] sm:$0xff]
          %v5524 = vld [vmem:[#allocation8 + $0x5a8] sm:$0xff]
          %v5525 = vld [vmem:[#allocation8 + $0x5b0] sm:$0xff]
          %v5526 = vld [vmem:[#allocation8 + $0x5b8] sm:$0xff]
          %v5527 = vld [vmem:[#allocation8 + $0x5c0] sm:$0xff]
          %v5528 = vld [vmem:[#allocation8 + $0x5c8] sm:$0xff]
          %v5529 = vld [vmem:[#allocation8 + $0x5d0] sm:$0xff]
          %v5530 = vld [vmem:[#allocation8 + $0x5d8] sm:$0xff]
          %v5531 = vld [vmem:[#allocation8 + $0x5e0] sm:$0xff]
          %v5532 = vld [vmem:[#allocation8 + $0x5e8] sm:$0xff]
          %v5533 = vld [vmem:[#allocation8 + $0x5f0] sm:$0xff]
          %v5534 = vld [vmem:[#allocation8 + $0x5f8] sm:$0xff]
          %v5535 = vld [vmem:[#allocation8 + $0x600] sm:$0xff]
          %v5536 = vld [vmem:[#allocation8 + $0x608] sm:$0xff]
          %v5537 = vld [vmem:[#allocation8 + $0x610] sm:$0xff]
          %v5538 = vld [vmem:[#allocation8 + $0x618] sm:$0xff]
          %v5539 = vld [vmem:[#allocation8 + $0x620] sm:$0xff]
          %v5540 = vld [vmem:[#allocation8 + $0x628] sm:$0xff]
          %v5541 = vld [vmem:[#allocation8 + $0x630] sm:$0xff]
          %v5542 = vld [vmem:[#allocation8 + $0x638] sm:$0xff]
          %v5543 = vld [vmem:[#allocation8 + $0x640] sm:$0xff]
          %v5544 = vld [vmem:[#allocation8 + $0x648] sm:$0xff]
          %v5545 = vld [vmem:[#allocation8 + $0x650] sm:$0xff]
          %v5546 = vld [vmem:[#allocation8 + $0x658] sm:$0xff]
          %v5547 = vld [vmem:[#allocation8 + $0x660] sm:$0xff]
          %v5548 = vld [vmem:[#allocation8 + $0x668] sm:$0xff]
          %v5549 = vld [vmem:[#allocation8 + $0x670] sm:$0xff]
          %v5550 = vld [vmem:[#allocation8 + $0x678] sm:$0xff]
          %v5551 = vld [vmem:[#allocation8 + $0x680] sm:$0xff]
          %v5552 = vld [vmem:[#allocation8 + $0x688] sm:$0xff]
          %v5553 = vld [vmem:[#allocation8 + $0x690] sm:$0xff]
          %v5554 = vld [vmem:[#allocation8 + $0x698] sm:$0xff]
          %v5555 = vld [vmem:[#allocation8 + $0x6a0] sm:$0xff]
          %v5556 = vld [vmem:[#allocation8 + $0x6a8] sm:$0xff]
          %v5557 = vld [vmem:[#allocation8 + $0x6b0] sm:$0xff]
          %v5558 = vld [vmem:[#allocation8 + $0x6b8] sm:$0xff]
          %v5559 = vld [vmem:[#allocation8 + $0x6c0] sm:$0xff]
          %v5560 = vld [vmem:[#allocation8 + $0x6c8] sm:$0xff]
          %v5561 = vld [vmem:[#allocation8 + $0x6d0] sm:$0xff]
          %v5562 = vld [vmem:[#allocation8 + $0x6d8] sm:$0xff]
          %v5563 = vld [vmem:[#allocation8 + $0x6e0] sm:$0xff]
          %v5564 = vld [vmem:[#allocation8 + $0x6e8] sm:$0xff]
          %v5565 = vld [vmem:[#allocation8 + $0x6f0] sm:$0xff]
          %v5566 = vld [vmem:[#allocation8 + $0x6f8] sm:$0xff]
          %v5567 = vld [vmem:[#allocation8 + $0x700] sm:$0xff]
          %v5568 = vld [vmem:[#allocation8 + $0x708] sm:$0xff]
          %v5569 = vld [vmem:[#allocation8 + $0x710] sm:$0xff]
          %v5570 = vld [vmem:[#allocation8 + $0x718] sm:$0xff]
          %v5571 = vld [vmem:[#allocation8 + $0x720] sm:$0xff]
          %v5572 = vld [vmem:[#allocation8 + $0x728] sm:$0xff]
          %v5573 = vld [vmem:[#allocation8 + $0x730] sm:$0xff]
          %v5574 = vld [vmem:[#allocation8 + $0x738] sm:$0xff]
          %v5575 = vld [vmem:[#allocation8 + $0x740] sm:$0xff]
          %v5576 = vld [vmem:[#allocation8 + $0x748] sm:$0xff]
          %v5577 = vld [vmem:[#allocation8 + $0x750] sm:$0xff]
          %v5578 = vld [vmem:[#allocation8 + $0x758] sm:$0xff]
          %v5579 = vld [vmem:[#allocation8 + $0x760] sm:$0xff]
          %v5580 = vld [vmem:[#allocation8 + $0x768] sm:$0xff]
          %v5581 = vld [vmem:[#allocation8 + $0x770] sm:$0xff]
          %v5582 = vld [vmem:[#allocation8 + $0x778] sm:$0xff]
          %v5583 = vld [vmem:[#allocation8 + $0x780] sm:$0xff]
          %v5584 = vld [vmem:[#allocation8 + $0x788] sm:$0xff]
          %v5585 = vld [vmem:[#allocation8 + $0x790] sm:$0xff]
          %v5586 = vld [vmem:[#allocation8 + $0x798] sm:$0xff]
          %v5587 = vld [vmem:[#allocation8 + $0x7a0] sm:$0xff]
          %v5588 = vld [vmem:[#allocation8 + $0x7a8] sm:$0xff]
          %v5589 = vld [vmem:[#allocation8 + $0x7b0] sm:$0xff]
          %v5590 = vld [vmem:[#allocation8 + $0x7b8] sm:$0xff]
          %v5591 = vld [vmem:[#allocation8 + $0x7c0] sm:$0xff]
          %v5592 = vld [vmem:[#allocation8 + $0x7c8] sm:$0xff]
          %v5593 = vld [vmem:[#allocation8 + $0x7d0] sm:$0xff]
          %v5594 = vld [vmem:[#allocation8 + $0x7d8] sm:$0xff]
          %v5595 = vld [vmem:[#allocation8 + $0x7e0] sm:$0xff]
          %v5596 = vld [vmem:[#allocation8 + $0x7e8] sm:$0xff]
          %v5597 = vld [vmem:[#allocation8 + $0x7f0] sm:$0xff]
          %v5598 = vld [vmem:[#allocation8 + $0x7f8] sm:$0xff]
          %v5599 = vld [vmem:[#allocation9] sm:$0xf]
          %v5601 = vlaneseq
          %v5602 = vshrl.u32 %v5601, 7
          %v5603 = vsub.s32 0, %v5602
          %v5604 = vrot.slane %v5599, %v5603
          %v5605 = vlaneseq
          %v5606 = vshrl.u32 %v5605, 7
          %v5607 = vsub.s32 1, %v5606
          %v5608 = vrot.slane %v5599, %v5607
          %v5609 = vlaneseq
          %v5610 = vshrl.u32 %v5609, 7
          %v5611 = vsub.s32 2, %v5610
          %v5612 = vrot.slane %v5599, %v5611
          %v5613 = vlaneseq
          %v5614 = vshrl.u32 %v5613, 7
          %v5615 = vsub.s32 3, %v5614
          %v5616 = vrot.slane %v5599, %v5615
          %5621 = vmatprep.subr.mxu0 %v5404
          %5622 = vmatpush1.msra.mxu0 %v5403
          %5623 = vmatprep.subr.mxu0 %v5400
          %5624 = vmatpush1.msra.mxu0 %v5399
          %5625 = vmatprep.subr.mxu0 %v5396
          %5626 = vmatpush1.msra.mxu0 %v5395
          %5627 = vmatprep.subr.mxu0 %v5392
          %5628 = vmatpush1.msra.mxu0 %v5391
          %5629 = vmatprep.subr.mxu0 %v5388
          %5630 = vmatpush1.msra.mxu0 %v5387
          %5631 = vmatprep.subr.mxu0 %v5384
          %5632 = vmatpush1.msra.mxu0 %v5383
          %5633 = vmatprep.subr.mxu0 %v5380
          %5634 = vmatpush1.msra.mxu0 %v5379
          %5635 = vmatprep.subr.mxu0 %v5376
          %5636 = vmatpush1.msra.mxu0 %v5375
          %5637 = vmatprep.subr.mxu0 %v5372
          %5638 = vmatpush1.msra.mxu0 %v5371
          %5639 = vmatprep.subr.mxu0 %v5368
          %5640 = vmatpush1.msra.mxu0 %v5367
          %5641 = vmatprep.subr.mxu0 %v5364
          %5642 = vmatpush1.msra.mxu0 %v5363
          %5643 = vmatprep.subr.mxu0 %v5360
          %5644 = vmatpush1.msra.mxu0 %v5359
          %5645 = vmatprep.subr.mxu0 %v5356
          %5646 = vmatpush1.msra.mxu0 %v5355
          %5647 = vmatprep.subr.mxu0 %v5352
          %5648 = vmatpush1.msra.mxu0 %v5351
          %5649 = vmatprep.subr.mxu0 %v5348
          %5650 = vmatpush1.msra.mxu0 %v5347
          %5651 = vmatprep.subr.mxu0 %v5344
          %5652 = vmatpush1.msra.mxu0 %v5343
          %5653 = vmatprep.subr.mxu0 %v5468
          %5654 = vmatpush2.msra.mxu0 %v5467
          %5655 = vmatprep.subr.mxu0 %v5464
          %5656 = vmatpush2.msra.mxu0 %v5463
          %5657 = vmatprep.subr.mxu0 %v5460
          %5658 = vmatpush2.msra.mxu0 %v5459
          %5659 = vmatprep.subr.mxu0 %v5456
          %5660 = vmatpush2.msra.mxu0 %v5455
          %5661 = vmatprep.subr.mxu0 %v5452
          %5662 = vmatpush2.msra.mxu0 %v5451
          %5663 = vmatprep.subr.mxu0 %v5448
          %5664 = vmatpush2.msra.mxu0 %v5447
          %5665 = vmatprep.subr.mxu0 %v5444
          %5666 = vmatpush2.msra.mxu0 %v5443
          %5667 = vmatprep.subr.mxu0 %v5440
          %5668 = vmatpush2.msra.mxu0 %v5439
          %5669 = vmatprep.subr.mxu0 %v5436
          %5670 = vmatpush2.msra.mxu0 %v5435
          %5671 = vmatprep.subr.mxu0 %v5432
          %5672 = vmatpush2.msra.mxu0 %v5431
          %5673 = vmatprep.subr.mxu0 %v5428
          %5674 = vmatpush2.msra.mxu0 %v5427
          %5675 = vmatprep.subr.mxu0 %v5424
          %5676 = vmatpush2.msra.mxu0 %v5423
          %5677 = vmatprep.subr.mxu0 %v5420
          %5678 = vmatpush2.msra.mxu0 %v5419
          %5679 = vmatprep.subr.mxu0 %v5416
          %5680 = vmatpush2.msra.mxu0 %v5415
          %5681 = vmatprep.subr.mxu0 %v5412
          %5682 = vmatpush2.msra.mxu0 %v5411
          %5683 = vmatprep.subr.mxu0 %v5408
          %5684 = vmatpush2.msra.mxu0 %v5407
          %5685 = vmatprep.mubr.f32.mxu0 %v5340
          %5686 = vmatmul.mubr.f32.gmra.mxu0 %v5339
          %v5687 = vpop.f32.mrf.mxu0
          %v5688 = vadd.f32 %v5604, %v5687
          %v5689 = vpop.f32.mrf.mxu0
          %v5690 = vadd.f32 %v5608, %v5689
          %5691 = vdwg.mxu0
          %5692 = vmatprep.subr.mxu0 %v5532
          %5693 = vmatpush1.msra.mxu0 %v5531
          %5694 = vmatprep.subr.mxu0 %v5528
          %5695 = vmatpush1.msra.mxu0 %v5527
          %5696 = vmatprep.subr.mxu0 %v5524
          %5697 = vmatpush1.msra.mxu0 %v5523
          %5698 = vmatprep.subr.mxu0 %v5520
          %5699 = vmatpush1.msra.mxu0 %v5519
          %5700 = vmatprep.subr.mxu0 %v5516
          %5701 = vmatpush1.msra.mxu0 %v5515
          %5702 = vmatprep.subr.mxu0 %v5512
          %5703 = vmatpush1.msra.mxu0 %v5511
          %5704 = vmatprep.subr.mxu0 %v5508
          %5705 = vmatpush1.msra.mxu0 %v5507
          %5706 = vmatprep.subr.mxu0 %v5504
          %5707 = vmatpush1.msra.mxu0 %v5503
          %5708 = vmatprep.subr.mxu0 %v5500
          %5709 = vmatpush1.msra.mxu0 %v5499
          %5710 = vmatprep.subr.mxu0 %v5496
          %5711 = vmatpush1.msra.mxu0 %v5495
          %5712 = vmatprep.subr.mxu0 %v5492
          %5713 = vmatpush1.msra.mxu0 %v5491
          %5714 = vmatprep.subr.mxu0 %v5488
          %5715 = vmatpush1.msra.mxu0 %v5487
          %5716 = vmatprep.subr.mxu0 %v5484
          %5717 = vmatpush1.msra.mxu0 %v5483
          %5718 = vmatprep.subr.mxu0 %v5480
          %5719 = vmatpush1.msra.mxu0 %v5479
          %5720 = vmatprep.subr.mxu0 %v5476
          %5721 = vmatpush1.msra.mxu0 %v5475
          %5722 = vmatprep.subr.mxu0 %v5472
          %5723 = vmatpush1.msra.mxu0 %v5471
          %5724 = vmatprep.subr.mxu0 %v5596
          %5725 = vmatpush2.msra.mxu0 %v5595
          %5726 = vmatprep.subr.mxu0 %v5592
          %5727 = vmatpush2.msra.mxu0 %v5591
          %5728 = vmatprep.subr.mxu0 %v5588
          %5729 = vmatpush2.msra.mxu0 %v5587
          %5730 = vmatprep.subr.mxu0 %v5584
          %5731 = vmatpush2.msra.mxu0 %v5583
          %5732 = vmatprep.subr.mxu0 %v5580
          %5733 = vmatpush2.msra.mxu0 %v5579
          %5734 = vmatprep.subr.mxu0 %v5576
          %5735 = vmatpush2.msra.mxu0 %v5575
          %5736 = vmatprep.subr.mxu0 %v5572
          %5737 = vmatpush2.msra.mxu0 %v5571
          %5738 = vmatprep.subr.mxu0 %v5568
          %5739 = vmatpush2.msra.mxu0 %v5567
          %5740 = vmatprep.subr.mxu0 %v5564
          %5741 = vmatpush2.msra.mxu0 %v5563
          %5742 = vmatprep.subr.mxu0 %v5560
          %5743 = vmatpush2.msra.mxu0 %v5559
          %5744 = vmatprep.subr.mxu0 %v5556
          %5745 = vmatpush2.msra.mxu0 %v5555
          %5746 = vmatprep.subr.mxu0 %v5552
          %5747 = vmatpush2.msra.mxu0 %v5551
          %5748 = vmatprep.subr.mxu0 %v5548
          %5749 = vmatpush2.msra.mxu0 %v5547
          %5750 = vmatprep.subr.mxu0 %v5544
          %5751 = vmatpush2.msra.mxu0 %v5543
          %5752 = vmatprep.subr.mxu0 %v5540
          %5753 = vmatpush2.msra.mxu0 %v5539
          %5754 = vmatprep.subr.mxu0 %v5536
          %5755 = vmatpush2.msra.mxu0 %v5535
          %5756 = vmatprep.mubr.f32.mxu0 %v5342
          %5757 = vmatmul.mubr.f32.gmra.mxu0 %v5341
          %v5758 = vpop.f32.mrf.mxu0
          %v5759 = vadd.f32 %v5688, %v5758
          %v5760 = vpop.f32.mrf.mxu0
          %v5761 = vadd.f32 %v5690, %v5760
          %5762 = vdwg.mxu0
          %5763 = vmatprep.subr.mxu0 %v5406
          %5764 = vmatpush1.msra.mxu0 %v5405
          %5765 = vmatprep.subr.mxu0 %v5402
          %5766 = vmatpush1.msra.mxu0 %v5401
          %5767 = vmatprep.subr.mxu0 %v5398
          %5768 = vmatpush1.msra.mxu0 %v5397
          %5769 = vmatprep.subr.mxu0 %v5394
          %5770 = vmatpush1.msra.mxu0 %v5393
          %5771 = vmatprep.subr.mxu0 %v5390
          %5772 = vmatpush1.msra.mxu0 %v5389
          %5773 = vmatprep.subr.mxu0 %v5386
          %5774 = vmatpush1.msra.mxu0 %v5385
          %5775 = vmatprep.subr.mxu0 %v5382
          %5776 = vmatpush1.msra.mxu0 %v5381
          %5777 = vmatprep.subr.mxu0 %v5378
          %5778 = vmatpush1.msra.mxu0 %v5377
          %5779 = vmatprep.subr.mxu0 %v5374
          %5780 = vmatpush1.msra.mxu0 %v5373
          %5781 = vmatprep.subr.mxu0 %v5370
          %5782 = vmatpush1.msra.mxu0 %v5369
          %5783 = vmatprep.subr.mxu0 %v5366
          %5784 = vmatpush1.msra.mxu0 %v5365
          %5785 = vmatprep.subr.mxu0 %v5362
          %5786 = vmatpush1.msra.mxu0 %v5361
          %5787 = vmatprep.subr.mxu0 %v5358
          %5788 = vmatpush1.msra.mxu0 %v5357
          %5789 = vmatprep.subr.mxu0 %v5354
          %5790 = vmatpush1.msra.mxu0 %v5353
          %5791 = vmatprep.subr.mxu0 %v5350
          %5792 = vmatpush1.msra.mxu0 %v5349
          %5793 = vmatprep.subr.mxu0 %v5346
          %5794 = vmatpush1.msra.mxu0 %v5345
          %5795 = vmatprep.subr.mxu0 %v5470
          %5796 = vmatpush2.msra.mxu0 %v5469
          %5797 = vmatprep.subr.mxu0 %v5466
          %5798 = vmatpush2.msra.mxu0 %v5465
          %5799 = vmatprep.subr.mxu0 %v5462
          %5800 = vmatpush2.msra.mxu0 %v5461
          %5801 = vmatprep.subr.mxu0 %v5458
          %5802 = vmatpush2.msra.mxu0 %v5457
          %5803 = vmatprep.subr.mxu0 %v5454
          %5804 = vmatpush2.msra.mxu0 %v5453
          %5805 = vmatprep.subr.mxu0 %v5450
          %5806 = vmatpush2.msra.mxu0 %v5449
          %5807 = vmatprep.subr.mxu0 %v5446
          %5808 = vmatpush2.msra.mxu0 %v5445
          %5809 = vmatprep.subr.mxu0 %v5442
          %5810 = vmatpush2.msra.mxu0 %v5441
          %5811 = vmatprep.subr.mxu0 %v5438
          %5812 = vmatpush2.msra.mxu0 %v5437
          %5813 = vmatprep.subr.mxu0 %v5434
          %5814 = vmatpush2.msra.mxu0 %v5433
          %5815 = vmatprep.subr.mxu0 %v5430
          %5816 = vmatpush2.msra.mxu0 %v5429
          %5817 = vmatprep.subr.mxu0 %v5426
          %5818 = vmatpush2.msra.mxu0 %v5425
          %5819 = vmatprep.subr.mxu0 %v5422
          %5820 = vmatpush2.msra.mxu0 %v5421
          %5821 = vmatprep.subr.mxu0 %v5418
          %5822 = vmatpush2.msra.mxu0 %v5417
          %5823 = vmatprep.subr.mxu0 %v5414
          %5824 = vmatpush2.msra.mxu0 %v5413
          %5825 = vmatprep.subr.mxu0 %v5410
          %5826 = vmatpush2.msra.mxu0 %v5409
          %5827 = vmatprep.mubr.f32.mxu0 %v5340
          %5828 = vmatmul.mubr.f32.gmra.mxu0 %v5339
          %v5829 = vpop.f32.mrf.mxu0
          %v5830 = vadd.f32 %v5612, %v5829
          %v5831 = vpop.f32.mrf.mxu0
          %v5832 = vadd.f32 %v5616, %v5831
          %5833 = vdwg.mxu0
          %5834 = vmatprep.subr.mxu0 %v5534
          %5835 = vmatpush1.msra.mxu0 %v5533
          %5836 = vmatprep.subr.mxu0 %v5530
          %5837 = vmatpush1.msra.mxu0 %v5529
          %5838 = vmatprep.subr.mxu0 %v5526
          %5839 = vmatpush1.msra.mxu0 %v5525
          %5840 = vmatprep.subr.mxu0 %v5522
          %5841 = vmatpush1.msra.mxu0 %v5521
          %5842 = vmatprep.subr.mxu0 %v5518
          %5843 = vmatpush1.msra.mxu0 %v5517
          %5844 = vmatprep.subr.mxu0 %v5514
          %5845 = vmatpush1.msra.mxu0 %v5513
          %5846 = vmatprep.subr.mxu0 %v5510
          %5847 = vmatpush1.msra.mxu0 %v5509
          %5848 = vmatprep.subr.mxu0 %v5506
          %5849 = vmatpush1.msra.mxu0 %v5505
          %5850 = vmatprep.subr.mxu0 %v5502
          %5851 = vmatpush1.msra.mxu0 %v5501
          %5852 = vmatprep.subr.mxu0 %v5498
          %5853 = vmatpush1.msra.mxu0 %v5497
          %5854 = vmatprep.subr.mxu0 %v5494
          %5855 = vmatpush1.msra.mxu0 %v5493
          %5856 = vmatprep.subr.mxu0 %v5490
          %5857 = vmatpush1.msra.mxu0 %v5489
          %5858 = vmatprep.subr.mxu0 %v5486
          %5859 = vmatpush1.msra.mxu0 %v5485
          %5860 = vmatprep.subr.mxu0 %v5482
          %5861 = vmatpush1.msra.mxu0 %v5481
          %5862 = vmatprep.subr.mxu0 %v5478
          %5863 = vmatpush1.msra.mxu0 %v5477
          %5864 = vmatprep.subr.mxu0 %v5474
          %5865 = vmatpush1.msra.mxu0 %v5473
          %5866 = vmatprep.subr.mxu0 %v5598
          %5867 = vmatpush2.msra.mxu0 %v5597
          %5868 = vmatprep.subr.mxu0 %v5594
          %5869 = vmatpush2.msra.mxu0 %v5593
          %5870 = vmatprep.subr.mxu0 %v5590
          %5871 = vmatpush2.msra.mxu0 %v5589
          %5872 = vmatprep.subr.mxu0 %v5586
          %5873 = vmatpush2.msra.mxu0 %v5585
          %5874 = vmatprep.subr.mxu0 %v5582
          %5875 = vmatpush2.msra.mxu0 %v5581
          %5876 = vmatprep.subr.mxu0 %v5578
          %5877 = vmatpush2.msra.mxu0 %v5577
          %5878 = vmatprep.subr.mxu0 %v5574
          %5879 = vmatpush2.msra.mxu0 %v5573
          %5880 = vmatprep.subr.mxu0 %v5570
          %5881 = vmatpush2.msra.mxu0 %v5569
          %5882 = vmatprep.subr.mxu0 %v5566
          %5883 = vmatpush2.msra.mxu0 %v5565
          %5884 = vmatprep.subr.mxu0 %v5562
          %5885 = vmatpush2.msra.mxu0 %v5561
          %5886 = vmatprep.subr.mxu0 %v5558
          %5887 = vmatpush2.msra.mxu0 %v5557
          %5888 = vmatprep.subr.mxu0 %v5554
          %5889 = vmatpush2.msra.mxu0 %v5553
          %5890 = vmatprep.subr.mxu0 %v5550
          %5891 = vmatpush2.msra.mxu0 %v5549
          %5892 = vmatprep.subr.mxu0 %v5546
          %5893 = vmatpush2.msra.mxu0 %v5545
          %5894 = vmatprep.subr.mxu0 %v5542
          %5895 = vmatpush2.msra.mxu0 %v5541
          %5896 = vmatprep.subr.mxu0 %v5538
          %5897 = vmatpush2.msra.mxu0 %v5537
          %5898 = vmatprep.mubr.f32.mxu0 %v5342
          %5899 = vmatmul.mubr.f32.gmra.mxu0 %v5341
          %v5900 = vpop.f32.mrf.mxu0
          %v5901 = vadd.f32 %v5830, %v5900
          %v5902 = vpop.f32.mrf.mxu0
          %v5903 = vadd.f32 %v5832, %v5902
          %5904 = vdwg.mxu0
          %v5905 = vmax.f32 %v5759, 0.0
          %v5906 = vmax.f32 %v5761, 0.0
          %v5907 = vmax.f32 %v5901, 0.0
          %v5908 = vmax.f32 %v5903, 0.0
          %v5909 = vld [vmem:[%s5] sm:$0xff]
          %v5910 = vld [vmem:[%s5 + $0x8] sm:$0xff]
          %v5911 = vld [vmem:[%s5 + $0x10] sm:$0xff]
          %v5912 = vld [vmem:[%s5 + $0x18] sm:$0xff]
          %v5913 = vld [vmem:[%s5 + $0x20] sm:$0xff]
          %v5914 = vld [vmem:[%s5 + $0x28] sm:$0xff]
          %v5915 = vld [vmem:[%s5 + $0x30] sm:$0xff]
          %v5916 = vld [vmem:[%s5 + $0x38] sm:$0xff]
          %v5917 = vld [vmem:[%s5 + $0x40] sm:$0xff]
          %v5918 = vld [vmem:[%s5 + $0x48] sm:$0xff]
          %v5919 = vld [vmem:[%s5 + $0x50] sm:$0xff]
          %v5920 = vld [vmem:[%s5 + $0x58] sm:$0xff]
          %v5921 = vld [vmem:[%s5 + $0x60] sm:$0xff]
          %v5922 = vld [vmem:[%s5 + $0x68] sm:$0xff]
          %v5923 = vld [vmem:[%s5 + $0x70] sm:$0xff]
          %v5924 = vld [vmem:[%s5 + $0x78] sm:$0xff]
          %v5925 = vld [vmem:[%s5 + $0x80] sm:$0xff]
          %v5926 = vld [vmem:[%s5 + $0x88] sm:$0xff]
          %v5927 = vld [vmem:[%s5 + $0x90] sm:$0xff]
          %v5928 = vld [vmem:[%s5 + $0x98] sm:$0xff]
          %v5929 = vld [vmem:[%s5 + $0xa0] sm:$0xff]
          %v5930 = vld [vmem:[%s5 + $0xa8] sm:$0xff]
          %v5931 = vld [vmem:[%s5 + $0xb0] sm:$0xff]
          %v5932 = vld [vmem:[%s5 + $0xb8] sm:$0xff]
          %v5933 = vld [vmem:[%s5 + $0xc0] sm:$0xff]
          %v5934 = vld [vmem:[%s5 + $0xc8] sm:$0xff]
          %v5935 = vld [vmem:[%s5 + $0xd0] sm:$0xff]
          %v5936 = vld [vmem:[%s5 + $0xd8] sm:$0xff]
          %v5937 = vld [vmem:[%s5 + $0xe0] sm:$0xff]
          %v5938 = vld [vmem:[%s5 + $0xe8] sm:$0xff]
          %v5939 = vld [vmem:[%s5 + $0xf0] sm:$0xff]
          %v5940 = vld [vmem:[%s5 + $0xf8] sm:$0xff]
          %v5941 = vld [vmem:[%s5 + $0x100] sm:$0xff]
          %v5942 = vld [vmem:[%s5 + $0x108] sm:$0xff]
          %v5943 = vld [vmem:[%s5 + $0x110] sm:$0xff]
          %v5944 = vld [vmem:[%s5 + $0x118] sm:$0xff]
          %v5945 = vld [vmem:[%s5 + $0x120] sm:$0xff]
          %v5946 = vld [vmem:[%s5 + $0x128] sm:$0xff]
          %v5947 = vld [vmem:[%s5 + $0x130] sm:$0xff]
          %v5948 = vld [vmem:[%s5 + $0x138] sm:$0xff]
          %v5949 = vld [vmem:[%s5 + $0x140] sm:$0xff]
          %v5950 = vld [vmem:[%s5 + $0x148] sm:$0xff]
          %v5951 = vld [vmem:[%s5 + $0x150] sm:$0xff]
          %v5952 = vld [vmem:[%s5 + $0x158] sm:$0xff]
          %v5953 = vld [vmem:[%s5 + $0x160] sm:$0xff]
          %v5954 = vld [vmem:[%s5 + $0x168] sm:$0xff]
          %v5955 = vld [vmem:[%s5 + $0x170] sm:$0xff]
          %v5956 = vld [vmem:[%s5 + $0x178] sm:$0xff]
          %v5957 = vld [vmem:[%s5 + $0x180] sm:$0xff]
          %v5958 = vld [vmem:[%s5 + $0x188] sm:$0xff]
          %v5959 = vld [vmem:[%s5 + $0x190] sm:$0xff]
          %v5960 = vld [vmem:[%s5 + $0x198] sm:$0xff]
          %v5961 = vld [vmem:[%s5 + $0x1a0] sm:$0xff]
          %v5962 = vld [vmem:[%s5 + $0x1a8] sm:$0xff]
          %v5963 = vld [vmem:[%s5 + $0x1b0] sm:$0xff]
          %v5964 = vld [vmem:[%s5 + $0x1b8] sm:$0xff]
          %v5965 = vld [vmem:[%s5 + $0x1c0] sm:$0xff]
          %v5966 = vld [vmem:[%s5 + $0x1c8] sm:$0xff]
          %v5967 = vld [vmem:[%s5 + $0x1d0] sm:$0xff]
          %v5968 = vld [vmem:[%s5 + $0x1d8] sm:$0xff]
          %v5969 = vld [vmem:[%s5 + $0x1e0] sm:$0xff]
          %v5970 = vld [vmem:[%s5 + $0x1e8] sm:$0xff]
          %v5971 = vld [vmem:[%s5 + $0x1f0] sm:$0xff]
          %v5972 = vld [vmem:[%s5 + $0x1f8] sm:$0xff]
          %v5973 = vld [vmem:[#allocation3] sm:$0x1]
          %v5975 = vlaneseq
          %v5976 = vshrl.u32 %v5975, 7
          %v5977 = vsub.s32 0, %v5976
          %v5978 = vrot.slane %v5973, %v5977
          %5980 = vmatprep.subr.mxu0 0.0
          %5981 = vmatpush1.msra.mxu0 %v5924
          %5982 = vmatprep.subr.mxu0 0.0
          %5983 = vmatpush1.msra.mxu0 %v5923
          %5984 = vmatprep.subr.mxu0 0.0
          %5985 = vmatpush1.msra.mxu0 %v5922
          %5986 = vmatprep.subr.mxu0 0.0
          %5987 = vmatpush1.msra.mxu0 %v5921
          %5988 = vmatprep.subr.mxu0 0.0
          %5989 = vmatpush1.msra.mxu0 %v5920
          %5990 = vmatprep.subr.mxu0 0.0
          %5991 = vmatpush1.msra.mxu0 %v5919
          %5992 = vmatprep.subr.mxu0 0.0
          %5993 = vmatpush1.msra.mxu0 %v5918
          %5994 = vmatprep.subr.mxu0 0.0
          %5995 = vmatpush1.msra.mxu0 %v5917
          %5996 = vmatprep.subr.mxu0 0.0
          %5997 = vmatpush1.msra.mxu0 %v5916
          %5998 = vmatprep.subr.mxu0 0.0
          %5999 = vmatpush1.msra.mxu0 %v5915
          %6000 = vmatprep.subr.mxu0 0.0
          %6001 = vmatpush1.msra.mxu0 %v5914
          %6002 = vmatprep.subr.mxu0 0.0
          %6003 = vmatpush1.msra.mxu0 %v5913
          %6004 = vmatprep.subr.mxu0 0.0
          %6005 = vmatpush1.msra.mxu0 %v5912
          %6006 = vmatprep.subr.mxu0 0.0
          %6007 = vmatpush1.msra.mxu0 %v5911
          %6008 = vmatprep.subr.mxu0 0.0
          %6009 = vmatpush1.msra.mxu0 %v5910
          %6010 = vmatprep.subr.mxu0 0.0
          %6011 = vmatpush1.msra.mxu0 %v5909
          %6012 = vmatprep.subr.mxu0 0.0
          %6013 = vmatpush2.msra.mxu0 %v5940
          %6014 = vmatprep.subr.mxu0 0.0
          %6015 = vmatpush2.msra.mxu0 %v5939
          %6016 = vmatprep.subr.mxu0 0.0
          %6017 = vmatpush2.msra.mxu0 %v5938
          %6018 = vmatprep.subr.mxu0 0.0
          %6019 = vmatpush2.msra.mxu0 %v5937
          %6020 = vmatprep.subr.mxu0 0.0
          %6021 = vmatpush2.msra.mxu0 %v5936
          %6022 = vmatprep.subr.mxu0 0.0
          %6023 = vmatpush2.msra.mxu0 %v5935
          %6024 = vmatprep.subr.mxu0 0.0
          %6025 = vmatpush2.msra.mxu0 %v5934
          %6026 = vmatprep.subr.mxu0 0.0
          %6027 = vmatpush2.msra.mxu0 %v5933
          %6028 = vmatprep.subr.mxu0 0.0
          %6029 = vmatpush2.msra.mxu0 %v5932
          %6030 = vmatprep.subr.mxu0 0.0
          %6031 = vmatpush2.msra.mxu0 %v5931
          %6032 = vmatprep.subr.mxu0 0.0
          %6033 = vmatpush2.msra.mxu0 %v5930
          %6034 = vmatprep.subr.mxu0 0.0
          %6035 = vmatpush2.msra.mxu0 %v5929
          %6036 = vmatprep.subr.mxu0 0.0
          %6037 = vmatpush2.msra.mxu0 %v5928
          %6038 = vmatprep.subr.mxu0 0.0
          %6039 = vmatpush2.msra.mxu0 %v5927
          %6040 = vmatprep.subr.mxu0 0.0
          %6041 = vmatpush2.msra.mxu0 %v5926
          %6042 = vmatprep.subr.mxu0 0.0
          %6043 = vmatpush2.msra.mxu0 %v5925
          %6044 = vmatprep.mubr.f32.mxu0 %v5906
          %6045 = vmatmul.mubr.f32.gmra.mxu0 %v5905
          %v6046 = vpop.f32.mrf.mxu0
          %v6047 = vadd.f32 %v5978, %v6046
          %v6048 = vpop.f32.mrf.mxu0
          %6049 = vdwg.mxu0
          %6050 = vmatprep.subr.mxu0 0.0
          %6051 = vmatpush1.msra.mxu0 %v5956
          %6052 = vmatprep.subr.mxu0 0.0
          %6053 = vmatpush1.msra.mxu0 %v5955
          %6054 = vmatprep.subr.mxu0 0.0
          %6055 = vmatpush1.msra.mxu0 %v5954
          %6056 = vmatprep.subr.mxu0 0.0
          %6057 = vmatpush1.msra.mxu0 %v5953
          %6058 = vmatprep.subr.mxu0 0.0
          %6059 = vmatpush1.msra.mxu0 %v5952
          %6060 = vmatprep.subr.mxu0 0.0
          %6061 = vmatpush1.msra.mxu0 %v5951
          %6062 = vmatprep.subr.mxu0 0.0
          %6063 = vmatpush1.msra.mxu0 %v5950
          %6064 = vmatprep.subr.mxu0 0.0
          %6065 = vmatpush1.msra.mxu0 %v5949
          %6066 = vmatprep.subr.mxu0 0.0
          %6067 = vmatpush1.msra.mxu0 %v5948
          %6068 = vmatprep.subr.mxu0 0.0
          %6069 = vmatpush1.msra.mxu0 %v5947
          %6070 = vmatprep.subr.mxu0 0.0
          %6071 = vmatpush1.msra.mxu0 %v5946
          %6072 = vmatprep.subr.mxu0 0.0
          %6073 = vmatpush1.msra.mxu0 %v5945
          %6074 = vmatprep.subr.mxu0 0.0
          %6075 = vmatpush1.msra.mxu0 %v5944
          %6076 = vmatprep.subr.mxu0 0.0
          %6077 = vmatpush1.msra.mxu0 %v5943
          %6078 = vmatprep.subr.mxu0 0.0
          %6079 = vmatpush1.msra.mxu0 %v5942
          %6080 = vmatprep.subr.mxu0 0.0
          %6081 = vmatpush1.msra.mxu0 %v5941
          %6082 = vmatprep.subr.mxu0 0.0
          %6083 = vmatpush2.msra.mxu0 %v5972
          %6084 = vmatprep.subr.mxu0 0.0
          %6085 = vmatpush2.msra.mxu0 %v5971
          %6086 = vmatprep.subr.mxu0 0.0
          %6087 = vmatpush2.msra.mxu0 %v5970
          %6088 = vmatprep.subr.mxu0 0.0
          %6089 = vmatpush2.msra.mxu0 %v5969
          %6090 = vmatprep.subr.mxu0 0.0
          %6091 = vmatpush2.msra.mxu0 %v5968
          %6092 = vmatprep.subr.mxu0 0.0
          %6093 = vmatpush2.msra.mxu0 %v5967
          %6094 = vmatprep.subr.mxu0 0.0
          %6095 = vmatpush2.msra.mxu0 %v5966
          %6096 = vmatprep.subr.mxu0 0.0
          %6097 = vmatpush2.msra.mxu0 %v5965
          %6098 = vmatprep.subr.mxu0 0.0
          %6099 = vmatpush2.msra.mxu0 %v5964
          %6100 = vmatprep.subr.mxu0 0.0
          %6101 = vmatpush2.msra.mxu0 %v5963
          %6102 = vmatprep.subr.mxu0 0.0
          %6103 = vmatpush2.msra.mxu0 %v5962
          %6104 = vmatprep.subr.mxu0 0.0
          %6105 = vmatpush2.msra.mxu0 %v5961
          %6106 = vmatprep.subr.mxu0 0.0
          %6107 = vmatpush2.msra.mxu0 %v5960
          %6108 = vmatprep.subr.mxu0 0.0
          %6109 = vmatpush2.msra.mxu0 %v5959
          %6110 = vmatprep.subr.mxu0 0.0
          %6111 = vmatpush2.msra.mxu0 %v5958
          %6112 = vmatprep.subr.mxu0 0.0
          %6113 = vmatpush2.msra.mxu0 %v5957
          %6114 = vmatprep.mubr.f32.mxu0 %v5908
          %6115 = vmatmul.mubr.f32.gmra.mxu0 %v5907
          %v6116 = vpop.f32.mrf.mxu0
          %v6117 = vadd.f32 %v6047, %v6116
          %v6118 = vpop.f32.mrf.mxu0
          %6119 = vdwg.mxu0
          %v6120 = vxor.u32 %v6117, 2147483648
          %v6121 = vmul.f32 %v6120, 1.442695
          %v6122 = vpow.pop %v6121
          %v6123 = vadd.f32 %v6122, 1.0
          %v6124 = vrcp.pop %v6123
          %v6125 = vmul.f32 1.0, %v6124
          %vm6126 = vcmask 7168
          %6127 = vst.msk [vmem:[%s388] sm:$0xff] %vm6126, %v6125
        $region72: #{_forward_impl.1} parent=47 // pred_fallthru
          _
        %p6128 = scmp.lt.s32.totalorder %s29, 0
        %s6129 = scalar_select %p6128, %s29, 0
        %s6130 = smul.addr %s6129, 8
        %s6131 = scalar_lea.vmem %s7, %s6130
        // Predicated region
        $region73: #{_forward_impl.1} parent=47 // pred_check
          %p6132 = pneg %p214
        $region74: #{_forward_impl.1} parent=47 // pred_check_branch
          %6134 = sbr.rel (%p6132) target = $region76
        $region75: #{_forward_impl.1} parent=47 // pred_region
          _
        $region76: #{_forward_impl.1} parent=47 // pred_fallthru
          _
        // Predicated region
        $region77: #{_forward_impl.1} parent=47 // pred_check
          %p6135 = pneg %p214
        $region78: #{_forward_impl.1} parent=47 // pred_check_branch
          %6137 = sbr.rel (%p6135) target = $region80
        $region79: #{_forward_impl.1} parent=47 // pred_region
          %p6138 = scmp.lt.s32.totalorder %s29, 0
          %s6139 = scalar_select %p6138, %s29, 0
          %s6140 = smul.addr %s6139, 8
          %s6141 = scalar_lea.vmem %s7, %s6140
        $region80: #{_forward_impl.1} parent=47 // pred_fallthru
          _
      $region48: #{_forward_impl.1} parent=5 // pred_fallthru
        _
      %p6142 = scmp.le.s32.totalorder 2, %s20
      // Predicated region
      $region81: #{_forward_impl.1} parent=5 // pred_check
        %p6143 = pneg %p6142
      $region82: #{_forward_impl.1} parent=5 // pred_check_branch
        %6145 = sbr.rel (%p6143) target = $region84
      $region83: #{_forward_impl.1} parent=5 // pred_region
        %s6146 = ssub.s32 %s20, 2
      $region84: #{_forward_impl.1} parent=5 // pred_fallthru
        _
    $region6: #{_forward_impl.1} parent=1 // loop_footer
      %s24 = sadd.s32 1, %s20
    $region7: #{_forward_impl.1} parent=1 // loop_footer_branch
      %19 = sbr.rel target = $region3
    $region8: #{_forward_impl.1} parent=1 // loop_exit
      _
    %6147 = vsyncpa [#allocation5], 1
    %s6148 = scalar_lea.sflag [#allocation5], 1
    %6149 = vsyncpa %s6148, 1
    %6150 = vsyncpa [#allocation7], 1
    %6151 = vsyncpa [#allocation10], 1

</llo_original>
